<compile_context>
chip_gen: v7x
topology: tpu7x:2x2x1
jax: 0.10.0
libtpu: 0.0.40
codegen_flags: <defaults>
</compile_context>

<pallas_src>
import jax
import jax.numpy as jnp
import numpy as np
from jax.experimental import pallas as pl
from jax.experimental.pallas import tpu as pltpu


# ----------------------------------------------------------------------------
# Kernel 1: the recurrent loop (attention + LSTMCell), whole sequence per batch
# tile. Grid = (B_pad // TB,) "parallel".
# ----------------------------------------------------------------------------
def decoder_steps_kernel(eg_ref, feats_ref, uhs_ref, h0_ref, c0_ref,
                         wfused_ref, wb_ref, aw_ref, ab_ref, wihc_ref,
                         hs_ref, alphas_ref,
                         h_sc, c_sc):
    S = eg_ref.shape[0]
    D = h_sc.shape[1]
    A = wb_ref.shape[1]

    h_sc[...] = h0_ref[...]
    c_sc[...] = c0_ref[...]

    def step(s, carry):
        h = h_sc[...]
        c = c_sc[...]

        # One fused h-dependent matmul: h @ [W_att | W_hh] -> (B, A + 4D).
        hw = jnp.dot(h.astype(jnp.bfloat16), wfused_ref[...],
                     preferred_element_type=jnp.float32)
        w_ah = hw[:, :A] + wb_ref[...]                                          # (B, A)
        h_gates = hw[:, A:]                                                     # (B, 4D)

        # ---- Bahdanau attention ----
        combined = jnp.tanh(uhs_ref[...] + w_ah[:, None, :])                    # (B, N, A)
        # XLU lane-reduce rides a separate VLIW slot; do NOT convert to a 1-col matmul.
        scores = jnp.sum(combined * aw_ref[...][None, :, :], axis=-1) + ab_ref[...]  # (B, N)
        m = jnp.max(scores, axis=1, keepdims=True)
        e = jnp.exp(scores - m)
        denom = jnp.sum(e, axis=1, keepdims=True)
        alpha = e * pl.reciprocal(denom, approx=True)                            # (B, N)
        context = jnp.sum(feats_ref[...] * alpha[:, :, None], axis=1)            # (B, E)

        # ---- LSTMCell (PyTorch gate order i, f, g, o) ----
        # embed @ W_ih[:Emb] + b_ih + b_hh is precomputed per step in eg_ref.
        gates = (eg_ref[s]
                 + jnp.dot(context.astype(jnp.bfloat16), wihc_ref[...],
                           preferred_element_type=jnp.float32)
                 + h_gates)                                                      # (B, 4D)
        i_g = jax.nn.sigmoid(gates[:, 0:D])
        f_g = jax.nn.sigmoid(gates[:, D:2 * D])
        g_g = jnp.tanh(gates[:, 2 * D:3 * D])
        o_g = jax.nn.sigmoid(gates[:, 3 * D:4 * D])
        c_new = f_g * c + i_g * g_g
        h_new = o_g * jnp.tanh(c_new)
        h_sc[...] = h_new
        c_sc[...] = c_new

        hs_ref[s] = h_new.astype(hs_ref.dtype)     # bf16 lane-dense (B, D) store
        alphas_ref[s] = alpha                      # single masked (B, N) store
        return carry

    jax.lax.fori_loop(0, S, step, 0, unroll=True)


# ----------------------------------------------------------------------------
# Kernel 2: batched vocab projection over all timesteps at once (batch-major M).
# ----------------------------------------------------------------------------
def vocab_proj_kernel(h_ref, w_ref, b_ref, o_ref):
    o_ref[...] = (jnp.dot(h_ref[...], w_ref[...],
                          preferred_element_type=jnp.float32) + b_ref[...])


def decoder_forward(params, features, captions):
    """Pallas implementation of DecoderRNN.forward(features, captions)."""
    B, T = captions.shape
    S = T - 1                               # seq_length = len(captions[0]) - 1
    _, N, E = features.shape
    Emb = params["embedding"].shape[1]
    A = params["uw"].shape[1]
    D = params["ihw"].shape[1]
    V = params["fcw"].shape[1]
    G = 4 * D

    f32, bf16 = jnp.float32, jnp.bfloat16
    B_pad = max(8, ((B + 7) // 8) * 8)            # sublane-friendly batch
    TB = 16 if B_pad % 16 == 0 else B_pad         # batch tile for the "parallel" grid axis

    feats_p = jnp.pad(features.astype(f32), ((0, B_pad - B), (0, 0), (0, 0)))

    # ---- one-time, recurrence-independent precompute (plain XLA) ----
    mean_f = feats_p.mean(axis=1)                                              # (Bp, E)
    h0 = mean_f @ params["ihw"] + params["ihb"]                                # (Bp, D)
    c0 = mean_f @ params["icw"] + params["icb"]                                # (Bp, D)
    u_hs = jnp.einsum("bne,ea->bna", feats_p, params["uw"]) + params["ub"]     # (Bp, N, A)

    embeds = jnp.take(params["embedding"], captions[:, :S], axis=0)            # (B, S, Emb)
    embeds_p = jnp.pad(embeds, ((0, B_pad - B), (0, 0), (0, 0)))
    wih_emb = params["wih"][:Emb]                                              # (Emb, 4D)
    # Emitted directly in (S, Bp, 4D) layout — no materialize-then-transpose round trip.
    eg_t = (jnp.einsum("bse,eg->sbg", embeds_p, wih_emb)
            + params["bih"] + params["bhh"])                                   # (S, Bp, 4D)

    w_fused = jnp.concatenate([params["ww"], params["whh"]], axis=1).astype(bf16)  # (D, A+4D)
    wih_ctx = params["wih"][Emb:].astype(bf16)                                     # (E, 4D)

    hs, alphas_p = pl.pallas_call(
        decoder_steps_kernel,
        grid=(B_pad // TB,),
        in_specs=[pl.BlockSpec((S, TB, G), lambda b: (0, b, 0)),     # eg_t
                  pl.BlockSpec((TB, N, E), lambda b: (b, 0, 0)),     # feats
                  pl.BlockSpec((TB, N, A), lambda b: (b, 0, 0)),     # u_hs
                  pl.BlockSpec((TB, D), lambda b: (b, 0)),           # h0
                  pl.BlockSpec((TB, D), lambda b: (b, 0)),           # c0
                  pl.BlockSpec((D, A + G), lambda b: (0, 0)),        # [ww | whh] bf16
                  pl.BlockSpec((1, A), lambda b: (0, 0)),            # wb
                  pl.BlockSpec((1, A), lambda b: (0, 0)),            # aw
                  pl.BlockSpec((1, 1), lambda b: (0, 0)),            # ab
                  pl.BlockSpec((E, G), lambda b: (0, 0))],           # wih_ctx bf16
        out_specs=[pl.BlockSpec((S, TB, D), lambda b: (0, b, 0)),    # hs (bf16)
                   pl.BlockSpec((S, TB, N), lambda b: (0, b, 0))],   # alphas
        out_shape=[jax.ShapeDtypeStruct((S, B_pad, D), bf16),
                   jax.ShapeDtypeStruct((S, B_pad, N), f32)],
        scratch_shapes=[pltpu.VMEM((TB, D), f32),        # h
                        pltpu.VMEM((TB, D), f32)],       # c
        compiler_params=pltpu.CompilerParams(
            dimension_semantics=("parallel",),
            vmem_limit_bytes=64 * 1024 * 1024),
    )(eg_t, feats_p, u_hs, h0, c0,
      w_fused, params["wb"], params["aw"], params["ab"], wih_ctx)

    # ---- vocab projection: batch-major (Bp*S, D) x (D, V_pad), tiled over M and V ----
    M = B_pad * S
    h_flat = jnp.transpose(hs, (1, 0, 2)).reshape(M, D)                        # bf16, batch-major
    V_pad = ((V + 127) // 128) * 128
    fcw = jnp.pad(params["fcw"], ((0, 0), (0, V_pad - V))).astype(bf16)
    fcb = jnp.pad(params["fcb"], ((0, 0), (0, V_pad - V)))

    TM = M
    for tm in (1024, 512, 256, 128):
        if M % tm == 0:
            TM = tm
            break
    TV = 512 if V_pad % 512 == 0 else (256 if V_pad % 256 == 0 else 128)

    preds_flat = pl.pallas_call(
        vocab_proj_kernel,
        grid=(M // TM, V_pad // TV),
        in_specs=[pl.BlockSpec((TM, D), lambda i, j: (i, 0)),
                  pl.BlockSpec((D, TV), lambda i, j: (0, j)),
                  pl.BlockSpec((1, TV), lambda i, j: (0, j))],
        out_specs=pl.BlockSpec((TM, TV), lambda i, j: (i, j)),
        out_shape=jax.ShapeDtypeStruct((M, V_pad), f32),
        compiler_params=pltpu.CompilerParams(
            dimension_semantics=("parallel", "parallel"),
            vmem_limit_bytes=32 * 1024 * 1024),
    )(h_flat, fcw, fcb)

    preds = preds_flat[:, :V].reshape(B_pad, S, V)[:B]                         # (B, S, V)
    alphas = jnp.transpose(alphas_p, (1, 0, 2))[:B]                            # (B, S, N)
    return preds, alphas


def decoder_forward_ref(params, features, captions):
    """Pure-JAX f32 reference mirroring the PyTorch forward (dropout = identity)."""
    B, T = captions.shape
    S = T - 1
    embeds = jnp.take(params["embedding"], captions, axis=0)
    mean_f = features.mean(axis=1)
    h = mean_f @ params["ihw"] + params["ihb"]
    c = mean_f @ params["icw"] + params["icb"]
    D = h.shape[1]
    preds, alphas = [], []
    for s in range(S):
        u_hs = features @ params["uw"] + params["ub"]
        w_ah = h @ params["ww"] + params["wb"]
        combined = jnp.tanh(u_hs + w_ah[:, None, :])
        scores = jnp.sum(combined * params["aw"][None, :, :], axis=-1) + params["ab"]
        alpha = jax.nn.softmax(scores, axis=1)
        context = jnp.sum(features * alpha[:, :, None], axis=1)
        x = jnp.concatenate([embeds[:, s], context], axis=1)
        gates = x @ params["wih"] + params["bih"] + h @ params["whh"] + params["bhh"]
        i_g = jax.nn.sigmoid(gates[:, 0:D])
        f_g = jax.nn.sigmoid(gates[:, D:2 * D])
        g_g = jnp.tanh(gates[:, 2 * D:3 * D])
        o_g = jax.nn.sigmoid(gates[:, 3 * D:4 * D])
        c = f_g * c + i_g * g_g
        h = o_g * jnp.tanh(c)
        preds.append(h @ params["fcw"] + params["fcb"])
        alphas.append(alpha)
    return jnp.stack(preds, axis=1), jnp.stack(alphas, axis=1)


def make_params(key, vocab_size, embed_size, attention_dim, encoder_dim, decoder_dim):
    """Deterministic synthetic parameters. Linear weights stored matmul-ready as (in, out)."""
    ks = jax.random.split(key, 16)
    n = lambda k, shape, scale=0.05: (scale * jax.random.normal(k, shape)).astype(jnp.float32)
    E, D, A, Emb, V = encoder_dim, decoder_dim, attention_dim, embed_size, vocab_size
    return dict(
        embedding=n(ks[0], (V, Emb)),
        uw=n(ks[1], (E, A)), ub=n(ks[2], (1, A)),
        ww=n(ks[3], (D, A)), wb=n(ks[4], (1, A)),
        aw=n(ks[5], (1, A)), ab=n(ks[6], (1, 1)),
        ihw=n(ks[7], (E, D)), ihb=n(ks[8], (1, D)),
        icw=n(ks[9], (E, D)), icb=n(ks[10], (1, D)),
        wih=n(ks[11], (Emb + E, 4 * D)), whh=n(ks[12], (D, 4 * D)),
        bih=n(ks[13], (1, 4 * D)), bhh=n(ks[14], (1, 4 * D)),
        fcw=n(ks[15], (D, V)), fcb=jnp.zeros((1, V), jnp.float32),
    )


if __name__ == "__main__":
    # Small, TPU-friendly shapes consistent with the module's forward.
    B, N, T = 2, 8, 6            # batch, num encoder regions, caption length (seq_length = 5)
    vocab_size = 256
    embed_size = 128
    attention_dim = 128
    encoder_dim = 128
    decoder_dim = 128

    key = jax.random.PRNGKey(0)
    k_p, k_f, k_c = jax.random.split(key, 3)
    params = make_params(k_p, vocab_size, embed_size, attention_dim, encoder_dim, decoder_dim)
    features = jax.random.normal(k_f, (B, N, encoder_dim), dtype=jnp.float32)
    captions = jax.random.randint(k_c, (B, T), 0, vocab_size, dtype=jnp.int32)

    preds, alphas = jax.jit(decoder_forward)(params, features, captions)
    jax.block_until_ready((preds, alphas))

    preds_ref, alphas_ref = decoder_forward_ref(params, features, captions)
    assert preds.shape == (B, T - 1, vocab_size)
    assert alphas.shape == (B, T - 1, N)
    # bf16 matmul weights/hs + approx-reciprocal softmax -> relaxed tolerance vs f32 reference.
    np.testing.assert_allclose(np.asarray(preds), np.asarray(preds_ref), rtol=2e-2, atol=2e-2)
    np.testing.assert_allclose(np.asarray(alphas), np.asarray(alphas_ref), rtol=2e-2, atol=2e-2)

    print("KERNEL_OK")
</pallas_src>

<mosaic_0001>
module attributes {stable_mosaic.version = 11 : i64} {
  func.func @decoder_steps_kernel(%arg0: i32, %arg1: memref<5x8x512xf32, #tpu.memory_space<vmem>>, %arg2: memref<8x8x128xf32, #tpu.memory_space<vmem>>, %arg3: memref<8x8x128xf32, #tpu.memory_space<vmem>>, %arg4: memref<8x128xf32, #tpu.memory_space<vmem>>, %arg5: memref<8x128xf32, #tpu.memory_space<vmem>>, %arg6: memref<128x640xbf16, #tpu.memory_space<vmem>>, %arg7: memref<1x128xf32, #tpu.memory_space<vmem>>, %arg8: memref<1x128xf32, #tpu.memory_space<vmem>>, %arg9: memref<1x1xf32, #tpu.memory_space<vmem>>, %arg10: memref<128x512xbf16, #tpu.memory_space<vmem>>, %arg11: memref<5x8x128xbf16, #tpu.memory_space<vmem>>, %arg12: memref<5x8x8xf32, #tpu.memory_space<vmem>>, %arg13: memref<8x128xf32, #tpu.memory_space<vmem>>, %arg14: memref<8x128xf32, #tpu.memory_space<vmem>>) attributes {dimension_semantics = [#tpu.dimension_semantics<parallel>], iteration_bounds = array<i64: 1>, scalar_prefetch = 0 : i64, scratch_operands = 2 : i64, tpu.core_type = #tpu.core_type<tc>, window_params = [{transform_indices = @transform_0, window_bounds = array<i64: 5, 8, 512>}, {transform_indices = @transform_1, window_bounds = array<i64: 8, 8, 128>}, {transform_indices = @transform_2, window_bounds = array<i64: 8, 8, 128>}, {transform_indices = @transform_3, window_bounds = array<i64: 8, 128>}, {transform_indices = @transform_4, window_bounds = array<i64: 8, 128>}, {pipeline_mode = #tpu.pipeline_mode<synchronous>, transform_indices = @transform_5, window_bounds = array<i64: 128, 640>}, {pipeline_mode = #tpu.pipeline_mode<synchronous>, transform_indices = @transform_6, window_bounds = array<i64: 1, 128>}, {pipeline_mode = #tpu.pipeline_mode<synchronous>, transform_indices = @transform_7, window_bounds = array<i64: 1, 128>}, {pipeline_mode = #tpu.pipeline_mode<synchronous>, transform_indices = @transform_8, window_bounds = array<i64: 1, 1>}, {pipeline_mode = #tpu.pipeline_mode<synchronous>, transform_indices = @transform_9, window_bounds = array<i64: 128, 512>}, {transform_indices = @transform_10, window_bounds = array<i64: 5, 8, 128>}, {transform_indices = @transform_11, window_bounds = array<i64: 5, 8, 8>}]} {
    %c0 = arith.constant 0 : index
    %c0_0 = arith.constant 0 : index
    %0 = vector.load %arg4[%c0, %c0_0] : memref<8x128xf32, #tpu.memory_space<vmem>>, vector<8x128xf32>
    %c0_1 = arith.constant 0 : index
    %c0_2 = arith.constant 0 : index
    %1 = vector.load %arg13[%c0_1, %c0_2] : memref<8x128xf32, #tpu.memory_space<vmem>>, vector<8x128xf32>
    tpu.vector_store %arg13[%c0_1, %c0_2], %0 {strides = array<i32>} : memref<8x128xf32, #tpu.memory_space<vmem>>, vector<8x128xf32>,
    %c0_3 = arith.constant 0 : index
    %c0_4 = arith.constant 0 : index
    %2 = vector.load %arg5[%c0_3, %c0_4] : memref<8x128xf32, #tpu.memory_space<vmem>>, vector<8x128xf32>
    %c0_5 = arith.constant 0 : index
    %c0_6 = arith.constant 0 : index
    %3 = vector.load %arg14[%c0_5, %c0_6] : memref<8x128xf32, #tpu.memory_space<vmem>>, vector<8x128xf32>
    tpu.vector_store %arg14[%c0_5, %c0_6], %2 {strides = array<i32>} : memref<8x128xf32, #tpu.memory_space<vmem>>, vector<8x128xf32>,
    %c0_i32 = arith.constant 0 : i32
    %c0_7 = arith.constant 0 : index
    %c0_8 = arith.constant 0 : index
    %4 = vector.load %arg13[%c0_7, %c0_8] : memref<8x128xf32, #tpu.memory_space<vmem>>, vector<8x128xf32>
    %c0_9 = arith.constant 0 : index
    %c0_10 = arith.constant 0 : index
    %5 = vector.load %arg14[%c0_9, %c0_10] : memref<8x128xf32, #tpu.memory_space<vmem>>, vector<8x128xf32>
    %6 = arith.truncf %4 : vector<8x128xf32> to vector<8x128xbf16>
    %c0_11 = arith.constant 0 : index
    %c0_12 = arith.constant 0 : index
    %7 = vector.load %arg6[%c0_11, %c0_12] : memref<128x640xbf16, #tpu.memory_space<vmem>>, vector<128x640xbf16>
    %cst = arith.constant dense<0.000000e+00> : vector<8x640xf32>
    %8 = tpu.matmul %6, %7, %cst {dimension_numbers = #tpu.dot_dimension_numbers<[1], [0], [0], [1], [0, 0, 1, 1], [], []>} : vector<8x128xbf16>, vector<128x640xbf16>, vector<8x640xf32> -> vector<8x640xf32>
    %9 = vector.extract_strided_slice %8 {offsets = [0, 0], sizes = [8, 128], strides = [1, 1]} : vector<8x640xf32> to vector<8x128xf32>
    %c0_13 = arith.constant 0 : index
    %c0_14 = arith.constant 0 : index
    %10 = vector.load %arg7[%c0_13, %c0_14] : memref<1x128xf32, #tpu.memory_space<vmem>>, vector<1x128xf32>
    %11 = vector.broadcast %10 : vector<1x128xf32> to vector<8x128xf32>
    %12 = arith.addf %9, %11 : vector<8x128xf32>
    %13 = vector.extract_strided_slice %8 {offsets = [0, 128], sizes = [8, 512], strides = [1, 1]} : vector<8x640xf32> to vector<8x512xf32>
    %c0_15 = arith.constant 0 : index
    %c0_16 = arith.constant 0 : index
    %c0_17 = arith.constant 0 : index
    %14 = vector.load %arg3[%c0_15, %c0_16, %c0_17] : memref<8x8x128xf32, #tpu.memory_space<vmem>>, vector<8x8x128xf32>
    %15 = vector.shape_cast %12 : vector<8x128xf32> to vector<8x1x128xf32>
    %16 = vector.broadcast %15 : vector<8x1x128xf32> to vector<8x8x128xf32>
    %17 = arith.addf %14, %16 : vector<8x8x128xf32>
    %18 = math.tanh %17 : vector<8x8x128xf32>
    %c0_18 = arith.constant 0 : index
    %c0_19 = arith.constant 0 : index
    %19 = vector.load %arg8[%c0_18, %c0_19] : memref<1x128xf32, #tpu.memory_space<vmem>>, vector<1x128xf32>
    %20 = vector.shape_cast %19 : vector<1x128xf32> to vector<1x1x128xf32>
    %21 = vector.broadcast %20 : vector<1x1x128xf32> to vector<8x8x128xf32>
    %22 = arith.mulf %18, %21 : vector<8x8x128xf32>
    %cst_20 = arith.constant dense<0.000000e+00> : vector<8x8xf32>
    %23 = vector.multi_reduction <add>, %22, %cst_20 [2] : vector<8x8x128xf32> to vector<8x8xf32>
    %c0_21 = arith.constant 0 : index
    %c0_22 = arith.constant 0 : index
    %24 = vector.load %arg9[%c0_21, %c0_22] : memref<1x1xf32, #tpu.memory_space<vmem>>, vector<1x1xf32>
    %25 = vector.broadcast %24 : vector<1x1xf32> to vector<8x8xf32>
    %26 = arith.addf %23, %25 : vector<8x8xf32>
    %cst_23 = arith.constant dense<0xFF800000> : vector<8xf32>
    %27 = vector.multi_reduction <maximumf>, %26, %cst_23 [1] : vector<8x8xf32> to vector<8xf32>
    %28 = vector.shape_cast %27 : vector<8xf32> to vector<8x1xf32>
    %29 = vector.broadcast %28 : vector<8x1xf32> to vector<8x8xf32>
    %30 = arith.subf %26, %29 : vector<8x8xf32>
    %31 = math.exp %30 : vector<8x8xf32>
    %cst_24 = arith.constant dense<0.000000e+00> : vector<8xf32>
    %32 = vector.multi_reduction <add>, %31, %cst_24 [1] : vector<8x8xf32> to vector<8xf32>
    %33 = vector.shape_cast %32 : vector<8xf32> to vector<8x1xf32>
    %34 = tpu.reciprocal %33 {approx = true} : vector<8x1xf32> -> vector<8x1xf32>
    %35 = vector.broadcast %34 : vector<8x1xf32> to vector<8x8xf32>
    %36 = arith.mulf %31, %35 : vector<8x8xf32>
    %c0_25 = arith.constant 0 : index
    %c0_26 = arith.constant 0 : index
    %c0_27 = arith.constant 0 : index
    %37 = vector.load %arg2[%c0_25, %c0_26, %c0_27] : memref<8x8x128xf32, #tpu.memory_space<vmem>>, vector<8x8x128xf32>
    %38 = vector.shape_cast %36 : vector<8x8xf32> to vector<8x8x1xf32>
    %39 = vector.broadcast %38 : vector<8x8x1xf32> to vector<8x8x128xf32>
    %40 = arith.mulf %37, %39 : vector<8x8x128xf32>
    %cst_28 = arith.constant dense<0.000000e+00> : vector<8x128xf32>
    %41 = vector.multi_reduction <add>, %40, %cst_28 [1] : vector<8x8x128xf32> to vector<8x128xf32>
    %42 = arith.index_cast %c0_i32 : i32 to index
    %c0_29 = arith.constant 0 : index
    %c0_30 = arith.constant 0 : index
    %43 = vector.load %arg1[%42, %c0_29, %c0_30] : memref<5x8x512xf32, #tpu.memory_space<vmem>>, vector<1x8x512xf32>
    %44 = vector.shape_cast %43 : vector<1x8x512xf32> to vector<8x512xf32>
    %45 = arith.truncf %41 : vector<8x128xf32> to vector<8x128xbf16>
    %c0_31 = arith.constant 0 : index
    %c0_32 = arith.constant 0 : index
    %46 = vector.load %arg10[%c0_31, %c0_32] : memref<128x512xbf16, #tpu.memory_space<vmem>>, vector<128x512xbf16>
    %cst_33 = arith.constant dense<0.000000e+00> : vector<8x512xf32>
    %47 = tpu.matmul %45, %46, %cst_33 {dimension_numbers = #tpu.dot_dimension_numbers<[1], [0], [0], [1], [0, 0, 1, 1], [], []>} : vector<8x128xbf16>, vector<128x512xbf16>, vector<8x512xf32> -> vector<8x512xf32>
    %48 = arith.addf %44, %47 : vector<8x512xf32>
    %49 = arith.addf %48, %13 : vector<8x512xf32>
    %50 = vector.extract_strided_slice %49 {offsets = [0, 0], sizes = [8, 128], strides = [1, 1]} : vector<8x512xf32> to vector<8x128xf32>
    %51 = arith.negf %50 : vector<8x128xf32>
    %52 = math.exp %51 : vector<8x128xf32>
    %cst_34 = arith.constant 1.000000e+00 : f32
    %53 = vector.broadcast %cst_34 : f32 to vector<8x128xf32>
    %54 = arith.addf %53, %52 : vector<8x128xf32>
    %55 = arith.divf %53, %54 : vector<8x128xf32>
    %56 = vector.extract_strided_slice %49 {offsets = [0, 128], sizes = [8, 128], strides = [1, 1]} : vector<8x512xf32> to vector<8x128xf32>
    %57 = arith.negf %56 : vector<8x128xf32>
    %58 = math.exp %57 : vector<8x128xf32>
    %cst_35 = arith.constant 1.000000e+00 : f32
    %59 = vector.broadcast %cst_35 : f32 to vector<8x128xf32>
    %60 = arith.addf %59, %58 : vector<8x128xf32>
    %61 = arith.divf %59, %60 : vector<8x128xf32>
    %62 = vector.extract_strided_slice %49 {offsets = [0, 256], sizes = [8, 128], strides = [1, 1]} : vector<8x512xf32> to vector<8x128xf32>
    %63 = math.tanh %62 : vector<8x128xf32>
    %64 = vector.extract_strided_slice %49 {offsets = [0, 384], sizes = [8, 128], strides = [1, 1]} : vector<8x512xf32> to vector<8x128xf32>
    %65 = arith.negf %64 : vector<8x128xf32>
    %66 = math.exp %65 : vector<8x128xf32>
    %cst_36 = arith.constant 1.000000e+00 : f32
    %67 = vector.broadcast %cst_36 : f32 to vector<8x128xf32>
    %68 = arith.addf %67, %66 : vector<8x128xf32>
    %69 = arith.divf %67, %68 : vector<8x128xf32>
    %70 = arith.mulf %61, %5 : vector<8x128xf32>
    %71 = arith.mulf %55, %63 : vector<8x128xf32>
    %72 = arith.addf %70, %71 : vector<8x128xf32>
    %73 = math.tanh %72 : vector<8x128xf32>
    %74 = arith.mulf %69, %73 : vector<8x128xf32>
    %c0_37 = arith.constant 0 : index
    %c0_38 = arith.constant 0 : index
    %75 = vector.load %arg13[%c0_37, %c0_38] : memref<8x128xf32, #tpu.memory_space<vmem>>, vector<8x128xf32>
    tpu.vector_store %arg13[%c0_37, %c0_38], %74 {strides = array<i32>} : memref<8x128xf32, #tpu.memory_space<vmem>>, vector<8x128xf32>,
    %c0_39 = arith.constant 0 : index
    %c0_40 = arith.constant 0 : index
    %76 = vector.load %arg14[%c0_39, %c0_40] : memref<8x128xf32, #tpu.memory_space<vmem>>, vector<8x128xf32>
    tpu.vector_store %arg14[%c0_39, %c0_40], %72 {strides = array<i32>} : memref<8x128xf32, #tpu.memory_space<vmem>>, vector<8x128xf32>,
    %77 = arith.truncf %74 : vector<8x128xf32> to vector<8x128xbf16>
    %78 = arith.index_cast %c0_i32 : i32 to index
    %c0_41 = arith.constant 0 : index
    %c0_42 = arith.constant 0 : index
    %79 = vector.load %arg11[%78, %c0_41, %c0_42] : memref<5x8x128xbf16, #tpu.memory_space<vmem>>, vector<1x8x128xbf16>
    %80 = vector.shape_cast %79 : vector<1x8x128xbf16> to vector<8x128xbf16>
    %81 = vector.shape_cast %77 : vector<8x128xbf16> to vector<1x8x128xbf16>
    tpu.vector_store %arg11[%78, %c0_41, %c0_42], %81 {strides = array<i32>} : memref<5x8x128xbf16, #tpu.memory_space<vmem>>, vector<1x8x128xbf16>,
    %82 = arith.index_cast %c0_i32 : i32 to index
    %c0_43 = arith.constant 0 : index
    %c0_44 = arith.constant 0 : index
    %83 = vector.load %arg12[%82, %c0_43, %c0_44] : memref<5x8x8xf32, #tpu.memory_space<vmem>>, vector<1x8x8xf32>
    %84 = vector.shape_cast %83 : vector<1x8x8xf32> to vector<8x8xf32>
    %85 = vector.shape_cast %36 : vector<8x8xf32> to vector<1x8x8xf32>
    tpu.vector_store %arg12[%82, %c0_43, %c0_44], %85 {strides = array<i32>} : memref<5x8x8xf32, #tpu.memory_space<vmem>>, vector<1x8x8xf32>,
    %c1_i32 = arith.constant 1 : i32
    %c0_45 = arith.constant 0 : index
    %c0_46 = arith.constant 0 : index
    %86 = vector.load %arg13[%c0_45, %c0_46] : memref<8x128xf32, #tpu.memory_space<vmem>>, vector<8x128xf32>
    %c0_47 = arith.constant 0 : index
    %c0_48 = arith.constant 0 : index
    %87 = vector.load %arg14[%c0_47, %c0_48] : memref<8x128xf32, #tpu.memory_space<vmem>>, vector<8x128xf32>
    %88 = arith.truncf %86 : vector<8x128xf32> to vector<8x128xbf16>
    %c0_49 = arith.constant 0 : index
    %c0_50 = arith.constant 0 : index
    %89 = vector.load %arg6[%c0_49, %c0_50] : memref<128x640xbf16, #tpu.memory_space<vmem>>, vector<128x640xbf16>
    %cst_51 = arith.constant dense<0.000000e+00> : vector<8x640xf32>
    %90 = tpu.matmul %88, %89, %cst_51 {dimension_numbers = #tpu.dot_dimension_numbers<[1], [0], [0], [1], [0, 0, 1, 1], [], []>} : vector<8x128xbf16>, vector<128x640xbf16>, vector<8x640xf32> -> vector<8x640xf32>
    %91 = vector.extract_strided_slice %90 {offsets = [0, 0], sizes = [8, 128], strides = [1, 1]} : vector<8x640xf32> to vector<8x128xf32>
    %c0_52 = arith.constant 0 : index
    %c0_53 = arith.constant 0 : index
    %92 = vector.load %arg7[%c0_52, %c0_53] : memref<1x128xf32, #tpu.memory_space<vmem>>, vector<1x128xf32>
    %93 = vector.broadcast %92 : vector<1x128xf32> to vector<8x128xf32>
    %94 = arith.addf %91, %93 : vector<8x128xf32>
    %95 = vector.extract_strided_slice %90 {offsets = [0, 128], sizes = [8, 512], strides = [1, 1]} : vector<8x640xf32> to vector<8x512xf32>
    %c0_54 = arith.constant 0 : index
    %c0_55 = arith.constant 0 : index
    %c0_56 = arith.constant 0 : index
    %96 = vector.load %arg3[%c0_54, %c0_55, %c0_56] : memref<8x8x128xf32, #tpu.memory_space<vmem>>, vector<8x8x128xf32>
    %97 = vector.shape_cast %94 : vector<8x128xf32> to vector<8x1x128xf32>
    %98 = vector.broadcast %97 : vector<8x1x128xf32> to vector<8x8x128xf32>
    %99 = arith.addf %96, %98 : vector<8x8x128xf32>
    %100 = math.tanh %99 : vector<8x8x128xf32>
    %c0_57 = arith.constant 0 : index
    %c0_58 = arith.constant 0 : index
    %101 = vector.load %arg8[%c0_57, %c0_58] : memref<1x128xf32, #tpu.memory_space<vmem>>, vector<1x128xf32>
    %102 = vector.shape_cast %101 : vector<1x128xf32> to vector<1x1x128xf32>
    %103 = vector.broadcast %102 : vector<1x1x128xf32> to vector<8x8x128xf32>
    %104 = arith.mulf %100, %103 : vector<8x8x128xf32>
    %cst_59 = arith.constant dense<0.000000e+00> : vector<8x8xf32>
    %105 = vector.multi_reduction <add>, %104, %cst_59 [2] : vector<8x8x128xf32> to vector<8x8xf32>
    %c0_60 = arith.constant 0 : index
    %c0_61 = arith.constant 0 : index
    %106 = vector.load %arg9[%c0_60, %c0_61] : memref<1x1xf32, #tpu.memory_space<vmem>>, vector<1x1xf32>
    %107 = vector.broadcast %106 : vector<1x1xf32> to vector<8x8xf32>
    %108 = arith.addf %105, %107 : vector<8x8xf32>
    %cst_62 = arith.constant dense<0xFF800000> : vector<8xf32>
    %109 = vector.multi_reduction <maximumf>, %108, %cst_62 [1] : vector<8x8xf32> to vector<8xf32>
    %110 = vector.shape_cast %109 : vector<8xf32> to vector<8x1xf32>
    %111 = vector.broadcast %110 : vector<8x1xf32> to vector<8x8xf32>
    %112 = arith.subf %108, %111 : vector<8x8xf32>
    %113 = math.exp %112 : vector<8x8xf32>
    %cst_63 = arith.constant dense<0.000000e+00> : vector<8xf32>
    %114 = vector.multi_reduction <add>, %113, %cst_63 [1] : vector<8x8xf32> to vector<8xf32>
    %115 = vector.shape_cast %114 : vector<8xf32> to vector<8x1xf32>
    %116 = tpu.reciprocal %115 {approx = true} : vector<8x1xf32> -> vector<8x1xf32>
    %117 = vector.broadcast %116 : vector<8x1xf32> to vector<8x8xf32>
    %118 = arith.mulf %113, %117 : vector<8x8xf32>
    %c0_64 = arith.constant 0 : index
    %c0_65 = arith.constant 0 : index
    %c0_66 = arith.constant 0 : index
    %119 = vector.load %arg2[%c0_64, %c0_65, %c0_66] : memref<8x8x128xf32, #tpu.memory_space<vmem>>, vector<8x8x128xf32>
    %120 = vector.shape_cast %118 : vector<8x8xf32> to vector<8x8x1xf32>
    %121 = vector.broadcast %120 : vector<8x8x1xf32> to vector<8x8x128xf32>
    %122 = arith.mulf %119, %121 : vector<8x8x128xf32>
    %cst_67 = arith.constant dense<0.000000e+00> : vector<8x128xf32>
    %123 = vector.multi_reduction <add>, %122, %cst_67 [1] : vector<8x8x128xf32> to vector<8x128xf32>
    %124 = arith.index_cast %c1_i32 : i32 to index
    %c0_68 = arith.constant 0 : index
    %c0_69 = arith.constant 0 : index
    %125 = vector.load %arg1[%124, %c0_68, %c0_69] : memref<5x8x512xf32, #tpu.memory_space<vmem>>, vector<1x8x512xf32>
    %126 = vector.shape_cast %125 : vector<1x8x512xf32> to vector<8x512xf32>
    %127 = arith.truncf %123 : vector<8x128xf32> to vector<8x128xbf16>
    %c0_70 = arith.constant 0 : index
    %c0_71 = arith.constant 0 : index
    %128 = vector.load %arg10[%c0_70, %c0_71] : memref<128x512xbf16, #tpu.memory_space<vmem>>, vector<128x512xbf16>
    %cst_72 = arith.constant dense<0.000000e+00> : vector<8x512xf32>
    %129 = tpu.matmul %127, %128, %cst_72 {dimension_numbers = #tpu.dot_dimension_numbers<[1], [0], [0], [1], [0, 0, 1, 1], [], []>} : vector<8x128xbf16>, vector<128x512xbf16>, vector<8x512xf32> -> vector<8x512xf32>
    %130 = arith.addf %126, %129 : vector<8x512xf32>
    %131 = arith.addf %130, %95 : vector<8x512xf32>
    %132 = vector.extract_strided_slice %131 {offsets = [0, 0], sizes = [8, 128], strides = [1, 1]} : vector<8x512xf32> to vector<8x128xf32>
    %133 = arith.negf %132 : vector<8x128xf32>
    %134 = math.exp %133 : vector<8x128xf32>
    %cst_73 = arith.constant 1.000000e+00 : f32
    %135 = vector.broadcast %cst_73 : f32 to vector<8x128xf32>
    %136 = arith.addf %135, %134 : vector<8x128xf32>
    %137 = arith.divf %135, %136 : vector<8x128xf32>
    %138 = vector.extract_strided_slice %131 {offsets = [0, 128], sizes = [8, 128], strides = [1, 1]} : vector<8x512xf32> to vector<8x128xf32>
    %139 = arith.negf %138 : vector<8x128xf32>
    %140 = math.exp %139 : vector<8x128xf32>
    %cst_74 = arith.constant 1.000000e+00 : f32
    %141 = vector.broadcast %cst_74 : f32 to vector<8x128xf32>
    %142 = arith.addf %141, %140 : vector<8x128xf32>
    %143 = arith.divf %141, %142 : vector<8x128xf32>
    %144 = vector.extract_strided_slice %131 {offsets = [0, 256], sizes = [8, 128], strides = [1, 1]} : vector<8x512xf32> to vector<8x128xf32>
    %145 = math.tanh %144 : vector<8x128xf32>
    %146 = vector.extract_strided_slice %131 {offsets = [0, 384], sizes = [8, 128], strides = [1, 1]} : vector<8x512xf32> to vector<8x128xf32>
    %147 = arith.negf %146 : vector<8x128xf32>
    %148 = math.exp %147 : vector<8x128xf32>
    %cst_75 = arith.constant 1.000000e+00 : f32
    %149 = vector.broadcast %cst_75 : f32 to vector<8x128xf32>
    %150 = arith.addf %149, %148 : vector<8x128xf32>
    %151 = arith.divf %149, %150 : vector<8x128xf32>
    %152 = arith.mulf %143, %87 : vector<8x128xf32>
    %153 = arith.mulf %137, %145 : vector<8x128xf32>
    %154 = arith.addf %152, %153 : vector<8x128xf32>
    %155 = math.tanh %154 : vector<8x128xf32>
    %156 = arith.mulf %151, %155 : vector<8x128xf32>
    %c0_76 = arith.constant 0 : index
    %c0_77 = arith.constant 0 : index
    %157 = vector.load %arg13[%c0_76, %c0_77] : memref<8x128xf32, #tpu.memory_space<vmem>>, vector<8x128xf32>
    tpu.vector_store %arg13[%c0_76, %c0_77], %156 {strides = array<i32>} : memref<8x128xf32, #tpu.memory_space<vmem>>, vector<8x128xf32>,
    %c0_78 = arith.constant 0 : index
    %c0_79 = arith.constant 0 : index
    %158 = vector.load %arg14[%c0_78, %c0_79] : memref<8x128xf32, #tpu.memory_space<vmem>>, vector<8x128xf32>
    tpu.vector_store %arg14[%c0_78, %c0_79], %154 {strides = array<i32>} : memref<8x128xf32, #tpu.memory_space<vmem>>, vector<8x128xf32>,
    %159 = arith.truncf %156 : vector<8x128xf32> to vector<8x128xbf16>
    %160 = arith.index_cast %c1_i32 : i32 to index
    %c0_80 = arith.constant 0 : index
    %c0_81 = arith.constant 0 : index
    %161 = vector.load %arg11[%160, %c0_80, %c0_81] : memref<5x8x128xbf16, #tpu.memory_space<vmem>>, vector<1x8x128xbf16>
    %162 = vector.shape_cast %161 : vector<1x8x128xbf16> to vector<8x128xbf16>
    %163 = vector.shape_cast %159 : vector<8x128xbf16> to vector<1x8x128xbf16>
    tpu.vector_store %arg11[%160, %c0_80, %c0_81], %163 {strides = array<i32>} : memref<5x8x128xbf16, #tpu.memory_space<vmem>>, vector<1x8x128xbf16>,
    %164 = arith.index_cast %c1_i32 : i32 to index
    %c0_82 = arith.constant 0 : index
    %c0_83 = arith.constant 0 : index
    %165 = vector.load %arg12[%164, %c0_82, %c0_83] : memref<5x8x8xf32, #tpu.memory_space<vmem>>, vector<1x8x8xf32>
    %166 = vector.shape_cast %165 : vector<1x8x8xf32> to vector<8x8xf32>
    %167 = vector.shape_cast %118 : vector<8x8xf32> to vector<1x8x8xf32>
    tpu.vector_store %arg12[%164, %c0_82, %c0_83], %167 {strides = array<i32>} : memref<5x8x8xf32, #tpu.memory_space<vmem>>, vector<1x8x8xf32>,
    %c2_i32 = arith.constant 2 : i32
    %c0_84 = arith.constant 0 : index
    %c0_85 = arith.constant 0 : index
    %168 = vector.load %arg13[%c0_84, %c0_85] : memref<8x128xf32, #tpu.memory_space<vmem>>, vector<8x128xf32>
    %c0_86 = arith.constant 0 : index
    %c0_87 = arith.constant 0 : index
    %169 = vector.load %arg14[%c0_86, %c0_87] : memref<8x128xf32, #tpu.memory_space<vmem>>, vector<8x128xf32>
    %170 = arith.truncf %168 : vector<8x128xf32> to vector<8x128xbf16>
    %c0_88 = arith.constant 0 : index
    %c0_89 = arith.constant 0 : index
    %171 = vector.load %arg6[%c0_88, %c0_89] : memref<128x640xbf16, #tpu.memory_space<vmem>>, vector<128x640xbf16>
    %cst_90 = arith.constant dense<0.000000e+00> : vector<8x640xf32>
    %172 = tpu.matmul %170, %171, %cst_90 {dimension_numbers = #tpu.dot_dimension_numbers<[1], [0], [0], [1], [0, 0, 1, 1], [], []>} : vector<8x128xbf16>, vector<128x640xbf16>, vector<8x640xf32> -> vector<8x640xf32>
    %173 = vector.extract_strided_slice %172 {offsets = [0, 0], sizes = [8, 128], strides = [1, 1]} : vector<8x640xf32> to vector<8x128xf32>
    %c0_91 = arith.constant 0 : index
    %c0_92 = arith.constant 0 : index
    %174 = vector.load %arg7[%c0_91, %c0_92] : memref<1x128xf32, #tpu.memory_space<vmem>>, vector<1x128xf32>
    %175 = vector.broadcast %174 : vector<1x128xf32> to vector<8x128xf32>
    %176 = arith.addf %173, %175 : vector<8x128xf32>
    %177 = vector.extract_strided_slice %172 {offsets = [0, 128], sizes = [8, 512], strides = [1, 1]} : vector<8x640xf32> to vector<8x512xf32>
    %c0_93 = arith.constant 0 : index
    %c0_94 = arith.constant 0 : index
    %c0_95 = arith.constant 0 : index
    %178 = vector.load %arg3[%c0_93, %c0_94, %c0_95] : memref<8x8x128xf32, #tpu.memory_space<vmem>>, vector<8x8x128xf32>
    %179 = vector.shape_cast %176 : vector<8x128xf32> to vector<8x1x128xf32>
    %180 = vector.broadcast %179 : vector<8x1x128xf32> to vector<8x8x128xf32>
    %181 = arith.addf %178, %180 : vector<8x8x128xf32>
    %182 = math.tanh %181 : vector<8x8x128xf32>
    %c0_96 = arith.constant 0 : index
    %c0_97 = arith.constant 0 : index
    %183 = vector.load %arg8[%c0_96, %c0_97] : memref<1x128xf32, #tpu.memory_space<vmem>>, vector<1x128xf32>
    %184 = vector.shape_cast %183 : vector<1x128xf32> to vector<1x1x128xf32>
    %185 = vector.broadcast %184 : vector<1x1x128xf32> to vector<8x8x128xf32>
    %186 = arith.mulf %182, %185 : vector<8x8x128xf32>
    %cst_98 = arith.constant dense<0.000000e+00> : vector<8x8xf32>
    %187 = vector.multi_reduction <add>, %186, %cst_98 [2] : vector<8x8x128xf32> to vector<8x8xf32>
    %c0_99 = arith.constant 0 : index
    %c0_100 = arith.constant 0 : index
    %188 = vector.load %arg9[%c0_99, %c0_100] : memref<1x1xf32, #tpu.memory_space<vmem>>, vector<1x1xf32>
    %189 = vector.broadcast %188 : vector<1x1xf32> to vector<8x8xf32>
    %190 = arith.addf %187, %189 : vector<8x8xf32>
    %cst_101 = arith.constant dense<0xFF800000> : vector<8xf32>
    %191 = vector.multi_reduction <maximumf>, %190, %cst_101 [1] : vector<8x8xf32> to vector<8xf32>
    %192 = vector.shape_cast %191 : vector<8xf32> to vector<8x1xf32>
    %193 = vector.broadcast %192 : vector<8x1xf32> to vector<8x8xf32>
    %194 = arith.subf %190, %193 : vector<8x8xf32>
    %195 = math.exp %194 : vector<8x8xf32>
    %cst_102 = arith.constant dense<0.000000e+00> : vector<8xf32>
    %196 = vector.multi_reduction <add>, %195, %cst_102 [1] : vector<8x8xf32> to vector<8xf32>
    %197 = vector.shape_cast %196 : vector<8xf32> to vector<8x1xf32>
    %198 = tpu.reciprocal %197 {approx = true} : vector<8x1xf32> -> vector<8x1xf32>
    %199 = vector.broadcast %198 : vector<8x1xf32> to vector<8x8xf32>
    %200 = arith.mulf %195, %199 : vector<8x8xf32>
    %c0_103 = arith.constant 0 : index
    %c0_104 = arith.constant 0 : index
    %c0_105 = arith.constant 0 : index
    %201 = vector.load %arg2[%c0_103, %c0_104, %c0_105] : memref<8x8x128xf32, #tpu.memory_space<vmem>>, vector<8x8x128xf32>
    %202 = vector.shape_cast %200 : vector<8x8xf32> to vector<8x8x1xf32>
    %203 = vector.broadcast %202 : vector<8x8x1xf32> to vector<8x8x128xf32>
    %204 = arith.mulf %201, %203 : vector<8x8x128xf32>
    %cst_106 = arith.constant dense<0.000000e+00> : vector<8x128xf32>
    %205 = vector.multi_reduction <add>, %204, %cst_106 [1] : vector<8x8x128xf32> to vector<8x128xf32>
    %206 = arith.index_cast %c2_i32 : i32 to index
    %c0_107 = arith.constant 0 : index
    %c0_108 = arith.constant 0 : index
    %207 = vector.load %arg1[%206, %c0_107, %c0_108] : memref<5x8x512xf32, #tpu.memory_space<vmem>>, vector<1x8x512xf32>
    %208 = vector.shape_cast %207 : vector<1x8x512xf32> to vector<8x512xf32>
    %209 = arith.truncf %205 : vector<8x128xf32> to vector<8x128xbf16>
    %c0_109 = arith.constant 0 : index
    %c0_110 = arith.constant 0 : index
    %210 = vector.load %arg10[%c0_109, %c0_110] : memref<128x512xbf16, #tpu.memory_space<vmem>>, vector<128x512xbf16>
    %cst_111 = arith.constant dense<0.000000e+00> : vector<8x512xf32>
    %211 = tpu.matmul %209, %210, %cst_111 {dimension_numbers = #tpu.dot_dimension_numbers<[1], [0], [0], [1], [0, 0, 1, 1], [], []>} : vector<8x128xbf16>, vector<128x512xbf16>, vector<8x512xf32> -> vector<8x512xf32>
    %212 = arith.addf %208, %211 : vector<8x512xf32>
    %213 = arith.addf %212, %177 : vector<8x512xf32>
    %214 = vector.extract_strided_slice %213 {offsets = [0, 0], sizes = [8, 128], strides = [1, 1]} : vector<8x512xf32> to vector<8x128xf32>
    %215 = arith.negf %214 : vector<8x128xf32>
    %216 = math.exp %215 : vector<8x128xf32>
    %cst_112 = arith.constant 1.000000e+00 : f32
    %217 = vector.broadcast %cst_112 : f32 to vector<8x128xf32>
    %218 = arith.addf %217, %216 : vector<8x128xf32>
    %219 = arith.divf %217, %218 : vector<8x128xf32>
    %220 = vector.extract_strided_slice %213 {offsets = [0, 128], sizes = [8, 128], strides = [1, 1]} : vector<8x512xf32> to vector<8x128xf32>
    %221 = arith.negf %220 : vector<8x128xf32>
    %222 = math.exp %221 : vector<8x128xf32>
    %cst_113 = arith.constant 1.000000e+00 : f32
    %223 = vector.broadcast %cst_113 : f32 to vector<8x128xf32>
    %224 = arith.addf %223, %222 : vector<8x128xf32>
    %225 = arith.divf %223, %224 : vector<8x128xf32>
    %226 = vector.extract_strided_slice %213 {offsets = [0, 256], sizes = [8, 128], strides = [1, 1]} : vector<8x512xf32> to vector<8x128xf32>
    %227 = math.tanh %226 : vector<8x128xf32>
    %228 = vector.extract_strided_slice %213 {offsets = [0, 384], sizes = [8, 128], strides = [1, 1]} : vector<8x512xf32> to vector<8x128xf32>
    %229 = arith.negf %228 : vector<8x128xf32>
    %230 = math.exp %229 : vector<8x128xf32>
    %cst_114 = arith.constant 1.000000e+00 : f32
    %231 = vector.broadcast %cst_114 : f32 to vector<8x128xf32>
    %232 = arith.addf %231, %230 : vector<8x128xf32>
    %233 = arith.divf %231, %232 : vector<8x128xf32>
    %234 = arith.mulf %225, %169 : vector<8x128xf32>
    %235 = arith.mulf %219, %227 : vector<8x128xf32>
    %236 = arith.addf %234, %235 : vector<8x128xf32>
    %237 = math.tanh %236 : vector<8x128xf32>
    %238 = arith.mulf %233, %237 : vector<8x128xf32>
    %c0_115 = arith.constant 0 : index
    %c0_116 = arith.constant 0 : index
    %239 = vector.load %arg13[%c0_115, %c0_116] : memref<8x128xf32, #tpu.memory_space<vmem>>, vector<8x128xf32>
    tpu.vector_store %arg13[%c0_115, %c0_116], %238 {strides = array<i32>} : memref<8x128xf32, #tpu.memory_space<vmem>>, vector<8x128xf32>,
    %c0_117 = arith.constant 0 : index
    %c0_118 = arith.constant 0 : index
    %240 = vector.load %arg14[%c0_117, %c0_118] : memref<8x128xf32, #tpu.memory_space<vmem>>, vector<8x128xf32>
    tpu.vector_store %arg14[%c0_117, %c0_118], %236 {strides = array<i32>} : memref<8x128xf32, #tpu.memory_space<vmem>>, vector<8x128xf32>,
    %241 = arith.truncf %238 : vector<8x128xf32> to vector<8x128xbf16>
    %242 = arith.index_cast %c2_i32 : i32 to index
    %c0_119 = arith.constant 0 : index
    %c0_120 = arith.constant 0 : index
    %243 = vector.load %arg11[%242, %c0_119, %c0_120] : memref<5x8x128xbf16, #tpu.memory_space<vmem>>, vector<1x8x128xbf16>
    %244 = vector.shape_cast %243 : vector<1x8x128xbf16> to vector<8x128xbf16>
    %245 = vector.shape_cast %241 : vector<8x128xbf16> to vector<1x8x128xbf16>
    tpu.vector_store %arg11[%242, %c0_119, %c0_120], %245 {strides = array<i32>} : memref<5x8x128xbf16, #tpu.memory_space<vmem>>, vector<1x8x128xbf16>,
    %246 = arith.index_cast %c2_i32 : i32 to index
    %c0_121 = arith.constant 0 : index
    %c0_122 = arith.constant 0 : index
    %247 = vector.load %arg12[%246, %c0_121, %c0_122] : memref<5x8x8xf32, #tpu.memory_space<vmem>>, vector<1x8x8xf32>
    %248 = vector.shape_cast %247 : vector<1x8x8xf32> to vector<8x8xf32>
    %249 = vector.shape_cast %200 : vector<8x8xf32> to vector<1x8x8xf32>
    tpu.vector_store %arg12[%246, %c0_121, %c0_122], %249 {strides = array<i32>} : memref<5x8x8xf32, #tpu.memory_space<vmem>>, vector<1x8x8xf32>,
    %c3_i32 = arith.constant 3 : i32
    %c0_123 = arith.constant 0 : index
    %c0_124 = arith.constant 0 : index
    %250 = vector.load %arg13[%c0_123, %c0_124] : memref<8x128xf32, #tpu.memory_space<vmem>>, vector<8x128xf32>
    %c0_125 = arith.constant 0 : index
    %c0_126 = arith.constant 0 : index
    %251 = vector.load %arg14[%c0_125, %c0_126] : memref<8x128xf32, #tpu.memory_space<vmem>>, vector<8x128xf32>
    %252 = arith.truncf %250 : vector<8x128xf32> to vector<8x128xbf16>
    %c0_127 = arith.constant 0 : index
    %c0_128 = arith.constant 0 : index
    %253 = vector.load %arg6[%c0_127, %c0_128] : memref<128x640xbf16, #tpu.memory_space<vmem>>, vector<128x640xbf16>
    %cst_129 = arith.constant dense<0.000000e+00> : vector<8x640xf32>
    %254 = tpu.matmul %252, %253, %cst_129 {dimension_numbers = #tpu.dot_dimension_numbers<[1], [0], [0], [1], [0, 0, 1, 1], [], []>} : vector<8x128xbf16>, vector<128x640xbf16>, vector<8x640xf32> -> vector<8x640xf32>
    %255 = vector.extract_strided_slice %254 {offsets = [0, 0], sizes = [8, 128], strides = [1, 1]} : vector<8x640xf32> to vector<8x128xf32>
    %c0_130 = arith.constant 0 : index
    %c0_131 = arith.constant 0 : index
    %256 = vector.load %arg7[%c0_130, %c0_131] : memref<1x128xf32, #tpu.memory_space<vmem>>, vector<1x128xf32>
    %257 = vector.broadcast %256 : vector<1x128xf32> to vector<8x128xf32>
    %258 = arith.addf %255, %257 : vector<8x128xf32>
    %259 = vector.extract_strided_slice %254 {offsets = [0, 128], sizes = [8, 512], strides = [1, 1]} : vector<8x640xf32> to vector<8x512xf32>
    %c0_132 = arith.constant 0 : index
    %c0_133 = arith.constant 0 : index
    %c0_134 = arith.constant 0 : index
    %260 = vector.load %arg3[%c0_132, %c0_133, %c0_134] : memref<8x8x128xf32, #tpu.memory_space<vmem>>, vector<8x8x128xf32>
    %261 = vector.shape_cast %258 : vector<8x128xf32> to vector<8x1x128xf32>
    %262 = vector.broadcast %261 : vector<8x1x128xf32> to vector<8x8x128xf32>
    %263 = arith.addf %260, %262 : vector<8x8x128xf32>
    %264 = math.tanh %263 : vector<8x8x128xf32>
    %c0_135 = arith.constant 0 : index
    %c0_136 = arith.constant 0 : index
    %265 = vector.load %arg8[%c0_135, %c0_136] : memref<1x128xf32, #tpu.memory_space<vmem>>, vector<1x128xf32>
    %266 = vector.shape_cast %265 : vector<1x128xf32> to vector<1x1x128xf32>
    %267 = vector.broadcast %266 : vector<1x1x128xf32> to vector<8x8x128xf32>
    %268 = arith.mulf %264, %267 : vector<8x8x128xf32>
    %cst_137 = arith.constant dense<0.000000e+00> : vector<8x8xf32>
    %269 = vector.multi_reduction <add>, %268, %cst_137 [2] : vector<8x8x128xf32> to vector<8x8xf32>
    %c0_138 = arith.constant 0 : index
    %c0_139 = arith.constant 0 : index
    %270 = vector.load %arg9[%c0_138, %c0_139] : memref<1x1xf32, #tpu.memory_space<vmem>>, vector<1x1xf32>
    %271 = vector.broadcast %270 : vector<1x1xf32> to vector<8x8xf32>
    %272 = arith.addf %269, %271 : vector<8x8xf32>
    %cst_140 = arith.constant dense<0xFF800000> : vector<8xf32>
    %273 = vector.multi_reduction <maximumf>, %272, %cst_140 [1] : vector<8x8xf32> to vector<8xf32>
    %274 = vector.shape_cast %273 : vector<8xf32> to vector<8x1xf32>
    %275 = vector.broadcast %274 : vector<8x1xf32> to vector<8x8xf32>
    %276 = arith.subf %272, %275 : vector<8x8xf32>
    %277 = math.exp %276 : vector<8x8xf32>
    %cst_141 = arith.constant dense<0.000000e+00> : vector<8xf32>
    %278 = vector.multi_reduction <add>, %277, %cst_141 [1] : vector<8x8xf32> to vector<8xf32>
    %279 = vector.shape_cast %278 : vector<8xf32> to vector<8x1xf32>
    %280 = tpu.reciprocal %279 {approx = true} : vector<8x1xf32> -> vector<8x1xf32>
    %281 = vector.broadcast %280 : vector<8x1xf32> to vector<8x8xf32>
    %282 = arith.mulf %277, %281 : vector<8x8xf32>
    %c0_142 = arith.constant 0 : index
    %c0_143 = arith.constant 0 : index
    %c0_144 = arith.constant 0 : index
    %283 = vector.load %arg2[%c0_142, %c0_143, %c0_144] : memref<8x8x128xf32, #tpu.memory_space<vmem>>, vector<8x8x128xf32>
    %284 = vector.shape_cast %282 : vector<8x8xf32> to vector<8x8x1xf32>
    %285 = vector.broadcast %284 : vector<8x8x1xf32> to vector<8x8x128xf32>
    %286 = arith.mulf %283, %285 : vector<8x8x128xf32>
    %cst_145 = arith.constant dense<0.000000e+00> : vector<8x128xf32>
    %287 = vector.multi_reduction <add>, %286, %cst_145 [1] : vector<8x8x128xf32> to vector<8x128xf32>
    %288 = arith.index_cast %c3_i32 : i32 to index
    %c0_146 = arith.constant 0 : index
    %c0_147 = arith.constant 0 : index
    %289 = vector.load %arg1[%288, %c0_146, %c0_147] : memref<5x8x512xf32, #tpu.memory_space<vmem>>, vector<1x8x512xf32>
    %290 = vector.shape_cast %289 : vector<1x8x512xf32> to vector<8x512xf32>
    %291 = arith.truncf %287 : vector<8x128xf32> to vector<8x128xbf16>
    %c0_148 = arith.constant 0 : index
    %c0_149 = arith.constant 0 : index
    %292 = vector.load %arg10[%c0_148, %c0_149] : memref<128x512xbf16, #tpu.memory_space<vmem>>, vector<128x512xbf16>
    %cst_150 = arith.constant dense<0.000000e+00> : vector<8x512xf32>
    %293 = tpu.matmul %291, %292, %cst_150 {dimension_numbers = #tpu.dot_dimension_numbers<[1], [0], [0], [1], [0, 0, 1, 1], [], []>} : vector<8x128xbf16>, vector<128x512xbf16>, vector<8x512xf32> -> vector<8x512xf32>
    %294 = arith.addf %290, %293 : vector<8x512xf32>
    %295 = arith.addf %294, %259 : vector<8x512xf32>
    %296 = vector.extract_strided_slice %295 {offsets = [0, 0], sizes = [8, 128], strides = [1, 1]} : vector<8x512xf32> to vector<8x128xf32>
    %297 = arith.negf %296 : vector<8x128xf32>
    %298 = math.exp %297 : vector<8x128xf32>
    %cst_151 = arith.constant 1.000000e+00 : f32
    %299 = vector.broadcast %cst_151 : f32 to vector<8x128xf32>
    %300 = arith.addf %299, %298 : vector<8x128xf32>
    %301 = arith.divf %299, %300 : vector<8x128xf32>
    %302 = vector.extract_strided_slice %295 {offsets = [0, 128], sizes = [8, 128], strides = [1, 1]} : vector<8x512xf32> to vector<8x128xf32>
    %303 = arith.negf %302 : vector<8x128xf32>
    %304 = math.exp %303 : vector<8x128xf32>
    %cst_152 = arith.constant 1.000000e+00 : f32
    %305 = vector.broadcast %cst_152 : f32 to vector<8x128xf32>
    %306 = arith.addf %305, %304 : vector<8x128xf32>
    %307 = arith.divf %305, %306 : vector<8x128xf32>
    %308 = vector.extract_strided_slice %295 {offsets = [0, 256], sizes = [8, 128], strides = [1, 1]} : vector<8x512xf32> to vector<8x128xf32>
    %309 = math.tanh %308 : vector<8x128xf32>
    %310 = vector.extract_strided_slice %295 {offsets = [0, 384], sizes = [8, 128], strides = [1, 1]} : vector<8x512xf32> to vector<8x128xf32>
    %311 = arith.negf %310 : vector<8x128xf32>
    %312 = math.exp %311 : vector<8x128xf32>
    %cst_153 = arith.constant 1.000000e+00 : f32
    %313 = vector.broadcast %cst_153 : f32 to vector<8x128xf32>
    %314 = arith.addf %313, %312 : vector<8x128xf32>
    %315 = arith.divf %313, %314 : vector<8x128xf32>
    %316 = arith.mulf %307, %251 : vector<8x128xf32>
    %317 = arith.mulf %301, %309 : vector<8x128xf32>
    %318 = arith.addf %316, %317 : vector<8x128xf32>
    %319 = math.tanh %318 : vector<8x128xf32>
    %320 = arith.mulf %315, %319 : vector<8x128xf32>
    %c0_154 = arith.constant 0 : index
    %c0_155 = arith.constant 0 : index
    %321 = vector.load %arg13[%c0_154, %c0_155] : memref<8x128xf32, #tpu.memory_space<vmem>>, vector<8x128xf32>
    tpu.vector_store %arg13[%c0_154, %c0_155], %320 {strides = array<i32>} : memref<8x128xf32, #tpu.memory_space<vmem>>, vector<8x128xf32>,
    %c0_156 = arith.constant 0 : index
    %c0_157 = arith.constant 0 : index
    %322 = vector.load %arg14[%c0_156, %c0_157] : memref<8x128xf32, #tpu.memory_space<vmem>>, vector<8x128xf32>
    tpu.vector_store %arg14[%c0_156, %c0_157], %318 {strides = array<i32>} : memref<8x128xf32, #tpu.memory_space<vmem>>, vector<8x128xf32>,
    %323 = arith.truncf %320 : vector<8x128xf32> to vector<8x128xbf16>
    %324 = arith.index_cast %c3_i32 : i32 to index
    %c0_158 = arith.constant 0 : index
    %c0_159 = arith.constant 0 : index
    %325 = vector.load %arg11[%324, %c0_158, %c0_159] : memref<5x8x128xbf16, #tpu.memory_space<vmem>>, vector<1x8x128xbf16>
    %326 = vector.shape_cast %325 : vector<1x8x128xbf16> to vector<8x128xbf16>
    %327 = vector.shape_cast %323 : vector<8x128xbf16> to vector<1x8x128xbf16>
    tpu.vector_store %arg11[%324, %c0_158, %c0_159], %327 {strides = array<i32>} : memref<5x8x128xbf16, #tpu.memory_space<vmem>>, vector<1x8x128xbf16>,
    %328 = arith.index_cast %c3_i32 : i32 to index
    %c0_160 = arith.constant 0 : index
    %c0_161 = arith.constant 0 : index
    %329 = vector.load %arg12[%328, %c0_160, %c0_161] : memref<5x8x8xf32, #tpu.memory_space<vmem>>, vector<1x8x8xf32>
    %330 = vector.shape_cast %329 : vector<1x8x8xf32> to vector<8x8xf32>
    %331 = vector.shape_cast %282 : vector<8x8xf32> to vector<1x8x8xf32>
    tpu.vector_store %arg12[%328, %c0_160, %c0_161], %331 {strides = array<i32>} : memref<5x8x8xf32, #tpu.memory_space<vmem>>, vector<1x8x8xf32>,
    %c4_i32 = arith.constant 4 : i32
    %c0_162 = arith.constant 0 : index
    %c0_163 = arith.constant 0 : index
    %332 = vector.load %arg13[%c0_162, %c0_163] : memref<8x128xf32, #tpu.memory_space<vmem>>, vector<8x128xf32>
    %c0_164 = arith.constant 0 : index
    %c0_165 = arith.constant 0 : index
    %333 = vector.load %arg14[%c0_164, %c0_165] : memref<8x128xf32, #tpu.memory_space<vmem>>, vector<8x128xf32>
    %334 = arith.truncf %332 : vector<8x128xf32> to vector<8x128xbf16>
    %c0_166 = arith.constant 0 : index
    %c0_167 = arith.constant 0 : index
    %335 = vector.load %arg6[%c0_166, %c0_167] : memref<128x640xbf16, #tpu.memory_space<vmem>>, vector<128x640xbf16>
    %cst_168 = arith.constant dense<0.000000e+00> : vector<8x640xf32>
    %336 = tpu.matmul %334, %335, %cst_168 {dimension_numbers = #tpu.dot_dimension_numbers<[1], [0], [0], [1], [0, 0, 1, 1], [], []>} : vector<8x128xbf16>, vector<128x640xbf16>, vector<8x640xf32> -> vector<8x640xf32>
    %337 = vector.extract_strided_slice %336 {offsets = [0, 0], sizes = [8, 128], strides = [1, 1]} : vector<8x640xf32> to vector<8x128xf32>
    %c0_169 = arith.constant 0 : index
    %c0_170 = arith.constant 0 : index
    %338 = vector.load %arg7[%c0_169, %c0_170] : memref<1x128xf32, #tpu.memory_space<vmem>>, vector<1x128xf32>
    %339 = vector.broadcast %338 : vector<1x128xf32> to vector<8x128xf32>
    %340 = arith.addf %337, %339 : vector<8x128xf32>
    %341 = vector.extract_strided_slice %336 {offsets = [0, 128], sizes = [8, 512], strides = [1, 1]} : vector<8x640xf32> to vector<8x512xf32>
    %c0_171 = arith.constant 0 : index
    %c0_172 = arith.constant 0 : index
    %c0_173 = arith.constant 0 : index
    %342 = vector.load %arg3[%c0_171, %c0_172, %c0_173] : memref<8x8x128xf32, #tpu.memory_space<vmem>>, vector<8x8x128xf32>
    %343 = vector.shape_cast %340 : vector<8x128xf32> to vector<8x1x128xf32>
    %344 = vector.broadcast %343 : vector<8x1x128xf32> to vector<8x8x128xf32>
    %345 = arith.addf %342, %344 : vector<8x8x128xf32>
    %346 = math.tanh %345 : vector<8x8x128xf32>
    %c0_174 = arith.constant 0 : index
    %c0_175 = arith.constant 0 : index
    %347 = vector.load %arg8[%c0_174, %c0_175] : memref<1x128xf32, #tpu.memory_space<vmem>>, vector<1x128xf32>
    %348 = vector.shape_cast %347 : vector<1x128xf32> to vector<1x1x128xf32>
    %349 = vector.broadcast %348 : vector<1x1x128xf32> to vector<8x8x128xf32>
    %350 = arith.mulf %346, %349 : vector<8x8x128xf32>
    %cst_176 = arith.constant dense<0.000000e+00> : vector<8x8xf32>
    %351 = vector.multi_reduction <add>, %350, %cst_176 [2] : vector<8x8x128xf32> to vector<8x8xf32>
    %c0_177 = arith.constant 0 : index
    %c0_178 = arith.constant 0 : index
    %352 = vector.load %arg9[%c0_177, %c0_178] : memref<1x1xf32, #tpu.memory_space<vmem>>, vector<1x1xf32>
    %353 = vector.broadcast %352 : vector<1x1xf32> to vector<8x8xf32>
    %354 = arith.addf %351, %353 : vector<8x8xf32>
    %cst_179 = arith.constant dense<0xFF800000> : vector<8xf32>
    %355 = vector.multi_reduction <maximumf>, %354, %cst_179 [1] : vector<8x8xf32> to vector<8xf32>
    %356 = vector.shape_cast %355 : vector<8xf32> to vector<8x1xf32>
    %357 = vector.broadcast %356 : vector<8x1xf32> to vector<8x8xf32>
    %358 = arith.subf %354, %357 : vector<8x8xf32>
    %359 = math.exp %358 : vector<8x8xf32>
    %cst_180 = arith.constant dense<0.000000e+00> : vector<8xf32>
    %360 = vector.multi_reduction <add>, %359, %cst_180 [1] : vector<8x8xf32> to vector<8xf32>
    %361 = vector.shape_cast %360 : vector<8xf32> to vector<8x1xf32>
    %362 = tpu.reciprocal %361 {approx = true} : vector<8x1xf32> -> vector<8x1xf32>
    %363 = vector.broadcast %362 : vector<8x1xf32> to vector<8x8xf32>
    %364 = arith.mulf %359, %363 : vector<8x8xf32>
    %c0_181 = arith.constant 0 : index
    %c0_182 = arith.constant 0 : index
    %c0_183 = arith.constant 0 : index
    %365 = vector.load %arg2[%c0_181, %c0_182, %c0_183] : memref<8x8x128xf32, #tpu.memory_space<vmem>>, vector<8x8x128xf32>
    %366 = vector.shape_cast %364 : vector<8x8xf32> to vector<8x8x1xf32>
    %367 = vector.broadcast %366 : vector<8x8x1xf32> to vector<8x8x128xf32>
    %368 = arith.mulf %365, %367 : vector<8x8x128xf32>
    %cst_184 = arith.constant dense<0.000000e+00> : vector<8x128xf32>
    %369 = vector.multi_reduction <add>, %368, %cst_184 [1] : vector<8x8x128xf32> to vector<8x128xf32>
    %370 = arith.index_cast %c4_i32 : i32 to index
    %c0_185 = arith.constant 0 : index
    %c0_186 = arith.constant 0 : index
    %371 = vector.load %arg1[%370, %c0_185, %c0_186] : memref<5x8x512xf32, #tpu.memory_space<vmem>>, vector<1x8x512xf32>
    %372 = vector.shape_cast %371 : vector<1x8x512xf32> to vector<8x512xf32>
    %373 = arith.truncf %369 : vector<8x128xf32> to vector<8x128xbf16>
    %c0_187 = arith.constant 0 : index
    %c0_188 = arith.constant 0 : index
    %374 = vector.load %arg10[%c0_187, %c0_188] : memref<128x512xbf16, #tpu.memory_space<vmem>>, vector<128x512xbf16>
    %cst_189 = arith.constant dense<0.000000e+00> : vector<8x512xf32>
    %375 = tpu.matmul %373, %374, %cst_189 {dimension_numbers = #tpu.dot_dimension_numbers<[1], [0], [0], [1], [0, 0, 1, 1], [], []>} : vector<8x128xbf16>, vector<128x512xbf16>, vector<8x512xf32> -> vector<8x512xf32>
    %376 = arith.addf %372, %375 : vector<8x512xf32>
    %377 = arith.addf %376, %341 : vector<8x512xf32>
    %378 = vector.extract_strided_slice %377 {offsets = [0, 0], sizes = [8, 128], strides = [1, 1]} : vector<8x512xf32> to vector<8x128xf32>
    %379 = arith.negf %378 : vector<8x128xf32>
    %380 = math.exp %379 : vector<8x128xf32>
    %cst_190 = arith.constant 1.000000e+00 : f32
    %381 = vector.broadcast %cst_190 : f32 to vector<8x128xf32>
    %382 = arith.addf %381, %380 : vector<8x128xf32>
    %383 = arith.divf %381, %382 : vector<8x128xf32>
    %384 = vector.extract_strided_slice %377 {offsets = [0, 128], sizes = [8, 128], strides = [1, 1]} : vector<8x512xf32> to vector<8x128xf32>
    %385 = arith.negf %384 : vector<8x128xf32>
    %386 = math.exp %385 : vector<8x128xf32>
    %cst_191 = arith.constant 1.000000e+00 : f32
    %387 = vector.broadcast %cst_191 : f32 to vector<8x128xf32>
    %388 = arith.addf %387, %386 : vector<8x128xf32>
    %389 = arith.divf %387, %388 : vector<8x128xf32>
    %390 = vector.extract_strided_slice %377 {offsets = [0, 256], sizes = [8, 128], strides = [1, 1]} : vector<8x512xf32> to vector<8x128xf32>
    %391 = math.tanh %390 : vector<8x128xf32>
    %392 = vector.extract_strided_slice %377 {offsets = [0, 384], sizes = [8, 128], strides = [1, 1]} : vector<8x512xf32> to vector<8x128xf32>
    %393 = arith.negf %392 : vector<8x128xf32>
    %394 = math.exp %393 : vector<8x128xf32>
    %cst_192 = arith.constant 1.000000e+00 : f32
    %395 = vector.broadcast %cst_192 : f32 to vector<8x128xf32>
    %396 = arith.addf %395, %394 : vector<8x128xf32>
    %397 = arith.divf %395, %396 : vector<8x128xf32>
    %398 = arith.mulf %389, %333 : vector<8x128xf32>
    %399 = arith.mulf %383, %391 : vector<8x128xf32>
    %400 = arith.addf %398, %399 : vector<8x128xf32>
    %401 = math.tanh %400 : vector<8x128xf32>
    %402 = arith.mulf %397, %401 : vector<8x128xf32>
    %c0_193 = arith.constant 0 : index
    %c0_194 = arith.constant 0 : index
    %403 = vector.load %arg13[%c0_193, %c0_194] : memref<8x128xf32, #tpu.memory_space<vmem>>, vector<8x128xf32>
    tpu.vector_store %arg13[%c0_193, %c0_194], %402 {strides = array<i32>} : memref<8x128xf32, #tpu.memory_space<vmem>>, vector<8x128xf32>,
    %c0_195 = arith.constant 0 : index
    %c0_196 = arith.constant 0 : index
    %404 = vector.load %arg14[%c0_195, %c0_196] : memref<8x128xf32, #tpu.memory_space<vmem>>, vector<8x128xf32>
    tpu.vector_store %arg14[%c0_195, %c0_196], %400 {strides = array<i32>} : memref<8x128xf32, #tpu.memory_space<vmem>>, vector<8x128xf32>,
    %405 = arith.truncf %402 : vector<8x128xf32> to vector<8x128xbf16>
    %406 = arith.index_cast %c4_i32 : i32 to index
    %c0_197 = arith.constant 0 : index
    %c0_198 = arith.constant 0 : index
    %407 = vector.load %arg11[%406, %c0_197, %c0_198] : memref<5x8x128xbf16, #tpu.memory_space<vmem>>, vector<1x8x128xbf16>
    %408 = vector.shape_cast %407 : vector<1x8x128xbf16> to vector<8x128xbf16>
    %409 = vector.shape_cast %405 : vector<8x128xbf16> to vector<1x8x128xbf16>
    tpu.vector_store %arg11[%406, %c0_197, %c0_198], %409 {strides = array<i32>} : memref<5x8x128xbf16, #tpu.memory_space<vmem>>, vector<1x8x128xbf16>,
    %410 = arith.index_cast %c4_i32 : i32 to index
    %c0_199 = arith.constant 0 : index
    %c0_200 = arith.constant 0 : index
    %411 = vector.load %arg12[%410, %c0_199, %c0_200] : memref<5x8x8xf32, #tpu.memory_space<vmem>>, vector<1x8x8xf32>
    %412 = vector.shape_cast %411 : vector<1x8x8xf32> to vector<8x8xf32>
    %413 = vector.shape_cast %364 : vector<8x8xf32> to vector<1x8x8xf32>
    tpu.vector_store %arg12[%410, %c0_199, %c0_200], %413 {strides = array<i32>} : memref<5x8x8xf32, #tpu.memory_space<vmem>>, vector<1x8x8xf32>,
    %c5_i32 = arith.constant 5 : i32
    return
  }
  func.func @transform_0(%arg0: i32) -> (i32, i32, i32) {
    %c0_i32 = arith.constant 0 : i32
    %c0_i32_0 = arith.constant 0 : i32
    %c0_i32_1 = arith.constant 0 : i32
    return %c0_i32, %arg0, %c0_i32_0 : i32, i32, i32
  }
  func.func @transform_1(%arg0: i32) -> (i32, i32, i32) {
    %c0_i32 = arith.constant 0 : i32
    %c0_i32_0 = arith.constant 0 : i32
    %c0_i32_1 = arith.constant 0 : i32
    return %arg0, %c0_i32, %c0_i32_0 : i32, i32, i32
  }
  func.func @transform_2(%arg0: i32) -> (i32, i32, i32) {
    %c0_i32 = arith.constant 0 : i32
    %c0_i32_0 = arith.constant 0 : i32
    %c0_i32_1 = arith.constant 0 : i32
    return %arg0, %c0_i32, %c0_i32_0 : i32, i32, i32
  }
  func.func @transform_3(%arg0: i32) -> (i32, i32) {
    %c0_i32 = arith.constant 0 : i32
    %c0_i32_0 = arith.constant 0 : i32
    return %arg0, %c0_i32 : i32, i32
  }
  func.func @transform_4(%arg0: i32) -> (i32, i32) {
    %c0_i32 = arith.constant 0 : i32
    %c0_i32_0 = arith.constant 0 : i32
    return %arg0, %c0_i32 : i32, i32
  }
  func.func @transform_5(%arg0: i32) -> (i32, i32) {
    %c0_i32 = arith.constant 0 : i32
    %c0_i32_0 = arith.constant 0 : i32
    %c0_i32_1 = arith.constant 0 : i32
    return %c0_i32, %c0_i32_0 : i32, i32
  }
  func.func @transform_6(%arg0: i32) -> (i32, i32) {
    %c0_i32 = arith.constant 0 : i32
    %c0_i32_0 = arith.constant 0 : i32
    %c0_i32_1 = arith.constant 0 : i32
    return %c0_i32, %c0_i32_0 : i32, i32
  }
  func.func @transform_7(%arg0: i32) -> (i32, i32) {
    %c0_i32 = arith.constant 0 : i32
    %c0_i32_0 = arith.constant 0 : i32
    %c0_i32_1 = arith.constant 0 : i32
    return %c0_i32, %c0_i32_0 : i32, i32
  }
  func.func @transform_8(%arg0: i32) -> (i32, i32) {
    %c0_i32 = arith.constant 0 : i32
    %c0_i32_0 = arith.constant 0 : i32
    %c0_i32_1 = arith.constant 0 : i32
    return %c0_i32, %c0_i32_0 : i32, i32
  }
  func.func @transform_9(%arg0: i32) -> (i32, i32) {
    %c0_i32 = arith.constant 0 : i32
    %c0_i32_0 = arith.constant 0 : i32
    %c0_i32_1 = arith.constant 0 : i32
    return %c0_i32, %c0_i32_0 : i32, i32
  }
  func.func @transform_10(%arg0: i32) -> (i32, i32, i32) {
    %c0_i32 = arith.constant 0 : i32
    %c0_i32_0 = arith.constant 0 : i32
    %c0_i32_1 = arith.constant 0 : i32
    return %c0_i32, %arg0, %c0_i32_0 : i32, i32, i32
  }
  func.func @transform_11(%arg0: i32) -> (i32, i32, i32) {
    %c0_i32 = arith.constant 0 : i32
    %c0_i32_0 = arith.constant 0 : i32
    %c0_i32_1 = arith.constant 0 : i32
    return %c0_i32, %arg0, %c0_i32_0 : i32, i32, i32
  }
}

module attributes {stable_mosaic.version = 11 : i64} {
  func.func @vocab_proj_kernel(%arg0: i32, %arg1: i32, %arg2: memref<40x128xbf16, #tpu.memory_space<vmem>>, %arg3: memref<128x256xbf16, #tpu.memory_space<vmem>>, %arg4: memref<1x256xf32, #tpu.memory_space<vmem>>, %arg5: memref<40x256xf32, #tpu.memory_space<vmem>>) attributes {dimension_semantics = [#tpu.dimension_semantics<parallel>, #tpu.dimension_semantics<parallel>], iteration_bounds = array<i64: 1, 1>, scalar_prefetch = 0 : i64, scratch_operands = 0 : i64, tpu.core_type = #tpu.core_type<tc>, window_params = [{transform_indices = @transform_0, window_bounds = array<i64: 40, 128>}, {transform_indices = @transform_1, window_bounds = array<i64: 128, 256>}, {transform_indices = @transform_2, window_bounds = array<i64: 1, 256>}, {transform_indices = @transform_3, window_bounds = array<i64: 40, 256>}]} {
    %c0 = arith.constant 0 : index
    %c0_0 = arith.constant 0 : index
    %0 = vector.load %arg2[%c0, %c0_0] : memref<40x128xbf16, #tpu.memory_space<vmem>>, vector<40x128xbf16>
    %c0_1 = arith.constant 0 : index
    %c0_2 = arith.constant 0 : index
    %1 = vector.load %arg3[%c0_1, %c0_2] : memref<128x256xbf16, #tpu.memory_space<vmem>>, vector<128x256xbf16>
    %cst = arith.constant dense<0.000000e+00> : vector<40x256xf32>
    %2 = tpu.matmul %0, %1, %cst {dimension_numbers = #tpu.dot_dimension_numbers<[1], [0], [0], [1], [0, 0, 1, 1], [], []>} : vector<40x128xbf16>, vector<128x256xbf16>, vector<40x256xf32> -> vector<40x256xf32>
    %c0_3 = arith.constant 0 : index
    %c0_4 = arith.constant 0 : index
    %3 = vector.load %arg4[%c0_3, %c0_4] : memref<1x256xf32, #tpu.memory_space<vmem>>, vector<1x256xf32>
    %4 = vector.broadcast %3 : vector<1x256xf32> to vector<40x256xf32>
    %5 = arith.addf %2, %4 : vector<40x256xf32>
    %c0_5 = arith.constant 0 : index
    %c0_6 = arith.constant 0 : index
    %6 = vector.load %arg5[%c0_5, %c0_6] : memref<40x256xf32, #tpu.memory_space<vmem>>, vector<40x256xf32>
    tpu.vector_store %arg5[%c0_5, %c0_6], %5 {strides = array<i32>} : memref<40x256xf32, #tpu.memory_space<vmem>>, vector<40x256xf32>,
    return
  }
  func.func @transform_0(%arg0: i32, %arg1: i32) -> (i32, i32) {
    %c0_i32 = arith.constant 0 : i32
    %c0_i32_0 = arith.constant 0 : i32
    return %arg0, %c0_i32 : i32, i32
  }
  func.func @transform_1(%arg0: i32, %arg1: i32) -> (i32, i32) {
    %c0_i32 = arith.constant 0 : i32
    %c0_i32_0 = arith.constant 0 : i32
    return %c0_i32, %arg1 : i32, i32
  }
  func.func @transform_2(%arg0: i32, %arg1: i32) -> (i32, i32) {
    %c0_i32 = arith.constant 0 : i32
    %c0_i32_0 = arith.constant 0 : i32
    return %c0_i32, %arg1 : i32, i32
  }
  func.func @transform_3(%arg0: i32, %arg1: i32) -> (i32, i32) {
    %c0_i32 = arith.constant 0 : i32
    return %arg0, %arg1 : i32, i32
  }
}

</mosaic_0001>

<llo_original>
// kernel: decoder_forward.3
$region0: #{decoder_forward.3}
  #allocation0 [shape = 'u32[]', space=smem, size = 0x4, offset = 0x4, fixed_abs, tag = 'smem constant byte address 0x4 - core index']
  #allocation1 [shape = 'u32[144,128]{1,0:T(1,128)}', space=vmem, size = 0x12000, scoped, tag = 'internal scratch']
  %s0 = inlined_call_operand.vmem [shape: bf16[40,128], index: 0, kind: input, shape index: {}]
  %s1 = inlined_call_operand.vmem [shape: bf16[128,256], index: 1, kind: input, shape index: {}]
  %s2 = inlined_call_operand.vmem [shape: f32[1,256], index: 2, kind: input, shape index: {}]
  %s3 = inlined_call_operand.vmem [shape: f32[40,256], index: 3, kind: output, shape index: {}]
  %s4 = sld [smem:[#allocation0]]
  $region22: #{decoder_forward.3} parent=0
    _
  %s6 = ssub.s32 1, %s4
  %s7 = scalar_select 0, %s6, %s4
  // Predicated region
  $region2: #{decoder_forward.3} parent=0 // pred_check
    _
  $region3: #{decoder_forward.3} parent=0 // pred_check_branch
    %9 = sbr.rel (0) target = $region5
  $region4: #{decoder_forward.3} parent=0 // pred_region
    _
  $region5: #{decoder_forward.3} parent=0 // pred_fallthru
    _
  // Predicated region
  $region6: #{decoder_forward.3} parent=0 // pred_check
    _
  $region7: #{decoder_forward.3} parent=0 // pred_check_branch
    %11 = sbr.rel (0) target = $region9
  $region8: #{decoder_forward.3} parent=0 // pred_region
    _
  $region9: #{decoder_forward.3} parent=0 // pred_fallthru
    _
  // Predicated region
  $region10: #{decoder_forward.3} parent=0 // pred_check
    _
  $region11: #{decoder_forward.3} parent=0 // pred_check_branch
    %13 = sbr.rel (0) target = $region13
  $region12: #{decoder_forward.3} parent=0 // pred_region
    _
  $region13: #{decoder_forward.3} parent=0 // pred_fallthru
    _
  %v15 = vld [vmem:[%s0] sm:$0xf]
  %v16 = vld [vmem:[%s0 + $0x4] sm:$0xf]
  %v17 = vld [vmem:[%s0 + $0x8] sm:$0xf]
  %v18 = vld [vmem:[%s0 + $0xc] sm:$0xf]
  %v19 = vld [vmem:[%s0 + $0x10] sm:$0xf]
  %v20 = vld [vmem:[%s1] sm:$0xff]
  %v21 = vld [vmem:[%s1 + $0x8] sm:$0xff]
  %v22 = vld [vmem:[%s1 + $0x10] sm:$0xff]
  %v23 = vld [vmem:[%s1 + $0x18] sm:$0xff]
  %v24 = vld [vmem:[%s1 + $0x20] sm:$0xff]
  %v25 = vld [vmem:[%s1 + $0x28] sm:$0xff]
  %v26 = vld [vmem:[%s1 + $0x30] sm:$0xff]
  %v27 = vld [vmem:[%s1 + $0x38] sm:$0xff]
  %v28 = vld [vmem:[%s1 + $0x40] sm:$0xff]
  %v29 = vld [vmem:[%s1 + $0x48] sm:$0xff]
  %v30 = vld [vmem:[%s1 + $0x50] sm:$0xff]
  %v31 = vld [vmem:[%s1 + $0x58] sm:$0xff]
  %v32 = vld [vmem:[%s1 + $0x60] sm:$0xff]
  %v33 = vld [vmem:[%s1 + $0x68] sm:$0xff]
  %v34 = vld [vmem:[%s1 + $0x70] sm:$0xff]
  %v35 = vld [vmem:[%s1 + $0x78] sm:$0xff]
  %v36 = vld [vmem:[%s2] sm:$0x3]
  %v38 = vlaneseq
  %v39 = vshrl.u32 %v38, 7
  %v40 = vsub.s32 0, %v39
  %v41 = vrot.slane %v36, %v40
  %v42 = vlaneseq
  %v43 = vshrl.u32 %v42, 7
  %v44 = vsub.s32 1, %v43
  %v45 = vrot.slane %v36, %v44
  %v53 = vunpack.c.l.b16 %v15
  %v54 = vunpack.c.l.b16 %v16
  %v55 = vunpack.c.l.b16 %v17
  %v56 = vunpack.c.l.b16 %v18
  %v57 = vunpack.c.l.b16 %v19
  %v58 = vpack.c.b16 %v54, %v53
  %v59 = vpack.c.b16 %v56, %v55
  %v60 = vpack.c.b16 %v57, %v57
  %v80 = vunpack.c.l.b16 %v20
  %v81 = vunpack.c.h.b16 %v20
  %v82 = vunpack.c.l.b16 %v21
  %v83 = vunpack.c.h.b16 %v21
  %v84 = vunpack.c.l.b16 %v22
  %v85 = vunpack.c.h.b16 %v22
  %v86 = vunpack.c.l.b16 %v23
  %v87 = vunpack.c.h.b16 %v23
  %v88 = vunpack.c.l.b16 %v24
  %v89 = vunpack.c.h.b16 %v24
  %v90 = vunpack.c.l.b16 %v25
  %v91 = vunpack.c.h.b16 %v25
  %v92 = vunpack.c.l.b16 %v26
  %v93 = vunpack.c.h.b16 %v26
  %v94 = vunpack.c.l.b16 %v27
  %v95 = vunpack.c.h.b16 %v27
  %v96 = vunpack.c.l.b16 %v28
  %v97 = vunpack.c.h.b16 %v28
  %v98 = vunpack.c.l.b16 %v29
  %v99 = vunpack.c.h.b16 %v29
  %v100 = vunpack.c.l.b16 %v30
  %v101 = vunpack.c.h.b16 %v30
  %v102 = vunpack.c.l.b16 %v31
  %v103 = vunpack.c.h.b16 %v31
  %v104 = vunpack.c.l.b16 %v32
  %v105 = vunpack.c.h.b16 %v32
  %v106 = vunpack.c.l.b16 %v33
  %v107 = vunpack.c.h.b16 %v33
  %v108 = vunpack.c.l.b16 %v34
  %v109 = vunpack.c.h.b16 %v34
  %v110 = vunpack.c.l.b16 %v35
  %v111 = vunpack.c.h.b16 %v35
  %v112 = vpack.c.b16 %v82, %v80
  %v113 = vpack.c.b16 %v83, %v81
  %v114 = vpack.c.b16 %v86, %v84
  %v115 = vpack.c.b16 %v87, %v85
  %v116 = vpack.c.b16 %v90, %v88
  %v117 = vpack.c.b16 %v91, %v89
  %v118 = vpack.c.b16 %v94, %v92
  %v119 = vpack.c.b16 %v95, %v93
  %v120 = vpack.c.b16 %v98, %v96
  %v121 = vpack.c.b16 %v99, %v97
  %v122 = vpack.c.b16 %v102, %v100
  %v123 = vpack.c.b16 %v103, %v101
  %v124 = vpack.c.b16 %v106, %v104
  %v125 = vpack.c.b16 %v107, %v105
  %v126 = vpack.c.b16 %v110, %v108
  %v127 = vpack.c.b16 %v111, %v109
  %144 = vmatprep.subr.bf16.mxu0 %v113
  %145 = vmatpush1.bf16.msra.mxu0 %v112
  %146 = vmatprep.subr.bf16.mxu0 %v115
  %147 = vmatpush1.bf16.msra.mxu0 %v114
  %148 = vmatprep.subr.bf16.mxu0 %v117
  %149 = vmatpush1.bf16.msra.mxu0 %v116
  %150 = vmatprep.subr.bf16.mxu0 %v119
  %151 = vmatpush1.bf16.msra.mxu0 %v118
  %152 = vmatprep.subr.bf16.mxu0 %v121
  %153 = vmatpush1.bf16.msra.mxu0 %v120
  %154 = vmatprep.subr.bf16.mxu0 %v123
  %155 = vmatpush1.bf16.msra.mxu0 %v122
  %156 = vmatprep.subr.bf16.mxu0 %v125
  %157 = vmatpush1.bf16.msra.mxu0 %v124
  %158 = vmatprep.subr.bf16.mxu0 %v127
  %159 = vmatpush1.bf16.msra.mxu0 %v126
  %160 = vmatprep.subr.bf16.mxu0 0
  %161 = vmatpush1.bf16.msra.mxu0 0
  %162 = vmatprep.subr.bf16.mxu0 0
  %163 = vmatpush1.bf16.msra.mxu0 0
  %164 = vmatprep.subr.bf16.mxu0 0
  %165 = vmatpush1.bf16.msra.mxu0 0
  %166 = vmatprep.subr.bf16.mxu0 0
  %167 = vmatpush1.bf16.msra.mxu0 0
  %168 = vmatprep.subr.bf16.mxu0 0
  %169 = vmatpush1.bf16.msra.mxu0 0
  %170 = vmatprep.subr.bf16.mxu0 0
  %171 = vmatpush1.bf16.msra.mxu0 0
  %172 = vmatprep.subr.bf16.mxu0 0
  %173 = vmatpush1.bf16.msra.mxu0 0
  %174 = vmatprep.subr.bf16.mxu0 0
  %175 = vmatpush1.bf16.msra.mxu0 0
  %176 = vmatprep.mubr.bf16.mxu0 0
  %177 = vmatmul.mubr.bf16.gmra.mrb[0].mxu0 %v58
  %v178 = vpop.f32.mrb[0].mxu0
  %v179 = vadd.f32 %v41, %v178
  %v180 = vpop.f32.mrb[0].mxu0
  %v181 = vadd.f32 %v45, %v180
  %v182 = vpop.f32.mrb[0].mxu0
  %v183 = vadd.f32 %v41, %v182
  %v184 = vpop.f32.mrb[0].mxu0
  %v185 = vadd.f32 %v45, %v184
  %186 = vmatprep.mubr.bf16.mxu0 0
  %187 = vmatmul.mubr.bf16.gmra.mrb[0].mxu0 %v59
  %v188 = vpop.f32.mrb[0].mxu0
  %v189 = vadd.f32 %v41, %v188
  %v190 = vpop.f32.mrb[0].mxu0
  %v191 = vadd.f32 %v45, %v190
  %v192 = vpop.f32.mrb[0].mxu0
  %v193 = vadd.f32 %v41, %v192
  %v194 = vpop.f32.mrb[0].mxu0
  %v195 = vadd.f32 %v45, %v194
  %196 = vmatprep.mubr.bf16.mxu0 0
  %197 = vmatmul.mubr.bf16.gmra.mrb[0].mxu0 %v60
  %v198 = vpop.f32.mrb[0].mxu0
  %v199 = vadd.f32 %v41, %v198
  %v200 = vpop.f32.mrb[0].mxu0
  %v201 = vadd.f32 %v45, %v200
  %v202 = vpop.f32.mrb[0].mxu0
  %v203 = vpop.f32.mrb[0].mxu0
  %204 = vdwg.mxu0
  %205 = vst [vmem:[%s3] sm:$0xff] %v179
  %206 = vst [vmem:[%s3 + $0x8] sm:$0xff] %v181
  %207 = vst [vmem:[%s3 + $0x10] sm:$0xff] %v183
  %208 = vst [vmem:[%s3 + $0x18] sm:$0xff] %v185
  %209 = vst [vmem:[%s3 + $0x20] sm:$0xff] %v189
  %210 = vst [vmem:[%s3 + $0x28] sm:$0xff] %v191
  %211 = vst [vmem:[%s3 + $0x30] sm:$0xff] %v193
  %212 = vst [vmem:[%s3 + $0x38] sm:$0xff] %v195
  %213 = vst [vmem:[%s3 + $0x40] sm:$0xff] %v199
  %214 = vst [vmem:[%s3 + $0x48] sm:$0xff] %v201
  // Predicated region
  $region14: #{decoder_forward.3} parent=0 // pred_check
    _
  $region15: #{decoder_forward.3} parent=0 // pred_check_branch
    %216 = sbr.rel (0) target = $region17
  $region16: #{decoder_forward.3} parent=0 // pred_region
    _
  $region17: #{decoder_forward.3} parent=0 // pred_fallthru
    _
  // Predicated region
  $region18: #{decoder_forward.3} parent=0 // pred_check
    _
  $region19: #{decoder_forward.3} parent=0 // pred_check_branch
    %218 = sbr.rel (0) target = $region21
  $region20: #{decoder_forward.3} parent=0 // pred_region
    _
  $region21: #{decoder_forward.3} parent=0 // pred_fallthru
    _

// kernel: decoder_forward.2
$region0: #{decoder_forward.2}
  #allocation0 [shape = 'u32[]', space=smem, size = 0x4, offset = 0x4, fixed_abs, tag = 'smem constant byte address 0x4 - core index']
  #allocation1 [shape = 'u32[144,128]{1,0:T(1,128)}', space=vmem, size = 0x12000, scoped, tag = 'internal scratch']
  #allocation2 [shape = 'f32[8,128]{1,0:T(8,128)}', space=vmem, size = 0x1000, scoped, tag = 'scratch operand']
  #allocation3 [shape = 'f32[8,128]{1,0:T(8,128)}', space=vmem, size = 0x1000, scoped, tag = 'scratch operand']
  #allocation4 [shape = 'f32[1,1]{1,0:T(1,128)S(1)}', space=vmem, size = 0x200, scoped, tag = 'scoped memory for decoder_forward.2']
  %s0 = inlined_call_operand.hbm [shape: f32[5,8,512], index: 0, kind: input, shape index: {}]
  %s1 = inlined_call_operand.hbm [shape: f32[8,8,128], index: 1, kind: input, shape index: {}]
  %s2 = inlined_call_operand.hbm [shape: f32[8,8,128], index: 2, kind: input, shape index: {}]
  %s3 = inlined_call_operand.hbm [shape: f32[8,128], index: 3, kind: input, shape index: {}]
  %s4 = inlined_call_operand.hbm [shape: f32[8,128], index: 4, kind: input, shape index: {}]
  %s5 = inlined_call_operand.hbm [shape: bf16[128,640], index: 5, kind: input, shape index: {}]
  %s6 = inlined_call_operand.hbm [shape: f32[1,128], index: 6, kind: input, shape index: {}]
  %s7 = inlined_call_operand.hbm [shape: f32[1,128], index: 7, kind: input, shape index: {}]
  %s8 = inlined_call_operand.<no memory space> [shape: f32[1,1], index: 8, kind: input, shape index: {}]
  %s9 = inlined_call_operand.hbm [shape: bf16[128,512], index: 9, kind: input, shape index: {}]
  %s10 = inlined_call_operand.hbm [shape: bf16[5,8,128], index: 10, kind: output, shape index: {0}]
  %s11 = inlined_call_operand.hbm [shape: f32[5,8,8], index: 11, kind: output, shape index: {1}]
  %12 = xla_tuple %s10, %s11
  %s13 = sld [smem:[#allocation0]]
  $region94: #{decoder_forward.2} parent=0
    _
  %s15 = ssub.s32 1, %s13
  %s16 = scalar_select 0, %s15, %s13
  %v17 = vstv %s8
  %18 = vst [vmem:[#allocation4] sm:$0x1] %v17
  $region1: #{decoder_forward.2} parent=0
    #allocation5 [shape = 'u8[81920]{0}', space=vmem, size = 0x14000, scoped, tag = 'input window, operand 0, single buffered']
    #allocation6 [shape = 's32[1]{0}', space=sflag, size = 0x4, scoped, tag = 'scoped memory for decoder_forward.2']
    #allocation7 [shape = 's32[1]{0}', space=sflag, size = 0x4, scoped, tag = 'scoped memory for decoder_forward.2']
    #allocation8 [shape = 'u8[32768]{0}', space=vmem, size = 0x8000, scoped, tag = 'input window, operand 1, single buffered']
    #allocation9 [shape = 's32[1]{0}', space=sflag, size = 0x4, scoped, tag = 'scoped memory for decoder_forward.2']
    #allocation10 [shape = 'u8[32768]{0}', space=vmem, size = 0x8000, scoped, tag = 'input window, operand 2, single buffered']
    #allocation11 [shape = 'u8[4096]{0}', space=vmem, size = 0x1000, scoped, tag = 'input window, operand 3, single buffered']
    #allocation12 [shape = 's32[1]{0}', space=sflag, size = 0x4, scoped, tag = 'scoped memory for decoder_forward.2']
    #allocation13 [shape = 'u8[4096]{0}', space=vmem, size = 0x1000, scoped, tag = 'input window, operand 4, single buffered']
    #allocation14 [shape = 'u8[163840]{0}', space=vmem, size = 0x28000, scoped, tag = 'input window, operand 5, single buffered']
    #allocation15 [shape = 's32[1]{0}', space=sflag, size = 0x4, scoped, tag = 'scoped memory for decoder_forward.2']
    #allocation16 [shape = 'u8[512]{0}', space=vmem, size = 0x400, scoped, tag = 'input window, operand 6, single buffered']
    #allocation17 [shape = 'u8[512]{0}', space=vmem, size = 0x400, scoped, tag = 'input window, operand 7, single buffered']
    #allocation18 [shape = 's32[1]{0}', space=sflag, size = 0x4, scoped, tag = 'scoped memory for decoder_forward.2']
    #allocation19 [shape = 'u8[131072]{0}', space=vmem, size = 0x20000, scoped, tag = 'input window, operand 9, single buffered']
    #allocation20 [shape = 'u8[10240]{0}', space=vmem, size = 0x2800, scoped, tag = 'output window, operand 0, single buffered']
    #allocation21 [shape = 'u8[20480]{0}', space=vmem, size = 0x5000, scoped, tag = 'output window, operand 1, single buffered']
    #allocation22 [shape = 's32[1]{0}', space=sflag, size = 0x4, scoped, tag = 'scoped memory for decoder_forward.2']
    %19 = vsyncpa [#allocation6], 0
    %20 = vsyncpa [#allocation9], 0
    %21 = vsyncpa [#allocation12], 0
    %22 = vsyncpa [#allocation15], 0
    %23 = vsyncpa [#allocation18], 0
    %24 = vsyncpa [#allocation7], 0
    %25 = vsyncpa [#allocation22], 0
    // Predicated region
    $region2: #{decoder_forward.2} parent=1 // pred_check
      _
    $region3: #{decoder_forward.2} parent=1 // pred_check_branch
      %27 = sbr.rel (0) target = $region5
    $region4: #{decoder_forward.2} parent=1 // pred_region
      %s29 = ssub.s32 2560, 2560
      %30 = vsyncadd [#allocation6], %s29
      %s31 = sshll.u32 [#allocation5], 4
      %s32 = int_to_ptr.vmem [resolvable:$true] %s31
      %37 = dma.hbm_to_vmem [thread:$0]  %s0, 2560, %s32, [#allocation6], 512, 512, 32
    $region5: #{decoder_forward.2} parent=1 // pred_fallthru
      _
    // Predicated region
    $region6: #{decoder_forward.2} parent=1 // pred_check
      _
    $region7: #{decoder_forward.2} parent=1 // pred_check_branch
      %39 = sbr.rel (0) target = $region9
    $region8: #{decoder_forward.2} parent=1 // pred_region
      %s41 = ssub.s32 1024, 1024
      %42 = vsyncadd [#allocation9], %s41
      %s43 = sshll.u32 [#allocation8], 4
      %s44 = int_to_ptr.vmem [resolvable:$true] %s43
      %49 = dma.hbm_to_vmem [thread:$0]  %s1, 1024, %s44, [#allocation9], 128, 128, 8
    $region9: #{decoder_forward.2} parent=1 // pred_fallthru
      _
    // Predicated region
    $region10: #{decoder_forward.2} parent=1 // pred_check
      _
    $region11: #{decoder_forward.2} parent=1 // pred_check_branch
      %51 = sbr.rel (0) target = $region13
    $region12: #{decoder_forward.2} parent=1 // pred_region
      %s53 = ssub.s32 1024, 1024
      %54 = vsyncadd [#allocation9], %s53
      %s55 = sshll.u32 [#allocation10], 4
      %s56 = int_to_ptr.vmem [resolvable:$true] %s55
      %61 = dma.hbm_to_vmem [thread:$0]  %s2, 1024, %s56, [#allocation9], 128, 128, 8
    $region13: #{decoder_forward.2} parent=1 // pred_fallthru
      _
    // Predicated region
    $region14: #{decoder_forward.2} parent=1 // pred_check
      _
    $region15: #{decoder_forward.2} parent=1 // pred_check_branch
      %63 = sbr.rel (0) target = $region17
    $region16: #{decoder_forward.2} parent=1 // pred_region
      %s65 = ssub.s32 128, 128
      %66 = vsyncadd [#allocation12], %s65
      %s68 = sshll.u32 [#allocation11], 4
      %s69 = int_to_ptr.vmem [resolvable:$true] %s68
      %71 = dma.hbm_to_vmem [thread:$0]  %s3, 128, %s69, [#allocation12]
    $region17: #{decoder_forward.2} parent=1 // pred_fallthru
      _
    // Predicated region
    $region18: #{decoder_forward.2} parent=1 // pred_check
      _
    $region19: #{decoder_forward.2} parent=1 // pred_check_branch
      %73 = sbr.rel (0) target = $region21
    $region20: #{decoder_forward.2} parent=1 // pred_region
      %s75 = ssub.s32 128, 128
      %76 = vsyncadd [#allocation12], %s75
      %s78 = sshll.u32 [#allocation13], 4
      %s79 = int_to_ptr.vmem [resolvable:$true] %s78
      %81 = dma.hbm_to_vmem [thread:$0]  %s4, 128, %s79, [#allocation12]
    $region21: #{decoder_forward.2} parent=1 // pred_fallthru
      _
    // Predicated region
    $region22: #{decoder_forward.2} parent=1 // pred_check
      _
    $region23: #{decoder_forward.2} parent=1 // pred_check_branch
      %83 = sbr.rel (0) target = $region25
    $region24: #{decoder_forward.2} parent=1 // pred_region
      %s85 = ssub.s32 5120, 5120
      %86 = vsyncadd [#allocation15], %s85
      %s87 = sshll.u32 [#allocation14], 4
      %s88 = int_to_ptr.vmem [resolvable:$true] %s87
      %93 = dma.hbm_to_vmem [thread:$0]  %s5, 5120, %s88, [#allocation15], 320, 320, 20
    $region25: #{decoder_forward.2} parent=1 // pred_fallthru
      _
    // Predicated region
    $region26: #{decoder_forward.2} parent=1 // pred_check
      _
    $region27: #{decoder_forward.2} parent=1 // pred_check_branch
      %95 = sbr.rel (0) target = $region29
    $region28: #{decoder_forward.2} parent=1 // pred_region
      %s97 = ssub.s32 16, 16
      %98 = vsyncadd [#allocation15], %s97
      %s100 = sshll.u32 [#allocation16], 4
      %s101 = int_to_ptr.vmem [resolvable:$true] %s100
      %103 = dma.hbm_to_vmem [thread:$0]  %s6, 16, %s101, [#allocation15]
    $region29: #{decoder_forward.2} parent=1 // pred_fallthru
      _
    // Predicated region
    $region30: #{decoder_forward.2} parent=1 // pred_check
      _
    $region31: #{decoder_forward.2} parent=1 // pred_check_branch
      %105 = sbr.rel (0) target = $region33
    $region32: #{decoder_forward.2} parent=1 // pred_region
      %s107 = ssub.s32 16, 16
      %108 = vsyncadd [#allocation18], %s107
      %s110 = sshll.u32 [#allocation17], 4
      %s111 = int_to_ptr.vmem [resolvable:$true] %s110
      %113 = dma.hbm_to_vmem [thread:$0]  %s7, 16, %s111, [#allocation18]
    $region33: #{decoder_forward.2} parent=1 // pred_fallthru
      _
    // Predicated region
    $region34: #{decoder_forward.2} parent=1 // pred_check
      _
    $region35: #{decoder_forward.2} parent=1 // pred_check_branch
      %115 = sbr.rel (0) target = $region37
    $region36: #{decoder_forward.2} parent=1 // pred_region
      _
    $region37: #{decoder_forward.2} parent=1 // pred_fallthru
      _
    // Predicated region
    $region38: #{decoder_forward.2} parent=1 // pred_check
      _
    $region39: #{decoder_forward.2} parent=1 // pred_check_branch
      %117 = sbr.rel (0) target = $region41
    $region40: #{decoder_forward.2} parent=1 // pred_region
      %s119 = ssub.s32 4096, 4096
      %120 = vsyncadd [#allocation18], %s119
      %s121 = sshll.u32 [#allocation19], 4
      %s122 = int_to_ptr.vmem [resolvable:$true] %s121
      %127 = dma.hbm_to_vmem [thread:$0]  %s9, 4096, %s122, [#allocation18], 256, 256, 16
    $region41: #{decoder_forward.2} parent=1 // pred_fallthru
      _
    // Predicated region
    $region42: #{decoder_forward.2} parent=1 // pred_check
      _
    $region43: #{decoder_forward.2} parent=1 // pred_check_branch
      %129 = sbr.rel (0) target = $region45
    $region44: #{decoder_forward.2} parent=1 // pred_region
      %130 = dma.done [#allocation6], 2560
    $region45: #{decoder_forward.2} parent=1 // pred_fallthru
      _
    // Predicated region
    $region46: #{decoder_forward.2} parent=1 // pred_check
      _
    $region47: #{decoder_forward.2} parent=1 // pred_check_branch
      %132 = sbr.rel (0) target = $region49
    $region48: #{decoder_forward.2} parent=1 // pred_region
      %133 = dma.done [#allocation9], 1024
    $region49: #{decoder_forward.2} parent=1 // pred_fallthru
      _
    // Predicated region
    $region50: #{decoder_forward.2} parent=1 // pred_check
      _
    $region51: #{decoder_forward.2} parent=1 // pred_check_branch
      %135 = sbr.rel (0) target = $region53
    $region52: #{decoder_forward.2} parent=1 // pred_region
      %136 = dma.done [#allocation9], 1024
    $region53: #{decoder_forward.2} parent=1 // pred_fallthru
      _
    // Predicated region
    $region54: #{decoder_forward.2} parent=1 // pred_check
      _
    $region55: #{decoder_forward.2} parent=1 // pred_check_branch
      %138 = sbr.rel (0) target = $region57
    $region56: #{decoder_forward.2} parent=1 // pred_region
      %139 = dma.done [#allocation12], 128
    $region57: #{decoder_forward.2} parent=1 // pred_fallthru
      _
    // Predicated region
    $region58: #{decoder_forward.2} parent=1 // pred_check
      _
    $region59: #{decoder_forward.2} parent=1 // pred_check_branch
      %141 = sbr.rel (0) target = $region61
    $region60: #{decoder_forward.2} parent=1 // pred_region
      %142 = dma.done [#allocation12], 128
    $region61: #{decoder_forward.2} parent=1 // pred_fallthru
      _
    // Predicated region
    $region62: #{decoder_forward.2} parent=1 // pred_check
      _
    $region63: #{decoder_forward.2} parent=1 // pred_check_branch
      %144 = sbr.rel (0) target = $region65
    $region64: #{decoder_forward.2} parent=1 // pred_region
      %145 = dma.done [#allocation15], 5120
    $region65: #{decoder_forward.2} parent=1 // pred_fallthru
      _
    // Predicated region
    $region66: #{decoder_forward.2} parent=1 // pred_check
      _
    $region67: #{decoder_forward.2} parent=1 // pred_check_branch
      %147 = sbr.rel (0) target = $region69
    $region68: #{decoder_forward.2} parent=1 // pred_region
      %148 = dma.done [#allocation15], 16
    $region69: #{decoder_forward.2} parent=1 // pred_fallthru
      _
    // Predicated region
    $region70: #{decoder_forward.2} parent=1 // pred_check
      _
    $region71: #{decoder_forward.2} parent=1 // pred_check_branch
      %150 = sbr.rel (0) target = $region73
    $region72: #{decoder_forward.2} parent=1 // pred_region
      %151 = dma.done [#allocation18], 16
    $region73: #{decoder_forward.2} parent=1 // pred_fallthru
      _
    // Predicated region
    $region74: #{decoder_forward.2} parent=1 // pred_check
      _
    $region75: #{decoder_forward.2} parent=1 // pred_check_branch
      %153 = sbr.rel (0) target = $region77
    $region76: #{decoder_forward.2} parent=1 // pred_region
      %154 = dma.done [#allocation18], 4096
    $region77: #{decoder_forward.2} parent=1 // pred_fallthru
      _
    %v156 = vld [vmem:[#allocation11] sm:$0xff]
    %157 = vst [vmem:[#allocation2] sm:$0xff] %v156
    %v158 = vld [vmem:[#allocation13] sm:$0xff]
    %159 = vst [vmem:[#allocation3] sm:$0xff] %v158
    %v160 = vld [vmem:[#allocation2] sm:$0xff]
    %v161 = vld [vmem:[#allocation3] sm:$0xff]
    %v162 = vpack.c.bf16 %v160, %v160
    %v163 = vld [vmem:[#allocation14] sm:$0xff]
    %v164 = vld [vmem:[#allocation14 + $0x8] sm:$0xff]
    %v165 = vld [vmem:[#allocation14 + $0x10] sm:$0xf]
    %v166 = vld [vmem:[#allocation14 + $0x14] sm:$0xff]
    %v167 = vld [vmem:[#allocation14 + $0x1c] sm:$0xff]
    %v168 = vld [vmem:[#allocation14 + $0x24] sm:$0xf]
    %v169 = vld [vmem:[#allocation14 + $0x28] sm:$0xff]
    %v170 = vld [vmem:[#allocation14 + $0x30] sm:$0xff]
    %v171 = vld [vmem:[#allocation14 + $0x38] sm:$0xf]
    %v172 = vld [vmem:[#allocation14 + $0x3c] sm:$0xff]
    %v173 = vld [vmem:[#allocation14 + $0x44] sm:$0xff]
    %v174 = vld [vmem:[#allocation14 + $0x4c] sm:$0xf]
    %v175 = vld [vmem:[#allocation14 + $0x50] sm:$0xff]
    %v176 = vld [vmem:[#allocation14 + $0x58] sm:$0xff]
    %v177 = vld [vmem:[#allocation14 + $0x60] sm:$0xf]
    %v178 = vld [vmem:[#allocation14 + $0x64] sm:$0xff]
    %v179 = vld [vmem:[#allocation14 + $0x6c] sm:$0xff]
    %v180 = vld [vmem:[#allocation14 + $0x74] sm:$0xf]
    %v181 = vld [vmem:[#allocation14 + $0x78] sm:$0xff]
    %v182 = vld [vmem:[#allocation14 + $0x80] sm:$0xff]
    %v183 = vld [vmem:[#allocation14 + $0x88] sm:$0xf]
    %v184 = vld [vmem:[#allocation14 + $0x8c] sm:$0xff]
    %v185 = vld [vmem:[#allocation14 + $0x94] sm:$0xff]
    %v186 = vld [vmem:[#allocation14 + $0x9c] sm:$0xf]
    %v187 = vld [vmem:[#allocation14 + $0xa0] sm:$0xff]
    %v188 = vld [vmem:[#allocation14 + $0xa8] sm:$0xff]
    %v189 = vld [vmem:[#allocation14 + $0xb0] sm:$0xf]
    %v190 = vld [vmem:[#allocation14 + $0xb4] sm:$0xff]
    %v191 = vld [vmem:[#allocation14 + $0xbc] sm:$0xff]
    %v192 = vld [vmem:[#allocation14 + $0xc4] sm:$0xf]
    %v193 = vld [vmem:[#allocation14 + $0xc8] sm:$0xff]
    %v194 = vld [vmem:[#allocation14 + $0xd0] sm:$0xff]
    %v195 = vld [vmem:[#allocation14 + $0xd8] sm:$0xf]
    %v196 = vld [vmem:[#allocation14 + $0xdc] sm:$0xff]
    %v197 = vld [vmem:[#allocation14 + $0xe4] sm:$0xff]
    %v198 = vld [vmem:[#allocation14 + $0xec] sm:$0xf]
    %v199 = vld [vmem:[#allocation14 + $0xf0] sm:$0xff]
    %v200 = vld [vmem:[#allocation14 + $0xf8] sm:$0xff]
    %v201 = vld [vmem:[#allocation14 + $0x100] sm:$0xf]
    %v202 = vld [vmem:[#allocation14 + $0x104] sm:$0xff]
    %v203 = vld [vmem:[#allocation14 + $0x10c] sm:$0xff]
    %v204 = vld [vmem:[#allocation14 + $0x114] sm:$0xf]
    %v205 = vld [vmem:[#allocation14 + $0x118] sm:$0xff]
    %v206 = vld [vmem:[#allocation14 + $0x120] sm:$0xff]
    %v207 = vld [vmem:[#allocation14 + $0x128] sm:$0xf]
    %v208 = vld [vmem:[#allocation14 + $0x12c] sm:$0xff]
    %v209 = vld [vmem:[#allocation14 + $0x134] sm:$0xff]
    %v210 = vld [vmem:[#allocation14 + $0x13c] sm:$0xf]
    %v259 = vunpack.c.l.b16 %v163
    %v260 = vunpack.c.h.b16 %v163
    %v261 = vunpack.c.l.b16 %v164
    %v262 = vunpack.c.h.b16 %v164
    %v263 = vunpack.c.l.b16 %v165
    %v264 = vunpack.c.l.b16 %v166
    %v265 = vunpack.c.h.b16 %v166
    %v266 = vunpack.c.l.b16 %v167
    %v267 = vunpack.c.h.b16 %v167
    %v268 = vunpack.c.l.b16 %v168
    %v269 = vunpack.c.l.b16 %v169
    %v270 = vunpack.c.h.b16 %v169
    %v271 = vunpack.c.l.b16 %v170
    %v272 = vunpack.c.h.b16 %v170
    %v273 = vunpack.c.l.b16 %v171
    %v274 = vunpack.c.l.b16 %v172
    %v275 = vunpack.c.h.b16 %v172
    %v276 = vunpack.c.l.b16 %v173
    %v277 = vunpack.c.h.b16 %v173
    %v278 = vunpack.c.l.b16 %v174
    %v279 = vunpack.c.l.b16 %v175
    %v280 = vunpack.c.h.b16 %v175
    %v281 = vunpack.c.l.b16 %v176
    %v282 = vunpack.c.h.b16 %v176
    %v283 = vunpack.c.l.b16 %v177
    %v284 = vunpack.c.l.b16 %v178
    %v285 = vunpack.c.h.b16 %v178
    %v286 = vunpack.c.l.b16 %v179
    %v287 = vunpack.c.h.b16 %v179
    %v288 = vunpack.c.l.b16 %v180
    %v289 = vunpack.c.l.b16 %v181
    %v290 = vunpack.c.h.b16 %v181
    %v291 = vunpack.c.l.b16 %v182
    %v292 = vunpack.c.h.b16 %v182
    %v293 = vunpack.c.l.b16 %v183
    %v294 = vunpack.c.l.b16 %v184
    %v295 = vunpack.c.h.b16 %v184
    %v296 = vunpack.c.l.b16 %v185
    %v297 = vunpack.c.h.b16 %v185
    %v298 = vunpack.c.l.b16 %v186
    %v299 = vunpack.c.l.b16 %v187
    %v300 = vunpack.c.h.b16 %v187
    %v301 = vunpack.c.l.b16 %v188
    %v302 = vunpack.c.h.b16 %v188
    %v303 = vunpack.c.l.b16 %v189
    %v304 = vunpack.c.l.b16 %v190
    %v305 = vunpack.c.h.b16 %v190
    %v306 = vunpack.c.l.b16 %v191
    %v307 = vunpack.c.h.b16 %v191
    %v308 = vunpack.c.l.b16 %v192
    %v309 = vunpack.c.l.b16 %v193
    %v310 = vunpack.c.h.b16 %v193
    %v311 = vunpack.c.l.b16 %v194
    %v312 = vunpack.c.h.b16 %v194
    %v313 = vunpack.c.l.b16 %v195
    %v314 = vunpack.c.l.b16 %v196
    %v315 = vunpack.c.h.b16 %v196
    %v316 = vunpack.c.l.b16 %v197
    %v317 = vunpack.c.h.b16 %v197
    %v318 = vunpack.c.l.b16 %v198
    %v319 = vunpack.c.l.b16 %v199
    %v320 = vunpack.c.h.b16 %v199
    %v321 = vunpack.c.l.b16 %v200
    %v322 = vunpack.c.h.b16 %v200
    %v323 = vunpack.c.l.b16 %v201
    %v324 = vunpack.c.l.b16 %v202
    %v325 = vunpack.c.h.b16 %v202
    %v326 = vunpack.c.l.b16 %v203
    %v327 = vunpack.c.h.b16 %v203
    %v328 = vunpack.c.l.b16 %v204
    %v329 = vunpack.c.l.b16 %v205
    %v330 = vunpack.c.h.b16 %v205
    %v331 = vunpack.c.l.b16 %v206
    %v332 = vunpack.c.h.b16 %v206
    %v333 = vunpack.c.l.b16 %v207
    %v334 = vunpack.c.l.b16 %v208
    %v335 = vunpack.c.h.b16 %v208
    %v336 = vunpack.c.l.b16 %v209
    %v337 = vunpack.c.h.b16 %v209
    %v338 = vunpack.c.l.b16 %v210
    %v339 = vpack.c.b16 %v264, %v259
    %v340 = vpack.c.b16 %v265, %v260
    %v341 = vpack.c.b16 %v266, %v261
    %v342 = vpack.c.b16 %v267, %v262
    %v343 = vpack.c.b16 %v268, %v263
    %v344 = vpack.c.b16 %v274, %v269
    %v345 = vpack.c.b16 %v275, %v270
    %v346 = vpack.c.b16 %v276, %v271
    %v347 = vpack.c.b16 %v277, %v272
    %v348 = vpack.c.b16 %v278, %v273
    %v349 = vpack.c.b16 %v284, %v279
    %v350 = vpack.c.b16 %v285, %v280
    %v351 = vpack.c.b16 %v286, %v281
    %v352 = vpack.c.b16 %v287, %v282
    %v353 = vpack.c.b16 %v288, %v283
    %v354 = vpack.c.b16 %v294, %v289
    %v355 = vpack.c.b16 %v295, %v290
    %v356 = vpack.c.b16 %v296, %v291
    %v357 = vpack.c.b16 %v297, %v292
    %v358 = vpack.c.b16 %v298, %v293
    %v359 = vpack.c.b16 %v304, %v299
    %v360 = vpack.c.b16 %v305, %v300
    %v361 = vpack.c.b16 %v306, %v301
    %v362 = vpack.c.b16 %v307, %v302
    %v363 = vpack.c.b16 %v308, %v303
    %v364 = vpack.c.b16 %v314, %v309
    %v365 = vpack.c.b16 %v315, %v310
    %v366 = vpack.c.b16 %v316, %v311
    %v367 = vpack.c.b16 %v317, %v312
    %v368 = vpack.c.b16 %v318, %v313
    %v369 = vpack.c.b16 %v324, %v319
    %v370 = vpack.c.b16 %v325, %v320
    %v371 = vpack.c.b16 %v326, %v321
    %v372 = vpack.c.b16 %v327, %v322
    %v373 = vpack.c.b16 %v328, %v323
    %v374 = vpack.c.b16 %v334, %v329
    %v375 = vpack.c.b16 %v335, %v330
    %v376 = vpack.c.b16 %v336, %v331
    %v377 = vpack.c.b16 %v337, %v332
    %v378 = vpack.c.b16 %v338, %v333
    %419 = vmatprep.subr.bf16.mxu0 %v340
    %420 = vmatpush1.bf16.msra.mxu0 %v339
    %421 = vmatprep.subr.bf16.mxu0 %v345
    %422 = vmatpush1.bf16.msra.mxu0 %v344
    %423 = vmatprep.subr.bf16.mxu0 %v350
    %424 = vmatpush1.bf16.msra.mxu0 %v349
    %425 = vmatprep.subr.bf16.mxu0 %v355
    %426 = vmatpush1.bf16.msra.mxu0 %v354
    %427 = vmatprep.subr.bf16.mxu0 %v360
    %428 = vmatpush1.bf16.msra.mxu0 %v359
    %429 = vmatprep.subr.bf16.mxu0 %v365
    %430 = vmatpush1.bf16.msra.mxu0 %v364
    %431 = vmatprep.subr.bf16.mxu0 %v370
    %432 = vmatpush1.bf16.msra.mxu0 %v369
    %433 = vmatprep.subr.bf16.mxu0 %v375
    %434 = vmatpush1.bf16.msra.mxu0 %v374
    %435 = vmatprep.subr.bf16.mxu0 0
    %436 = vmatpush1.bf16.msra.mxu0 0
    %437 = vmatprep.subr.bf16.mxu0 0
    %438 = vmatpush1.bf16.msra.mxu0 0
    %439 = vmatprep.subr.bf16.mxu0 0
    %440 = vmatpush1.bf16.msra.mxu0 0
    %441 = vmatprep.subr.bf16.mxu0 0
    %442 = vmatpush1.bf16.msra.mxu0 0
    %443 = vmatprep.subr.bf16.mxu0 0
    %444 = vmatpush1.bf16.msra.mxu0 0
    %445 = vmatprep.subr.bf16.mxu0 0
    %446 = vmatpush1.bf16.msra.mxu0 0
    %447 = vmatprep.subr.bf16.mxu0 0
    %448 = vmatpush1.bf16.msra.mxu0 0
    %449 = vmatprep.subr.bf16.mxu0 0
    %450 = vmatpush1.bf16.msra.mxu0 0
    %451 = vmatprep.mubr.bf16.mxu0 0
    %452 = vmatmul.mubr.bf16.gmra.mrb[0].mxu0 %v162
    %v453 = vpop.f32.mrb[0].mxu0
    %v454 = vadd.f32 0.0, %v453
    %v455 = vpop.f32.mrb[0].mxu0
    %v456 = vadd.f32 0.0, %v455
    %v457 = vpop.f32.mrb[0].mxu0
    %v458 = vpop.f32.mrb[0].mxu0
    %459 = vdwg.mxu0
    %460 = vmatprep.subr.bf16.mxu0 %v342
    %461 = vmatpush1.bf16.msra.mxu0 %v341
    %462 = vmatprep.subr.bf16.mxu0 %v347
    %463 = vmatpush1.bf16.msra.mxu0 %v346
    %464 = vmatprep.subr.bf16.mxu0 %v352
    %465 = vmatpush1.bf16.msra.mxu0 %v351
    %466 = vmatprep.subr.bf16.mxu0 %v357
    %467 = vmatpush1.bf16.msra.mxu0 %v356
    %468 = vmatprep.subr.bf16.mxu0 %v362
    %469 = vmatpush1.bf16.msra.mxu0 %v361
    %470 = vmatprep.subr.bf16.mxu0 %v367
    %471 = vmatpush1.bf16.msra.mxu0 %v366
    %472 = vmatprep.subr.bf16.mxu0 %v372
    %473 = vmatpush1.bf16.msra.mxu0 %v371
    %474 = vmatprep.subr.bf16.mxu0 %v377
    %475 = vmatpush1.bf16.msra.mxu0 %v376
    %476 = vmatprep.subr.bf16.mxu0 0
    %477 = vmatpush1.bf16.msra.mxu0 0
    %478 = vmatprep.subr.bf16.mxu0 0
    %479 = vmatpush1.bf16.msra.mxu0 0
    %480 = vmatprep.subr.bf16.mxu0 0
    %481 = vmatpush1.bf16.msra.mxu0 0
    %482 = vmatprep.subr.bf16.mxu0 0
    %483 = vmatpush1.bf16.msra.mxu0 0
    %484 = vmatprep.subr.bf16.mxu0 0
    %485 = vmatpush1.bf16.msra.mxu0 0
    %486 = vmatprep.subr.bf16.mxu0 0
    %487 = vmatpush1.bf16.msra.mxu0 0
    %488 = vmatprep.subr.bf16.mxu0 0
    %489 = vmatpush1.bf16.msra.mxu0 0
    %490 = vmatprep.subr.bf16.mxu0 0
    %491 = vmatpush1.bf16.msra.mxu0 0
    %492 = vmatprep.mubr.bf16.mxu0 0
    %493 = vmatmul.mubr.bf16.gmra.mrb[0].mxu0 %v162
    %v494 = vpop.f32.mrb[0].mxu0
    %v495 = vadd.f32 0.0, %v494
    %v496 = vpop.f32.mrb[0].mxu0
    %v497 = vadd.f32 0.0, %v496
    %v498 = vpop.f32.mrb[0].mxu0
    %v499 = vpop.f32.mrb[0].mxu0
    %500 = vdwg.mxu0
    %501 = vmatprep.subr.bf16.mxu0 0
    %502 = vmatpush1.bf16.msra.mxu0 %v343
    %503 = vmatprep.subr.bf16.mxu0 0
    %504 = vmatpush1.bf16.msra.mxu0 %v348
    %505 = vmatprep.subr.bf16.mxu0 0
    %506 = vmatpush1.bf16.msra.mxu0 %v353
    %507 = vmatprep.subr.bf16.mxu0 0
    %508 = vmatpush1.bf16.msra.mxu0 %v358
    %509 = vmatprep.subr.bf16.mxu0 0
    %510 = vmatpush1.bf16.msra.mxu0 %v363
    %511 = vmatprep.subr.bf16.mxu0 0
    %512 = vmatpush1.bf16.msra.mxu0 %v368
    %513 = vmatprep.subr.bf16.mxu0 0
    %514 = vmatpush1.bf16.msra.mxu0 %v373
    %515 = vmatprep.subr.bf16.mxu0 0
    %516 = vmatpush1.bf16.msra.mxu0 %v378
    %517 = vmatprep.subr.bf16.mxu0 0
    %518 = vmatpush1.bf16.msra.mxu0 0
    %519 = vmatprep.subr.bf16.mxu0 0
    %520 = vmatpush1.bf16.msra.mxu0 0
    %521 = vmatprep.subr.bf16.mxu0 0
    %522 = vmatpush1.bf16.msra.mxu0 0
    %523 = vmatprep.subr.bf16.mxu0 0
    %524 = vmatpush1.bf16.msra.mxu0 0
    %525 = vmatprep.subr.bf16.mxu0 0
    %526 = vmatpush1.bf16.msra.mxu0 0
    %527 = vmatprep.subr.bf16.mxu0 0
    %528 = vmatpush1.bf16.msra.mxu0 0
    %529 = vmatprep.subr.bf16.mxu0 0
    %530 = vmatpush1.bf16.msra.mxu0 0
    %531 = vmatprep.subr.bf16.mxu0 0
    %532 = vmatpush1.bf16.msra.mxu0 0
    %533 = vmatprep.mubr.bf16.mxu0 0
    %534 = vmatmul.mubr.bf16.gmra.mrb[0].mxu0 %v162
    %v535 = vpop.f32.mrb[0].mxu0
    %v536 = vadd.f32 0.0, %v535
    %v537 = vpop.f32.mrb[0].mxu0
    %v538 = vpop.f32.mrb[0].mxu0
    %v539 = vpop.f32.mrb[0].mxu0
    %540 = vdwg.mxu0
    %v541 = vld [vmem:[#allocation16] sm:$0x1]
    %v543 = vlaneseq
    %v544 = vshrl.u32 %v543, 7
    %v545 = vsub.s32 0, %v544
    %v546 = vrot.slane %v541, %v545
    %v548 = vadd.f32 %v454, %v546
    %v549 = vld [vmem:[#allocation10] sm:$0xff]
    %v550 = vld [vmem:[#allocation10 + $0x8] sm:$0xff]
    %v551 = vld [vmem:[#allocation10 + $0x10] sm:$0xff]
    %v552 = vld [vmem:[#allocation10 + $0x18] sm:$0xff]
    %v553 = vld [vmem:[#allocation10 + $0x20] sm:$0xff]
    %v554 = vld [vmem:[#allocation10 + $0x28] sm:$0xff]
    %v555 = vld [vmem:[#allocation10 + $0x30] sm:$0xff]
    %v556 = vld [vmem:[#allocation10 + $0x38] sm:$0xff]
    %v558 = vcombine.high %v548, %v548
    %v560 = vunpack.c.l.s4 1966171168
    %v561 = vunpack.c.0.s8 %v560
    %v562 = vlaneseq
    %v563 = vshrl.u32 %v562, 7
    %v564 = vsub.s32 %v561, %v563
    %v565 = vrot.slane %v548, %v564
    %v567 = vunpack.c.l.s4 1966171168
    %v568 = vunpack.c.0.s8 %v567
    %v569 = vlaneseq
    %v570 = vshrl.u32 %v569, 7
    %v571 = vsub.s32 %v568, %v570
    %v572 = vrot.slane %v558, %v571
    %v573 = vcombine.high %v565, %v565
    %v574 = vcombine.high %v572, %v572
    %v576 = vunpack.c.l.s4 1966171168
    %v577 = vunpack.c.0.s8 %v576
    %v578 = vlaneseq
    %v579 = vshrl.u32 %v578, 7
    %v580 = vsub.s32 %v577, %v579
    %v581 = vrot.slane %v565, %v580
    %v583 = vunpack.c.l.s4 1966171168
    %v584 = vunpack.c.0.s8 %v583
    %v585 = vlaneseq
    %v586 = vshrl.u32 %v585, 7
    %v587 = vsub.s32 %v584, %v586
    %v588 = vrot.slane %v572, %v587
    %v590 = vunpack.c.l.s4 1966171168
    %v591 = vunpack.c.0.s8 %v590
    %v592 = vlaneseq
    %v593 = vshrl.u32 %v592, 7
    %v594 = vsub.s32 %v591, %v593
    %v595 = vrot.slane %v573, %v594
    %v597 = vunpack.c.l.s4 1966171168
    %v598 = vunpack.c.0.s8 %v597
    %v599 = vlaneseq
    %v600 = vshrl.u32 %v599, 7
    %v601 = vsub.s32 %v598, %v600
    %v602 = vrot.slane %v574, %v601
    %v603 = vcombine.high %v581, %v581
    %v604 = vcombine.high %v588, %v588
    %v605 = vcombine.high %v595, %v595
    %v606 = vcombine.high %v602, %v602
    %v607 = vlaneseq
    %v608 = vshrl.u32 %v607, 7
    %v609 = vsub.s32 0, %v608
    %v610 = vrot.slane %v581, %v609
    %v611 = vlaneseq
    %v612 = vshrl.u32 %v611, 7
    %v613 = vsub.s32 0, %v612
    %v614 = vrot.slane %v595, %v613
    %v615 = vlaneseq
    %v616 = vshrl.u32 %v615, 7
    %v617 = vsub.s32 0, %v616
    %v618 = vrot.slane %v603, %v617
    %v619 = vlaneseq
    %v620 = vshrl.u32 %v619, 7
    %v621 = vsub.s32 0, %v620
    %v622 = vrot.slane %v605, %v621
    %v623 = vlaneseq
    %v624 = vshrl.u32 %v623, 7
    %v625 = vsub.s32 0, %v624
    %v626 = vrot.slane %v588, %v625
    %v627 = vlaneseq
    %v628 = vshrl.u32 %v627, 7
    %v629 = vsub.s32 0, %v628
    %v630 = vrot.slane %v602, %v629
    %v631 = vlaneseq
    %v632 = vshrl.u32 %v631, 7
    %v633 = vsub.s32 0, %v632
    %v634 = vrot.slane %v604, %v633
    %v635 = vlaneseq
    %v636 = vshrl.u32 %v635, 7
    %v637 = vsub.s32 0, %v636
    %v638 = vrot.slane %v606, %v637
    %v647 = vadd.f32 %v549, %v610
    %v648 = vadd.f32 %v550, %v614
    %v649 = vadd.f32 %v551, %v618
    %v650 = vadd.f32 %v552, %v622
    %v651 = vadd.f32 %v553, %v626
    %v652 = vadd.f32 %v554, %v630
    %v653 = vadd.f32 %v555, %v634
    %v654 = vadd.f32 %v556, %v638
    %v655 = vtanh.pop %v647
    %v656 = vtanh.pop %v648
    %v657 = vtanh.pop %v649
    %v658 = vtanh.pop %v650
    %v659 = vtanh.pop %v651
    %v660 = vtanh.pop %v652
    %v661 = vtanh.pop %v653
    %v662 = vtanh.pop %v654
    %v663 = vld [vmem:[#allocation17] sm:$0x1]
    %v665 = vlaneseq
    %v666 = vshrl.u32 %v665, 7
    %v667 = vsub.s32 0, %v666
    %v668 = vrot.slane %v663, %v667
    %v670 = vmul.f32 %v655, %v668
    %v671 = vmul.f32 %v656, %v668
    %v672 = vmul.f32 %v657, %v668
    %v673 = vmul.f32 %v658, %v668
    %v674 = vmul.f32 %v659, %v668
    %v675 = vmul.f32 %v660, %v668
    %v676 = vmul.f32 %v661, %v668
    %v677 = vmul.f32 %v662, %v668
    %678 = vadd.xlane.f32.xlu0 %v670
    %v679 = vpop.xlane.xlu0 %678
    %680 = vadd.xlane.f32.xlu0 %v671
    %v681 = vpop.xlane.xlu0 %680
    %682 = vadd.xlane.f32.xlu0 %v672
    %v683 = vpop.xlane.xlu0 %682
    %684 = vadd.xlane.f32.xlu0 %v673
    %v685 = vpop.xlane.xlu0 %684
    %686 = vadd.xlane.f32.xlu0 %v674
    %v687 = vpop.xlane.xlu0 %686
    %688 = vadd.xlane.f32.xlu0 %v675
    %v689 = vpop.xlane.xlu0 %688
    %690 = vadd.xlane.f32.xlu0 %v676
    %v691 = vpop.xlane.xlu0 %690
    %692 = vadd.xlane.f32.xlu0 %v677
    %v693 = vpop.xlane.xlu0 %692
    %v694 = vld [vmem:[#allocation4] sm:$0x1]
    %v696 = vlaneseq
    %v697 = vshrl.u32 %v696, 7
    %v698 = vsub.s32 0, %v697
    %v699 = vrot.slane %v694, %v698
    %700 = vset.pattern.permute.xlu0 0
    %701 = vperm.xlu0 %700, %v699
    %v702 = vpop.permute.xlu0 %701
    %v704 = vadd.f32 %v679, %v702
    %v705 = vadd.f32 %v681, %v702
    %v706 = vadd.f32 %v683, %v702
    %v707 = vadd.f32 %v685, %v702
    %v708 = vadd.f32 %v687, %v702
    %v709 = vadd.f32 %v689, %v702
    %v710 = vadd.f32 %v691, %v702
    %v711 = vadd.f32 %v693, %v702
    %v720 = vlaneseq
    %v721 = vand.u32 %v720, 127
    %v722 = vlaneseq
    %v723 = vshrl.u32 %v722, 7
    %v724 = vsub.s32 %v721, %v723
    %v725 = vrot.slane %v704, %v724
    %v726 = vlaneseq
    %v727 = vshrl.u32 %v726, 7
    %v728 = vsub.s32 %v721, %v727
    %v729 = vrot.slane %v705, %v728
    %v730 = vlaneseq
    %v731 = vshrl.u32 %v730, 7
    %v732 = vsub.s32 %v721, %v731
    %v733 = vrot.slane %v706, %v732
    %v734 = vlaneseq
    %v735 = vshrl.u32 %v734, 7
    %v736 = vsub.s32 %v721, %v735
    %v737 = vrot.slane %v707, %v736
    %v738 = vlaneseq
    %v739 = vshrl.u32 %v738, 7
    %v740 = vsub.s32 %v721, %v739
    %v741 = vrot.slane %v708, %v740
    %v742 = vlaneseq
    %v743 = vshrl.u32 %v742, 7
    %v744 = vsub.s32 %v721, %v743
    %v745 = vrot.slane %v709, %v744
    %v746 = vlaneseq
    %v747 = vshrl.u32 %v746, 7
    %v748 = vsub.s32 %v721, %v747
    %v749 = vrot.slane %v710, %v748
    %v750 = vlaneseq
    %v751 = vshrl.u32 %v750, 7
    %v752 = vsub.s32 %v721, %v751
    %v753 = vrot.slane %v711, %v752
    %vm754 = vcmask 1041409
    %v755 = vsel %vm754, %v729, %v725
    %vm756 = vcmask 1042434
    %v757 = vsel %vm756, %v733, %v755
    %vm758 = vcmask 1043459
    %v759 = vsel %vm758, %v737, %v757
    %vm760 = vcmask 1044484
    %v761 = vsel %vm760, %v741, %v759
    %vm762 = vcmask 1045509
    %v763 = vsel %vm762, %v745, %v761
    %vm764 = vcmask 1046534
    %v765 = vsel %vm764, %v749, %v763
    %vm766 = vcmask 1047559
    %v767 = vsel %vm766, %v753, %v765
    %vm769 = vcmask 64512
    %v770 = vsel %vm769, %v767, -inf
    %771 = vmax.xlane.f32.xlu0 %v770
    %v772 = vpop.xlane.xlu0 %771
    %v774 = vlaneseq
    %v775 = vshrl.u32 %v774, 7
    %v776 = vsub.s32 0, %v775
    %v777 = vrot.slane %v772, %v776
    %v778 = vlaneseq
    %v779 = vshrl.u32 %v778, 7
    %v780 = vsub.s32 1, %v779
    %v781 = vrot.slane %v772, %v780
    %v782 = vlaneseq
    %v783 = vshrl.u32 %v782, 7
    %v784 = vsub.s32 2, %v783
    %v785 = vrot.slane %v772, %v784
    %v786 = vlaneseq
    %v787 = vshrl.u32 %v786, 7
    %v788 = vsub.s32 3, %v787
    %v789 = vrot.slane %v772, %v788
    %v790 = vlaneseq
    %v791 = vshrl.u32 %v790, 7
    %v792 = vsub.s32 4, %v791
    %v793 = vrot.slane %v772, %v792
    %v794 = vlaneseq
    %v795 = vshrl.u32 %v794, 7
    %v796 = vsub.s32 5, %v795
    %v797 = vrot.slane %v772, %v796
    %v798 = vlaneseq
    %v799 = vshrl.u32 %v798, 7
    %v800 = vsub.s32 6, %v799
    %v801 = vrot.slane %v772, %v800
    %v802 = vlaneseq
    %v803 = vshrl.u32 %v802, 7
    %v804 = vsub.s32 7, %v803
    %v805 = vrot.slane %v772, %v804
    %v814 = vsub.f32 %v704, %v777
    %v815 = vsub.f32 %v705, %v781
    %v816 = vsub.f32 %v706, %v785
    %v817 = vsub.f32 %v707, %v789
    %v818 = vsub.f32 %v708, %v793
    %v819 = vsub.f32 %v709, %v797
    %v820 = vsub.f32 %v710, %v801
    %v821 = vsub.f32 %v711, %v805
    %v822 = vmul.f32 %v814, 1.442695
    %v823 = vpow.pop %v822
    %v824 = vmul.f32 %v815, 1.442695
    %v825 = vpow.pop %v824
    %v826 = vmul.f32 %v816, 1.442695
    %v827 = vpow.pop %v826
    %v828 = vmul.f32 %v817, 1.442695
    %v829 = vpow.pop %v828
    %v830 = vmul.f32 %v818, 1.442695
    %v831 = vpow.pop %v830
    %v832 = vmul.f32 %v819, 1.442695
    %v833 = vpow.pop %v832
    %v834 = vmul.f32 %v820, 1.442695
    %v835 = vpow.pop %v834
    %v836 = vmul.f32 %v821, 1.442695
    %v837 = vpow.pop %v836
    %846 = vset.pattern.permute.xlu0 0
    %847 = vperm.xlu0 %846, %v823
    %v848 = vpop.permute.xlu0 %847
    %849 = vset.pattern.permute.xlu0 0
    %850 = vperm.xlu0 %849, %v825
    %v851 = vpop.permute.xlu0 %850
    %852 = vset.pattern.permute.xlu0 0
    %853 = vperm.xlu0 %852, %v827
    %v854 = vpop.permute.xlu0 %853
    %855 = vset.pattern.permute.xlu0 0
    %856 = vperm.xlu0 %855, %v829
    %v857 = vpop.permute.xlu0 %856
    %858 = vset.pattern.permute.xlu0 0
    %859 = vperm.xlu0 %858, %v831
    %v860 = vpop.permute.xlu0 %859
    %861 = vset.pattern.permute.xlu0 0
    %862 = vperm.xlu0 %861, %v833
    %v863 = vpop.permute.xlu0 %862
    %864 = vset.pattern.permute.xlu0 0
    %865 = vperm.xlu0 %864, %v835
    %v866 = vpop.permute.xlu0 %865
    %867 = vset.pattern.permute.xlu0 0
    %868 = vperm.xlu0 %867, %v837
    %v869 = vpop.permute.xlu0 %868
    %v870 = vlaneseq
    %v871 = vshrl.u32 %v870, 7
    %v872 = vsub.s32 %v721, %v871
    %v873 = vrot.slane %v848, %v872
    %v874 = vlaneseq
    %v875 = vshrl.u32 %v874, 7
    %v876 = vsub.s32 %v721, %v875
    %v877 = vrot.slane %v851, %v876
    %v878 = vlaneseq
    %v879 = vshrl.u32 %v878, 7
    %v880 = vsub.s32 %v721, %v879
    %v881 = vrot.slane %v854, %v880
    %v882 = vlaneseq
    %v883 = vshrl.u32 %v882, 7
    %v884 = vsub.s32 %v721, %v883
    %v885 = vrot.slane %v857, %v884
    %v886 = vlaneseq
    %v887 = vshrl.u32 %v886, 7
    %v888 = vsub.s32 %v721, %v887
    %v889 = vrot.slane %v860, %v888
    %v890 = vlaneseq
    %v891 = vshrl.u32 %v890, 7
    %v892 = vsub.s32 %v721, %v891
    %v893 = vrot.slane %v863, %v892
    %v894 = vlaneseq
    %v895 = vshrl.u32 %v894, 7
    %v896 = vsub.s32 %v721, %v895
    %v897 = vrot.slane %v866, %v896
    %v898 = vlaneseq
    %v899 = vshrl.u32 %v898, 7
    %v900 = vsub.s32 %v721, %v899
    %v901 = vrot.slane %v869, %v900
    %v902 = vsel %vm754, %v877, %v873
    %v903 = vsel %vm756, %v881, %v902
    %v904 = vsel %vm758, %v885, %v903
    %v905 = vsel %vm760, %v889, %v904
    %v906 = vsel %vm762, %v893, %v905
    %v907 = vsel %vm764, %v897, %v906
    %v908 = vsel %vm766, %v901, %v907
    %v910 = vsel %vm769, %v908, 0.0
    %911 = vadd.xlane.f32.xlu0 %v910
    %v912 = vpop.xlane.xlu0 %911
    %v913 = vrcp.pop %v912
    %v915 = vlaneseq
    %v916 = vshrl.u32 %v915, 7
    %v917 = vsub.s32 0, %v916
    %v918 = vrot.slane %v913, %v917
    %v919 = vlaneseq
    %v920 = vshrl.u32 %v919, 7
    %v921 = vsub.s32 1, %v920
    %v922 = vrot.slane %v913, %v921
    %v923 = vlaneseq
    %v924 = vshrl.u32 %v923, 7
    %v925 = vsub.s32 2, %v924
    %v926 = vrot.slane %v913, %v925
    %v927 = vlaneseq
    %v928 = vshrl.u32 %v927, 7
    %v929 = vsub.s32 3, %v928
    %v930 = vrot.slane %v913, %v929
    %v931 = vlaneseq
    %v932 = vshrl.u32 %v931, 7
    %v933 = vsub.s32 4, %v932
    %v934 = vrot.slane %v913, %v933
    %v935 = vlaneseq
    %v936 = vshrl.u32 %v935, 7
    %v937 = vsub.s32 5, %v936
    %v938 = vrot.slane %v913, %v937
    %v939 = vlaneseq
    %v940 = vshrl.u32 %v939, 7
    %v941 = vsub.s32 6, %v940
    %v942 = vrot.slane %v913, %v941
    %v943 = vlaneseq
    %v944 = vshrl.u32 %v943, 7
    %v945 = vsub.s32 7, %v944
    %v946 = vrot.slane %v913, %v945
    %v955 = vmul.f32 %v823, %v918
    %v956 = vmul.f32 %v825, %v922
    %v957 = vmul.f32 %v827, %v926
    %v958 = vmul.f32 %v829, %v930
    %v959 = vmul.f32 %v831, %v934
    %v960 = vmul.f32 %v833, %v938
    %v961 = vmul.f32 %v835, %v942
    %v962 = vmul.f32 %v837, %v946
    %v963 = vld [vmem:[#allocation8] sm:$0xff]
    %v964 = vld [vmem:[#allocation8 + $0x8] sm:$0xff]
    %v965 = vld [vmem:[#allocation8 + $0x10] sm:$0xff]
    %v966 = vld [vmem:[#allocation8 + $0x18] sm:$0xff]
    %v967 = vld [vmem:[#allocation8 + $0x20] sm:$0xff]
    %v968 = vld [vmem:[#allocation8 + $0x28] sm:$0xff]
    %v969 = vld [vmem:[#allocation8 + $0x30] sm:$0xff]
    %v970 = vld [vmem:[#allocation8 + $0x38] sm:$0xff]
    %972 = vset.pattern.permute.xlu0 0
    %973 = vperm.xlu0 %972, %v955
    %v974 = vpop.permute.xlu0 %973
    %977 = vset.pattern.permute.xlu0 0
    %978 = vperm.xlu0 %977, %v956
    %v979 = vpop.permute.xlu0 %978
    %982 = vset.pattern.permute.xlu0 0
    %983 = vperm.xlu0 %982, %v957
    %v984 = vpop.permute.xlu0 %983
    %987 = vset.pattern.permute.xlu0 0
    %988 = vperm.xlu0 %987, %v958
    %v989 = vpop.permute.xlu0 %988
    %992 = vset.pattern.permute.xlu0 0
    %993 = vperm.xlu0 %992, %v959
    %v994 = vpop.permute.xlu0 %993
    %997 = vset.pattern.permute.xlu0 0
    %998 = vperm.xlu0 %997, %v960
    %v999 = vpop.permute.xlu0 %998
    %1002 = vset.pattern.permute.xlu0 0
    %1003 = vperm.xlu0 %1002, %v961
    %v1004 = vpop.permute.xlu0 %1003
    %1007 = vset.pattern.permute.xlu0 0
    %1008 = vperm.xlu0 %1007, %v962
    %v1009 = vpop.permute.xlu0 %1008
    %v1011 = vmul.f32 %v963, %v974
    %v1012 = vmul.f32 %v964, %v979
    %v1013 = vmul.f32 %v965, %v984
    %v1014 = vmul.f32 %v966, %v989
    %v1015 = vmul.f32 %v967, %v994
    %v1016 = vmul.f32 %v968, %v999
    %v1017 = vmul.f32 %v969, %v1004
    %v1018 = vmul.f32 %v970, %v1009
    %v1019 = vrot.slane %v1011, 4
    %v1020 = vadd.f32 %v1011, %v1019
    %v1021 = vrot.slane %v1020, 2
    %v1022 = vadd.f32 %v1020, %v1021
    %v1023 = vrot.slane %v1022, 1
    %v1024 = vadd.f32 %v1022, %v1023
    %v1025 = vrot.slane %v1012, 4
    %v1026 = vadd.f32 %v1012, %v1025
    %v1027 = vrot.slane %v1026, 2
    %v1028 = vadd.f32 %v1026, %v1027
    %v1029 = vrot.slane %v1028, 1
    %v1030 = vadd.f32 %v1028, %v1029
    %v1031 = vrot.slane %v1013, 4
    %v1032 = vadd.f32 %v1013, %v1031
    %v1033 = vrot.slane %v1032, 2
    %v1034 = vadd.f32 %v1032, %v1033
    %v1035 = vrot.slane %v1034, 1
    %v1036 = vadd.f32 %v1034, %v1035
    %v1037 = vrot.slane %v1014, 4
    %v1038 = vadd.f32 %v1014, %v1037
    %v1039 = vrot.slane %v1038, 2
    %v1040 = vadd.f32 %v1038, %v1039
    %v1041 = vrot.slane %v1040, 1
    %v1042 = vadd.f32 %v1040, %v1041
    %v1043 = vrot.slane %v1015, 4
    %v1044 = vadd.f32 %v1015, %v1043
    %v1045 = vrot.slane %v1044, 2
    %v1046 = vadd.f32 %v1044, %v1045
    %v1047 = vrot.slane %v1046, 1
    %v1048 = vadd.f32 %v1046, %v1047
    %v1049 = vrot.slane %v1016, 4
    %v1050 = vadd.f32 %v1016, %v1049
    %v1051 = vrot.slane %v1050, 2
    %v1052 = vadd.f32 %v1050, %v1051
    %v1053 = vrot.slane %v1052, 1
    %v1054 = vadd.f32 %v1052, %v1053
    %v1055 = vrot.slane %v1017, 4
    %v1056 = vadd.f32 %v1017, %v1055
    %v1057 = vrot.slane %v1056, 2
    %v1058 = vadd.f32 %v1056, %v1057
    %v1059 = vrot.slane %v1058, 1
    %v1060 = vadd.f32 %v1058, %v1059
    %v1061 = vrot.slane %v1018, 4
    %v1062 = vadd.f32 %v1018, %v1061
    %v1063 = vrot.slane %v1062, 2
    %v1064 = vadd.f32 %v1062, %v1063
    %v1065 = vrot.slane %v1064, 1
    %v1066 = vadd.f32 %v1064, %v1065
    %v1067 = vld [vmem:[#allocation5] sm:$0xff]
    %v1068 = vld [vmem:[#allocation5 + $0x8] sm:$0xff]
    %v1069 = vld [vmem:[#allocation5 + $0x10] sm:$0xff]
    %v1070 = vld [vmem:[#allocation5 + $0x18] sm:$0xff]
    %v1071 = vpack.c.bf16 %v1024, %v1024
    %v1072 = vpack.c.bf16 %v1030, %v1030
    %v1073 = vpack.c.bf16 %v1036, %v1036
    %v1074 = vpack.c.bf16 %v1042, %v1042
    %v1075 = vpack.c.bf16 %v1048, %v1048
    %v1076 = vpack.c.bf16 %v1054, %v1054
    %v1077 = vpack.c.bf16 %v1060, %v1060
    %v1078 = vpack.c.bf16 %v1066, %v1066
    %v1079 = vld [vmem:[#allocation19] sm:$0xff]
    %v1080 = vld [vmem:[#allocation19 + $0x8] sm:$0xff]
    %v1081 = vld [vmem:[#allocation19 + $0x10] sm:$0xff]
    %v1082 = vld [vmem:[#allocation19 + $0x18] sm:$0xff]
    %v1083 = vld [vmem:[#allocation19 + $0x20] sm:$0xff]
    %v1084 = vld [vmem:[#allocation19 + $0x28] sm:$0xff]
    %v1085 = vld [vmem:[#allocation19 + $0x30] sm:$0xff]
    %v1086 = vld [vmem:[#allocation19 + $0x38] sm:$0xff]
    %v1087 = vld [vmem:[#allocation19 + $0x40] sm:$0xff]
    %v1088 = vld [vmem:[#allocation19 + $0x48] sm:$0xff]
    %v1089 = vld [vmem:[#allocation19 + $0x50] sm:$0xff]
    %v1090 = vld [vmem:[#allocation19 + $0x58] sm:$0xff]
    %v1091 = vld [vmem:[#allocation19 + $0x60] sm:$0xff]
    %v1092 = vld [vmem:[#allocation19 + $0x68] sm:$0xff]
    %v1093 = vld [vmem:[#allocation19 + $0x70] sm:$0xff]
    %v1094 = vld [vmem:[#allocation19 + $0x78] sm:$0xff]
    %v1095 = vld [vmem:[#allocation19 + $0x80] sm:$0xff]
    %v1096 = vld [vmem:[#allocation19 + $0x88] sm:$0xff]
    %v1097 = vld [vmem:[#allocation19 + $0x90] sm:$0xff]
    %v1098 = vld [vmem:[#allocation19 + $0x98] sm:$0xff]
    %v1099 = vld [vmem:[#allocation19 + $0xa0] sm:$0xff]
    %v1100 = vld [vmem:[#allocation19 + $0xa8] sm:$0xff]
    %v1101 = vld [vmem:[#allocation19 + $0xb0] sm:$0xff]
    %v1102 = vld [vmem:[#allocation19 + $0xb8] sm:$0xff]
    %v1103 = vld [vmem:[#allocation19 + $0xc0] sm:$0xff]
    %v1104 = vld [vmem:[#allocation19 + $0xc8] sm:$0xff]
    %v1105 = vld [vmem:[#allocation19 + $0xd0] sm:$0xff]
    %v1106 = vld [vmem:[#allocation19 + $0xd8] sm:$0xff]
    %v1107 = vld [vmem:[#allocation19 + $0xe0] sm:$0xff]
    %v1108 = vld [vmem:[#allocation19 + $0xe8] sm:$0xff]
    %v1109 = vld [vmem:[#allocation19 + $0xf0] sm:$0xff]
    %v1110 = vld [vmem:[#allocation19 + $0xf8] sm:$0xff]
    %v1119 = vunpack.c.l.b16 %v1071
    %v1120 = vunpack.c.l.b16 %v1072
    %v1121 = vunpack.c.l.b16 %v1073
    %v1122 = vunpack.c.l.b16 %v1074
    %v1123 = vunpack.c.l.b16 %v1075
    %v1124 = vunpack.c.l.b16 %v1076
    %v1125 = vunpack.c.l.b16 %v1077
    %v1126 = vunpack.c.l.b16 %v1078
    %v1127 = vsel %vm754, %v1120, %v1119
    %v1128 = vsel %vm756, %v1121, %v1127
    %v1129 = vsel %vm758, %v1122, %v1128
    %v1130 = vsel %vm760, %v1123, %v1129
    %v1131 = vsel %vm762, %v1124, %v1130
    %v1132 = vsel %vm764, %v1125, %v1131
    %v1133 = vsel %vm766, %v1126, %v1132
    %v1134 = vpack.c.b16 %v1133, %v1133
    %v1168 = vunpack.c.l.b16 %v1079
    %v1169 = vunpack.c.h.b16 %v1079
    %v1170 = vunpack.c.l.b16 %v1080
    %v1171 = vunpack.c.h.b16 %v1080
    %v1172 = vunpack.c.l.b16 %v1081
    %v1173 = vunpack.c.h.b16 %v1081
    %v1174 = vunpack.c.l.b16 %v1082
    %v1175 = vunpack.c.h.b16 %v1082
    %v1176 = vunpack.c.l.b16 %v1083
    %v1177 = vunpack.c.h.b16 %v1083
    %v1178 = vunpack.c.l.b16 %v1084
    %v1179 = vunpack.c.h.b16 %v1084
    %v1180 = vunpack.c.l.b16 %v1085
    %v1181 = vunpack.c.h.b16 %v1085
    %v1182 = vunpack.c.l.b16 %v1086
    %v1183 = vunpack.c.h.b16 %v1086
    %v1184 = vunpack.c.l.b16 %v1087
    %v1185 = vunpack.c.h.b16 %v1087
    %v1186 = vunpack.c.l.b16 %v1088
    %v1187 = vunpack.c.h.b16 %v1088
    %v1188 = vunpack.c.l.b16 %v1089
    %v1189 = vunpack.c.h.b16 %v1089
    %v1190 = vunpack.c.l.b16 %v1090
    %v1191 = vunpack.c.h.b16 %v1090
    %v1192 = vunpack.c.l.b16 %v1091
    %v1193 = vunpack.c.h.b16 %v1091
    %v1194 = vunpack.c.l.b16 %v1092
    %v1195 = vunpack.c.h.b16 %v1092
    %v1196 = vunpack.c.l.b16 %v1093
    %v1197 = vunpack.c.h.b16 %v1093
    %v1198 = vunpack.c.l.b16 %v1094
    %v1199 = vunpack.c.h.b16 %v1094
    %v1200 = vunpack.c.l.b16 %v1095
    %v1201 = vunpack.c.h.b16 %v1095
    %v1202 = vunpack.c.l.b16 %v1096
    %v1203 = vunpack.c.h.b16 %v1096
    %v1204 = vunpack.c.l.b16 %v1097
    %v1205 = vunpack.c.h.b16 %v1097
    %v1206 = vunpack.c.l.b16 %v1098
    %v1207 = vunpack.c.h.b16 %v1098
    %v1208 = vunpack.c.l.b16 %v1099
    %v1209 = vunpack.c.h.b16 %v1099
    %v1210 = vunpack.c.l.b16 %v1100
    %v1211 = vunpack.c.h.b16 %v1100
    %v1212 = vunpack.c.l.b16 %v1101
    %v1213 = vunpack.c.h.b16 %v1101
    %v1214 = vunpack.c.l.b16 %v1102
    %v1215 = vunpack.c.h.b16 %v1102
    %v1216 = vunpack.c.l.b16 %v1103
    %v1217 = vunpack.c.h.b16 %v1103
    %v1218 = vunpack.c.l.b16 %v1104
    %v1219 = vunpack.c.h.b16 %v1104
    %v1220 = vunpack.c.l.b16 %v1105
    %v1221 = vunpack.c.h.b16 %v1105
    %v1222 = vunpack.c.l.b16 %v1106
    %v1223 = vunpack.c.h.b16 %v1106
    %v1224 = vunpack.c.l.b16 %v1107
    %v1225 = vunpack.c.h.b16 %v1107
    %v1226 = vunpack.c.l.b16 %v1108
    %v1227 = vunpack.c.h.b16 %v1108
    %v1228 = vunpack.c.l.b16 %v1109
    %v1229 = vunpack.c.h.b16 %v1109
    %v1230 = vunpack.c.l.b16 %v1110
    %v1231 = vunpack.c.h.b16 %v1110
    %v1232 = vpack.c.b16 %v1172, %v1168
    %v1233 = vpack.c.b16 %v1173, %v1169
    %v1234 = vpack.c.b16 %v1174, %v1170
    %v1235 = vpack.c.b16 %v1175, %v1171
    %v1236 = vpack.c.b16 %v1180, %v1176
    %v1237 = vpack.c.b16 %v1181, %v1177
    %v1238 = vpack.c.b16 %v1182, %v1178
    %v1239 = vpack.c.b16 %v1183, %v1179
    %v1240 = vpack.c.b16 %v1188, %v1184
    %v1241 = vpack.c.b16 %v1189, %v1185
    %v1242 = vpack.c.b16 %v1190, %v1186
    %v1243 = vpack.c.b16 %v1191, %v1187
    %v1244 = vpack.c.b16 %v1196, %v1192
    %v1245 = vpack.c.b16 %v1197, %v1193
    %v1246 = vpack.c.b16 %v1198, %v1194
    %v1247 = vpack.c.b16 %v1199, %v1195
    %v1248 = vpack.c.b16 %v1204, %v1200
    %v1249 = vpack.c.b16 %v1205, %v1201
    %v1250 = vpack.c.b16 %v1206, %v1202
    %v1251 = vpack.c.b16 %v1207, %v1203
    %v1252 = vpack.c.b16 %v1212, %v1208
    %v1253 = vpack.c.b16 %v1213, %v1209
    %v1254 = vpack.c.b16 %v1214, %v1210
    %v1255 = vpack.c.b16 %v1215, %v1211
    %v1256 = vpack.c.b16 %v1220, %v1216
    %v1257 = vpack.c.b16 %v1221, %v1217
    %v1258 = vpack.c.b16 %v1222, %v1218
    %v1259 = vpack.c.b16 %v1223, %v1219
    %v1260 = vpack.c.b16 %v1228, %v1224
    %v1261 = vpack.c.b16 %v1229, %v1225
    %v1262 = vpack.c.b16 %v1230, %v1226
    %v1263 = vpack.c.b16 %v1231, %v1227
    %1296 = vmatprep.subr.bf16.mxu0 %v1233
    %1297 = vmatpush1.bf16.msra.mxu0 %v1232
    %1298 = vmatprep.subr.bf16.mxu0 %v1237
    %1299 = vmatpush1.bf16.msra.mxu0 %v1236
    %1300 = vmatprep.subr.bf16.mxu0 %v1241
    %1301 = vmatpush1.bf16.msra.mxu0 %v1240
    %1302 = vmatprep.subr.bf16.mxu0 %v1245
    %1303 = vmatpush1.bf16.msra.mxu0 %v1244
    %1304 = vmatprep.subr.bf16.mxu0 %v1249
    %1305 = vmatpush1.bf16.msra.mxu0 %v1248
    %1306 = vmatprep.subr.bf16.mxu0 %v1253
    %1307 = vmatpush1.bf16.msra.mxu0 %v1252
    %1308 = vmatprep.subr.bf16.mxu0 %v1257
    %1309 = vmatpush1.bf16.msra.mxu0 %v1256
    %1310 = vmatprep.subr.bf16.mxu0 %v1261
    %1311 = vmatpush1.bf16.msra.mxu0 %v1260
    %1312 = vmatprep.subr.bf16.mxu0 0
    %1313 = vmatpush1.bf16.msra.mxu0 0
    %1314 = vmatprep.subr.bf16.mxu0 0
    %1315 = vmatpush1.bf16.msra.mxu0 0
    %1316 = vmatprep.subr.bf16.mxu0 0
    %1317 = vmatpush1.bf16.msra.mxu0 0
    %1318 = vmatprep.subr.bf16.mxu0 0
    %1319 = vmatpush1.bf16.msra.mxu0 0
    %1320 = vmatprep.subr.bf16.mxu0 0
    %1321 = vmatpush1.bf16.msra.mxu0 0
    %1322 = vmatprep.subr.bf16.mxu0 0
    %1323 = vmatpush1.bf16.msra.mxu0 0
    %1324 = vmatprep.subr.bf16.mxu0 0
    %1325 = vmatpush1.bf16.msra.mxu0 0
    %1326 = vmatprep.subr.bf16.mxu0 0
    %1327 = vmatpush1.bf16.msra.mxu0 0
    %1328 = vmatprep.mubr.bf16.mxu0 0
    %1329 = vmatmul.mubr.bf16.gmra.mrb[0].mxu0 %v1134
    %v1330 = vpop.f32.mrb[0].mxu0
    %v1331 = vadd.f32 0.0, %v1330
    %v1332 = vpop.f32.mrb[0].mxu0
    %v1333 = vadd.f32 0.0, %v1332
    %v1334 = vpop.f32.mrb[0].mxu0
    %v1335 = vpop.f32.mrb[0].mxu0
    %1336 = vdwg.mxu0
    %1337 = vmatprep.subr.bf16.mxu0 %v1235
    %1338 = vmatpush1.bf16.msra.mxu0 %v1234
    %1339 = vmatprep.subr.bf16.mxu0 %v1239
    %1340 = vmatpush1.bf16.msra.mxu0 %v1238
    %1341 = vmatprep.subr.bf16.mxu0 %v1243
    %1342 = vmatpush1.bf16.msra.mxu0 %v1242
    %1343 = vmatprep.subr.bf16.mxu0 %v1247
    %1344 = vmatpush1.bf16.msra.mxu0 %v1246
    %1345 = vmatprep.subr.bf16.mxu0 %v1251
    %1346 = vmatpush1.bf16.msra.mxu0 %v1250
    %1347 = vmatprep.subr.bf16.mxu0 %v1255
    %1348 = vmatpush1.bf16.msra.mxu0 %v1254
    %1349 = vmatprep.subr.bf16.mxu0 %v1259
    %1350 = vmatpush1.bf16.msra.mxu0 %v1258
    %1351 = vmatprep.subr.bf16.mxu0 %v1263
    %1352 = vmatpush1.bf16.msra.mxu0 %v1262
    %1353 = vmatprep.subr.bf16.mxu0 0
    %1354 = vmatpush1.bf16.msra.mxu0 0
    %1355 = vmatprep.subr.bf16.mxu0 0
    %1356 = vmatpush1.bf16.msra.mxu0 0
    %1357 = vmatprep.subr.bf16.mxu0 0
    %1358 = vmatpush1.bf16.msra.mxu0 0
    %1359 = vmatprep.subr.bf16.mxu0 0
    %1360 = vmatpush1.bf16.msra.mxu0 0
    %1361 = vmatprep.subr.bf16.mxu0 0
    %1362 = vmatpush1.bf16.msra.mxu0 0
    %1363 = vmatprep.subr.bf16.mxu0 0
    %1364 = vmatpush1.bf16.msra.mxu0 0
    %1365 = vmatprep.subr.bf16.mxu0 0
    %1366 = vmatpush1.bf16.msra.mxu0 0
    %1367 = vmatprep.subr.bf16.mxu0 0
    %1368 = vmatpush1.bf16.msra.mxu0 0
    %1369 = vmatprep.mubr.bf16.mxu0 0
    %1370 = vmatmul.mubr.bf16.gmra.mrb[0].mxu0 %v1134
    %v1371 = vpop.f32.mrb[0].mxu0
    %v1372 = vadd.f32 0.0, %v1371
    %v1373 = vpop.f32.mrb[0].mxu0
    %v1374 = vadd.f32 0.0, %v1373
    %v1375 = vpop.f32.mrb[0].mxu0
    %v1376 = vpop.f32.mrb[0].mxu0
    %1377 = vdwg.mxu0
    %v1378 = vadd.f32 %v1067, %v1331
    %v1379 = vadd.f32 %v1068, %v1333
    %v1380 = vadd.f32 %v1069, %v1372
    %v1381 = vadd.f32 %v1070, %v1374
    %v1382 = vadd.f32 %v1378, %v456
    %v1383 = vadd.f32 %v1379, %v495
    %v1384 = vadd.f32 %v1380, %v497
    %v1385 = vadd.f32 %v1381, %v536
    %v1386 = vxor.u32 %v1382, 2147483648
    %v1387 = vmul.f32 %v1386, 1.442695
    %v1388 = vpow.pop %v1387
    %v1389 = vadd.f32 %v1388, 1.0
    %v1390 = vrcp.pop %v1389
    %v1391 = vmul.f32 1.0, %v1390
    %v1392 = vxor.u32 %v1383, 2147483648
    %v1393 = vmul.f32 %v1392, 1.442695
    %v1394 = vpow.pop %v1393
    %v1395 = vadd.f32 %v1394, 1.0
    %v1396 = vrcp.pop %v1395
    %v1397 = vmul.f32 1.0, %v1396
    %v1398 = vtanh.pop %v1384
    %v1399 = vxor.u32 %v1385, 2147483648
    %v1400 = vmul.f32 %v1399, 1.442695
    %v1401 = vpow.pop %v1400
    %v1402 = vadd.f32 %v1401, 1.0
    %v1403 = vrcp.pop %v1402
    %v1404 = vmul.f32 1.0, %v1403
    %v1405 = vmul.f32 %v1397, %v161
    %v1406 = vmul.f32 %v1391, %v1398
    %v1407 = vadd.f32 %v1405, %v1406
    %v1408 = vtanh.pop %v1407
    %v1409 = vmul.f32 %v1404, %v1408
    %1410 = vst [vmem:[#allocation2] sm:$0xff] %v1409
    %1411 = vst [vmem:[#allocation3] sm:$0xff] %v1407
    %v1412 = vpack.c.bf16 %v1409, %v1409
    %1413 = vst [vmem:[#allocation20] sm:$0xf] %v1412
    %v1414 = vlaneseq
    %v1415 = vshrl.u32 %v1414, 7
    %v1416 = vsub.s32 %v721, %v1415
    %v1417 = vrot.slane %v974, %v1416
    %v1418 = vlaneseq
    %v1419 = vshrl.u32 %v1418, 7
    %v1420 = vsub.s32 %v721, %v1419
    %v1421 = vrot.slane %v979, %v1420
    %v1422 = vlaneseq
    %v1423 = vshrl.u32 %v1422, 7
    %v1424 = vsub.s32 %v721, %v1423
    %v1425 = vrot.slane %v984, %v1424
    %v1426 = vlaneseq
    %v1427 = vshrl.u32 %v1426, 7
    %v1428 = vsub.s32 %v721, %v1427
    %v1429 = vrot.slane %v989, %v1428
    %v1430 = vlaneseq
    %v1431 = vshrl.u32 %v1430, 7
    %v1432 = vsub.s32 %v721, %v1431
    %v1433 = vrot.slane %v994, %v1432
    %v1434 = vlaneseq
    %v1435 = vshrl.u32 %v1434, 7
    %v1436 = vsub.s32 %v721, %v1435
    %v1437 = vrot.slane %v999, %v1436
    %v1438 = vlaneseq
    %v1439 = vshrl.u32 %v1438, 7
    %v1440 = vsub.s32 %v721, %v1439
    %v1441 = vrot.slane %v1004, %v1440
    %v1442 = vlaneseq
    %v1443 = vshrl.u32 %v1442, 7
    %v1444 = vsub.s32 %v721, %v1443
    %v1445 = vrot.slane %v1009, %v1444
    %v1446 = vsel %vm754, %v1421, %v1417
    %v1447 = vsel %vm756, %v1425, %v1446
    %v1448 = vsel %vm758, %v1429, %v1447
    %v1449 = vsel %vm760, %v1433, %v1448
    %v1450 = vsel %vm762, %v1437, %v1449
    %v1451 = vsel %vm764, %v1441, %v1450
    %v1452 = vsel %vm766, %v1445, %v1451
    %1454 = vst.msk [vmem:[#allocation21] sm:$0xff] %vm769, %v1452
    %v1455 = vld [vmem:[#allocation2] sm:$0xff]
    %v1456 = vld [vmem:[#allocation3] sm:$0xff]
    %v1457 = vpack.c.bf16 %v1455, %v1455
    %v1458 = vld [vmem:[#allocation14] sm:$0xff]
    %v1459 = vld [vmem:[#allocation14 + $0x8] sm:$0xff]
    %v1460 = vld [vmem:[#allocation14 + $0x10] sm:$0xf]
    %v1461 = vld [vmem:[#allocation14 + $0x14] sm:$0xff]
    %v1462 = vld [vmem:[#allocation14 + $0x1c] sm:$0xff]
    %v1463 = vld [vmem:[#allocation14 + $0x24] sm:$0xf]
    %v1464 = vld [vmem:[#allocation14 + $0x28] sm:$0xff]
    %v1465 = vld [vmem:[#allocation14 + $0x30] sm:$0xff]
    %v1466 = vld [vmem:[#allocation14 + $0x38] sm:$0xf]
    %v1467 = vld [vmem:[#allocation14 + $0x3c] sm:$0xff]
    %v1468 = vld [vmem:[#allocation14 + $0x44] sm:$0xff]
    %v1469 = vld [vmem:[#allocation14 + $0x4c] sm:$0xf]
    %v1470 = vld [vmem:[#allocation14 + $0x50] sm:$0xff]
    %v1471 = vld [vmem:[#allocation14 + $0x58] sm:$0xff]
    %v1472 = vld [vmem:[#allocation14 + $0x60] sm:$0xf]
    %v1473 = vld [vmem:[#allocation14 + $0x64] sm:$0xff]
    %v1474 = vld [vmem:[#allocation14 + $0x6c] sm:$0xff]
    %v1475 = vld [vmem:[#allocation14 + $0x74] sm:$0xf]
    %v1476 = vld [vmem:[#allocation14 + $0x78] sm:$0xff]
    %v1477 = vld [vmem:[#allocation14 + $0x80] sm:$0xff]
    %v1478 = vld [vmem:[#allocation14 + $0x88] sm:$0xf]
    %v1479 = vld [vmem:[#allocation14 + $0x8c] sm:$0xff]
    %v1480 = vld [vmem:[#allocation14 + $0x94] sm:$0xff]
    %v1481 = vld [vmem:[#allocation14 + $0x9c] sm:$0xf]
    %v1482 = vld [vmem:[#allocation14 + $0xa0] sm:$0xff]
    %v1483 = vld [vmem:[#allocation14 + $0xa8] sm:$0xff]
    %v1484 = vld [vmem:[#allocation14 + $0xb0] sm:$0xf]
    %v1485 = vld [vmem:[#allocation14 + $0xb4] sm:$0xff]
    %v1486 = vld [vmem:[#allocation14 + $0xbc] sm:$0xff]
    %v1487 = vld [vmem:[#allocation14 + $0xc4] sm:$0xf]
    %v1488 = vld [vmem:[#allocation14 + $0xc8] sm:$0xff]
    %v1489 = vld [vmem:[#allocation14 + $0xd0] sm:$0xff]
    %v1490 = vld [vmem:[#allocation14 + $0xd8] sm:$0xf]
    %v1491 = vld [vmem:[#allocation14 + $0xdc] sm:$0xff]
    %v1492 = vld [vmem:[#allocation14 + $0xe4] sm:$0xff]
    %v1493 = vld [vmem:[#allocation14 + $0xec] sm:$0xf]
    %v1494 = vld [vmem:[#allocation14 + $0xf0] sm:$0xff]
    %v1495 = vld [vmem:[#allocation14 + $0xf8] sm:$0xff]
    %v1496 = vld [vmem:[#allocation14 + $0x100] sm:$0xf]
    %v1497 = vld [vmem:[#allocation14 + $0x104] sm:$0xff]
    %v1498 = vld [vmem:[#allocation14 + $0x10c] sm:$0xff]
    %v1499 = vld [vmem:[#allocation14 + $0x114] sm:$0xf]
    %v1500 = vld [vmem:[#allocation14 + $0x118] sm:$0xff]
    %v1501 = vld [vmem:[#allocation14 + $0x120] sm:$0xff]
    %v1502 = vld [vmem:[#allocation14 + $0x128] sm:$0xf]
    %v1503 = vld [vmem:[#allocation14 + $0x12c] sm:$0xff]
    %v1504 = vld [vmem:[#allocation14 + $0x134] sm:$0xff]
    %v1505 = vld [vmem:[#allocation14 + $0x13c] sm:$0xf]
    %v1554 = vunpack.c.l.b16 %v1458
    %v1555 = vunpack.c.h.b16 %v1458
    %v1556 = vunpack.c.l.b16 %v1459
    %v1557 = vunpack.c.h.b16 %v1459
    %v1558 = vunpack.c.l.b16 %v1460
    %v1559 = vunpack.c.l.b16 %v1461
    %v1560 = vunpack.c.h.b16 %v1461
    %v1561 = vunpack.c.l.b16 %v1462
    %v1562 = vunpack.c.h.b16 %v1462
    %v1563 = vunpack.c.l.b16 %v1463
    %v1564 = vunpack.c.l.b16 %v1464
    %v1565 = vunpack.c.h.b16 %v1464
    %v1566 = vunpack.c.l.b16 %v1465
    %v1567 = vunpack.c.h.b16 %v1465
    %v1568 = vunpack.c.l.b16 %v1466
    %v1569 = vunpack.c.l.b16 %v1467
    %v1570 = vunpack.c.h.b16 %v1467
    %v1571 = vunpack.c.l.b16 %v1468
    %v1572 = vunpack.c.h.b16 %v1468
    %v1573 = vunpack.c.l.b16 %v1469
    %v1574 = vunpack.c.l.b16 %v1470
    %v1575 = vunpack.c.h.b16 %v1470
    %v1576 = vunpack.c.l.b16 %v1471
    %v1577 = vunpack.c.h.b16 %v1471
    %v1578 = vunpack.c.l.b16 %v1472
    %v1579 = vunpack.c.l.b16 %v1473
    %v1580 = vunpack.c.h.b16 %v1473
    %v1581 = vunpack.c.l.b16 %v1474
    %v1582 = vunpack.c.h.b16 %v1474
    %v1583 = vunpack.c.l.b16 %v1475
    %v1584 = vunpack.c.l.b16 %v1476
    %v1585 = vunpack.c.h.b16 %v1476
    %v1586 = vunpack.c.l.b16 %v1477
    %v1587 = vunpack.c.h.b16 %v1477
    %v1588 = vunpack.c.l.b16 %v1478
    %v1589 = vunpack.c.l.b16 %v1479
    %v1590 = vunpack.c.h.b16 %v1479
    %v1591 = vunpack.c.l.b16 %v1480
    %v1592 = vunpack.c.h.b16 %v1480
    %v1593 = vunpack.c.l.b16 %v1481
    %v1594 = vunpack.c.l.b16 %v1482
    %v1595 = vunpack.c.h.b16 %v1482
    %v1596 = vunpack.c.l.b16 %v1483
    %v1597 = vunpack.c.h.b16 %v1483
    %v1598 = vunpack.c.l.b16 %v1484
    %v1599 = vunpack.c.l.b16 %v1485
    %v1600 = vunpack.c.h.b16 %v1485
    %v1601 = vunpack.c.l.b16 %v1486
    %v1602 = vunpack.c.h.b16 %v1486
    %v1603 = vunpack.c.l.b16 %v1487
    %v1604 = vunpack.c.l.b16 %v1488
    %v1605 = vunpack.c.h.b16 %v1488
    %v1606 = vunpack.c.l.b16 %v1489
    %v1607 = vunpack.c.h.b16 %v1489
    %v1608 = vunpack.c.l.b16 %v1490
    %v1609 = vunpack.c.l.b16 %v1491
    %v1610 = vunpack.c.h.b16 %v1491
    %v1611 = vunpack.c.l.b16 %v1492
    %v1612 = vunpack.c.h.b16 %v1492
    %v1613 = vunpack.c.l.b16 %v1493
    %v1614 = vunpack.c.l.b16 %v1494
    %v1615 = vunpack.c.h.b16 %v1494
    %v1616 = vunpack.c.l.b16 %v1495
    %v1617 = vunpack.c.h.b16 %v1495
    %v1618 = vunpack.c.l.b16 %v1496
    %v1619 = vunpack.c.l.b16 %v1497
    %v1620 = vunpack.c.h.b16 %v1497
    %v1621 = vunpack.c.l.b16 %v1498
    %v1622 = vunpack.c.h.b16 %v1498
    %v1623 = vunpack.c.l.b16 %v1499
    %v1624 = vunpack.c.l.b16 %v1500
    %v1625 = vunpack.c.h.b16 %v1500
    %v1626 = vunpack.c.l.b16 %v1501
    %v1627 = vunpack.c.h.b16 %v1501
    %v1628 = vunpack.c.l.b16 %v1502
    %v1629 = vunpack.c.l.b16 %v1503
    %v1630 = vunpack.c.h.b16 %v1503
    %v1631 = vunpack.c.l.b16 %v1504
    %v1632 = vunpack.c.h.b16 %v1504
    %v1633 = vunpack.c.l.b16 %v1505
    %v1634 = vpack.c.b16 %v1559, %v1554
    %v1635 = vpack.c.b16 %v1560, %v1555
    %v1636 = vpack.c.b16 %v1561, %v1556
    %v1637 = vpack.c.b16 %v1562, %v1557
    %v1638 = vpack.c.b16 %v1563, %v1558
    %v1639 = vpack.c.b16 %v1569, %v1564
    %v1640 = vpack.c.b16 %v1570, %v1565
    %v1641 = vpack.c.b16 %v1571, %v1566
    %v1642 = vpack.c.b16 %v1572, %v1567
    %v1643 = vpack.c.b16 %v1573, %v1568
    %v1644 = vpack.c.b16 %v1579, %v1574
    %v1645 = vpack.c.b16 %v1580, %v1575
    %v1646 = vpack.c.b16 %v1581, %v1576
    %v1647 = vpack.c.b16 %v1582, %v1577
    %v1648 = vpack.c.b16 %v1583, %v1578
    %v1649 = vpack.c.b16 %v1589, %v1584
    %v1650 = vpack.c.b16 %v1590, %v1585
    %v1651 = vpack.c.b16 %v1591, %v1586
    %v1652 = vpack.c.b16 %v1592, %v1587
    %v1653 = vpack.c.b16 %v1593, %v1588
    %v1654 = vpack.c.b16 %v1599, %v1594
    %v1655 = vpack.c.b16 %v1600, %v1595
    %v1656 = vpack.c.b16 %v1601, %v1596
    %v1657 = vpack.c.b16 %v1602, %v1597
    %v1658 = vpack.c.b16 %v1603, %v1598
    %v1659 = vpack.c.b16 %v1609, %v1604
    %v1660 = vpack.c.b16 %v1610, %v1605
    %v1661 = vpack.c.b16 %v1611, %v1606
    %v1662 = vpack.c.b16 %v1612, %v1607
    %v1663 = vpack.c.b16 %v1613, %v1608
    %v1664 = vpack.c.b16 %v1619, %v1614
    %v1665 = vpack.c.b16 %v1620, %v1615
    %v1666 = vpack.c.b16 %v1621, %v1616
    %v1667 = vpack.c.b16 %v1622, %v1617
    %v1668 = vpack.c.b16 %v1623, %v1618
    %v1669 = vpack.c.b16 %v1629, %v1624
    %v1670 = vpack.c.b16 %v1630, %v1625
    %v1671 = vpack.c.b16 %v1631, %v1626
    %v1672 = vpack.c.b16 %v1632, %v1627
    %v1673 = vpack.c.b16 %v1633, %v1628
    %1714 = vmatprep.subr.bf16.mxu0 %v1635
    %1715 = vmatpush1.bf16.msra.mxu0 %v1634
    %1716 = vmatprep.subr.bf16.mxu0 %v1640
    %1717 = vmatpush1.bf16.msra.mxu0 %v1639
    %1718 = vmatprep.subr.bf16.mxu0 %v1645
    %1719 = vmatpush1.bf16.msra.mxu0 %v1644
    %1720 = vmatprep.subr.bf16.mxu0 %v1650
    %1721 = vmatpush1.bf16.msra.mxu0 %v1649
    %1722 = vmatprep.subr.bf16.mxu0 %v1655
    %1723 = vmatpush1.bf16.msra.mxu0 %v1654
    %1724 = vmatprep.subr.bf16.mxu0 %v1660
    %1725 = vmatpush1.bf16.msra.mxu0 %v1659
    %1726 = vmatprep.subr.bf16.mxu0 %v1665
    %1727 = vmatpush1.bf16.msra.mxu0 %v1664
    %1728 = vmatprep.subr.bf16.mxu0 %v1670
    %1729 = vmatpush1.bf16.msra.mxu0 %v1669
    %1730 = vmatprep.subr.bf16.mxu0 0
    %1731 = vmatpush1.bf16.msra.mxu0 0
    %1732 = vmatprep.subr.bf16.mxu0 0
    %1733 = vmatpush1.bf16.msra.mxu0 0
    %1734 = vmatprep.subr.bf16.mxu0 0
    %1735 = vmatpush1.bf16.msra.mxu0 0
    %1736 = vmatprep.subr.bf16.mxu0 0
    %1737 = vmatpush1.bf16.msra.mxu0 0
    %1738 = vmatprep.subr.bf16.mxu0 0
    %1739 = vmatpush1.bf16.msra.mxu0 0
    %1740 = vmatprep.subr.bf16.mxu0 0
    %1741 = vmatpush1.bf16.msra.mxu0 0
    %1742 = vmatprep.subr.bf16.mxu0 0
    %1743 = vmatpush1.bf16.msra.mxu0 0
    %1744 = vmatprep.subr.bf16.mxu0 0
    %1745 = vmatpush1.bf16.msra.mxu0 0
    %1746 = vmatprep.mubr.bf16.mxu0 0
    %1747 = vmatmul.mubr.bf16.gmra.mrb[0].mxu0 %v1457
    %v1748 = vpop.f32.mrb[0].mxu0
    %v1749 = vadd.f32 0.0, %v1748
    %v1750 = vpop.f32.mrb[0].mxu0
    %v1751 = vadd.f32 0.0, %v1750
    %v1752 = vpop.f32.mrb[0].mxu0
    %v1753 = vpop.f32.mrb[0].mxu0
    %1754 = vdwg.mxu0
    %1755 = vmatprep.subr.bf16.mxu0 %v1637
    %1756 = vmatpush1.bf16.msra.mxu0 %v1636
    %1757 = vmatprep.subr.bf16.mxu0 %v1642
    %1758 = vmatpush1.bf16.msra.mxu0 %v1641
    %1759 = vmatprep.subr.bf16.mxu0 %v1647
    %1760 = vmatpush1.bf16.msra.mxu0 %v1646
    %1761 = vmatprep.subr.bf16.mxu0 %v1652
    %1762 = vmatpush1.bf16.msra.mxu0 %v1651
    %1763 = vmatprep.subr.bf16.mxu0 %v1657
    %1764 = vmatpush1.bf16.msra.mxu0 %v1656
    %1765 = vmatprep.subr.bf16.mxu0 %v1662
    %1766 = vmatpush1.bf16.msra.mxu0 %v1661
    %1767 = vmatprep.subr.bf16.mxu0 %v1667
    %1768 = vmatpush1.bf16.msra.mxu0 %v1666
    %1769 = vmatprep.subr.bf16.mxu0 %v1672
    %1770 = vmatpush1.bf16.msra.mxu0 %v1671
    %1771 = vmatprep.subr.bf16.mxu0 0
    %1772 = vmatpush1.bf16.msra.mxu0 0
    %1773 = vmatprep.subr.bf16.mxu0 0
    %1774 = vmatpush1.bf16.msra.mxu0 0
    %1775 = vmatprep.subr.bf16.mxu0 0
    %1776 = vmatpush1.bf16.msra.mxu0 0
    %1777 = vmatprep.subr.bf16.mxu0 0
    %1778 = vmatpush1.bf16.msra.mxu0 0
    %1779 = vmatprep.subr.bf16.mxu0 0
    %1780 = vmatpush1.bf16.msra.mxu0 0
    %1781 = vmatprep.subr.bf16.mxu0 0
    %1782 = vmatpush1.bf16.msra.mxu0 0
    %1783 = vmatprep.subr.bf16.mxu0 0
    %1784 = vmatpush1.bf16.msra.mxu0 0
    %1785 = vmatprep.subr.bf16.mxu0 0
    %1786 = vmatpush1.bf16.msra.mxu0 0
    %1787 = vmatprep.mubr.bf16.mxu0 0
    %1788 = vmatmul.mubr.bf16.gmra.mrb[0].mxu0 %v1457
    %v1789 = vpop.f32.mrb[0].mxu0
    %v1790 = vadd.f32 0.0, %v1789
    %v1791 = vpop.f32.mrb[0].mxu0
    %v1792 = vadd.f32 0.0, %v1791
    %v1793 = vpop.f32.mrb[0].mxu0
    %v1794 = vpop.f32.mrb[0].mxu0
    %1795 = vdwg.mxu0
    %1796 = vmatprep.subr.bf16.mxu0 0
    %1797 = vmatpush1.bf16.msra.mxu0 %v1638
    %1798 = vmatprep.subr.bf16.mxu0 0
    %1799 = vmatpush1.bf16.msra.mxu0 %v1643
    %1800 = vmatprep.subr.bf16.mxu0 0
    %1801 = vmatpush1.bf16.msra.mxu0 %v1648
    %1802 = vmatprep.subr.bf16.mxu0 0
    %1803 = vmatpush1.bf16.msra.mxu0 %v1653
    %1804 = vmatprep.subr.bf16.mxu0 0
    %1805 = vmatpush1.bf16.msra.mxu0 %v1658
    %1806 = vmatprep.subr.bf16.mxu0 0
    %1807 = vmatpush1.bf16.msra.mxu0 %v1663
    %1808 = vmatprep.subr.bf16.mxu0 0
    %1809 = vmatpush1.bf16.msra.mxu0 %v1668
    %1810 = vmatprep.subr.bf16.mxu0 0
    %1811 = vmatpush1.bf16.msra.mxu0 %v1673
    %1812 = vmatprep.subr.bf16.mxu0 0
    %1813 = vmatpush1.bf16.msra.mxu0 0
    %1814 = vmatprep.subr.bf16.mxu0 0
    %1815 = vmatpush1.bf16.msra.mxu0 0
    %1816 = vmatprep.subr.bf16.mxu0 0
    %1817 = vmatpush1.bf16.msra.mxu0 0
    %1818 = vmatprep.subr.bf16.mxu0 0
    %1819 = vmatpush1.bf16.msra.mxu0 0
    %1820 = vmatprep.subr.bf16.mxu0 0
    %1821 = vmatpush1.bf16.msra.mxu0 0
    %1822 = vmatprep.subr.bf16.mxu0 0
    %1823 = vmatpush1.bf16.msra.mxu0 0
    %1824 = vmatprep.subr.bf16.mxu0 0
    %1825 = vmatpush1.bf16.msra.mxu0 0
    %1826 = vmatprep.subr.bf16.mxu0 0
    %1827 = vmatpush1.bf16.msra.mxu0 0
    %1828 = vmatprep.mubr.bf16.mxu0 0
    %1829 = vmatmul.mubr.bf16.gmra.mrb[0].mxu0 %v1457
    %v1830 = vpop.f32.mrb[0].mxu0
    %v1831 = vadd.f32 0.0, %v1830
    %v1832 = vpop.f32.mrb[0].mxu0
    %v1833 = vpop.f32.mrb[0].mxu0
    %v1834 = vpop.f32.mrb[0].mxu0
    %1835 = vdwg.mxu0
    %v1836 = vld [vmem:[#allocation16] sm:$0x1]
    %v1838 = vlaneseq
    %v1839 = vshrl.u32 %v1838, 7
    %v1840 = vsub.s32 0, %v1839
    %v1841 = vrot.slane %v1836, %v1840
    %v1843 = vadd.f32 %v1749, %v1841
    %v1844 = vld [vmem:[#allocation10] sm:$0xff]
    %v1845 = vld [vmem:[#allocation10 + $0x8] sm:$0xff]
    %v1846 = vld [vmem:[#allocation10 + $0x10] sm:$0xff]
    %v1847 = vld [vmem:[#allocation10 + $0x18] sm:$0xff]
    %v1848 = vld [vmem:[#allocation10 + $0x20] sm:$0xff]
    %v1849 = vld [vmem:[#allocation10 + $0x28] sm:$0xff]
    %v1850 = vld [vmem:[#allocation10 + $0x30] sm:$0xff]
    %v1851 = vld [vmem:[#allocation10 + $0x38] sm:$0xff]
    %v1853 = vcombine.high %v1843, %v1843
    %v1855 = vunpack.c.l.s4 1966171168
    %v1856 = vunpack.c.0.s8 %v1855
    %v1857 = vlaneseq
    %v1858 = vshrl.u32 %v1857, 7
    %v1859 = vsub.s32 %v1856, %v1858
    %v1860 = vrot.slane %v1843, %v1859
    %v1862 = vunpack.c.l.s4 1966171168
    %v1863 = vunpack.c.0.s8 %v1862
    %v1864 = vlaneseq
    %v1865 = vshrl.u32 %v1864, 7
    %v1866 = vsub.s32 %v1863, %v1865
    %v1867 = vrot.slane %v1853, %v1866
    %v1868 = vcombine.high %v1860, %v1860
    %v1869 = vcombine.high %v1867, %v1867
    %v1871 = vunpack.c.l.s4 1966171168
    %v1872 = vunpack.c.0.s8 %v1871
    %v1873 = vlaneseq
    %v1874 = vshrl.u32 %v1873, 7
    %v1875 = vsub.s32 %v1872, %v1874
    %v1876 = vrot.slane %v1860, %v1875
    %v1878 = vunpack.c.l.s4 1966171168
    %v1879 = vunpack.c.0.s8 %v1878
    %v1880 = vlaneseq
    %v1881 = vshrl.u32 %v1880, 7
    %v1882 = vsub.s32 %v1879, %v1881
    %v1883 = vrot.slane %v1867, %v1882
    %v1885 = vunpack.c.l.s4 1966171168
    %v1886 = vunpack.c.0.s8 %v1885
    %v1887 = vlaneseq
    %v1888 = vshrl.u32 %v1887, 7
    %v1889 = vsub.s32 %v1886, %v1888
    %v1890 = vrot.slane %v1868, %v1889
    %v1892 = vunpack.c.l.s4 1966171168
    %v1893 = vunpack.c.0.s8 %v1892
    %v1894 = vlaneseq
    %v1895 = vshrl.u32 %v1894, 7
    %v1896 = vsub.s32 %v1893, %v1895
    %v1897 = vrot.slane %v1869, %v1896
    %v1898 = vcombine.high %v1876, %v1876
    %v1899 = vcombine.high %v1883, %v1883
    %v1900 = vcombine.high %v1890, %v1890
    %v1901 = vcombine.high %v1897, %v1897
    %v1902 = vlaneseq
    %v1903 = vshrl.u32 %v1902, 7
    %v1904 = vsub.s32 0, %v1903
    %v1905 = vrot.slane %v1876, %v1904
    %v1906 = vlaneseq
    %v1907 = vshrl.u32 %v1906, 7
    %v1908 = vsub.s32 0, %v1907
    %v1909 = vrot.slane %v1890, %v1908
    %v1910 = vlaneseq
    %v1911 = vshrl.u32 %v1910, 7
    %v1912 = vsub.s32 0, %v1911
    %v1913 = vrot.slane %v1898, %v1912
    %v1914 = vlaneseq
    %v1915 = vshrl.u32 %v1914, 7
    %v1916 = vsub.s32 0, %v1915
    %v1917 = vrot.slane %v1900, %v1916
    %v1918 = vlaneseq
    %v1919 = vshrl.u32 %v1918, 7
    %v1920 = vsub.s32 0, %v1919
    %v1921 = vrot.slane %v1883, %v1920
    %v1922 = vlaneseq
    %v1923 = vshrl.u32 %v1922, 7
    %v1924 = vsub.s32 0, %v1923
    %v1925 = vrot.slane %v1897, %v1924
    %v1926 = vlaneseq
    %v1927 = vshrl.u32 %v1926, 7
    %v1928 = vsub.s32 0, %v1927
    %v1929 = vrot.slane %v1899, %v1928
    %v1930 = vlaneseq
    %v1931 = vshrl.u32 %v1930, 7
    %v1932 = vsub.s32 0, %v1931
    %v1933 = vrot.slane %v1901, %v1932
    %v1942 = vadd.f32 %v1844, %v1905
    %v1943 = vadd.f32 %v1845, %v1909
    %v1944 = vadd.f32 %v1846, %v1913
    %v1945 = vadd.f32 %v1847, %v1917
    %v1946 = vadd.f32 %v1848, %v1921
    %v1947 = vadd.f32 %v1849, %v1925
    %v1948 = vadd.f32 %v1850, %v1929
    %v1949 = vadd.f32 %v1851, %v1933
    %v1950 = vtanh.pop %v1942
    %v1951 = vtanh.pop %v1943
    %v1952 = vtanh.pop %v1944
    %v1953 = vtanh.pop %v1945
    %v1954 = vtanh.pop %v1946
    %v1955 = vtanh.pop %v1947
    %v1956 = vtanh.pop %v1948
    %v1957 = vtanh.pop %v1949
    %v1958 = vld [vmem:[#allocation17] sm:$0x1]
    %v1960 = vlaneseq
    %v1961 = vshrl.u32 %v1960, 7
    %v1962 = vsub.s32 0, %v1961
    %v1963 = vrot.slane %v1958, %v1962
    %v1965 = vmul.f32 %v1950, %v1963
    %v1966 = vmul.f32 %v1951, %v1963
    %v1967 = vmul.f32 %v1952, %v1963
    %v1968 = vmul.f32 %v1953, %v1963
    %v1969 = vmul.f32 %v1954, %v1963
    %v1970 = vmul.f32 %v1955, %v1963
    %v1971 = vmul.f32 %v1956, %v1963
    %v1972 = vmul.f32 %v1957, %v1963
    %1973 = vadd.xlane.f32.xlu0 %v1965
    %v1974 = vpop.xlane.xlu0 %1973
    %1975 = vadd.xlane.f32.xlu0 %v1966
    %v1976 = vpop.xlane.xlu0 %1975
    %1977 = vadd.xlane.f32.xlu0 %v1967
    %v1978 = vpop.xlane.xlu0 %1977
    %1979 = vadd.xlane.f32.xlu0 %v1968
    %v1980 = vpop.xlane.xlu0 %1979
    %1981 = vadd.xlane.f32.xlu0 %v1969
    %v1982 = vpop.xlane.xlu0 %1981
    %1983 = vadd.xlane.f32.xlu0 %v1970
    %v1984 = vpop.xlane.xlu0 %1983
    %1985 = vadd.xlane.f32.xlu0 %v1971
    %v1986 = vpop.xlane.xlu0 %1985
    %1987 = vadd.xlane.f32.xlu0 %v1972
    %v1988 = vpop.xlane.xlu0 %1987
    %v1989 = vld [vmem:[#allocation4] sm:$0x1]
    %v1991 = vlaneseq
    %v1992 = vshrl.u32 %v1991, 7
    %v1993 = vsub.s32 0, %v1992
    %v1994 = vrot.slane %v1989, %v1993
    %1995 = vset.pattern.permute.xlu0 0
    %1996 = vperm.xlu0 %1995, %v1994
    %v1997 = vpop.permute.xlu0 %1996
    %v1999 = vadd.f32 %v1974, %v1997
    %v2000 = vadd.f32 %v1976, %v1997
    %v2001 = vadd.f32 %v1978, %v1997
    %v2002 = vadd.f32 %v1980, %v1997
    %v2003 = vadd.f32 %v1982, %v1997
    %v2004 = vadd.f32 %v1984, %v1997
    %v2005 = vadd.f32 %v1986, %v1997
    %v2006 = vadd.f32 %v1988, %v1997
    %v2015 = vlaneseq
    %v2016 = vshrl.u32 %v2015, 7
    %v2017 = vsub.s32 %v721, %v2016
    %v2018 = vrot.slane %v1999, %v2017
    %v2019 = vlaneseq
    %v2020 = vshrl.u32 %v2019, 7
    %v2021 = vsub.s32 %v721, %v2020
    %v2022 = vrot.slane %v2000, %v2021
    %v2023 = vlaneseq
    %v2024 = vshrl.u32 %v2023, 7
    %v2025 = vsub.s32 %v721, %v2024
    %v2026 = vrot.slane %v2001, %v2025
    %v2027 = vlaneseq
    %v2028 = vshrl.u32 %v2027, 7
    %v2029 = vsub.s32 %v721, %v2028
    %v2030 = vrot.slane %v2002, %v2029
    %v2031 = vlaneseq
    %v2032 = vshrl.u32 %v2031, 7
    %v2033 = vsub.s32 %v721, %v2032
    %v2034 = vrot.slane %v2003, %v2033
    %v2035 = vlaneseq
    %v2036 = vshrl.u32 %v2035, 7
    %v2037 = vsub.s32 %v721, %v2036
    %v2038 = vrot.slane %v2004, %v2037
    %v2039 = vlaneseq
    %v2040 = vshrl.u32 %v2039, 7
    %v2041 = vsub.s32 %v721, %v2040
    %v2042 = vrot.slane %v2005, %v2041
    %v2043 = vlaneseq
    %v2044 = vshrl.u32 %v2043, 7
    %v2045 = vsub.s32 %v721, %v2044
    %v2046 = vrot.slane %v2006, %v2045
    %v2047 = vsel %vm754, %v2022, %v2018
    %v2048 = vsel %vm756, %v2026, %v2047
    %v2049 = vsel %vm758, %v2030, %v2048
    %v2050 = vsel %vm760, %v2034, %v2049
    %v2051 = vsel %vm762, %v2038, %v2050
    %v2052 = vsel %vm764, %v2042, %v2051
    %v2053 = vsel %vm766, %v2046, %v2052
    %v2055 = vsel %vm769, %v2053, -inf
    %2056 = vmax.xlane.f32.xlu0 %v2055
    %v2057 = vpop.xlane.xlu0 %2056
    %v2059 = vlaneseq
    %v2060 = vshrl.u32 %v2059, 7
    %v2061 = vsub.s32 0, %v2060
    %v2062 = vrot.slane %v2057, %v2061
    %v2063 = vlaneseq
    %v2064 = vshrl.u32 %v2063, 7
    %v2065 = vsub.s32 1, %v2064
    %v2066 = vrot.slane %v2057, %v2065
    %v2067 = vlaneseq
    %v2068 = vshrl.u32 %v2067, 7
    %v2069 = vsub.s32 2, %v2068
    %v2070 = vrot.slane %v2057, %v2069
    %v2071 = vlaneseq
    %v2072 = vshrl.u32 %v2071, 7
    %v2073 = vsub.s32 3, %v2072
    %v2074 = vrot.slane %v2057, %v2073
    %v2075 = vlaneseq
    %v2076 = vshrl.u32 %v2075, 7
    %v2077 = vsub.s32 4, %v2076
    %v2078 = vrot.slane %v2057, %v2077
    %v2079 = vlaneseq
    %v2080 = vshrl.u32 %v2079, 7
    %v2081 = vsub.s32 5, %v2080
    %v2082 = vrot.slane %v2057, %v2081
    %v2083 = vlaneseq
    %v2084 = vshrl.u32 %v2083, 7
    %v2085 = vsub.s32 6, %v2084
    %v2086 = vrot.slane %v2057, %v2085
    %v2087 = vlaneseq
    %v2088 = vshrl.u32 %v2087, 7
    %v2089 = vsub.s32 7, %v2088
    %v2090 = vrot.slane %v2057, %v2089
    %v2099 = vsub.f32 %v1999, %v2062
    %v2100 = vsub.f32 %v2000, %v2066
    %v2101 = vsub.f32 %v2001, %v2070
    %v2102 = vsub.f32 %v2002, %v2074
    %v2103 = vsub.f32 %v2003, %v2078
    %v2104 = vsub.f32 %v2004, %v2082
    %v2105 = vsub.f32 %v2005, %v2086
    %v2106 = vsub.f32 %v2006, %v2090
    %v2107 = vmul.f32 %v2099, 1.442695
    %v2108 = vpow.pop %v2107
    %v2109 = vmul.f32 %v2100, 1.442695
    %v2110 = vpow.pop %v2109
    %v2111 = vmul.f32 %v2101, 1.442695
    %v2112 = vpow.pop %v2111
    %v2113 = vmul.f32 %v2102, 1.442695
    %v2114 = vpow.pop %v2113
    %v2115 = vmul.f32 %v2103, 1.442695
    %v2116 = vpow.pop %v2115
    %v2117 = vmul.f32 %v2104, 1.442695
    %v2118 = vpow.pop %v2117
    %v2119 = vmul.f32 %v2105, 1.442695
    %v2120 = vpow.pop %v2119
    %v2121 = vmul.f32 %v2106, 1.442695
    %v2122 = vpow.pop %v2121
    %2131 = vset.pattern.permute.xlu0 0
    %2132 = vperm.xlu0 %2131, %v2108
    %v2133 = vpop.permute.xlu0 %2132
    %2134 = vset.pattern.permute.xlu0 0
    %2135 = vperm.xlu0 %2134, %v2110
    %v2136 = vpop.permute.xlu0 %2135
    %2137 = vset.pattern.permute.xlu0 0
    %2138 = vperm.xlu0 %2137, %v2112
    %v2139 = vpop.permute.xlu0 %2138
    %2140 = vset.pattern.permute.xlu0 0
    %2141 = vperm.xlu0 %2140, %v2114
    %v2142 = vpop.permute.xlu0 %2141
    %2143 = vset.pattern.permute.xlu0 0
    %2144 = vperm.xlu0 %2143, %v2116
    %v2145 = vpop.permute.xlu0 %2144
    %2146 = vset.pattern.permute.xlu0 0
    %2147 = vperm.xlu0 %2146, %v2118
    %v2148 = vpop.permute.xlu0 %2147
    %2149 = vset.pattern.permute.xlu0 0
    %2150 = vperm.xlu0 %2149, %v2120
    %v2151 = vpop.permute.xlu0 %2150
    %2152 = vset.pattern.permute.xlu0 0
    %2153 = vperm.xlu0 %2152, %v2122
    %v2154 = vpop.permute.xlu0 %2153
    %v2155 = vlaneseq
    %v2156 = vshrl.u32 %v2155, 7
    %v2157 = vsub.s32 %v721, %v2156
    %v2158 = vrot.slane %v2133, %v2157
    %v2159 = vlaneseq
    %v2160 = vshrl.u32 %v2159, 7
    %v2161 = vsub.s32 %v721, %v2160
    %v2162 = vrot.slane %v2136, %v2161
    %v2163 = vlaneseq
    %v2164 = vshrl.u32 %v2163, 7
    %v2165 = vsub.s32 %v721, %v2164
    %v2166 = vrot.slane %v2139, %v2165
    %v2167 = vlaneseq
    %v2168 = vshrl.u32 %v2167, 7
    %v2169 = vsub.s32 %v721, %v2168
    %v2170 = vrot.slane %v2142, %v2169
    %v2171 = vlaneseq
    %v2172 = vshrl.u32 %v2171, 7
    %v2173 = vsub.s32 %v721, %v2172
    %v2174 = vrot.slane %v2145, %v2173
    %v2175 = vlaneseq
    %v2176 = vshrl.u32 %v2175, 7
    %v2177 = vsub.s32 %v721, %v2176
    %v2178 = vrot.slane %v2148, %v2177
    %v2179 = vlaneseq
    %v2180 = vshrl.u32 %v2179, 7
    %v2181 = vsub.s32 %v721, %v2180
    %v2182 = vrot.slane %v2151, %v2181
    %v2183 = vlaneseq
    %v2184 = vshrl.u32 %v2183, 7
    %v2185 = vsub.s32 %v721, %v2184
    %v2186 = vrot.slane %v2154, %v2185
    %v2187 = vsel %vm754, %v2162, %v2158
    %v2188 = vsel %vm756, %v2166, %v2187
    %v2189 = vsel %vm758, %v2170, %v2188
    %v2190 = vsel %vm760, %v2174, %v2189
    %v2191 = vsel %vm762, %v2178, %v2190
    %v2192 = vsel %vm764, %v2182, %v2191
    %v2193 = vsel %vm766, %v2186, %v2192
    %v2195 = vsel %vm769, %v2193, 0.0
    %2196 = vadd.xlane.f32.xlu0 %v2195
    %v2197 = vpop.xlane.xlu0 %2196
    %v2198 = vrcp.pop %v2197
    %v2200 = vlaneseq
    %v2201 = vshrl.u32 %v2200, 7
    %v2202 = vsub.s32 0, %v2201
    %v2203 = vrot.slane %v2198, %v2202
    %v2204 = vlaneseq
    %v2205 = vshrl.u32 %v2204, 7
    %v2206 = vsub.s32 1, %v2205
    %v2207 = vrot.slane %v2198, %v2206
    %v2208 = vlaneseq
    %v2209 = vshrl.u32 %v2208, 7
    %v2210 = vsub.s32 2, %v2209
    %v2211 = vrot.slane %v2198, %v2210
    %v2212 = vlaneseq
    %v2213 = vshrl.u32 %v2212, 7
    %v2214 = vsub.s32 3, %v2213
    %v2215 = vrot.slane %v2198, %v2214
    %v2216 = vlaneseq
    %v2217 = vshrl.u32 %v2216, 7
    %v2218 = vsub.s32 4, %v2217
    %v2219 = vrot.slane %v2198, %v2218
    %v2220 = vlaneseq
    %v2221 = vshrl.u32 %v2220, 7
    %v2222 = vsub.s32 5, %v2221
    %v2223 = vrot.slane %v2198, %v2222
    %v2224 = vlaneseq
    %v2225 = vshrl.u32 %v2224, 7
    %v2226 = vsub.s32 6, %v2225
    %v2227 = vrot.slane %v2198, %v2226
    %v2228 = vlaneseq
    %v2229 = vshrl.u32 %v2228, 7
    %v2230 = vsub.s32 7, %v2229
    %v2231 = vrot.slane %v2198, %v2230
    %v2240 = vmul.f32 %v2108, %v2203
    %v2241 = vmul.f32 %v2110, %v2207
    %v2242 = vmul.f32 %v2112, %v2211
    %v2243 = vmul.f32 %v2114, %v2215
    %v2244 = vmul.f32 %v2116, %v2219
    %v2245 = vmul.f32 %v2118, %v2223
    %v2246 = vmul.f32 %v2120, %v2227
    %v2247 = vmul.f32 %v2122, %v2231
    %v2248 = vld [vmem:[#allocation8] sm:$0xff]
    %v2249 = vld [vmem:[#allocation8 + $0x8] sm:$0xff]
    %v2250 = vld [vmem:[#allocation8 + $0x10] sm:$0xff]
    %v2251 = vld [vmem:[#allocation8 + $0x18] sm:$0xff]
    %v2252 = vld [vmem:[#allocation8 + $0x20] sm:$0xff]
    %v2253 = vld [vmem:[#allocation8 + $0x28] sm:$0xff]
    %v2254 = vld [vmem:[#allocation8 + $0x30] sm:$0xff]
    %v2255 = vld [vmem:[#allocation8 + $0x38] sm:$0xff]
    %2257 = vset.pattern.permute.xlu0 0
    %2258 = vperm.xlu0 %2257, %v2240
    %v2259 = vpop.permute.xlu0 %2258
    %2262 = vset.pattern.permute.xlu0 0
    %2263 = vperm.xlu0 %2262, %v2241
    %v2264 = vpop.permute.xlu0 %2263
    %2267 = vset.pattern.permute.xlu0 0
    %2268 = vperm.xlu0 %2267, %v2242
    %v2269 = vpop.permute.xlu0 %2268
    %2272 = vset.pattern.permute.xlu0 0
    %2273 = vperm.xlu0 %2272, %v2243
    %v2274 = vpop.permute.xlu0 %2273
    %2277 = vset.pattern.permute.xlu0 0
    %2278 = vperm.xlu0 %2277, %v2244
    %v2279 = vpop.permute.xlu0 %2278
    %2282 = vset.pattern.permute.xlu0 0
    %2283 = vperm.xlu0 %2282, %v2245
    %v2284 = vpop.permute.xlu0 %2283
    %2287 = vset.pattern.permute.xlu0 0
    %2288 = vperm.xlu0 %2287, %v2246
    %v2289 = vpop.permute.xlu0 %2288
    %2292 = vset.pattern.permute.xlu0 0
    %2293 = vperm.xlu0 %2292, %v2247
    %v2294 = vpop.permute.xlu0 %2293
    %v2296 = vmul.f32 %v2248, %v2259
    %v2297 = vmul.f32 %v2249, %v2264
    %v2298 = vmul.f32 %v2250, %v2269
    %v2299 = vmul.f32 %v2251, %v2274
    %v2300 = vmul.f32 %v2252, %v2279
    %v2301 = vmul.f32 %v2253, %v2284
    %v2302 = vmul.f32 %v2254, %v2289
    %v2303 = vmul.f32 %v2255, %v2294
    %v2304 = vrot.slane %v2296, 4
    %v2305 = vadd.f32 %v2296, %v2304
    %v2306 = vrot.slane %v2305, 2
    %v2307 = vadd.f32 %v2305, %v2306
    %v2308 = vrot.slane %v2307, 1
    %v2309 = vadd.f32 %v2307, %v2308
    %v2310 = vrot.slane %v2297, 4
    %v2311 = vadd.f32 %v2297, %v2310
    %v2312 = vrot.slane %v2311, 2
    %v2313 = vadd.f32 %v2311, %v2312
    %v2314 = vrot.slane %v2313, 1
    %v2315 = vadd.f32 %v2313, %v2314
    %v2316 = vrot.slane %v2298, 4
    %v2317 = vadd.f32 %v2298, %v2316
    %v2318 = vrot.slane %v2317, 2
    %v2319 = vadd.f32 %v2317, %v2318
    %v2320 = vrot.slane %v2319, 1
    %v2321 = vadd.f32 %v2319, %v2320
    %v2322 = vrot.slane %v2299, 4
    %v2323 = vadd.f32 %v2299, %v2322
    %v2324 = vrot.slane %v2323, 2
    %v2325 = vadd.f32 %v2323, %v2324
    %v2326 = vrot.slane %v2325, 1
    %v2327 = vadd.f32 %v2325, %v2326
    %v2328 = vrot.slane %v2300, 4
    %v2329 = vadd.f32 %v2300, %v2328
    %v2330 = vrot.slane %v2329, 2
    %v2331 = vadd.f32 %v2329, %v2330
    %v2332 = vrot.slane %v2331, 1
    %v2333 = vadd.f32 %v2331, %v2332
    %v2334 = vrot.slane %v2301, 4
    %v2335 = vadd.f32 %v2301, %v2334
    %v2336 = vrot.slane %v2335, 2
    %v2337 = vadd.f32 %v2335, %v2336
    %v2338 = vrot.slane %v2337, 1
    %v2339 = vadd.f32 %v2337, %v2338
    %v2340 = vrot.slane %v2302, 4
    %v2341 = vadd.f32 %v2302, %v2340
    %v2342 = vrot.slane %v2341, 2
    %v2343 = vadd.f32 %v2341, %v2342
    %v2344 = vrot.slane %v2343, 1
    %v2345 = vadd.f32 %v2343, %v2344
    %v2346 = vrot.slane %v2303, 4
    %v2347 = vadd.f32 %v2303, %v2346
    %v2348 = vrot.slane %v2347, 2
    %v2349 = vadd.f32 %v2347, %v2348
    %v2350 = vrot.slane %v2349, 1
    %v2351 = vadd.f32 %v2349, %v2350
    %s2352 = scalar_lea.vmem [#allocation5], 32
    %v2353 = vld [vmem:[%s2352] sm:$0xff]
    %v2354 = vld [vmem:[%s2352 + $0x8] sm:$0xff]
    %v2355 = vld [vmem:[%s2352 + $0x10] sm:$0xff]
    %v2356 = vld [vmem:[%s2352 + $0x18] sm:$0xff]
    %v2357 = vpack.c.bf16 %v2309, %v2309
    %v2358 = vpack.c.bf16 %v2315, %v2315
    %v2359 = vpack.c.bf16 %v2321, %v2321
    %v2360 = vpack.c.bf16 %v2327, %v2327
    %v2361 = vpack.c.bf16 %v2333, %v2333
    %v2362 = vpack.c.bf16 %v2339, %v2339
    %v2363 = vpack.c.bf16 %v2345, %v2345
    %v2364 = vpack.c.bf16 %v2351, %v2351
    %v2365 = vld [vmem:[#allocation19] sm:$0xff]
    %v2366 = vld [vmem:[#allocation19 + $0x8] sm:$0xff]
    %v2367 = vld [vmem:[#allocation19 + $0x10] sm:$0xff]
    %v2368 = vld [vmem:[#allocation19 + $0x18] sm:$0xff]
    %v2369 = vld [vmem:[#allocation19 + $0x20] sm:$0xff]
    %v2370 = vld [vmem:[#allocation19 + $0x28] sm:$0xff]
    %v2371 = vld [vmem:[#allocation19 + $0x30] sm:$0xff]
    %v2372 = vld [vmem:[#allocation19 + $0x38] sm:$0xff]
    %v2373 = vld [vmem:[#allocation19 + $0x40] sm:$0xff]
    %v2374 = vld [vmem:[#allocation19 + $0x48] sm:$0xff]
    %v2375 = vld [vmem:[#allocation19 + $0x50] sm:$0xff]
    %v2376 = vld [vmem:[#allocation19 + $0x58] sm:$0xff]
    %v2377 = vld [vmem:[#allocation19 + $0x60] sm:$0xff]
    %v2378 = vld [vmem:[#allocation19 + $0x68] sm:$0xff]
    %v2379 = vld [vmem:[#allocation19 + $0x70] sm:$0xff]
    %v2380 = vld [vmem:[#allocation19 + $0x78] sm:$0xff]
    %v2381 = vld [vmem:[#allocation19 + $0x80] sm:$0xff]
    %v2382 = vld [vmem:[#allocation19 + $0x88] sm:$0xff]
    %v2383 = vld [vmem:[#allocation19 + $0x90] sm:$0xff]
    %v2384 = vld [vmem:[#allocation19 + $0x98] sm:$0xff]
    %v2385 = vld [vmem:[#allocation19 + $0xa0] sm:$0xff]
    %v2386 = vld [vmem:[#allocation19 + $0xa8] sm:$0xff]
    %v2387 = vld [vmem:[#allocation19 + $0xb0] sm:$0xff]
    %v2388 = vld [vmem:[#allocation19 + $0xb8] sm:$0xff]
    %v2389 = vld [vmem:[#allocation19 + $0xc0] sm:$0xff]
    %v2390 = vld [vmem:[#allocation19 + $0xc8] sm:$0xff]
    %v2391 = vld [vmem:[#allocation19 + $0xd0] sm:$0xff]
    %v2392 = vld [vmem:[#allocation19 + $0xd8] sm:$0xff]
    %v2393 = vld [vmem:[#allocation19 + $0xe0] sm:$0xff]
    %v2394 = vld [vmem:[#allocation19 + $0xe8] sm:$0xff]
    %v2395 = vld [vmem:[#allocation19 + $0xf0] sm:$0xff]
    %v2396 = vld [vmem:[#allocation19 + $0xf8] sm:$0xff]
    %v2405 = vunpack.c.l.b16 %v2357
    %v2406 = vunpack.c.l.b16 %v2358
    %v2407 = vunpack.c.l.b16 %v2359
    %v2408 = vunpack.c.l.b16 %v2360
    %v2409 = vunpack.c.l.b16 %v2361
    %v2410 = vunpack.c.l.b16 %v2362
    %v2411 = vunpack.c.l.b16 %v2363
    %v2412 = vunpack.c.l.b16 %v2364
    %v2413 = vsel %vm754, %v2406, %v2405
    %v2414 = vsel %vm756, %v2407, %v2413
    %v2415 = vsel %vm758, %v2408, %v2414
    %v2416 = vsel %vm760, %v2409, %v2415
    %v2417 = vsel %vm762, %v2410, %v2416
    %v2418 = vsel %vm764, %v2411, %v2417
    %v2419 = vsel %vm766, %v2412, %v2418
    %v2420 = vpack.c.b16 %v2419, %v2419
    %v2454 = vunpack.c.l.b16 %v2365
    %v2455 = vunpack.c.h.b16 %v2365
    %v2456 = vunpack.c.l.b16 %v2366
    %v2457 = vunpack.c.h.b16 %v2366
    %v2458 = vunpack.c.l.b16 %v2367
    %v2459 = vunpack.c.h.b16 %v2367
    %v2460 = vunpack.c.l.b16 %v2368
    %v2461 = vunpack.c.h.b16 %v2368
    %v2462 = vunpack.c.l.b16 %v2369
    %v2463 = vunpack.c.h.b16 %v2369
    %v2464 = vunpack.c.l.b16 %v2370
    %v2465 = vunpack.c.h.b16 %v2370
    %v2466 = vunpack.c.l.b16 %v2371
    %v2467 = vunpack.c.h.b16 %v2371
    %v2468 = vunpack.c.l.b16 %v2372
    %v2469 = vunpack.c.h.b16 %v2372
    %v2470 = vunpack.c.l.b16 %v2373
    %v2471 = vunpack.c.h.b16 %v2373
    %v2472 = vunpack.c.l.b16 %v2374
    %v2473 = vunpack.c.h.b16 %v2374
    %v2474 = vunpack.c.l.b16 %v2375
    %v2475 = vunpack.c.h.b16 %v2375
    %v2476 = vunpack.c.l.b16 %v2376
    %v2477 = vunpack.c.h.b16 %v2376
    %v2478 = vunpack.c.l.b16 %v2377
    %v2479 = vunpack.c.h.b16 %v2377
    %v2480 = vunpack.c.l.b16 %v2378
    %v2481 = vunpack.c.h.b16 %v2378
    %v2482 = vunpack.c.l.b16 %v2379
    %v2483 = vunpack.c.h.b16 %v2379
    %v2484 = vunpack.c.l.b16 %v2380
    %v2485 = vunpack.c.h.b16 %v2380
    %v2486 = vunpack.c.l.b16 %v2381
    %v2487 = vunpack.c.h.b16 %v2381
    %v2488 = vunpack.c.l.b16 %v2382
    %v2489 = vunpack.c.h.b16 %v2382
    %v2490 = vunpack.c.l.b16 %v2383
    %v2491 = vunpack.c.h.b16 %v2383
    %v2492 = vunpack.c.l.b16 %v2384
    %v2493 = vunpack.c.h.b16 %v2384
    %v2494 = vunpack.c.l.b16 %v2385
    %v2495 = vunpack.c.h.b16 %v2385
    %v2496 = vunpack.c.l.b16 %v2386
    %v2497 = vunpack.c.h.b16 %v2386
    %v2498 = vunpack.c.l.b16 %v2387
    %v2499 = vunpack.c.h.b16 %v2387
    %v2500 = vunpack.c.l.b16 %v2388
    %v2501 = vunpack.c.h.b16 %v2388
    %v2502 = vunpack.c.l.b16 %v2389
    %v2503 = vunpack.c.h.b16 %v2389
    %v2504 = vunpack.c.l.b16 %v2390
    %v2505 = vunpack.c.h.b16 %v2390
    %v2506 = vunpack.c.l.b16 %v2391
    %v2507 = vunpack.c.h.b16 %v2391
    %v2508 = vunpack.c.l.b16 %v2392
    %v2509 = vunpack.c.h.b16 %v2392
    %v2510 = vunpack.c.l.b16 %v2393
    %v2511 = vunpack.c.h.b16 %v2393
    %v2512 = vunpack.c.l.b16 %v2394
    %v2513 = vunpack.c.h.b16 %v2394
    %v2514 = vunpack.c.l.b16 %v2395
    %v2515 = vunpack.c.h.b16 %v2395
    %v2516 = vunpack.c.l.b16 %v2396
    %v2517 = vunpack.c.h.b16 %v2396
    %v2518 = vpack.c.b16 %v2458, %v2454
    %v2519 = vpack.c.b16 %v2459, %v2455
    %v2520 = vpack.c.b16 %v2460, %v2456
    %v2521 = vpack.c.b16 %v2461, %v2457
    %v2522 = vpack.c.b16 %v2466, %v2462
    %v2523 = vpack.c.b16 %v2467, %v2463
    %v2524 = vpack.c.b16 %v2468, %v2464
    %v2525 = vpack.c.b16 %v2469, %v2465
    %v2526 = vpack.c.b16 %v2474, %v2470
    %v2527 = vpack.c.b16 %v2475, %v2471
    %v2528 = vpack.c.b16 %v2476, %v2472
    %v2529 = vpack.c.b16 %v2477, %v2473
    %v2530 = vpack.c.b16 %v2482, %v2478
    %v2531 = vpack.c.b16 %v2483, %v2479
    %v2532 = vpack.c.b16 %v2484, %v2480
    %v2533 = vpack.c.b16 %v2485, %v2481
    %v2534 = vpack.c.b16 %v2490, %v2486
    %v2535 = vpack.c.b16 %v2491, %v2487
    %v2536 = vpack.c.b16 %v2492, %v2488
    %v2537 = vpack.c.b16 %v2493, %v2489
    %v2538 = vpack.c.b16 %v2498, %v2494
    %v2539 = vpack.c.b16 %v2499, %v2495
    %v2540 = vpack.c.b16 %v2500, %v2496
    %v2541 = vpack.c.b16 %v2501, %v2497
    %v2542 = vpack.c.b16 %v2506, %v2502
    %v2543 = vpack.c.b16 %v2507, %v2503
    %v2544 = vpack.c.b16 %v2508, %v2504
    %v2545 = vpack.c.b16 %v2509, %v2505
    %v2546 = vpack.c.b16 %v2514, %v2510
    %v2547 = vpack.c.b16 %v2515, %v2511
    %v2548 = vpack.c.b16 %v2516, %v2512
    %v2549 = vpack.c.b16 %v2517, %v2513
    %2582 = vmatprep.subr.bf16.mxu0 %v2519
    %2583 = vmatpush1.bf16.msra.mxu0 %v2518
    %2584 = vmatprep.subr.bf16.mxu0 %v2523
    %2585 = vmatpush1.bf16.msra.mxu0 %v2522
    %2586 = vmatprep.subr.bf16.mxu0 %v2527
    %2587 = vmatpush1.bf16.msra.mxu0 %v2526
    %2588 = vmatprep.subr.bf16.mxu0 %v2531
    %2589 = vmatpush1.bf16.msra.mxu0 %v2530
    %2590 = vmatprep.subr.bf16.mxu0 %v2535
    %2591 = vmatpush1.bf16.msra.mxu0 %v2534
    %2592 = vmatprep.subr.bf16.mxu0 %v2539
    %2593 = vmatpush1.bf16.msra.mxu0 %v2538
    %2594 = vmatprep.subr.bf16.mxu0 %v2543
    %2595 = vmatpush1.bf16.msra.mxu0 %v2542
    %2596 = vmatprep.subr.bf16.mxu0 %v2547
    %2597 = vmatpush1.bf16.msra.mxu0 %v2546
    %2598 = vmatprep.subr.bf16.mxu0 0
    %2599 = vmatpush1.bf16.msra.mxu0 0
    %2600 = vmatprep.subr.bf16.mxu0 0
    %2601 = vmatpush1.bf16.msra.mxu0 0
    %2602 = vmatprep.subr.bf16.mxu0 0
    %2603 = vmatpush1.bf16.msra.mxu0 0
    %2604 = vmatprep.subr.bf16.mxu0 0
    %2605 = vmatpush1.bf16.msra.mxu0 0
    %2606 = vmatprep.subr.bf16.mxu0 0
    %2607 = vmatpush1.bf16.msra.mxu0 0
    %2608 = vmatprep.subr.bf16.mxu0 0
    %2609 = vmatpush1.bf16.msra.mxu0 0
    %2610 = vmatprep.subr.bf16.mxu0 0
    %2611 = vmatpush1.bf16.msra.mxu0 0
    %2612 = vmatprep.subr.bf16.mxu0 0
    %2613 = vmatpush1.bf16.msra.mxu0 0
    %2614 = vmatprep.mubr.bf16.mxu0 0
    %2615 = vmatmul.mubr.bf16.gmra.mrb[0].mxu0 %v2420
    %v2616 = vpop.f32.mrb[0].mxu0
    %v2617 = vadd.f32 0.0, %v2616
    %v2618 = vpop.f32.mrb[0].mxu0
    %v2619 = vadd.f32 0.0, %v2618
    %v2620 = vpop.f32.mrb[0].mxu0
    %v2621 = vpop.f32.mrb[0].mxu0
    %2622 = vdwg.mxu0
    %2623 = vmatprep.subr.bf16.mxu0 %v2521
    %2624 = vmatpush1.bf16.msra.mxu0 %v2520
    %2625 = vmatprep.subr.bf16.mxu0 %v2525
    %2626 = vmatpush1.bf16.msra.mxu0 %v2524
    %2627 = vmatprep.subr.bf16.mxu0 %v2529
    %2628 = vmatpush1.bf16.msra.mxu0 %v2528
    %2629 = vmatprep.subr.bf16.mxu0 %v2533
    %2630 = vmatpush1.bf16.msra.mxu0 %v2532
    %2631 = vmatprep.subr.bf16.mxu0 %v2537
    %2632 = vmatpush1.bf16.msra.mxu0 %v2536
    %2633 = vmatprep.subr.bf16.mxu0 %v2541
    %2634 = vmatpush1.bf16.msra.mxu0 %v2540
    %2635 = vmatprep.subr.bf16.mxu0 %v2545
    %2636 = vmatpush1.bf16.msra.mxu0 %v2544
    %2637 = vmatprep.subr.bf16.mxu0 %v2549
    %2638 = vmatpush1.bf16.msra.mxu0 %v2548
    %2639 = vmatprep.subr.bf16.mxu0 0
    %2640 = vmatpush1.bf16.msra.mxu0 0
    %2641 = vmatprep.subr.bf16.mxu0 0
    %2642 = vmatpush1.bf16.msra.mxu0 0
    %2643 = vmatprep.subr.bf16.mxu0 0
    %2644 = vmatpush1.bf16.msra.mxu0 0
    %2645 = vmatprep.subr.bf16.mxu0 0
    %2646 = vmatpush1.bf16.msra.mxu0 0
    %2647 = vmatprep.subr.bf16.mxu0 0
    %2648 = vmatpush1.bf16.msra.mxu0 0
    %2649 = vmatprep.subr.bf16.mxu0 0
    %2650 = vmatpush1.bf16.msra.mxu0 0
    %2651 = vmatprep.subr.bf16.mxu0 0
    %2652 = vmatpush1.bf16.msra.mxu0 0
    %2653 = vmatprep.subr.bf16.mxu0 0
    %2654 = vmatpush1.bf16.msra.mxu0 0
    %2655 = vmatprep.mubr.bf16.mxu0 0
    %2656 = vmatmul.mubr.bf16.gmra.mrb[0].mxu0 %v2420
    %v2657 = vpop.f32.mrb[0].mxu0
    %v2658 = vadd.f32 0.0, %v2657
    %v2659 = vpop.f32.mrb[0].mxu0
    %v2660 = vadd.f32 0.0, %v2659
    %v2661 = vpop.f32.mrb[0].mxu0
    %v2662 = vpop.f32.mrb[0].mxu0
    %2663 = vdwg.mxu0
    %v2664 = vadd.f32 %v2353, %v2617
    %v2665 = vadd.f32 %v2354, %v2619
    %v2666 = vadd.f32 %v2355, %v2658
    %v2667 = vadd.f32 %v2356, %v2660
    %v2668 = vadd.f32 %v2664, %v1751
    %v2669 = vadd.f32 %v2665, %v1790
    %v2670 = vadd.f32 %v2666, %v1792
    %v2671 = vadd.f32 %v2667, %v1831
    %v2672 = vxor.u32 %v2668, 2147483648
    %v2673 = vmul.f32 %v2672, 1.442695
    %v2674 = vpow.pop %v2673
    %v2675 = vadd.f32 %v2674, 1.0
    %v2676 = vrcp.pop %v2675
    %v2677 = vmul.f32 1.0, %v2676
    %v2678 = vxor.u32 %v2669, 2147483648
    %v2679 = vmul.f32 %v2678, 1.442695
    %v2680 = vpow.pop %v2679
    %v2681 = vadd.f32 %v2680, 1.0
    %v2682 = vrcp.pop %v2681
    %v2683 = vmul.f32 1.0, %v2682
    %v2684 = vtanh.pop %v2670
    %v2685 = vxor.u32 %v2671, 2147483648
    %v2686 = vmul.f32 %v2685, 1.442695
    %v2687 = vpow.pop %v2686
    %v2688 = vadd.f32 %v2687, 1.0
    %v2689 = vrcp.pop %v2688
    %v2690 = vmul.f32 1.0, %v2689
    %v2691 = vmul.f32 %v2683, %v1456
    %v2692 = vmul.f32 %v2677, %v2684
    %v2693 = vadd.f32 %v2691, %v2692
    %v2694 = vtanh.pop %v2693
    %v2695 = vmul.f32 %v2690, %v2694
    %2696 = vst [vmem:[#allocation2] sm:$0xff] %v2695
    %2697 = vst [vmem:[#allocation3] sm:$0xff] %v2693
    %v2698 = vpack.c.bf16 %v2695, %v2695
    %s2699 = scalar_lea.vmem [#allocation20], 4
    %2700 = vst [vmem:[%s2699] sm:$0xf] %v2698
    %v2701 = vlaneseq
    %v2702 = vshrl.u32 %v2701, 7
    %v2703 = vsub.s32 %v721, %v2702
    %v2704 = vrot.slane %v2259, %v2703
    %v2705 = vlaneseq
    %v2706 = vshrl.u32 %v2705, 7
    %v2707 = vsub.s32 %v721, %v2706
    %v2708 = vrot.slane %v2264, %v2707
    %v2709 = vlaneseq
    %v2710 = vshrl.u32 %v2709, 7
    %v2711 = vsub.s32 %v721, %v2710
    %v2712 = vrot.slane %v2269, %v2711
    %v2713 = vlaneseq
    %v2714 = vshrl.u32 %v2713, 7
    %v2715 = vsub.s32 %v721, %v2714
    %v2716 = vrot.slane %v2274, %v2715
    %v2717 = vlaneseq
    %v2718 = vshrl.u32 %v2717, 7
    %v2719 = vsub.s32 %v721, %v2718
    %v2720 = vrot.slane %v2279, %v2719
    %v2721 = vlaneseq
    %v2722 = vshrl.u32 %v2721, 7
    %v2723 = vsub.s32 %v721, %v2722
    %v2724 = vrot.slane %v2284, %v2723
    %v2725 = vlaneseq
    %v2726 = vshrl.u32 %v2725, 7
    %v2727 = vsub.s32 %v721, %v2726
    %v2728 = vrot.slane %v2289, %v2727
    %v2729 = vlaneseq
    %v2730 = vshrl.u32 %v2729, 7
    %v2731 = vsub.s32 %v721, %v2730
    %v2732 = vrot.slane %v2294, %v2731
    %v2733 = vsel %vm754, %v2708, %v2704
    %v2734 = vsel %vm756, %v2712, %v2733
    %v2735 = vsel %vm758, %v2716, %v2734
    %v2736 = vsel %vm760, %v2720, %v2735
    %v2737 = vsel %vm762, %v2724, %v2736
    %v2738 = vsel %vm764, %v2728, %v2737
    %v2739 = vsel %vm766, %v2732, %v2738
    %s2741 = scalar_lea.vmem [#allocation21], 8
    %2742 = vst.msk [vmem:[%s2741] sm:$0xff] %vm769, %v2739
    %v2743 = vld [vmem:[#allocation2] sm:$0xff]
    %v2744 = vld [vmem:[#allocation3] sm:$0xff]
    %v2745 = vpack.c.bf16 %v2743, %v2743
    %v2746 = vld [vmem:[#allocation14] sm:$0xff]
    %v2747 = vld [vmem:[#allocation14 + $0x8] sm:$0xff]
    %v2748 = vld [vmem:[#allocation14 + $0x10] sm:$0xf]
    %v2749 = vld [vmem:[#allocation14 + $0x14] sm:$0xff]
    %v2750 = vld [vmem:[#allocation14 + $0x1c] sm:$0xff]
    %v2751 = vld [vmem:[#allocation14 + $0x24] sm:$0xf]
    %v2752 = vld [vmem:[#allocation14 + $0x28] sm:$0xff]
    %v2753 = vld [vmem:[#allocation14 + $0x30] sm:$0xff]
    %v2754 = vld [vmem:[#allocation14 + $0x38] sm:$0xf]
    %v2755 = vld [vmem:[#allocation14 + $0x3c] sm:$0xff]
    %v2756 = vld [vmem:[#allocation14 + $0x44] sm:$0xff]
    %v2757 = vld [vmem:[#allocation14 + $0x4c] sm:$0xf]
    %v2758 = vld [vmem:[#allocation14 + $0x50] sm:$0xff]
    %v2759 = vld [vmem:[#allocation14 + $0x58] sm:$0xff]
    %v2760 = vld [vmem:[#allocation14 + $0x60] sm:$0xf]
    %v2761 = vld [vmem:[#allocation14 + $0x64] sm:$0xff]
    %v2762 = vld [vmem:[#allocation14 + $0x6c] sm:$0xff]
    %v2763 = vld [vmem:[#allocation14 + $0x74] sm:$0xf]
    %v2764 = vld [vmem:[#allocation14 + $0x78] sm:$0xff]
    %v2765 = vld [vmem:[#allocation14 + $0x80] sm:$0xff]
    %v2766 = vld [vmem:[#allocation14 + $0x88] sm:$0xf]
    %v2767 = vld [vmem:[#allocation14 + $0x8c] sm:$0xff]
    %v2768 = vld [vmem:[#allocation14 + $0x94] sm:$0xff]
    %v2769 = vld [vmem:[#allocation14 + $0x9c] sm:$0xf]
    %v2770 = vld [vmem:[#allocation14 + $0xa0] sm:$0xff]
    %v2771 = vld [vmem:[#allocation14 + $0xa8] sm:$0xff]
    %v2772 = vld [vmem:[#allocation14 + $0xb0] sm:$0xf]
    %v2773 = vld [vmem:[#allocation14 + $0xb4] sm:$0xff]
    %v2774 = vld [vmem:[#allocation14 + $0xbc] sm:$0xff]
    %v2775 = vld [vmem:[#allocation14 + $0xc4] sm:$0xf]
    %v2776 = vld [vmem:[#allocation14 + $0xc8] sm:$0xff]
    %v2777 = vld [vmem:[#allocation14 + $0xd0] sm:$0xff]
    %v2778 = vld [vmem:[#allocation14 + $0xd8] sm:$0xf]
    %v2779 = vld [vmem:[#allocation14 + $0xdc] sm:$0xff]
    %v2780 = vld [vmem:[#allocation14 + $0xe4] sm:$0xff]
    %v2781 = vld [vmem:[#allocation14 + $0xec] sm:$0xf]
    %v2782 = vld [vmem:[#allocation14 + $0xf0] sm:$0xff]
    %v2783 = vld [vmem:[#allocation14 + $0xf8] sm:$0xff]
    %v2784 = vld [vmem:[#allocation14 + $0x100] sm:$0xf]
    %v2785 = vld [vmem:[#allocation14 + $0x104] sm:$0xff]
    %v2786 = vld [vmem:[#allocation14 + $0x10c] sm:$0xff]
    %v2787 = vld [vmem:[#allocation14 + $0x114] sm:$0xf]
    %v2788 = vld [vmem:[#allocation14 + $0x118] sm:$0xff]
    %v2789 = vld [vmem:[#allocation14 + $0x120] sm:$0xff]
    %v2790 = vld [vmem:[#allocation14 + $0x128] sm:$0xf]
    %v2791 = vld [vmem:[#allocation14 + $0x12c] sm:$0xff]
    %v2792 = vld [vmem:[#allocation14 + $0x134] sm:$0xff]
    %v2793 = vld [vmem:[#allocation14 + $0x13c] sm:$0xf]
    %v2842 = vunpack.c.l.b16 %v2746
    %v2843 = vunpack.c.h.b16 %v2746
    %v2844 = vunpack.c.l.b16 %v2747
    %v2845 = vunpack.c.h.b16 %v2747
    %v2846 = vunpack.c.l.b16 %v2748
    %v2847 = vunpack.c.l.b16 %v2749
    %v2848 = vunpack.c.h.b16 %v2749
    %v2849 = vunpack.c.l.b16 %v2750
    %v2850 = vunpack.c.h.b16 %v2750
    %v2851 = vunpack.c.l.b16 %v2751
    %v2852 = vunpack.c.l.b16 %v2752
    %v2853 = vunpack.c.h.b16 %v2752
    %v2854 = vunpack.c.l.b16 %v2753
    %v2855 = vunpack.c.h.b16 %v2753
    %v2856 = vunpack.c.l.b16 %v2754
    %v2857 = vunpack.c.l.b16 %v2755
    %v2858 = vunpack.c.h.b16 %v2755
    %v2859 = vunpack.c.l.b16 %v2756
    %v2860 = vunpack.c.h.b16 %v2756
    %v2861 = vunpack.c.l.b16 %v2757
    %v2862 = vunpack.c.l.b16 %v2758
    %v2863 = vunpack.c.h.b16 %v2758
    %v2864 = vunpack.c.l.b16 %v2759
    %v2865 = vunpack.c.h.b16 %v2759
    %v2866 = vunpack.c.l.b16 %v2760
    %v2867 = vunpack.c.l.b16 %v2761
    %v2868 = vunpack.c.h.b16 %v2761
    %v2869 = vunpack.c.l.b16 %v2762
    %v2870 = vunpack.c.h.b16 %v2762
    %v2871 = vunpack.c.l.b16 %v2763
    %v2872 = vunpack.c.l.b16 %v2764
    %v2873 = vunpack.c.h.b16 %v2764
    %v2874 = vunpack.c.l.b16 %v2765
    %v2875 = vunpack.c.h.b16 %v2765
    %v2876 = vunpack.c.l.b16 %v2766
    %v2877 = vunpack.c.l.b16 %v2767
    %v2878 = vunpack.c.h.b16 %v2767
    %v2879 = vunpack.c.l.b16 %v2768
    %v2880 = vunpack.c.h.b16 %v2768
    %v2881 = vunpack.c.l.b16 %v2769
    %v2882 = vunpack.c.l.b16 %v2770
    %v2883 = vunpack.c.h.b16 %v2770
    %v2884 = vunpack.c.l.b16 %v2771
    %v2885 = vunpack.c.h.b16 %v2771
    %v2886 = vunpack.c.l.b16 %v2772
    %v2887 = vunpack.c.l.b16 %v2773
    %v2888 = vunpack.c.h.b16 %v2773
    %v2889 = vunpack.c.l.b16 %v2774
    %v2890 = vunpack.c.h.b16 %v2774
    %v2891 = vunpack.c.l.b16 %v2775
    %v2892 = vunpack.c.l.b16 %v2776
    %v2893 = vunpack.c.h.b16 %v2776
    %v2894 = vunpack.c.l.b16 %v2777
    %v2895 = vunpack.c.h.b16 %v2777
    %v2896 = vunpack.c.l.b16 %v2778
    %v2897 = vunpack.c.l.b16 %v2779
    %v2898 = vunpack.c.h.b16 %v2779
    %v2899 = vunpack.c.l.b16 %v2780
    %v2900 = vunpack.c.h.b16 %v2780
    %v2901 = vunpack.c.l.b16 %v2781
    %v2902 = vunpack.c.l.b16 %v2782
    %v2903 = vunpack.c.h.b16 %v2782
    %v2904 = vunpack.c.l.b16 %v2783
    %v2905 = vunpack.c.h.b16 %v2783
    %v2906 = vunpack.c.l.b16 %v2784
    %v2907 = vunpack.c.l.b16 %v2785
    %v2908 = vunpack.c.h.b16 %v2785
    %v2909 = vunpack.c.l.b16 %v2786
    %v2910 = vunpack.c.h.b16 %v2786
    %v2911 = vunpack.c.l.b16 %v2787
    %v2912 = vunpack.c.l.b16 %v2788
    %v2913 = vunpack.c.h.b16 %v2788
    %v2914 = vunpack.c.l.b16 %v2789
    %v2915 = vunpack.c.h.b16 %v2789
    %v2916 = vunpack.c.l.b16 %v2790
    %v2917 = vunpack.c.l.b16 %v2791
    %v2918 = vunpack.c.h.b16 %v2791
    %v2919 = vunpack.c.l.b16 %v2792
    %v2920 = vunpack.c.h.b16 %v2792
    %v2921 = vunpack.c.l.b16 %v2793
    %v2922 = vpack.c.b16 %v2847, %v2842
    %v2923 = vpack.c.b16 %v2848, %v2843
    %v2924 = vpack.c.b16 %v2849, %v2844
    %v2925 = vpack.c.b16 %v2850, %v2845
    %v2926 = vpack.c.b16 %v2851, %v2846
    %v2927 = vpack.c.b16 %v2857, %v2852
    %v2928 = vpack.c.b16 %v2858, %v2853
    %v2929 = vpack.c.b16 %v2859, %v2854
    %v2930 = vpack.c.b16 %v2860, %v2855
    %v2931 = vpack.c.b16 %v2861, %v2856
    %v2932 = vpack.c.b16 %v2867, %v2862
    %v2933 = vpack.c.b16 %v2868, %v2863
    %v2934 = vpack.c.b16 %v2869, %v2864
    %v2935 = vpack.c.b16 %v2870, %v2865
    %v2936 = vpack.c.b16 %v2871, %v2866
    %v2937 = vpack.c.b16 %v2877, %v2872
    %v2938 = vpack.c.b16 %v2878, %v2873
    %v2939 = vpack.c.b16 %v2879, %v2874
    %v2940 = vpack.c.b16 %v2880, %v2875
    %v2941 = vpack.c.b16 %v2881, %v2876
    %v2942 = vpack.c.b16 %v2887, %v2882
    %v2943 = vpack.c.b16 %v2888, %v2883
    %v2944 = vpack.c.b16 %v2889, %v2884
    %v2945 = vpack.c.b16 %v2890, %v2885
    %v2946 = vpack.c.b16 %v2891, %v2886
    %v2947 = vpack.c.b16 %v2897, %v2892
    %v2948 = vpack.c.b16 %v2898, %v2893
    %v2949 = vpack.c.b16 %v2899, %v2894
    %v2950 = vpack.c.b16 %v2900, %v2895
    %v2951 = vpack.c.b16 %v2901, %v2896
    %v2952 = vpack.c.b16 %v2907, %v2902
    %v2953 = vpack.c.b16 %v2908, %v2903
    %v2954 = vpack.c.b16 %v2909, %v2904
    %v2955 = vpack.c.b16 %v2910, %v2905
    %v2956 = vpack.c.b16 %v2911, %v2906
    %v2957 = vpack.c.b16 %v2917, %v2912
    %v2958 = vpack.c.b16 %v2918, %v2913
    %v2959 = vpack.c.b16 %v2919, %v2914
    %v2960 = vpack.c.b16 %v2920, %v2915
    %v2961 = vpack.c.b16 %v2921, %v2916
    %3002 = vmatprep.subr.bf16.mxu0 %v2923
    %3003 = vmatpush1.bf16.msra.mxu0 %v2922
    %3004 = vmatprep.subr.bf16.mxu0 %v2928
    %3005 = vmatpush1.bf16.msra.mxu0 %v2927
    %3006 = vmatprep.subr.bf16.mxu0 %v2933
    %3007 = vmatpush1.bf16.msra.mxu0 %v2932
    %3008 = vmatprep.subr.bf16.mxu0 %v2938
    %3009 = vmatpush1.bf16.msra.mxu0 %v2937
    %3010 = vmatprep.subr.bf16.mxu0 %v2943
    %3011 = vmatpush1.bf16.msra.mxu0 %v2942
    %3012 = vmatprep.subr.bf16.mxu0 %v2948
    %3013 = vmatpush1.bf16.msra.mxu0 %v2947
    %3014 = vmatprep.subr.bf16.mxu0 %v2953
    %3015 = vmatpush1.bf16.msra.mxu0 %v2952
    %3016 = vmatprep.subr.bf16.mxu0 %v2958
    %3017 = vmatpush1.bf16.msra.mxu0 %v2957
    %3018 = vmatprep.subr.bf16.mxu0 0
    %3019 = vmatpush1.bf16.msra.mxu0 0
    %3020 = vmatprep.subr.bf16.mxu0 0
    %3021 = vmatpush1.bf16.msra.mxu0 0
    %3022 = vmatprep.subr.bf16.mxu0 0
    %3023 = vmatpush1.bf16.msra.mxu0 0
    %3024 = vmatprep.subr.bf16.mxu0 0
    %3025 = vmatpush1.bf16.msra.mxu0 0
    %3026 = vmatprep.subr.bf16.mxu0 0
    %3027 = vmatpush1.bf16.msra.mxu0 0
    %3028 = vmatprep.subr.bf16.mxu0 0
    %3029 = vmatpush1.bf16.msra.mxu0 0
    %3030 = vmatprep.subr.bf16.mxu0 0
    %3031 = vmatpush1.bf16.msra.mxu0 0
    %3032 = vmatprep.subr.bf16.mxu0 0
    %3033 = vmatpush1.bf16.msra.mxu0 0
    %3034 = vmatprep.mubr.bf16.mxu0 0
    %3035 = vmatmul.mubr.bf16.gmra.mrb[0].mxu0 %v2745
    %v3036 = vpop.f32.mrb[0].mxu0
    %v3037 = vadd.f32 0.0, %v3036
    %v3038 = vpop.f32.mrb[0].mxu0
    %v3039 = vadd.f32 0.0, %v3038
    %v3040 = vpop.f32.mrb[0].mxu0
    %v3041 = vpop.f32.mrb[0].mxu0
    %3042 = vdwg.mxu0
    %3043 = vmatprep.subr.bf16.mxu0 %v2925
    %3044 = vmatpush1.bf16.msra.mxu0 %v2924
    %3045 = vmatprep.subr.bf16.mxu0 %v2930
    %3046 = vmatpush1.bf16.msra.mxu0 %v2929
    %3047 = vmatprep.subr.bf16.mxu0 %v2935
    %3048 = vmatpush1.bf16.msra.mxu0 %v2934
    %3049 = vmatprep.subr.bf16.mxu0 %v2940
    %3050 = vmatpush1.bf16.msra.mxu0 %v2939
    %3051 = vmatprep.subr.bf16.mxu0 %v2945
    %3052 = vmatpush1.bf16.msra.mxu0 %v2944
    %3053 = vmatprep.subr.bf16.mxu0 %v2950
    %3054 = vmatpush1.bf16.msra.mxu0 %v2949
    %3055 = vmatprep.subr.bf16.mxu0 %v2955
    %3056 = vmatpush1.bf16.msra.mxu0 %v2954
    %3057 = vmatprep.subr.bf16.mxu0 %v2960
    %3058 = vmatpush1.bf16.msra.mxu0 %v2959
    %3059 = vmatprep.subr.bf16.mxu0 0
    %3060 = vmatpush1.bf16.msra.mxu0 0
    %3061 = vmatprep.subr.bf16.mxu0 0
    %3062 = vmatpush1.bf16.msra.mxu0 0
    %3063 = vmatprep.subr.bf16.mxu0 0
    %3064 = vmatpush1.bf16.msra.mxu0 0
    %3065 = vmatprep.subr.bf16.mxu0 0
    %3066 = vmatpush1.bf16.msra.mxu0 0
    %3067 = vmatprep.subr.bf16.mxu0 0
    %3068 = vmatpush1.bf16.msra.mxu0 0
    %3069 = vmatprep.subr.bf16.mxu0 0
    %3070 = vmatpush1.bf16.msra.mxu0 0
    %3071 = vmatprep.subr.bf16.mxu0 0
    %3072 = vmatpush1.bf16.msra.mxu0 0
    %3073 = vmatprep.subr.bf16.mxu0 0
    %3074 = vmatpush1.bf16.msra.mxu0 0
    %3075 = vmatprep.mubr.bf16.mxu0 0
    %3076 = vmatmul.mubr.bf16.gmra.mrb[0].mxu0 %v2745
    %v3077 = vpop.f32.mrb[0].mxu0
    %v3078 = vadd.f32 0.0, %v3077
    %v3079 = vpop.f32.mrb[0].mxu0
    %v3080 = vadd.f32 0.0, %v3079
    %v3081 = vpop.f32.mrb[0].mxu0
    %v3082 = vpop.f32.mrb[0].mxu0
    %3083 = vdwg.mxu0
    %3084 = vmatprep.subr.bf16.mxu0 0
    %3085 = vmatpush1.bf16.msra.mxu0 %v2926
    %3086 = vmatprep.subr.bf16.mxu0 0
    %3087 = vmatpush1.bf16.msra.mxu0 %v2931
    %3088 = vmatprep.subr.bf16.mxu0 0
    %3089 = vmatpush1.bf16.msra.mxu0 %v2936
    %3090 = vmatprep.subr.bf16.mxu0 0
    %3091 = vmatpush1.bf16.msra.mxu0 %v2941
    %3092 = vmatprep.subr.bf16.mxu0 0
    %3093 = vmatpush1.bf16.msra.mxu0 %v2946
    %3094 = vmatprep.subr.bf16.mxu0 0
    %3095 = vmatpush1.bf16.msra.mxu0 %v2951
    %3096 = vmatprep.subr.bf16.mxu0 0
    %3097 = vmatpush1.bf16.msra.mxu0 %v2956
    %3098 = vmatprep.subr.bf16.mxu0 0
    %3099 = vmatpush1.bf16.msra.mxu0 %v2961
    %3100 = vmatprep.subr.bf16.mxu0 0
    %3101 = vmatpush1.bf16.msra.mxu0 0
    %3102 = vmatprep.subr.bf16.mxu0 0
    %3103 = vmatpush1.bf16.msra.mxu0 0
    %3104 = vmatprep.subr.bf16.mxu0 0
    %3105 = vmatpush1.bf16.msra.mxu0 0
    %3106 = vmatprep.subr.bf16.mxu0 0
    %3107 = vmatpush1.bf16.msra.mxu0 0
    %3108 = vmatprep.subr.bf16.mxu0 0
    %3109 = vmatpush1.bf16.msra.mxu0 0
    %3110 = vmatprep.subr.bf16.mxu0 0
    %3111 = vmatpush1.bf16.msra.mxu0 0
    %3112 = vmatprep.subr.bf16.mxu0 0
    %3113 = vmatpush1.bf16.msra.mxu0 0
    %3114 = vmatprep.subr.bf16.mxu0 0
    %3115 = vmatpush1.bf16.msra.mxu0 0
    %3116 = vmatprep.mubr.bf16.mxu0 0
    %3117 = vmatmul.mubr.bf16.gmra.mrb[0].mxu0 %v2745
    %v3118 = vpop.f32.mrb[0].mxu0
    %v3119 = vadd.f32 0.0, %v3118
    %v3120 = vpop.f32.mrb[0].mxu0
    %v3121 = vpop.f32.mrb[0].mxu0
    %v3122 = vpop.f32.mrb[0].mxu0
    %3123 = vdwg.mxu0
    %v3124 = vld [vmem:[#allocation16] sm:$0x1]
    %v3126 = vlaneseq
    %v3127 = vshrl.u32 %v3126, 7
    %v3128 = vsub.s32 0, %v3127
    %v3129 = vrot.slane %v3124, %v3128
    %v3131 = vadd.f32 %v3037, %v3129
    %v3132 = vld [vmem:[#allocation10] sm:$0xff]
    %v3133 = vld [vmem:[#allocation10 + $0x8] sm:$0xff]
    %v3134 = vld [vmem:[#allocation10 + $0x10] sm:$0xff]
    %v3135 = vld [vmem:[#allocation10 + $0x18] sm:$0xff]
    %v3136 = vld [vmem:[#allocation10 + $0x20] sm:$0xff]
    %v3137 = vld [vmem:[#allocation10 + $0x28] sm:$0xff]
    %v3138 = vld [vmem:[#allocation10 + $0x30] sm:$0xff]
    %v3139 = vld [vmem:[#allocation10 + $0x38] sm:$0xff]
    %v3141 = vcombine.high %v3131, %v3131
    %v3143 = vunpack.c.l.s4 1966171168
    %v3144 = vunpack.c.0.s8 %v3143
    %v3145 = vlaneseq
    %v3146 = vshrl.u32 %v3145, 7
    %v3147 = vsub.s32 %v3144, %v3146
    %v3148 = vrot.slane %v3131, %v3147
    %v3150 = vunpack.c.l.s4 1966171168
    %v3151 = vunpack.c.0.s8 %v3150
    %v3152 = vlaneseq
    %v3153 = vshrl.u32 %v3152, 7
    %v3154 = vsub.s32 %v3151, %v3153
    %v3155 = vrot.slane %v3141, %v3154
    %v3156 = vcombine.high %v3148, %v3148
    %v3157 = vcombine.high %v3155, %v3155
    %v3159 = vunpack.c.l.s4 1966171168
    %v3160 = vunpack.c.0.s8 %v3159
    %v3161 = vlaneseq
    %v3162 = vshrl.u32 %v3161, 7
    %v3163 = vsub.s32 %v3160, %v3162
    %v3164 = vrot.slane %v3148, %v3163
    %v3166 = vunpack.c.l.s4 1966171168
    %v3167 = vunpack.c.0.s8 %v3166
    %v3168 = vlaneseq
    %v3169 = vshrl.u32 %v3168, 7
    %v3170 = vsub.s32 %v3167, %v3169
    %v3171 = vrot.slane %v3155, %v3170
    %v3173 = vunpack.c.l.s4 1966171168
    %v3174 = vunpack.c.0.s8 %v3173
    %v3175 = vlaneseq
    %v3176 = vshrl.u32 %v3175, 7
    %v3177 = vsub.s32 %v3174, %v3176
    %v3178 = vrot.slane %v3156, %v3177
    %v3180 = vunpack.c.l.s4 1966171168
    %v3181 = vunpack.c.0.s8 %v3180
    %v3182 = vlaneseq
    %v3183 = vshrl.u32 %v3182, 7
    %v3184 = vsub.s32 %v3181, %v3183
    %v3185 = vrot.slane %v3157, %v3184
    %v3186 = vcombine.high %v3164, %v3164
    %v3187 = vcombine.high %v3171, %v3171
    %v3188 = vcombine.high %v3178, %v3178
    %v3189 = vcombine.high %v3185, %v3185
    %v3190 = vlaneseq
    %v3191 = vshrl.u32 %v3190, 7
    %v3192 = vsub.s32 0, %v3191
    %v3193 = vrot.slane %v3164, %v3192
    %v3194 = vlaneseq
    %v3195 = vshrl.u32 %v3194, 7
    %v3196 = vsub.s32 0, %v3195
    %v3197 = vrot.slane %v3178, %v3196
    %v3198 = vlaneseq
    %v3199 = vshrl.u32 %v3198, 7
    %v3200 = vsub.s32 0, %v3199
    %v3201 = vrot.slane %v3186, %v3200
    %v3202 = vlaneseq
    %v3203 = vshrl.u32 %v3202, 7
    %v3204 = vsub.s32 0, %v3203
    %v3205 = vrot.slane %v3188, %v3204
    %v3206 = vlaneseq
    %v3207 = vshrl.u32 %v3206, 7
    %v3208 = vsub.s32 0, %v3207
    %v3209 = vrot.slane %v3171, %v3208
    %v3210 = vlaneseq
    %v3211 = vshrl.u32 %v3210, 7
    %v3212 = vsub.s32 0, %v3211
    %v3213 = vrot.slane %v3185, %v3212
    %v3214 = vlaneseq
    %v3215 = vshrl.u32 %v3214, 7
    %v3216 = vsub.s32 0, %v3215
    %v3217 = vrot.slane %v3187, %v3216
    %v3218 = vlaneseq
    %v3219 = vshrl.u32 %v3218, 7
    %v3220 = vsub.s32 0, %v3219
    %v3221 = vrot.slane %v3189, %v3220
    %v3230 = vadd.f32 %v3132, %v3193
    %v3231 = vadd.f32 %v3133, %v3197
    %v3232 = vadd.f32 %v3134, %v3201
    %v3233 = vadd.f32 %v3135, %v3205
    %v3234 = vadd.f32 %v3136, %v3209
    %v3235 = vadd.f32 %v3137, %v3213
    %v3236 = vadd.f32 %v3138, %v3217
    %v3237 = vadd.f32 %v3139, %v3221
    %v3238 = vtanh.pop %v3230
    %v3239 = vtanh.pop %v3231
    %v3240 = vtanh.pop %v3232
    %v3241 = vtanh.pop %v3233
    %v3242 = vtanh.pop %v3234
    %v3243 = vtanh.pop %v3235
    %v3244 = vtanh.pop %v3236
    %v3245 = vtanh.pop %v3237
    %v3246 = vld [vmem:[#allocation17] sm:$0x1]
    %v3248 = vlaneseq
    %v3249 = vshrl.u32 %v3248, 7
    %v3250 = vsub.s32 0, %v3249
    %v3251 = vrot.slane %v3246, %v3250
    %v3253 = vmul.f32 %v3238, %v3251
    %v3254 = vmul.f32 %v3239, %v3251
    %v3255 = vmul.f32 %v3240, %v3251
    %v3256 = vmul.f32 %v3241, %v3251
    %v3257 = vmul.f32 %v3242, %v3251
    %v3258 = vmul.f32 %v3243, %v3251
    %v3259 = vmul.f32 %v3244, %v3251
    %v3260 = vmul.f32 %v3245, %v3251
    %3261 = vadd.xlane.f32.xlu0 %v3253
    %v3262 = vpop.xlane.xlu0 %3261
    %3263 = vadd.xlane.f32.xlu0 %v3254
    %v3264 = vpop.xlane.xlu0 %3263
    %3265 = vadd.xlane.f32.xlu0 %v3255
    %v3266 = vpop.xlane.xlu0 %3265
    %3267 = vadd.xlane.f32.xlu0 %v3256
    %v3268 = vpop.xlane.xlu0 %3267
    %3269 = vadd.xlane.f32.xlu0 %v3257
    %v3270 = vpop.xlane.xlu0 %3269
    %3271 = vadd.xlane.f32.xlu0 %v3258
    %v3272 = vpop.xlane.xlu0 %3271
    %3273 = vadd.xlane.f32.xlu0 %v3259
    %v3274 = vpop.xlane.xlu0 %3273
    %3275 = vadd.xlane.f32.xlu0 %v3260
    %v3276 = vpop.xlane.xlu0 %3275
    %v3277 = vld [vmem:[#allocation4] sm:$0x1]
    %v3279 = vlaneseq
    %v3280 = vshrl.u32 %v3279, 7
    %v3281 = vsub.s32 0, %v3280
    %v3282 = vrot.slane %v3277, %v3281
    %3283 = vset.pattern.permute.xlu0 0
    %3284 = vperm.xlu0 %3283, %v3282
    %v3285 = vpop.permute.xlu0 %3284
    %v3287 = vadd.f32 %v3262, %v3285
    %v3288 = vadd.f32 %v3264, %v3285
    %v3289 = vadd.f32 %v3266, %v3285
    %v3290 = vadd.f32 %v3268, %v3285
    %v3291 = vadd.f32 %v3270, %v3285
    %v3292 = vadd.f32 %v3272, %v3285
    %v3293 = vadd.f32 %v3274, %v3285
    %v3294 = vadd.f32 %v3276, %v3285
    %v3303 = vlaneseq
    %v3304 = vshrl.u32 %v3303, 7
    %v3305 = vsub.s32 %v721, %v3304
    %v3306 = vrot.slane %v3287, %v3305
    %v3307 = vlaneseq
    %v3308 = vshrl.u32 %v3307, 7
    %v3309 = vsub.s32 %v721, %v3308
    %v3310 = vrot.slane %v3288, %v3309
    %v3311 = vlaneseq
    %v3312 = vshrl.u32 %v3311, 7
    %v3313 = vsub.s32 %v721, %v3312
    %v3314 = vrot.slane %v3289, %v3313
    %v3315 = vlaneseq
    %v3316 = vshrl.u32 %v3315, 7
    %v3317 = vsub.s32 %v721, %v3316
    %v3318 = vrot.slane %v3290, %v3317
    %v3319 = vlaneseq
    %v3320 = vshrl.u32 %v3319, 7
    %v3321 = vsub.s32 %v721, %v3320
    %v3322 = vrot.slane %v3291, %v3321
    %v3323 = vlaneseq
    %v3324 = vshrl.u32 %v3323, 7
    %v3325 = vsub.s32 %v721, %v3324
    %v3326 = vrot.slane %v3292, %v3325
    %v3327 = vlaneseq
    %v3328 = vshrl.u32 %v3327, 7
    %v3329 = vsub.s32 %v721, %v3328
    %v3330 = vrot.slane %v3293, %v3329
    %v3331 = vlaneseq
    %v3332 = vshrl.u32 %v3331, 7
    %v3333 = vsub.s32 %v721, %v3332
    %v3334 = vrot.slane %v3294, %v3333
    %v3335 = vsel %vm754, %v3310, %v3306
    %v3336 = vsel %vm756, %v3314, %v3335
    %v3337 = vsel %vm758, %v3318, %v3336
    %v3338 = vsel %vm760, %v3322, %v3337
    %v3339 = vsel %vm762, %v3326, %v3338
    %v3340 = vsel %vm764, %v3330, %v3339
    %v3341 = vsel %vm766, %v3334, %v3340
    %v3343 = vsel %vm769, %v3341, -inf
    %3344 = vmax.xlane.f32.xlu0 %v3343
    %v3345 = vpop.xlane.xlu0 %3344
    %v3347 = vlaneseq
    %v3348 = vshrl.u32 %v3347, 7
    %v3349 = vsub.s32 0, %v3348
    %v3350 = vrot.slane %v3345, %v3349
    %v3351 = vlaneseq
    %v3352 = vshrl.u32 %v3351, 7
    %v3353 = vsub.s32 1, %v3352
    %v3354 = vrot.slane %v3345, %v3353
    %v3355 = vlaneseq
    %v3356 = vshrl.u32 %v3355, 7
    %v3357 = vsub.s32 2, %v3356
    %v3358 = vrot.slane %v3345, %v3357
    %v3359 = vlaneseq
    %v3360 = vshrl.u32 %v3359, 7
    %v3361 = vsub.s32 3, %v3360
    %v3362 = vrot.slane %v3345, %v3361
    %v3363 = vlaneseq
    %v3364 = vshrl.u32 %v3363, 7
    %v3365 = vsub.s32 4, %v3364
    %v3366 = vrot.slane %v3345, %v3365
    %v3367 = vlaneseq
    %v3368 = vshrl.u32 %v3367, 7
    %v3369 = vsub.s32 5, %v3368
    %v3370 = vrot.slane %v3345, %v3369
    %v3371 = vlaneseq
    %v3372 = vshrl.u32 %v3371, 7
    %v3373 = vsub.s32 6, %v3372
    %v3374 = vrot.slane %v3345, %v3373
    %v3375 = vlaneseq
    %v3376 = vshrl.u32 %v3375, 7
    %v3377 = vsub.s32 7, %v3376
    %v3378 = vrot.slane %v3345, %v3377
    %v3387 = vsub.f32 %v3287, %v3350
    %v3388 = vsub.f32 %v3288, %v3354
    %v3389 = vsub.f32 %v3289, %v3358
    %v3390 = vsub.f32 %v3290, %v3362
    %v3391 = vsub.f32 %v3291, %v3366
    %v3392 = vsub.f32 %v3292, %v3370
    %v3393 = vsub.f32 %v3293, %v3374
    %v3394 = vsub.f32 %v3294, %v3378
    %v3395 = vmul.f32 %v3387, 1.442695
    %v3396 = vpow.pop %v3395
    %v3397 = vmul.f32 %v3388, 1.442695
    %v3398 = vpow.pop %v3397
    %v3399 = vmul.f32 %v3389, 1.442695
    %v3400 = vpow.pop %v3399
    %v3401 = vmul.f32 %v3390, 1.442695
    %v3402 = vpow.pop %v3401
    %v3403 = vmul.f32 %v3391, 1.442695
    %v3404 = vpow.pop %v3403
    %v3405 = vmul.f32 %v3392, 1.442695
    %v3406 = vpow.pop %v3405
    %v3407 = vmul.f32 %v3393, 1.442695
    %v3408 = vpow.pop %v3407
    %v3409 = vmul.f32 %v3394, 1.442695
    %v3410 = vpow.pop %v3409
    %3419 = vset.pattern.permute.xlu0 0
    %3420 = vperm.xlu0 %3419, %v3396
    %v3421 = vpop.permute.xlu0 %3420
    %3422 = vset.pattern.permute.xlu0 0
    %3423 = vperm.xlu0 %3422, %v3398
    %v3424 = vpop.permute.xlu0 %3423
    %3425 = vset.pattern.permute.xlu0 0
    %3426 = vperm.xlu0 %3425, %v3400
    %v3427 = vpop.permute.xlu0 %3426
    %3428 = vset.pattern.permute.xlu0 0
    %3429 = vperm.xlu0 %3428, %v3402
    %v3430 = vpop.permute.xlu0 %3429
    %3431 = vset.pattern.permute.xlu0 0
    %3432 = vperm.xlu0 %3431, %v3404
    %v3433 = vpop.permute.xlu0 %3432
    %3434 = vset.pattern.permute.xlu0 0
    %3435 = vperm.xlu0 %3434, %v3406
    %v3436 = vpop.permute.xlu0 %3435
    %3437 = vset.pattern.permute.xlu0 0
    %3438 = vperm.xlu0 %3437, %v3408
    %v3439 = vpop.permute.xlu0 %3438
    %3440 = vset.pattern.permute.xlu0 0
    %3441 = vperm.xlu0 %3440, %v3410
    %v3442 = vpop.permute.xlu0 %3441
    %v3443 = vlaneseq
    %v3444 = vshrl.u32 %v3443, 7
    %v3445 = vsub.s32 %v721, %v3444
    %v3446 = vrot.slane %v3421, %v3445
    %v3447 = vlaneseq
    %v3448 = vshrl.u32 %v3447, 7
    %v3449 = vsub.s32 %v721, %v3448
    %v3450 = vrot.slane %v3424, %v3449
    %v3451 = vlaneseq
    %v3452 = vshrl.u32 %v3451, 7
    %v3453 = vsub.s32 %v721, %v3452
    %v3454 = vrot.slane %v3427, %v3453
    %v3455 = vlaneseq
    %v3456 = vshrl.u32 %v3455, 7
    %v3457 = vsub.s32 %v721, %v3456
    %v3458 = vrot.slane %v3430, %v3457
    %v3459 = vlaneseq
    %v3460 = vshrl.u32 %v3459, 7
    %v3461 = vsub.s32 %v721, %v3460
    %v3462 = vrot.slane %v3433, %v3461
    %v3463 = vlaneseq
    %v3464 = vshrl.u32 %v3463, 7
    %v3465 = vsub.s32 %v721, %v3464
    %v3466 = vrot.slane %v3436, %v3465
    %v3467 = vlaneseq
    %v3468 = vshrl.u32 %v3467, 7
    %v3469 = vsub.s32 %v721, %v3468
    %v3470 = vrot.slane %v3439, %v3469
    %v3471 = vlaneseq
    %v3472 = vshrl.u32 %v3471, 7
    %v3473 = vsub.s32 %v721, %v3472
    %v3474 = vrot.slane %v3442, %v3473
    %v3475 = vsel %vm754, %v3450, %v3446
    %v3476 = vsel %vm756, %v3454, %v3475
    %v3477 = vsel %vm758, %v3458, %v3476
    %v3478 = vsel %vm760, %v3462, %v3477
    %v3479 = vsel %vm762, %v3466, %v3478
    %v3480 = vsel %vm764, %v3470, %v3479
    %v3481 = vsel %vm766, %v3474, %v3480
    %v3483 = vsel %vm769, %v3481, 0.0
    %3484 = vadd.xlane.f32.xlu0 %v3483
    %v3485 = vpop.xlane.xlu0 %3484
    %v3486 = vrcp.pop %v3485
    %v3488 = vlaneseq
    %v3489 = vshrl.u32 %v3488, 7
    %v3490 = vsub.s32 0, %v3489
    %v3491 = vrot.slane %v3486, %v3490
    %v3492 = vlaneseq
    %v3493 = vshrl.u32 %v3492, 7
    %v3494 = vsub.s32 1, %v3493
    %v3495 = vrot.slane %v3486, %v3494
    %v3496 = vlaneseq
    %v3497 = vshrl.u32 %v3496, 7
    %v3498 = vsub.s32 2, %v3497
    %v3499 = vrot.slane %v3486, %v3498
    %v3500 = vlaneseq
    %v3501 = vshrl.u32 %v3500, 7
    %v3502 = vsub.s32 3, %v3501
    %v3503 = vrot.slane %v3486, %v3502
    %v3504 = vlaneseq
    %v3505 = vshrl.u32 %v3504, 7
    %v3506 = vsub.s32 4, %v3505
    %v3507 = vrot.slane %v3486, %v3506
    %v3508 = vlaneseq
    %v3509 = vshrl.u32 %v3508, 7
    %v3510 = vsub.s32 5, %v3509
    %v3511 = vrot.slane %v3486, %v3510
    %v3512 = vlaneseq
    %v3513 = vshrl.u32 %v3512, 7
    %v3514 = vsub.s32 6, %v3513
    %v3515 = vrot.slane %v3486, %v3514
    %v3516 = vlaneseq
    %v3517 = vshrl.u32 %v3516, 7
    %v3518 = vsub.s32 7, %v3517
    %v3519 = vrot.slane %v3486, %v3518
    %v3528 = vmul.f32 %v3396, %v3491
    %v3529 = vmul.f32 %v3398, %v3495
    %v3530 = vmul.f32 %v3400, %v3499
    %v3531 = vmul.f32 %v3402, %v3503
    %v3532 = vmul.f32 %v3404, %v3507
    %v3533 = vmul.f32 %v3406, %v3511
    %v3534 = vmul.f32 %v3408, %v3515
    %v3535 = vmul.f32 %v3410, %v3519
    %v3536 = vld [vmem:[#allocation8] sm:$0xff]
    %v3537 = vld [vmem:[#allocation8 + $0x8] sm:$0xff]
    %v3538 = vld [vmem:[#allocation8 + $0x10] sm:$0xff]
    %v3539 = vld [vmem:[#allocation8 + $0x18] sm:$0xff]
    %v3540 = vld [vmem:[#allocation8 + $0x20] sm:$0xff]
    %v3541 = vld [vmem:[#allocation8 + $0x28] sm:$0xff]
    %v3542 = vld [vmem:[#allocation8 + $0x30] sm:$0xff]
    %v3543 = vld [vmem:[#allocation8 + $0x38] sm:$0xff]
    %3545 = vset.pattern.permute.xlu0 0
    %3546 = vperm.xlu0 %3545, %v3528
    %v3547 = vpop.permute.xlu0 %3546
    %3550 = vset.pattern.permute.xlu0 0
    %3551 = vperm.xlu0 %3550, %v3529
    %v3552 = vpop.permute.xlu0 %3551
    %3555 = vset.pattern.permute.xlu0 0
    %3556 = vperm.xlu0 %3555, %v3530
    %v3557 = vpop.permute.xlu0 %3556
    %3560 = vset.pattern.permute.xlu0 0
    %3561 = vperm.xlu0 %3560, %v3531
    %v3562 = vpop.permute.xlu0 %3561
    %3565 = vset.pattern.permute.xlu0 0
    %3566 = vperm.xlu0 %3565, %v3532
    %v3567 = vpop.permute.xlu0 %3566
    %3570 = vset.pattern.permute.xlu0 0
    %3571 = vperm.xlu0 %3570, %v3533
    %v3572 = vpop.permute.xlu0 %3571
    %3575 = vset.pattern.permute.xlu0 0
    %3576 = vperm.xlu0 %3575, %v3534
    %v3577 = vpop.permute.xlu0 %3576
    %3580 = vset.pattern.permute.xlu0 0
    %3581 = vperm.xlu0 %3580, %v3535
    %v3582 = vpop.permute.xlu0 %3581
    %v3584 = vmul.f32 %v3536, %v3547
    %v3585 = vmul.f32 %v3537, %v3552
    %v3586 = vmul.f32 %v3538, %v3557
    %v3587 = vmul.f32 %v3539, %v3562
    %v3588 = vmul.f32 %v3540, %v3567
    %v3589 = vmul.f32 %v3541, %v3572
    %v3590 = vmul.f32 %v3542, %v3577
    %v3591 = vmul.f32 %v3543, %v3582
    %v3592 = vrot.slane %v3584, 4
    %v3593 = vadd.f32 %v3584, %v3592
    %v3594 = vrot.slane %v3593, 2
    %v3595 = vadd.f32 %v3593, %v3594
    %v3596 = vrot.slane %v3595, 1
    %v3597 = vadd.f32 %v3595, %v3596
    %v3598 = vrot.slane %v3585, 4
    %v3599 = vadd.f32 %v3585, %v3598
    %v3600 = vrot.slane %v3599, 2
    %v3601 = vadd.f32 %v3599, %v3600
    %v3602 = vrot.slane %v3601, 1
    %v3603 = vadd.f32 %v3601, %v3602
    %v3604 = vrot.slane %v3586, 4
    %v3605 = vadd.f32 %v3586, %v3604
    %v3606 = vrot.slane %v3605, 2
    %v3607 = vadd.f32 %v3605, %v3606
    %v3608 = vrot.slane %v3607, 1
    %v3609 = vadd.f32 %v3607, %v3608
    %v3610 = vrot.slane %v3587, 4
    %v3611 = vadd.f32 %v3587, %v3610
    %v3612 = vrot.slane %v3611, 2
    %v3613 = vadd.f32 %v3611, %v3612
    %v3614 = vrot.slane %v3613, 1
    %v3615 = vadd.f32 %v3613, %v3614
    %v3616 = vrot.slane %v3588, 4
    %v3617 = vadd.f32 %v3588, %v3616
    %v3618 = vrot.slane %v3617, 2
    %v3619 = vadd.f32 %v3617, %v3618
    %v3620 = vrot.slane %v3619, 1
    %v3621 = vadd.f32 %v3619, %v3620
    %v3622 = vrot.slane %v3589, 4
    %v3623 = vadd.f32 %v3589, %v3622
    %v3624 = vrot.slane %v3623, 2
    %v3625 = vadd.f32 %v3623, %v3624
    %v3626 = vrot.slane %v3625, 1
    %v3627 = vadd.f32 %v3625, %v3626
    %v3628 = vrot.slane %v3590, 4
    %v3629 = vadd.f32 %v3590, %v3628
    %v3630 = vrot.slane %v3629, 2
    %v3631 = vadd.f32 %v3629, %v3630
    %v3632 = vrot.slane %v3631, 1
    %v3633 = vadd.f32 %v3631, %v3632
    %v3634 = vrot.slane %v3591, 4
    %v3635 = vadd.f32 %v3591, %v3634
    %v3636 = vrot.slane %v3635, 2
    %v3637 = vadd.f32 %v3635, %v3636
    %v3638 = vrot.slane %v3637, 1
    %v3639 = vadd.f32 %v3637, %v3638
    %s3640 = scalar_lea.vmem [#allocation5], 64
    %v3641 = vld [vmem:[%s3640] sm:$0xff]
    %v3642 = vld [vmem:[%s3640 + $0x8] sm:$0xff]
    %v3643 = vld [vmem:[%s3640 + $0x10] sm:$0xff]
    %v3644 = vld [vmem:[%s3640 + $0x18] sm:$0xff]
    %v3645 = vpack.c.bf16 %v3597, %v3597
    %v3646 = vpack.c.bf16 %v3603, %v3603
    %v3647 = vpack.c.bf16 %v3609, %v3609
    %v3648 = vpack.c.bf16 %v3615, %v3615
    %v3649 = vpack.c.bf16 %v3621, %v3621
    %v3650 = vpack.c.bf16 %v3627, %v3627
    %v3651 = vpack.c.bf16 %v3633, %v3633
    %v3652 = vpack.c.bf16 %v3639, %v3639
    %v3653 = vld [vmem:[#allocation19] sm:$0xff]
    %v3654 = vld [vmem:[#allocation19 + $0x8] sm:$0xff]
    %v3655 = vld [vmem:[#allocation19 + $0x10] sm:$0xff]
    %v3656 = vld [vmem:[#allocation19 + $0x18] sm:$0xff]
    %v3657 = vld [vmem:[#allocation19 + $0x20] sm:$0xff]
    %v3658 = vld [vmem:[#allocation19 + $0x28] sm:$0xff]
    %v3659 = vld [vmem:[#allocation19 + $0x30] sm:$0xff]
    %v3660 = vld [vmem:[#allocation19 + $0x38] sm:$0xff]
    %v3661 = vld [vmem:[#allocation19 + $0x40] sm:$0xff]
    %v3662 = vld [vmem:[#allocation19 + $0x48] sm:$0xff]
    %v3663 = vld [vmem:[#allocation19 + $0x50] sm:$0xff]
    %v3664 = vld [vmem:[#allocation19 + $0x58] sm:$0xff]
    %v3665 = vld [vmem:[#allocation19 + $0x60] sm:$0xff]
    %v3666 = vld [vmem:[#allocation19 + $0x68] sm:$0xff]
    %v3667 = vld [vmem:[#allocation19 + $0x70] sm:$0xff]
    %v3668 = vld [vmem:[#allocation19 + $0x78] sm:$0xff]
    %v3669 = vld [vmem:[#allocation19 + $0x80] sm:$0xff]
    %v3670 = vld [vmem:[#allocation19 + $0x88] sm:$0xff]
    %v3671 = vld [vmem:[#allocation19 + $0x90] sm:$0xff]
    %v3672 = vld [vmem:[#allocation19 + $0x98] sm:$0xff]
    %v3673 = vld [vmem:[#allocation19 + $0xa0] sm:$0xff]
    %v3674 = vld [vmem:[#allocation19 + $0xa8] sm:$0xff]
    %v3675 = vld [vmem:[#allocation19 + $0xb0] sm:$0xff]
    %v3676 = vld [vmem:[#allocation19 + $0xb8] sm:$0xff]
    %v3677 = vld [vmem:[#allocation19 + $0xc0] sm:$0xff]
    %v3678 = vld [vmem:[#allocation19 + $0xc8] sm:$0xff]
    %v3679 = vld [vmem:[#allocation19 + $0xd0] sm:$0xff]
    %v3680 = vld [vmem:[#allocation19 + $0xd8] sm:$0xff]
    %v3681 = vld [vmem:[#allocation19 + $0xe0] sm:$0xff]
    %v3682 = vld [vmem:[#allocation19 + $0xe8] sm:$0xff]
    %v3683 = vld [vmem:[#allocation19 + $0xf0] sm:$0xff]
    %v3684 = vld [vmem:[#allocation19 + $0xf8] sm:$0xff]
    %v3693 = vunpack.c.l.b16 %v3645
    %v3694 = vunpack.c.l.b16 %v3646
    %v3695 = vunpack.c.l.b16 %v3647
    %v3696 = vunpack.c.l.b16 %v3648
    %v3697 = vunpack.c.l.b16 %v3649
    %v3698 = vunpack.c.l.b16 %v3650
    %v3699 = vunpack.c.l.b16 %v3651
    %v3700 = vunpack.c.l.b16 %v3652
    %v3701 = vsel %vm754, %v3694, %v3693
    %v3702 = vsel %vm756, %v3695, %v3701
    %v3703 = vsel %vm758, %v3696, %v3702
    %v3704 = vsel %vm760, %v3697, %v3703
    %v3705 = vsel %vm762, %v3698, %v3704
    %v3706 = vsel %vm764, %v3699, %v3705
    %v3707 = vsel %vm766, %v3700, %v3706
    %v3708 = vpack.c.b16 %v3707, %v3707
    %v3742 = vunpack.c.l.b16 %v3653
    %v3743 = vunpack.c.h.b16 %v3653
    %v3744 = vunpack.c.l.b16 %v3654
    %v3745 = vunpack.c.h.b16 %v3654
    %v3746 = vunpack.c.l.b16 %v3655
    %v3747 = vunpack.c.h.b16 %v3655
    %v3748 = vunpack.c.l.b16 %v3656
    %v3749 = vunpack.c.h.b16 %v3656
    %v3750 = vunpack.c.l.b16 %v3657
    %v3751 = vunpack.c.h.b16 %v3657
    %v3752 = vunpack.c.l.b16 %v3658
    %v3753 = vunpack.c.h.b16 %v3658
    %v3754 = vunpack.c.l.b16 %v3659
    %v3755 = vunpack.c.h.b16 %v3659
    %v3756 = vunpack.c.l.b16 %v3660
    %v3757 = vunpack.c.h.b16 %v3660
    %v3758 = vunpack.c.l.b16 %v3661
    %v3759 = vunpack.c.h.b16 %v3661
    %v3760 = vunpack.c.l.b16 %v3662
    %v3761 = vunpack.c.h.b16 %v3662
    %v3762 = vunpack.c.l.b16 %v3663
    %v3763 = vunpack.c.h.b16 %v3663
    %v3764 = vunpack.c.l.b16 %v3664
    %v3765 = vunpack.c.h.b16 %v3664
    %v3766 = vunpack.c.l.b16 %v3665
    %v3767 = vunpack.c.h.b16 %v3665
    %v3768 = vunpack.c.l.b16 %v3666
    %v3769 = vunpack.c.h.b16 %v3666
    %v3770 = vunpack.c.l.b16 %v3667
    %v3771 = vunpack.c.h.b16 %v3667
    %v3772 = vunpack.c.l.b16 %v3668
    %v3773 = vunpack.c.h.b16 %v3668
    %v3774 = vunpack.c.l.b16 %v3669
    %v3775 = vunpack.c.h.b16 %v3669
    %v3776 = vunpack.c.l.b16 %v3670
    %v3777 = vunpack.c.h.b16 %v3670
    %v3778 = vunpack.c.l.b16 %v3671
    %v3779 = vunpack.c.h.b16 %v3671
    %v3780 = vunpack.c.l.b16 %v3672
    %v3781 = vunpack.c.h.b16 %v3672
    %v3782 = vunpack.c.l.b16 %v3673
    %v3783 = vunpack.c.h.b16 %v3673
    %v3784 = vunpack.c.l.b16 %v3674
    %v3785 = vunpack.c.h.b16 %v3674
    %v3786 = vunpack.c.l.b16 %v3675
    %v3787 = vunpack.c.h.b16 %v3675
    %v3788 = vunpack.c.l.b16 %v3676
    %v3789 = vunpack.c.h.b16 %v3676
    %v3790 = vunpack.c.l.b16 %v3677
    %v3791 = vunpack.c.h.b16 %v3677
    %v3792 = vunpack.c.l.b16 %v3678
    %v3793 = vunpack.c.h.b16 %v3678
    %v3794 = vunpack.c.l.b16 %v3679
    %v3795 = vunpack.c.h.b16 %v3679
    %v3796 = vunpack.c.l.b16 %v3680
    %v3797 = vunpack.c.h.b16 %v3680
    %v3798 = vunpack.c.l.b16 %v3681
    %v3799 = vunpack.c.h.b16 %v3681
    %v3800 = vunpack.c.l.b16 %v3682
    %v3801 = vunpack.c.h.b16 %v3682
    %v3802 = vunpack.c.l.b16 %v3683
    %v3803 = vunpack.c.h.b16 %v3683
    %v3804 = vunpack.c.l.b16 %v3684
    %v3805 = vunpack.c.h.b16 %v3684
    %v3806 = vpack.c.b16 %v3746, %v3742
    %v3807 = vpack.c.b16 %v3747, %v3743
    %v3808 = vpack.c.b16 %v3748, %v3744
    %v3809 = vpack.c.b16 %v3749, %v3745
    %v3810 = vpack.c.b16 %v3754, %v3750
    %v3811 = vpack.c.b16 %v3755, %v3751
    %v3812 = vpack.c.b16 %v3756, %v3752
    %v3813 = vpack.c.b16 %v3757, %v3753
    %v3814 = vpack.c.b16 %v3762, %v3758
    %v3815 = vpack.c.b16 %v3763, %v3759
    %v3816 = vpack.c.b16 %v3764, %v3760
    %v3817 = vpack.c.b16 %v3765, %v3761
    %v3818 = vpack.c.b16 %v3770, %v3766
    %v3819 = vpack.c.b16 %v3771, %v3767
    %v3820 = vpack.c.b16 %v3772, %v3768
    %v3821 = vpack.c.b16 %v3773, %v3769
    %v3822 = vpack.c.b16 %v3778, %v3774
    %v3823 = vpack.c.b16 %v3779, %v3775
    %v3824 = vpack.c.b16 %v3780, %v3776
    %v3825 = vpack.c.b16 %v3781, %v3777
    %v3826 = vpack.c.b16 %v3786, %v3782
    %v3827 = vpack.c.b16 %v3787, %v3783
    %v3828 = vpack.c.b16 %v3788, %v3784
    %v3829 = vpack.c.b16 %v3789, %v3785
    %v3830 = vpack.c.b16 %v3794, %v3790
    %v3831 = vpack.c.b16 %v3795, %v3791
    %v3832 = vpack.c.b16 %v3796, %v3792
    %v3833 = vpack.c.b16 %v3797, %v3793
    %v3834 = vpack.c.b16 %v3802, %v3798
    %v3835 = vpack.c.b16 %v3803, %v3799
    %v3836 = vpack.c.b16 %v3804, %v3800
    %v3837 = vpack.c.b16 %v3805, %v3801
    %3870 = vmatprep.subr.bf16.mxu0 %v3807
    %3871 = vmatpush1.bf16.msra.mxu0 %v3806
    %3872 = vmatprep.subr.bf16.mxu0 %v3811
    %3873 = vmatpush1.bf16.msra.mxu0 %v3810
    %3874 = vmatprep.subr.bf16.mxu0 %v3815
    %3875 = vmatpush1.bf16.msra.mxu0 %v3814
    %3876 = vmatprep.subr.bf16.mxu0 %v3819
    %3877 = vmatpush1.bf16.msra.mxu0 %v3818
    %3878 = vmatprep.subr.bf16.mxu0 %v3823
    %3879 = vmatpush1.bf16.msra.mxu0 %v3822
    %3880 = vmatprep.subr.bf16.mxu0 %v3827
    %3881 = vmatpush1.bf16.msra.mxu0 %v3826
    %3882 = vmatprep.subr.bf16.mxu0 %v3831
    %3883 = vmatpush1.bf16.msra.mxu0 %v3830
    %3884 = vmatprep.subr.bf16.mxu0 %v3835
    %3885 = vmatpush1.bf16.msra.mxu0 %v3834
    %3886 = vmatprep.subr.bf16.mxu0 0
    %3887 = vmatpush1.bf16.msra.mxu0 0
    %3888 = vmatprep.subr.bf16.mxu0 0
    %3889 = vmatpush1.bf16.msra.mxu0 0
    %3890 = vmatprep.subr.bf16.mxu0 0
    %3891 = vmatpush1.bf16.msra.mxu0 0
    %3892 = vmatprep.subr.bf16.mxu0 0
    %3893 = vmatpush1.bf16.msra.mxu0 0
    %3894 = vmatprep.subr.bf16.mxu0 0
    %3895 = vmatpush1.bf16.msra.mxu0 0
    %3896 = vmatprep.subr.bf16.mxu0 0
    %3897 = vmatpush1.bf16.msra.mxu0 0
    %3898 = vmatprep.subr.bf16.mxu0 0
    %3899 = vmatpush1.bf16.msra.mxu0 0
    %3900 = vmatprep.subr.bf16.mxu0 0
    %3901 = vmatpush1.bf16.msra.mxu0 0
    %3902 = vmatprep.mubr.bf16.mxu0 0
    %3903 = vmatmul.mubr.bf16.gmra.mrb[0].mxu0 %v3708
    %v3904 = vpop.f32.mrb[0].mxu0
    %v3905 = vadd.f32 0.0, %v3904
    %v3906 = vpop.f32.mrb[0].mxu0
    %v3907 = vadd.f32 0.0, %v3906
    %v3908 = vpop.f32.mrb[0].mxu0
    %v3909 = vpop.f32.mrb[0].mxu0
    %3910 = vdwg.mxu0
    %3911 = vmatprep.subr.bf16.mxu0 %v3809
    %3912 = vmatpush1.bf16.msra.mxu0 %v3808
    %3913 = vmatprep.subr.bf16.mxu0 %v3813
    %3914 = vmatpush1.bf16.msra.mxu0 %v3812
    %3915 = vmatprep.subr.bf16.mxu0 %v3817
    %3916 = vmatpush1.bf16.msra.mxu0 %v3816
    %3917 = vmatprep.subr.bf16.mxu0 %v3821
    %3918 = vmatpush1.bf16.msra.mxu0 %v3820
    %3919 = vmatprep.subr.bf16.mxu0 %v3825
    %3920 = vmatpush1.bf16.msra.mxu0 %v3824
    %3921 = vmatprep.subr.bf16.mxu0 %v3829
    %3922 = vmatpush1.bf16.msra.mxu0 %v3828
    %3923 = vmatprep.subr.bf16.mxu0 %v3833
    %3924 = vmatpush1.bf16.msra.mxu0 %v3832
    %3925 = vmatprep.subr.bf16.mxu0 %v3837
    %3926 = vmatpush1.bf16.msra.mxu0 %v3836
    %3927 = vmatprep.subr.bf16.mxu0 0
    %3928 = vmatpush1.bf16.msra.mxu0 0
    %3929 = vmatprep.subr.bf16.mxu0 0
    %3930 = vmatpush1.bf16.msra.mxu0 0
    %3931 = vmatprep.subr.bf16.mxu0 0
    %3932 = vmatpush1.bf16.msra.mxu0 0
    %3933 = vmatprep.subr.bf16.mxu0 0
    %3934 = vmatpush1.bf16.msra.mxu0 0
    %3935 = vmatprep.subr.bf16.mxu0 0
    %3936 = vmatpush1.bf16.msra.mxu0 0
    %3937 = vmatprep.subr.bf16.mxu0 0
    %3938 = vmatpush1.bf16.msra.mxu0 0
    %3939 = vmatprep.subr.bf16.mxu0 0
    %3940 = vmatpush1.bf16.msra.mxu0 0
    %3941 = vmatprep.subr.bf16.mxu0 0
    %3942 = vmatpush1.bf16.msra.mxu0 0
    %3943 = vmatprep.mubr.bf16.mxu0 0
    %3944 = vmatmul.mubr.bf16.gmra.mrb[0].mxu0 %v3708
    %v3945 = vpop.f32.mrb[0].mxu0
    %v3946 = vadd.f32 0.0, %v3945
    %v3947 = vpop.f32.mrb[0].mxu0
    %v3948 = vadd.f32 0.0, %v3947
    %v3949 = vpop.f32.mrb[0].mxu0
    %v3950 = vpop.f32.mrb[0].mxu0
    %3951 = vdwg.mxu0
    %v3952 = vadd.f32 %v3641, %v3905
    %v3953 = vadd.f32 %v3642, %v3907
    %v3954 = vadd.f32 %v3643, %v3946
    %v3955 = vadd.f32 %v3644, %v3948
    %v3956 = vadd.f32 %v3952, %v3039
    %v3957 = vadd.f32 %v3953, %v3078
    %v3958 = vadd.f32 %v3954, %v3080
    %v3959 = vadd.f32 %v3955, %v3119
    %v3960 = vxor.u32 %v3956, 2147483648
    %v3961 = vmul.f32 %v3960, 1.442695
    %v3962 = vpow.pop %v3961
    %v3963 = vadd.f32 %v3962, 1.0
    %v3964 = vrcp.pop %v3963
    %v3965 = vmul.f32 1.0, %v3964
    %v3966 = vxor.u32 %v3957, 2147483648
    %v3967 = vmul.f32 %v3966, 1.442695
    %v3968 = vpow.pop %v3967
    %v3969 = vadd.f32 %v3968, 1.0
    %v3970 = vrcp.pop %v3969
    %v3971 = vmul.f32 1.0, %v3970
    %v3972 = vtanh.pop %v3958
    %v3973 = vxor.u32 %v3959, 2147483648
    %v3974 = vmul.f32 %v3973, 1.442695
    %v3975 = vpow.pop %v3974
    %v3976 = vadd.f32 %v3975, 1.0
    %v3977 = vrcp.pop %v3976
    %v3978 = vmul.f32 1.0, %v3977
    %v3979 = vmul.f32 %v3971, %v2744
    %v3980 = vmul.f32 %v3965, %v3972
    %v3981 = vadd.f32 %v3979, %v3980
    %v3982 = vtanh.pop %v3981
    %v3983 = vmul.f32 %v3978, %v3982
    %3984 = vst [vmem:[#allocation2] sm:$0xff] %v3983
    %3985 = vst [vmem:[#allocation3] sm:$0xff] %v3981
    %v3986 = vpack.c.bf16 %v3983, %v3983
    %s3987 = scalar_lea.vmem [#allocation20], 8
    %3988 = vst [vmem:[%s3987] sm:$0xf] %v3986
    %v3989 = vlaneseq
    %v3990 = vshrl.u32 %v3989, 7
    %v3991 = vsub.s32 %v721, %v3990
    %v3992 = vrot.slane %v3547, %v3991
    %v3993 = vlaneseq
    %v3994 = vshrl.u32 %v3993, 7
    %v3995 = vsub.s32 %v721, %v3994
    %v3996 = vrot.slane %v3552, %v3995
    %v3997 = vlaneseq
    %v3998 = vshrl.u32 %v3997, 7
    %v3999 = vsub.s32 %v721, %v3998
    %v4000 = vrot.slane %v3557, %v3999
    %v4001 = vlaneseq
    %v4002 = vshrl.u32 %v4001, 7
    %v4003 = vsub.s32 %v721, %v4002
    %v4004 = vrot.slane %v3562, %v4003
    %v4005 = vlaneseq
    %v4006 = vshrl.u32 %v4005, 7
    %v4007 = vsub.s32 %v721, %v4006
    %v4008 = vrot.slane %v3567, %v4007
    %v4009 = vlaneseq
    %v4010 = vshrl.u32 %v4009, 7
    %v4011 = vsub.s32 %v721, %v4010
    %v4012 = vrot.slane %v3572, %v4011
    %v4013 = vlaneseq
    %v4014 = vshrl.u32 %v4013, 7
    %v4015 = vsub.s32 %v721, %v4014
    %v4016 = vrot.slane %v3577, %v4015
    %v4017 = vlaneseq
    %v4018 = vshrl.u32 %v4017, 7
    %v4019 = vsub.s32 %v721, %v4018
    %v4020 = vrot.slane %v3582, %v4019
    %v4021 = vsel %vm754, %v3996, %v3992
    %v4022 = vsel %vm756, %v4000, %v4021
    %v4023 = vsel %vm758, %v4004, %v4022
    %v4024 = vsel %vm760, %v4008, %v4023
    %v4025 = vsel %vm762, %v4012, %v4024
    %v4026 = vsel %vm764, %v4016, %v4025
    %v4027 = vsel %vm766, %v4020, %v4026
    %s4029 = scalar_lea.vmem [#allocation21], 16
    %4030 = vst.msk [vmem:[%s4029] sm:$0xff] %vm769, %v4027
    %v4031 = vld [vmem:[#allocation2] sm:$0xff]
    %v4032 = vld [vmem:[#allocation3] sm:$0xff]
    %v4033 = vpack.c.bf16 %v4031, %v4031
    %v4034 = vld [vmem:[#allocation14] sm:$0xff]
    %v4035 = vld [vmem:[#allocation14 + $0x8] sm:$0xff]
    %v4036 = vld [vmem:[#allocation14 + $0x10] sm:$0xf]
    %v4037 = vld [vmem:[#allocation14 + $0x14] sm:$0xff]
    %v4038 = vld [vmem:[#allocation14 + $0x1c] sm:$0xff]
    %v4039 = vld [vmem:[#allocation14 + $0x24] sm:$0xf]
    %v4040 = vld [vmem:[#allocation14 + $0x28] sm:$0xff]
    %v4041 = vld [vmem:[#allocation14 + $0x30] sm:$0xff]
    %v4042 = vld [vmem:[#allocation14 + $0x38] sm:$0xf]
    %v4043 = vld [vmem:[#allocation14 + $0x3c] sm:$0xff]
    %v4044 = vld [vmem:[#allocation14 + $0x44] sm:$0xff]
    %v4045 = vld [vmem:[#allocation14 + $0x4c] sm:$0xf]
    %v4046 = vld [vmem:[#allocation14 + $0x50] sm:$0xff]
    %v4047 = vld [vmem:[#allocation14 + $0x58] sm:$0xff]
    %v4048 = vld [vmem:[#allocation14 + $0x60] sm:$0xf]
    %v4049 = vld [vmem:[#allocation14 + $0x64] sm:$0xff]
    %v4050 = vld [vmem:[#allocation14 + $0x6c] sm:$0xff]
    %v4051 = vld [vmem:[#allocation14 + $0x74] sm:$0xf]
    %v4052 = vld [vmem:[#allocation14 + $0x78] sm:$0xff]
    %v4053 = vld [vmem:[#allocation14 + $0x80] sm:$0xff]
    %v4054 = vld [vmem:[#allocation14 + $0x88] sm:$0xf]
    %v4055 = vld [vmem:[#allocation14 + $0x8c] sm:$0xff]
    %v4056 = vld [vmem:[#allocation14 + $0x94] sm:$0xff]
    %v4057 = vld [vmem:[#allocation14 + $0x9c] sm:$0xf]
    %v4058 = vld [vmem:[#allocation14 + $0xa0] sm:$0xff]
    %v4059 = vld [vmem:[#allocation14 + $0xa8] sm:$0xff]
    %v4060 = vld [vmem:[#allocation14 + $0xb0] sm:$0xf]
    %v4061 = vld [vmem:[#allocation14 + $0xb4] sm:$0xff]
    %v4062 = vld [vmem:[#allocation14 + $0xbc] sm:$0xff]
    %v4063 = vld [vmem:[#allocation14 + $0xc4] sm:$0xf]
    %v4064 = vld [vmem:[#allocation14 + $0xc8] sm:$0xff]
    %v4065 = vld [vmem:[#allocation14 + $0xd0] sm:$0xff]
    %v4066 = vld [vmem:[#allocation14 + $0xd8] sm:$0xf]
    %v4067 = vld [vmem:[#allocation14 + $0xdc] sm:$0xff]
    %v4068 = vld [vmem:[#allocation14 + $0xe4] sm:$0xff]
    %v4069 = vld [vmem:[#allocation14 + $0xec] sm:$0xf]
    %v4070 = vld [vmem:[#allocation14 + $0xf0] sm:$0xff]
    %v4071 = vld [vmem:[#allocation14 + $0xf8] sm:$0xff]
    %v4072 = vld [vmem:[#allocation14 + $0x100] sm:$0xf]
    %v4073 = vld [vmem:[#allocation14 + $0x104] sm:$0xff]
    %v4074 = vld [vmem:[#allocation14 + $0x10c] sm:$0xff]
    %v4075 = vld [vmem:[#allocation14 + $0x114] sm:$0xf]
    %v4076 = vld [vmem:[#allocation14 + $0x118] sm:$0xff]
    %v4077 = vld [vmem:[#allocation14 + $0x120] sm:$0xff]
    %v4078 = vld [vmem:[#allocation14 + $0x128] sm:$0xf]
    %v4079 = vld [vmem:[#allocation14 + $0x12c] sm:$0xff]
    %v4080 = vld [vmem:[#allocation14 + $0x134] sm:$0xff]
    %v4081 = vld [vmem:[#allocation14 + $0x13c] sm:$0xf]
    %v4130 = vunpack.c.l.b16 %v4034
    %v4131 = vunpack.c.h.b16 %v4034
    %v4132 = vunpack.c.l.b16 %v4035
    %v4133 = vunpack.c.h.b16 %v4035
    %v4134 = vunpack.c.l.b16 %v4036
    %v4135 = vunpack.c.l.b16 %v4037
    %v4136 = vunpack.c.h.b16 %v4037
    %v4137 = vunpack.c.l.b16 %v4038
    %v4138 = vunpack.c.h.b16 %v4038
    %v4139 = vunpack.c.l.b16 %v4039
    %v4140 = vunpack.c.l.b16 %v4040
    %v4141 = vunpack.c.h.b16 %v4040
    %v4142 = vunpack.c.l.b16 %v4041
    %v4143 = vunpack.c.h.b16 %v4041
    %v4144 = vunpack.c.l.b16 %v4042
    %v4145 = vunpack.c.l.b16 %v4043
    %v4146 = vunpack.c.h.b16 %v4043
    %v4147 = vunpack.c.l.b16 %v4044
    %v4148 = vunpack.c.h.b16 %v4044
    %v4149 = vunpack.c.l.b16 %v4045
    %v4150 = vunpack.c.l.b16 %v4046
    %v4151 = vunpack.c.h.b16 %v4046
    %v4152 = vunpack.c.l.b16 %v4047
    %v4153 = vunpack.c.h.b16 %v4047
    %v4154 = vunpack.c.l.b16 %v4048
    %v4155 = vunpack.c.l.b16 %v4049
    %v4156 = vunpack.c.h.b16 %v4049
    %v4157 = vunpack.c.l.b16 %v4050
    %v4158 = vunpack.c.h.b16 %v4050
    %v4159 = vunpack.c.l.b16 %v4051
    %v4160 = vunpack.c.l.b16 %v4052
    %v4161 = vunpack.c.h.b16 %v4052
    %v4162 = vunpack.c.l.b16 %v4053
    %v4163 = vunpack.c.h.b16 %v4053
    %v4164 = vunpack.c.l.b16 %v4054
    %v4165 = vunpack.c.l.b16 %v4055
    %v4166 = vunpack.c.h.b16 %v4055
    %v4167 = vunpack.c.l.b16 %v4056
    %v4168 = vunpack.c.h.b16 %v4056
    %v4169 = vunpack.c.l.b16 %v4057
    %v4170 = vunpack.c.l.b16 %v4058
    %v4171 = vunpack.c.h.b16 %v4058
    %v4172 = vunpack.c.l.b16 %v4059
    %v4173 = vunpack.c.h.b16 %v4059
    %v4174 = vunpack.c.l.b16 %v4060
    %v4175 = vunpack.c.l.b16 %v4061
    %v4176 = vunpack.c.h.b16 %v4061
    %v4177 = vunpack.c.l.b16 %v4062
    %v4178 = vunpack.c.h.b16 %v4062
    %v4179 = vunpack.c.l.b16 %v4063
    %v4180 = vunpack.c.l.b16 %v4064
    %v4181 = vunpack.c.h.b16 %v4064
    %v4182 = vunpack.c.l.b16 %v4065
    %v4183 = vunpack.c.h.b16 %v4065
    %v4184 = vunpack.c.l.b16 %v4066
    %v4185 = vunpack.c.l.b16 %v4067
    %v4186 = vunpack.c.h.b16 %v4067
    %v4187 = vunpack.c.l.b16 %v4068
    %v4188 = vunpack.c.h.b16 %v4068
    %v4189 = vunpack.c.l.b16 %v4069
    %v4190 = vunpack.c.l.b16 %v4070
    %v4191 = vunpack.c.h.b16 %v4070
    %v4192 = vunpack.c.l.b16 %v4071
    %v4193 = vunpack.c.h.b16 %v4071
    %v4194 = vunpack.c.l.b16 %v4072
    %v4195 = vunpack.c.l.b16 %v4073
    %v4196 = vunpack.c.h.b16 %v4073
    %v4197 = vunpack.c.l.b16 %v4074
    %v4198 = vunpack.c.h.b16 %v4074
    %v4199 = vunpack.c.l.b16 %v4075
    %v4200 = vunpack.c.l.b16 %v4076
    %v4201 = vunpack.c.h.b16 %v4076
    %v4202 = vunpack.c.l.b16 %v4077
    %v4203 = vunpack.c.h.b16 %v4077
    %v4204 = vunpack.c.l.b16 %v4078
    %v4205 = vunpack.c.l.b16 %v4079
    %v4206 = vunpack.c.h.b16 %v4079
    %v4207 = vunpack.c.l.b16 %v4080
    %v4208 = vunpack.c.h.b16 %v4080
    %v4209 = vunpack.c.l.b16 %v4081
    %v4210 = vpack.c.b16 %v4135, %v4130
    %v4211 = vpack.c.b16 %v4136, %v4131
    %v4212 = vpack.c.b16 %v4137, %v4132
    %v4213 = vpack.c.b16 %v4138, %v4133
    %v4214 = vpack.c.b16 %v4139, %v4134
    %v4215 = vpack.c.b16 %v4145, %v4140
    %v4216 = vpack.c.b16 %v4146, %v4141
    %v4217 = vpack.c.b16 %v4147, %v4142
    %v4218 = vpack.c.b16 %v4148, %v4143
    %v4219 = vpack.c.b16 %v4149, %v4144
    %v4220 = vpack.c.b16 %v4155, %v4150
    %v4221 = vpack.c.b16 %v4156, %v4151
    %v4222 = vpack.c.b16 %v4157, %v4152
    %v4223 = vpack.c.b16 %v4158, %v4153
    %v4224 = vpack.c.b16 %v4159, %v4154
    %v4225 = vpack.c.b16 %v4165, %v4160
    %v4226 = vpack.c.b16 %v4166, %v4161
    %v4227 = vpack.c.b16 %v4167, %v4162
    %v4228 = vpack.c.b16 %v4168, %v4163
    %v4229 = vpack.c.b16 %v4169, %v4164
    %v4230 = vpack.c.b16 %v4175, %v4170
    %v4231 = vpack.c.b16 %v4176, %v4171
    %v4232 = vpack.c.b16 %v4177, %v4172
    %v4233 = vpack.c.b16 %v4178, %v4173
    %v4234 = vpack.c.b16 %v4179, %v4174
    %v4235 = vpack.c.b16 %v4185, %v4180
    %v4236 = vpack.c.b16 %v4186, %v4181
    %v4237 = vpack.c.b16 %v4187, %v4182
    %v4238 = vpack.c.b16 %v4188, %v4183
    %v4239 = vpack.c.b16 %v4189, %v4184
    %v4240 = vpack.c.b16 %v4195, %v4190
    %v4241 = vpack.c.b16 %v4196, %v4191
    %v4242 = vpack.c.b16 %v4197, %v4192
    %v4243 = vpack.c.b16 %v4198, %v4193
    %v4244 = vpack.c.b16 %v4199, %v4194
    %v4245 = vpack.c.b16 %v4205, %v4200
    %v4246 = vpack.c.b16 %v4206, %v4201
    %v4247 = vpack.c.b16 %v4207, %v4202
    %v4248 = vpack.c.b16 %v4208, %v4203
    %v4249 = vpack.c.b16 %v4209, %v4204
    %4290 = vmatprep.subr.bf16.mxu0 %v4211
    %4291 = vmatpush1.bf16.msra.mxu0 %v4210
    %4292 = vmatprep.subr.bf16.mxu0 %v4216
    %4293 = vmatpush1.bf16.msra.mxu0 %v4215
    %4294 = vmatprep.subr.bf16.mxu0 %v4221
    %4295 = vmatpush1.bf16.msra.mxu0 %v4220
    %4296 = vmatprep.subr.bf16.mxu0 %v4226
    %4297 = vmatpush1.bf16.msra.mxu0 %v4225
    %4298 = vmatprep.subr.bf16.mxu0 %v4231
    %4299 = vmatpush1.bf16.msra.mxu0 %v4230
    %4300 = vmatprep.subr.bf16.mxu0 %v4236
    %4301 = vmatpush1.bf16.msra.mxu0 %v4235
    %4302 = vmatprep.subr.bf16.mxu0 %v4241
    %4303 = vmatpush1.bf16.msra.mxu0 %v4240
    %4304 = vmatprep.subr.bf16.mxu0 %v4246
    %4305 = vmatpush1.bf16.msra.mxu0 %v4245
    %4306 = vmatprep.subr.bf16.mxu0 0
    %4307 = vmatpush1.bf16.msra.mxu0 0
    %4308 = vmatprep.subr.bf16.mxu0 0
    %4309 = vmatpush1.bf16.msra.mxu0 0
    %4310 = vmatprep.subr.bf16.mxu0 0
    %4311 = vmatpush1.bf16.msra.mxu0 0
    %4312 = vmatprep.subr.bf16.mxu0 0
    %4313 = vmatpush1.bf16.msra.mxu0 0
    %4314 = vmatprep.subr.bf16.mxu0 0
    %4315 = vmatpush1.bf16.msra.mxu0 0
    %4316 = vmatprep.subr.bf16.mxu0 0
    %4317 = vmatpush1.bf16.msra.mxu0 0
    %4318 = vmatprep.subr.bf16.mxu0 0
    %4319 = vmatpush1.bf16.msra.mxu0 0
    %4320 = vmatprep.subr.bf16.mxu0 0
    %4321 = vmatpush1.bf16.msra.mxu0 0
    %4322 = vmatprep.mubr.bf16.mxu0 0
    %4323 = vmatmul.mubr.bf16.gmra.mrb[0].mxu0 %v4033
    %v4324 = vpop.f32.mrb[0].mxu0
    %v4325 = vadd.f32 0.0, %v4324
    %v4326 = vpop.f32.mrb[0].mxu0
    %v4327 = vadd.f32 0.0, %v4326
    %v4328 = vpop.f32.mrb[0].mxu0
    %v4329 = vpop.f32.mrb[0].mxu0
    %4330 = vdwg.mxu0
    %4331 = vmatprep.subr.bf16.mxu0 %v4213
    %4332 = vmatpush1.bf16.msra.mxu0 %v4212
    %4333 = vmatprep.subr.bf16.mxu0 %v4218
    %4334 = vmatpush1.bf16.msra.mxu0 %v4217
    %4335 = vmatprep.subr.bf16.mxu0 %v4223
    %4336 = vmatpush1.bf16.msra.mxu0 %v4222
    %4337 = vmatprep.subr.bf16.mxu0 %v4228
    %4338 = vmatpush1.bf16.msra.mxu0 %v4227
    %4339 = vmatprep.subr.bf16.mxu0 %v4233
    %4340 = vmatpush1.bf16.msra.mxu0 %v4232
    %4341 = vmatprep.subr.bf16.mxu0 %v4238
    %4342 = vmatpush1.bf16.msra.mxu0 %v4237
    %4343 = vmatprep.subr.bf16.mxu0 %v4243
    %4344 = vmatpush1.bf16.msra.mxu0 %v4242
    %4345 = vmatprep.subr.bf16.mxu0 %v4248
    %4346 = vmatpush1.bf16.msra.mxu0 %v4247
    %4347 = vmatprep.subr.bf16.mxu0 0
    %4348 = vmatpush1.bf16.msra.mxu0 0
    %4349 = vmatprep.subr.bf16.mxu0 0
    %4350 = vmatpush1.bf16.msra.mxu0 0
    %4351 = vmatprep.subr.bf16.mxu0 0
    %4352 = vmatpush1.bf16.msra.mxu0 0
    %4353 = vmatprep.subr.bf16.mxu0 0
    %4354 = vmatpush1.bf16.msra.mxu0 0
    %4355 = vmatprep.subr.bf16.mxu0 0
    %4356 = vmatpush1.bf16.msra.mxu0 0
    %4357 = vmatprep.subr.bf16.mxu0 0
    %4358 = vmatpush1.bf16.msra.mxu0 0
    %4359 = vmatprep.subr.bf16.mxu0 0
    %4360 = vmatpush1.bf16.msra.mxu0 0
    %4361 = vmatprep.subr.bf16.mxu0 0
    %4362 = vmatpush1.bf16.msra.mxu0 0
    %4363 = vmatprep.mubr.bf16.mxu0 0
    %4364 = vmatmul.mubr.bf16.gmra.mrb[0].mxu0 %v4033
    %v4365 = vpop.f32.mrb[0].mxu0
    %v4366 = vadd.f32 0.0, %v4365
    %v4367 = vpop.f32.mrb[0].mxu0
    %v4368 = vadd.f32 0.0, %v4367
    %v4369 = vpop.f32.mrb[0].mxu0
    %v4370 = vpop.f32.mrb[0].mxu0
    %4371 = vdwg.mxu0
    %4372 = vmatprep.subr.bf16.mxu0 0
    %4373 = vmatpush1.bf16.msra.mxu0 %v4214
    %4374 = vmatprep.subr.bf16.mxu0 0
    %4375 = vmatpush1.bf16.msra.mxu0 %v4219
    %4376 = vmatprep.subr.bf16.mxu0 0
    %4377 = vmatpush1.bf16.msra.mxu0 %v4224
    %4378 = vmatprep.subr.bf16.mxu0 0
    %4379 = vmatpush1.bf16.msra.mxu0 %v4229
    %4380 = vmatprep.subr.bf16.mxu0 0
    %4381 = vmatpush1.bf16.msra.mxu0 %v4234
    %4382 = vmatprep.subr.bf16.mxu0 0
    %4383 = vmatpush1.bf16.msra.mxu0 %v4239
    %4384 = vmatprep.subr.bf16.mxu0 0
    %4385 = vmatpush1.bf16.msra.mxu0 %v4244
    %4386 = vmatprep.subr.bf16.mxu0 0
    %4387 = vmatpush1.bf16.msra.mxu0 %v4249
    %4388 = vmatprep.subr.bf16.mxu0 0
    %4389 = vmatpush1.bf16.msra.mxu0 0
    %4390 = vmatprep.subr.bf16.mxu0 0
    %4391 = vmatpush1.bf16.msra.mxu0 0
    %4392 = vmatprep.subr.bf16.mxu0 0
    %4393 = vmatpush1.bf16.msra.mxu0 0
    %4394 = vmatprep.subr.bf16.mxu0 0
    %4395 = vmatpush1.bf16.msra.mxu0 0
    %4396 = vmatprep.subr.bf16.mxu0 0
    %4397 = vmatpush1.bf16.msra.mxu0 0
    %4398 = vmatprep.subr.bf16.mxu0 0
    %4399 = vmatpush1.bf16.msra.mxu0 0
    %4400 = vmatprep.subr.bf16.mxu0 0
    %4401 = vmatpush1.bf16.msra.mxu0 0
    %4402 = vmatprep.subr.bf16.mxu0 0
    %4403 = vmatpush1.bf16.msra.mxu0 0
    %4404 = vmatprep.mubr.bf16.mxu0 0
    %4405 = vmatmul.mubr.bf16.gmra.mrb[0].mxu0 %v4033
    %v4406 = vpop.f32.mrb[0].mxu0
    %v4407 = vadd.f32 0.0, %v4406
    %v4408 = vpop.f32.mrb[0].mxu0
    %v4409 = vpop.f32.mrb[0].mxu0
    %v4410 = vpop.f32.mrb[0].mxu0
    %4411 = vdwg.mxu0
    %v4412 = vld [vmem:[#allocation16] sm:$0x1]
    %v4414 = vlaneseq
    %v4415 = vshrl.u32 %v4414, 7
    %v4416 = vsub.s32 0, %v4415
    %v4417 = vrot.slane %v4412, %v4416
    %v4419 = vadd.f32 %v4325, %v4417
    %v4420 = vld [vmem:[#allocation10] sm:$0xff]
    %v4421 = vld [vmem:[#allocation10 + $0x8] sm:$0xff]
    %v4422 = vld [vmem:[#allocation10 + $0x10] sm:$0xff]
    %v4423 = vld [vmem:[#allocation10 + $0x18] sm:$0xff]
    %v4424 = vld [vmem:[#allocation10 + $0x20] sm:$0xff]
    %v4425 = vld [vmem:[#allocation10 + $0x28] sm:$0xff]
    %v4426 = vld [vmem:[#allocation10 + $0x30] sm:$0xff]
    %v4427 = vld [vmem:[#allocation10 + $0x38] sm:$0xff]
    %v4429 = vcombine.high %v4419, %v4419
    %v4431 = vunpack.c.l.s4 1966171168
    %v4432 = vunpack.c.0.s8 %v4431
    %v4433 = vlaneseq
    %v4434 = vshrl.u32 %v4433, 7
    %v4435 = vsub.s32 %v4432, %v4434
    %v4436 = vrot.slane %v4419, %v4435
    %v4438 = vunpack.c.l.s4 1966171168
    %v4439 = vunpack.c.0.s8 %v4438
    %v4440 = vlaneseq
    %v4441 = vshrl.u32 %v4440, 7
    %v4442 = vsub.s32 %v4439, %v4441
    %v4443 = vrot.slane %v4429, %v4442
    %v4444 = vcombine.high %v4436, %v4436
    %v4445 = vcombine.high %v4443, %v4443
    %v4447 = vunpack.c.l.s4 1966171168
    %v4448 = vunpack.c.0.s8 %v4447
    %v4449 = vlaneseq
    %v4450 = vshrl.u32 %v4449, 7
    %v4451 = vsub.s32 %v4448, %v4450
    %v4452 = vrot.slane %v4436, %v4451
    %v4454 = vunpack.c.l.s4 1966171168
    %v4455 = vunpack.c.0.s8 %v4454
    %v4456 = vlaneseq
    %v4457 = vshrl.u32 %v4456, 7
    %v4458 = vsub.s32 %v4455, %v4457
    %v4459 = vrot.slane %v4443, %v4458
    %v4461 = vunpack.c.l.s4 1966171168
    %v4462 = vunpack.c.0.s8 %v4461
    %v4463 = vlaneseq
    %v4464 = vshrl.u32 %v4463, 7
    %v4465 = vsub.s32 %v4462, %v4464
    %v4466 = vrot.slane %v4444, %v4465
    %v4468 = vunpack.c.l.s4 1966171168
    %v4469 = vunpack.c.0.s8 %v4468
    %v4470 = vlaneseq
    %v4471 = vshrl.u32 %v4470, 7
    %v4472 = vsub.s32 %v4469, %v4471
    %v4473 = vrot.slane %v4445, %v4472
    %v4474 = vcombine.high %v4452, %v4452
    %v4475 = vcombine.high %v4459, %v4459
    %v4476 = vcombine.high %v4466, %v4466
    %v4477 = vcombine.high %v4473, %v4473
    %v4478 = vlaneseq
    %v4479 = vshrl.u32 %v4478, 7
    %v4480 = vsub.s32 0, %v4479
    %v4481 = vrot.slane %v4452, %v4480
    %v4482 = vlaneseq
    %v4483 = vshrl.u32 %v4482, 7
    %v4484 = vsub.s32 0, %v4483
    %v4485 = vrot.slane %v4466, %v4484
    %v4486 = vlaneseq
    %v4487 = vshrl.u32 %v4486, 7
    %v4488 = vsub.s32 0, %v4487
    %v4489 = vrot.slane %v4474, %v4488
    %v4490 = vlaneseq
    %v4491 = vshrl.u32 %v4490, 7
    %v4492 = vsub.s32 0, %v4491
    %v4493 = vrot.slane %v4476, %v4492
    %v4494 = vlaneseq
    %v4495 = vshrl.u32 %v4494, 7
    %v4496 = vsub.s32 0, %v4495
    %v4497 = vrot.slane %v4459, %v4496
    %v4498 = vlaneseq
    %v4499 = vshrl.u32 %v4498, 7
    %v4500 = vsub.s32 0, %v4499
    %v4501 = vrot.slane %v4473, %v4500
    %v4502 = vlaneseq
    %v4503 = vshrl.u32 %v4502, 7
    %v4504 = vsub.s32 0, %v4503
    %v4505 = vrot.slane %v4475, %v4504
    %v4506 = vlaneseq
    %v4507 = vshrl.u32 %v4506, 7
    %v4508 = vsub.s32 0, %v4507
    %v4509 = vrot.slane %v4477, %v4508
    %v4518 = vadd.f32 %v4420, %v4481
    %v4519 = vadd.f32 %v4421, %v4485
    %v4520 = vadd.f32 %v4422, %v4489
    %v4521 = vadd.f32 %v4423, %v4493
    %v4522 = vadd.f32 %v4424, %v4497
    %v4523 = vadd.f32 %v4425, %v4501
    %v4524 = vadd.f32 %v4426, %v4505
    %v4525 = vadd.f32 %v4427, %v4509
    %v4526 = vtanh.pop %v4518
    %v4527 = vtanh.pop %v4519
    %v4528 = vtanh.pop %v4520
    %v4529 = vtanh.pop %v4521
    %v4530 = vtanh.pop %v4522
    %v4531 = vtanh.pop %v4523
    %v4532 = vtanh.pop %v4524
    %v4533 = vtanh.pop %v4525
    %v4534 = vld [vmem:[#allocation17] sm:$0x1]
    %v4536 = vlaneseq
    %v4537 = vshrl.u32 %v4536, 7
    %v4538 = vsub.s32 0, %v4537
    %v4539 = vrot.slane %v4534, %v4538
    %v4541 = vmul.f32 %v4526, %v4539
    %v4542 = vmul.f32 %v4527, %v4539
    %v4543 = vmul.f32 %v4528, %v4539
    %v4544 = vmul.f32 %v4529, %v4539
    %v4545 = vmul.f32 %v4530, %v4539
    %v4546 = vmul.f32 %v4531, %v4539
    %v4547 = vmul.f32 %v4532, %v4539
    %v4548 = vmul.f32 %v4533, %v4539
    %4549 = vadd.xlane.f32.xlu0 %v4541
    %v4550 = vpop.xlane.xlu0 %4549
    %4551 = vadd.xlane.f32.xlu0 %v4542
    %v4552 = vpop.xlane.xlu0 %4551
    %4553 = vadd.xlane.f32.xlu0 %v4543
    %v4554 = vpop.xlane.xlu0 %4553
    %4555 = vadd.xlane.f32.xlu0 %v4544
    %v4556 = vpop.xlane.xlu0 %4555
    %4557 = vadd.xlane.f32.xlu0 %v4545
    %v4558 = vpop.xlane.xlu0 %4557
    %4559 = vadd.xlane.f32.xlu0 %v4546
    %v4560 = vpop.xlane.xlu0 %4559
    %4561 = vadd.xlane.f32.xlu0 %v4547
    %v4562 = vpop.xlane.xlu0 %4561
    %4563 = vadd.xlane.f32.xlu0 %v4548
    %v4564 = vpop.xlane.xlu0 %4563
    %v4565 = vld [vmem:[#allocation4] sm:$0x1]
    %v4567 = vlaneseq
    %v4568 = vshrl.u32 %v4567, 7
    %v4569 = vsub.s32 0, %v4568
    %v4570 = vrot.slane %v4565, %v4569
    %4571 = vset.pattern.permute.xlu0 0
    %4572 = vperm.xlu0 %4571, %v4570
    %v4573 = vpop.permute.xlu0 %4572
    %v4575 = vadd.f32 %v4550, %v4573
    %v4576 = vadd.f32 %v4552, %v4573
    %v4577 = vadd.f32 %v4554, %v4573
    %v4578 = vadd.f32 %v4556, %v4573
    %v4579 = vadd.f32 %v4558, %v4573
    %v4580 = vadd.f32 %v4560, %v4573
    %v4581 = vadd.f32 %v4562, %v4573
    %v4582 = vadd.f32 %v4564, %v4573
    %v4591 = vlaneseq
    %v4592 = vshrl.u32 %v4591, 7
    %v4593 = vsub.s32 %v721, %v4592
    %v4594 = vrot.slane %v4575, %v4593
    %v4595 = vlaneseq
    %v4596 = vshrl.u32 %v4595, 7
    %v4597 = vsub.s32 %v721, %v4596
    %v4598 = vrot.slane %v4576, %v4597
    %v4599 = vlaneseq
    %v4600 = vshrl.u32 %v4599, 7
    %v4601 = vsub.s32 %v721, %v4600
    %v4602 = vrot.slane %v4577, %v4601
    %v4603 = vlaneseq
    %v4604 = vshrl.u32 %v4603, 7
    %v4605 = vsub.s32 %v721, %v4604
    %v4606 = vrot.slane %v4578, %v4605
    %v4607 = vlaneseq
    %v4608 = vshrl.u32 %v4607, 7
    %v4609 = vsub.s32 %v721, %v4608
    %v4610 = vrot.slane %v4579, %v4609
    %v4611 = vlaneseq
    %v4612 = vshrl.u32 %v4611, 7
    %v4613 = vsub.s32 %v721, %v4612
    %v4614 = vrot.slane %v4580, %v4613
    %v4615 = vlaneseq
    %v4616 = vshrl.u32 %v4615, 7
    %v4617 = vsub.s32 %v721, %v4616
    %v4618 = vrot.slane %v4581, %v4617
    %v4619 = vlaneseq
    %v4620 = vshrl.u32 %v4619, 7
    %v4621 = vsub.s32 %v721, %v4620
    %v4622 = vrot.slane %v4582, %v4621
    %v4623 = vsel %vm754, %v4598, %v4594
    %v4624 = vsel %vm756, %v4602, %v4623
    %v4625 = vsel %vm758, %v4606, %v4624
    %v4626 = vsel %vm760, %v4610, %v4625
    %v4627 = vsel %vm762, %v4614, %v4626
    %v4628 = vsel %vm764, %v4618, %v4627
    %v4629 = vsel %vm766, %v4622, %v4628
    %v4631 = vsel %vm769, %v4629, -inf
    %4632 = vmax.xlane.f32.xlu0 %v4631
    %v4633 = vpop.xlane.xlu0 %4632
    %v4635 = vlaneseq
    %v4636 = vshrl.u32 %v4635, 7
    %v4637 = vsub.s32 0, %v4636
    %v4638 = vrot.slane %v4633, %v4637
    %v4639 = vlaneseq
    %v4640 = vshrl.u32 %v4639, 7
    %v4641 = vsub.s32 1, %v4640
    %v4642 = vrot.slane %v4633, %v4641
    %v4643 = vlaneseq
    %v4644 = vshrl.u32 %v4643, 7
    %v4645 = vsub.s32 2, %v4644
    %v4646 = vrot.slane %v4633, %v4645
    %v4647 = vlaneseq
    %v4648 = vshrl.u32 %v4647, 7
    %v4649 = vsub.s32 3, %v4648
    %v4650 = vrot.slane %v4633, %v4649
    %v4651 = vlaneseq
    %v4652 = vshrl.u32 %v4651, 7
    %v4653 = vsub.s32 4, %v4652
    %v4654 = vrot.slane %v4633, %v4653
    %v4655 = vlaneseq
    %v4656 = vshrl.u32 %v4655, 7
    %v4657 = vsub.s32 5, %v4656
    %v4658 = vrot.slane %v4633, %v4657
    %v4659 = vlaneseq
    %v4660 = vshrl.u32 %v4659, 7
    %v4661 = vsub.s32 6, %v4660
    %v4662 = vrot.slane %v4633, %v4661
    %v4663 = vlaneseq
    %v4664 = vshrl.u32 %v4663, 7
    %v4665 = vsub.s32 7, %v4664
    %v4666 = vrot.slane %v4633, %v4665
    %v4675 = vsub.f32 %v4575, %v4638
    %v4676 = vsub.f32 %v4576, %v4642
    %v4677 = vsub.f32 %v4577, %v4646
    %v4678 = vsub.f32 %v4578, %v4650
    %v4679 = vsub.f32 %v4579, %v4654
    %v4680 = vsub.f32 %v4580, %v4658
    %v4681 = vsub.f32 %v4581, %v4662
    %v4682 = vsub.f32 %v4582, %v4666
    %v4683 = vmul.f32 %v4675, 1.442695
    %v4684 = vpow.pop %v4683
    %v4685 = vmul.f32 %v4676, 1.442695
    %v4686 = vpow.pop %v4685
    %v4687 = vmul.f32 %v4677, 1.442695
    %v4688 = vpow.pop %v4687
    %v4689 = vmul.f32 %v4678, 1.442695
    %v4690 = vpow.pop %v4689
    %v4691 = vmul.f32 %v4679, 1.442695
    %v4692 = vpow.pop %v4691
    %v4693 = vmul.f32 %v4680, 1.442695
    %v4694 = vpow.pop %v4693
    %v4695 = vmul.f32 %v4681, 1.442695
    %v4696 = vpow.pop %v4695
    %v4697 = vmul.f32 %v4682, 1.442695
    %v4698 = vpow.pop %v4697
    %4707 = vset.pattern.permute.xlu0 0
    %4708 = vperm.xlu0 %4707, %v4684
    %v4709 = vpop.permute.xlu0 %4708
    %4710 = vset.pattern.permute.xlu0 0
    %4711 = vperm.xlu0 %4710, %v4686
    %v4712 = vpop.permute.xlu0 %4711
    %4713 = vset.pattern.permute.xlu0 0
    %4714 = vperm.xlu0 %4713, %v4688
    %v4715 = vpop.permute.xlu0 %4714
    %4716 = vset.pattern.permute.xlu0 0
    %4717 = vperm.xlu0 %4716, %v4690
    %v4718 = vpop.permute.xlu0 %4717
    %4719 = vset.pattern.permute.xlu0 0
    %4720 = vperm.xlu0 %4719, %v4692
    %v4721 = vpop.permute.xlu0 %4720
    %4722 = vset.pattern.permute.xlu0 0
    %4723 = vperm.xlu0 %4722, %v4694
    %v4724 = vpop.permute.xlu0 %4723
    %4725 = vset.pattern.permute.xlu0 0
    %4726 = vperm.xlu0 %4725, %v4696
    %v4727 = vpop.permute.xlu0 %4726
    %4728 = vset.pattern.permute.xlu0 0
    %4729 = vperm.xlu0 %4728, %v4698
    %v4730 = vpop.permute.xlu0 %4729
    %v4731 = vlaneseq
    %v4732 = vshrl.u32 %v4731, 7
    %v4733 = vsub.s32 %v721, %v4732
    %v4734 = vrot.slane %v4709, %v4733
    %v4735 = vlaneseq
    %v4736 = vshrl.u32 %v4735, 7
    %v4737 = vsub.s32 %v721, %v4736
    %v4738 = vrot.slane %v4712, %v4737
    %v4739 = vlaneseq
    %v4740 = vshrl.u32 %v4739, 7
    %v4741 = vsub.s32 %v721, %v4740
    %v4742 = vrot.slane %v4715, %v4741
    %v4743 = vlaneseq
    %v4744 = vshrl.u32 %v4743, 7
    %v4745 = vsub.s32 %v721, %v4744
    %v4746 = vrot.slane %v4718, %v4745
    %v4747 = vlaneseq
    %v4748 = vshrl.u32 %v4747, 7
    %v4749 = vsub.s32 %v721, %v4748
    %v4750 = vrot.slane %v4721, %v4749
    %v4751 = vlaneseq
    %v4752 = vshrl.u32 %v4751, 7
    %v4753 = vsub.s32 %v721, %v4752
    %v4754 = vrot.slane %v4724, %v4753
    %v4755 = vlaneseq
    %v4756 = vshrl.u32 %v4755, 7
    %v4757 = vsub.s32 %v721, %v4756
    %v4758 = vrot.slane %v4727, %v4757
    %v4759 = vlaneseq
    %v4760 = vshrl.u32 %v4759, 7
    %v4761 = vsub.s32 %v721, %v4760
    %v4762 = vrot.slane %v4730, %v4761
    %v4763 = vsel %vm754, %v4738, %v4734
    %v4764 = vsel %vm756, %v4742, %v4763
    %v4765 = vsel %vm758, %v4746, %v4764
    %v4766 = vsel %vm760, %v4750, %v4765
    %v4767 = vsel %vm762, %v4754, %v4766
    %v4768 = vsel %vm764, %v4758, %v4767
    %v4769 = vsel %vm766, %v4762, %v4768
    %v4771 = vsel %vm769, %v4769, 0.0
    %4772 = vadd.xlane.f32.xlu0 %v4771
    %v4773 = vpop.xlane.xlu0 %4772
    %v4774 = vrcp.pop %v4773
    %v4776 = vlaneseq
    %v4777 = vshrl.u32 %v4776, 7
    %v4778 = vsub.s32 0, %v4777
    %v4779 = vrot.slane %v4774, %v4778
    %v4780 = vlaneseq
    %v4781 = vshrl.u32 %v4780, 7
    %v4782 = vsub.s32 1, %v4781
    %v4783 = vrot.slane %v4774, %v4782
    %v4784 = vlaneseq
    %v4785 = vshrl.u32 %v4784, 7
    %v4786 = vsub.s32 2, %v4785
    %v4787 = vrot.slane %v4774, %v4786
    %v4788 = vlaneseq
    %v4789 = vshrl.u32 %v4788, 7
    %v4790 = vsub.s32 3, %v4789
    %v4791 = vrot.slane %v4774, %v4790
    %v4792 = vlaneseq
    %v4793 = vshrl.u32 %v4792, 7
    %v4794 = vsub.s32 4, %v4793
    %v4795 = vrot.slane %v4774, %v4794
    %v4796 = vlaneseq
    %v4797 = vshrl.u32 %v4796, 7
    %v4798 = vsub.s32 5, %v4797
    %v4799 = vrot.slane %v4774, %v4798
    %v4800 = vlaneseq
    %v4801 = vshrl.u32 %v4800, 7
    %v4802 = vsub.s32 6, %v4801
    %v4803 = vrot.slane %v4774, %v4802
    %v4804 = vlaneseq
    %v4805 = vshrl.u32 %v4804, 7
    %v4806 = vsub.s32 7, %v4805
    %v4807 = vrot.slane %v4774, %v4806
    %v4816 = vmul.f32 %v4684, %v4779
    %v4817 = vmul.f32 %v4686, %v4783
    %v4818 = vmul.f32 %v4688, %v4787
    %v4819 = vmul.f32 %v4690, %v4791
    %v4820 = vmul.f32 %v4692, %v4795
    %v4821 = vmul.f32 %v4694, %v4799
    %v4822 = vmul.f32 %v4696, %v4803
    %v4823 = vmul.f32 %v4698, %v4807
    %v4824 = vld [vmem:[#allocation8] sm:$0xff]
    %v4825 = vld [vmem:[#allocation8 + $0x8] sm:$0xff]
    %v4826 = vld [vmem:[#allocation8 + $0x10] sm:$0xff]
    %v4827 = vld [vmem:[#allocation8 + $0x18] sm:$0xff]
    %v4828 = vld [vmem:[#allocation8 + $0x20] sm:$0xff]
    %v4829 = vld [vmem:[#allocation8 + $0x28] sm:$0xff]
    %v4830 = vld [vmem:[#allocation8 + $0x30] sm:$0xff]
    %v4831 = vld [vmem:[#allocation8 + $0x38] sm:$0xff]
    %4833 = vset.pattern.permute.xlu0 0
    %4834 = vperm.xlu0 %4833, %v4816
    %v4835 = vpop.permute.xlu0 %4834
    %4838 = vset.pattern.permute.xlu0 0
    %4839 = vperm.xlu0 %4838, %v4817
    %v4840 = vpop.permute.xlu0 %4839
    %4843 = vset.pattern.permute.xlu0 0
    %4844 = vperm.xlu0 %4843, %v4818
    %v4845 = vpop.permute.xlu0 %4844
    %4848 = vset.pattern.permute.xlu0 0
    %4849 = vperm.xlu0 %4848, %v4819
    %v4850 = vpop.permute.xlu0 %4849
    %4853 = vset.pattern.permute.xlu0 0
    %4854 = vperm.xlu0 %4853, %v4820
    %v4855 = vpop.permute.xlu0 %4854
    %4858 = vset.pattern.permute.xlu0 0
    %4859 = vperm.xlu0 %4858, %v4821
    %v4860 = vpop.permute.xlu0 %4859
    %4863 = vset.pattern.permute.xlu0 0
    %4864 = vperm.xlu0 %4863, %v4822
    %v4865 = vpop.permute.xlu0 %4864
    %4868 = vset.pattern.permute.xlu0 0
    %4869 = vperm.xlu0 %4868, %v4823
    %v4870 = vpop.permute.xlu0 %4869
    %v4872 = vmul.f32 %v4824, %v4835
    %v4873 = vmul.f32 %v4825, %v4840
    %v4874 = vmul.f32 %v4826, %v4845
    %v4875 = vmul.f32 %v4827, %v4850
    %v4876 = vmul.f32 %v4828, %v4855
    %v4877 = vmul.f32 %v4829, %v4860
    %v4878 = vmul.f32 %v4830, %v4865
    %v4879 = vmul.f32 %v4831, %v4870
    %v4880 = vrot.slane %v4872, 4
    %v4881 = vadd.f32 %v4872, %v4880
    %v4882 = vrot.slane %v4881, 2
    %v4883 = vadd.f32 %v4881, %v4882
    %v4884 = vrot.slane %v4883, 1
    %v4885 = vadd.f32 %v4883, %v4884
    %v4886 = vrot.slane %v4873, 4
    %v4887 = vadd.f32 %v4873, %v4886
    %v4888 = vrot.slane %v4887, 2
    %v4889 = vadd.f32 %v4887, %v4888
    %v4890 = vrot.slane %v4889, 1
    %v4891 = vadd.f32 %v4889, %v4890
    %v4892 = vrot.slane %v4874, 4
    %v4893 = vadd.f32 %v4874, %v4892
    %v4894 = vrot.slane %v4893, 2
    %v4895 = vadd.f32 %v4893, %v4894
    %v4896 = vrot.slane %v4895, 1
    %v4897 = vadd.f32 %v4895, %v4896
    %v4898 = vrot.slane %v4875, 4
    %v4899 = vadd.f32 %v4875, %v4898
    %v4900 = vrot.slane %v4899, 2
    %v4901 = vadd.f32 %v4899, %v4900
    %v4902 = vrot.slane %v4901, 1
    %v4903 = vadd.f32 %v4901, %v4902
    %v4904 = vrot.slane %v4876, 4
    %v4905 = vadd.f32 %v4876, %v4904
    %v4906 = vrot.slane %v4905, 2
    %v4907 = vadd.f32 %v4905, %v4906
    %v4908 = vrot.slane %v4907, 1
    %v4909 = vadd.f32 %v4907, %v4908
    %v4910 = vrot.slane %v4877, 4
    %v4911 = vadd.f32 %v4877, %v4910
    %v4912 = vrot.slane %v4911, 2
    %v4913 = vadd.f32 %v4911, %v4912
    %v4914 = vrot.slane %v4913, 1
    %v4915 = vadd.f32 %v4913, %v4914
    %v4916 = vrot.slane %v4878, 4
    %v4917 = vadd.f32 %v4878, %v4916
    %v4918 = vrot.slane %v4917, 2
    %v4919 = vadd.f32 %v4917, %v4918
    %v4920 = vrot.slane %v4919, 1
    %v4921 = vadd.f32 %v4919, %v4920
    %v4922 = vrot.slane %v4879, 4
    %v4923 = vadd.f32 %v4879, %v4922
    %v4924 = vrot.slane %v4923, 2
    %v4925 = vadd.f32 %v4923, %v4924
    %v4926 = vrot.slane %v4925, 1
    %v4927 = vadd.f32 %v4925, %v4926
    %s4928 = scalar_lea.vmem [#allocation5], 96
    %v4929 = vld [vmem:[%s4928] sm:$0xff]
    %v4930 = vld [vmem:[%s4928 + $0x8] sm:$0xff]
    %v4931 = vld [vmem:[%s4928 + $0x10] sm:$0xff]
    %v4932 = vld [vmem:[%s4928 + $0x18] sm:$0xff]
    %v4933 = vpack.c.bf16 %v4885, %v4885
    %v4934 = vpack.c.bf16 %v4891, %v4891
    %v4935 = vpack.c.bf16 %v4897, %v4897
    %v4936 = vpack.c.bf16 %v4903, %v4903
    %v4937 = vpack.c.bf16 %v4909, %v4909
    %v4938 = vpack.c.bf16 %v4915, %v4915
    %v4939 = vpack.c.bf16 %v4921, %v4921
    %v4940 = vpack.c.bf16 %v4927, %v4927
    %v4941 = vld [vmem:[#allocation19] sm:$0xff]
    %v4942 = vld [vmem:[#allocation19 + $0x8] sm:$0xff]
    %v4943 = vld [vmem:[#allocation19 + $0x10] sm:$0xff]
    %v4944 = vld [vmem:[#allocation19 + $0x18] sm:$0xff]
    %v4945 = vld [vmem:[#allocation19 + $0x20] sm:$0xff]
    %v4946 = vld [vmem:[#allocation19 + $0x28] sm:$0xff]
    %v4947 = vld [vmem:[#allocation19 + $0x30] sm:$0xff]
    %v4948 = vld [vmem:[#allocation19 + $0x38] sm:$0xff]
    %v4949 = vld [vmem:[#allocation19 + $0x40] sm:$0xff]
    %v4950 = vld [vmem:[#allocation19 + $0x48] sm:$0xff]
    %v4951 = vld [vmem:[#allocation19 + $0x50] sm:$0xff]
    %v4952 = vld [vmem:[#allocation19 + $0x58] sm:$0xff]
    %v4953 = vld [vmem:[#allocation19 + $0x60] sm:$0xff]
    %v4954 = vld [vmem:[#allocation19 + $0x68] sm:$0xff]
    %v4955 = vld [vmem:[#allocation19 + $0x70] sm:$0xff]
    %v4956 = vld [vmem:[#allocation19 + $0x78] sm:$0xff]
    %v4957 = vld [vmem:[#allocation19 + $0x80] sm:$0xff]
    %v4958 = vld [vmem:[#allocation19 + $0x88] sm:$0xff]
    %v4959 = vld [vmem:[#allocation19 + $0x90] sm:$0xff]
    %v4960 = vld [vmem:[#allocation19 + $0x98] sm:$0xff]
    %v4961 = vld [vmem:[#allocation19 + $0xa0] sm:$0xff]
    %v4962 = vld [vmem:[#allocation19 + $0xa8] sm:$0xff]
    %v4963 = vld [vmem:[#allocation19 + $0xb0] sm:$0xff]
    %v4964 = vld [vmem:[#allocation19 + $0xb8] sm:$0xff]
    %v4965 = vld [vmem:[#allocation19 + $0xc0] sm:$0xff]
    %v4966 = vld [vmem:[#allocation19 + $0xc8] sm:$0xff]
    %v4967 = vld [vmem:[#allocation19 + $0xd0] sm:$0xff]
    %v4968 = vld [vmem:[#allocation19 + $0xd8] sm:$0xff]
    %v4969 = vld [vmem:[#allocation19 + $0xe0] sm:$0xff]
    %v4970 = vld [vmem:[#allocation19 + $0xe8] sm:$0xff]
    %v4971 = vld [vmem:[#allocation19 + $0xf0] sm:$0xff]
    %v4972 = vld [vmem:[#allocation19 + $0xf8] sm:$0xff]
    %v4981 = vunpack.c.l.b16 %v4933
    %v4982 = vunpack.c.l.b16 %v4934
    %v4983 = vunpack.c.l.b16 %v4935
    %v4984 = vunpack.c.l.b16 %v4936
    %v4985 = vunpack.c.l.b16 %v4937
    %v4986 = vunpack.c.l.b16 %v4938
    %v4987 = vunpack.c.l.b16 %v4939
    %v4988 = vunpack.c.l.b16 %v4940
    %v4989 = vsel %vm754, %v4982, %v4981
    %v4990 = vsel %vm756, %v4983, %v4989
    %v4991 = vsel %vm758, %v4984, %v4990
    %v4992 = vsel %vm760, %v4985, %v4991
    %v4993 = vsel %vm762, %v4986, %v4992
    %v4994 = vsel %vm764, %v4987, %v4993
    %v4995 = vsel %vm766, %v4988, %v4994
    %v4996 = vpack.c.b16 %v4995, %v4995
    %v5030 = vunpack.c.l.b16 %v4941
    %v5031 = vunpack.c.h.b16 %v4941
    %v5032 = vunpack.c.l.b16 %v4942
    %v5033 = vunpack.c.h.b16 %v4942
    %v5034 = vunpack.c.l.b16 %v4943
    %v5035 = vunpack.c.h.b16 %v4943
    %v5036 = vunpack.c.l.b16 %v4944
    %v5037 = vunpack.c.h.b16 %v4944
    %v5038 = vunpack.c.l.b16 %v4945
    %v5039 = vunpack.c.h.b16 %v4945
    %v5040 = vunpack.c.l.b16 %v4946
    %v5041 = vunpack.c.h.b16 %v4946
    %v5042 = vunpack.c.l.b16 %v4947
    %v5043 = vunpack.c.h.b16 %v4947
    %v5044 = vunpack.c.l.b16 %v4948
    %v5045 = vunpack.c.h.b16 %v4948
    %v5046 = vunpack.c.l.b16 %v4949
    %v5047 = vunpack.c.h.b16 %v4949
    %v5048 = vunpack.c.l.b16 %v4950
    %v5049 = vunpack.c.h.b16 %v4950
    %v5050 = vunpack.c.l.b16 %v4951
    %v5051 = vunpack.c.h.b16 %v4951
    %v5052 = vunpack.c.l.b16 %v4952
    %v5053 = vunpack.c.h.b16 %v4952
    %v5054 = vunpack.c.l.b16 %v4953
    %v5055 = vunpack.c.h.b16 %v4953
    %v5056 = vunpack.c.l.b16 %v4954
    %v5057 = vunpack.c.h.b16 %v4954
    %v5058 = vunpack.c.l.b16 %v4955
    %v5059 = vunpack.c.h.b16 %v4955
    %v5060 = vunpack.c.l.b16 %v4956
    %v5061 = vunpack.c.h.b16 %v4956
    %v5062 = vunpack.c.l.b16 %v4957
    %v5063 = vunpack.c.h.b16 %v4957
    %v5064 = vunpack.c.l.b16 %v4958
    %v5065 = vunpack.c.h.b16 %v4958
    %v5066 = vunpack.c.l.b16 %v4959
    %v5067 = vunpack.c.h.b16 %v4959
    %v5068 = vunpack.c.l.b16 %v4960
    %v5069 = vunpack.c.h.b16 %v4960
    %v5070 = vunpack.c.l.b16 %v4961
    %v5071 = vunpack.c.h.b16 %v4961
    %v5072 = vunpack.c.l.b16 %v4962
    %v5073 = vunpack.c.h.b16 %v4962
    %v5074 = vunpack.c.l.b16 %v4963
    %v5075 = vunpack.c.h.b16 %v4963
    %v5076 = vunpack.c.l.b16 %v4964
    %v5077 = vunpack.c.h.b16 %v4964
    %v5078 = vunpack.c.l.b16 %v4965
    %v5079 = vunpack.c.h.b16 %v4965
    %v5080 = vunpack.c.l.b16 %v4966
    %v5081 = vunpack.c.h.b16 %v4966
    %v5082 = vunpack.c.l.b16 %v4967
    %v5083 = vunpack.c.h.b16 %v4967
    %v5084 = vunpack.c.l.b16 %v4968
    %v5085 = vunpack.c.h.b16 %v4968
    %v5086 = vunpack.c.l.b16 %v4969
    %v5087 = vunpack.c.h.b16 %v4969
    %v5088 = vunpack.c.l.b16 %v4970
    %v5089 = vunpack.c.h.b16 %v4970
    %v5090 = vunpack.c.l.b16 %v4971
    %v5091 = vunpack.c.h.b16 %v4971
    %v5092 = vunpack.c.l.b16 %v4972
    %v5093 = vunpack.c.h.b16 %v4972
    %v5094 = vpack.c.b16 %v5034, %v5030
    %v5095 = vpack.c.b16 %v5035, %v5031
    %v5096 = vpack.c.b16 %v5036, %v5032
    %v5097 = vpack.c.b16 %v5037, %v5033
    %v5098 = vpack.c.b16 %v5042, %v5038
    %v5099 = vpack.c.b16 %v5043, %v5039
    %v5100 = vpack.c.b16 %v5044, %v5040
    %v5101 = vpack.c.b16 %v5045, %v5041
    %v5102 = vpack.c.b16 %v5050, %v5046
    %v5103 = vpack.c.b16 %v5051, %v5047
    %v5104 = vpack.c.b16 %v5052, %v5048
    %v5105 = vpack.c.b16 %v5053, %v5049
    %v5106 = vpack.c.b16 %v5058, %v5054
    %v5107 = vpack.c.b16 %v5059, %v5055
    %v5108 = vpack.c.b16 %v5060, %v5056
    %v5109 = vpack.c.b16 %v5061, %v5057
    %v5110 = vpack.c.b16 %v5066, %v5062
    %v5111 = vpack.c.b16 %v5067, %v5063
    %v5112 = vpack.c.b16 %v5068, %v5064
    %v5113 = vpack.c.b16 %v5069, %v5065
    %v5114 = vpack.c.b16 %v5074, %v5070
    %v5115 = vpack.c.b16 %v5075, %v5071
    %v5116 = vpack.c.b16 %v5076, %v5072
    %v5117 = vpack.c.b16 %v5077, %v5073
    %v5118 = vpack.c.b16 %v5082, %v5078
    %v5119 = vpack.c.b16 %v5083, %v5079
    %v5120 = vpack.c.b16 %v5084, %v5080
    %v5121 = vpack.c.b16 %v5085, %v5081
    %v5122 = vpack.c.b16 %v5090, %v5086
    %v5123 = vpack.c.b16 %v5091, %v5087
    %v5124 = vpack.c.b16 %v5092, %v5088
    %v5125 = vpack.c.b16 %v5093, %v5089
    %5158 = vmatprep.subr.bf16.mxu0 %v5095
    %5159 = vmatpush1.bf16.msra.mxu0 %v5094
    %5160 = vmatprep.subr.bf16.mxu0 %v5099
    %5161 = vmatpush1.bf16.msra.mxu0 %v5098
    %5162 = vmatprep.subr.bf16.mxu0 %v5103
    %5163 = vmatpush1.bf16.msra.mxu0 %v5102
    %5164 = vmatprep.subr.bf16.mxu0 %v5107
    %5165 = vmatpush1.bf16.msra.mxu0 %v5106
    %5166 = vmatprep.subr.bf16.mxu0 %v5111
    %5167 = vmatpush1.bf16.msra.mxu0 %v5110
    %5168 = vmatprep.subr.bf16.mxu0 %v5115
    %5169 = vmatpush1.bf16.msra.mxu0 %v5114
    %5170 = vmatprep.subr.bf16.mxu0 %v5119
    %5171 = vmatpush1.bf16.msra.mxu0 %v5118
    %5172 = vmatprep.subr.bf16.mxu0 %v5123
    %5173 = vmatpush1.bf16.msra.mxu0 %v5122
    %5174 = vmatprep.subr.bf16.mxu0 0
    %5175 = vmatpush1.bf16.msra.mxu0 0
    %5176 = vmatprep.subr.bf16.mxu0 0
    %5177 = vmatpush1.bf16.msra.mxu0 0
    %5178 = vmatprep.subr.bf16.mxu0 0
    %5179 = vmatpush1.bf16.msra.mxu0 0
    %5180 = vmatprep.subr.bf16.mxu0 0
    %5181 = vmatpush1.bf16.msra.mxu0 0
    %5182 = vmatprep.subr.bf16.mxu0 0
    %5183 = vmatpush1.bf16.msra.mxu0 0
    %5184 = vmatprep.subr.bf16.mxu0 0
    %5185 = vmatpush1.bf16.msra.mxu0 0
    %5186 = vmatprep.subr.bf16.mxu0 0
    %5187 = vmatpush1.bf16.msra.mxu0 0
    %5188 = vmatprep.subr.bf16.mxu0 0
    %5189 = vmatpush1.bf16.msra.mxu0 0
    %5190 = vmatprep.mubr.bf16.mxu0 0
    %5191 = vmatmul.mubr.bf16.gmra.mrb[0].mxu0 %v4996
    %v5192 = vpop.f32.mrb[0].mxu0
    %v5193 = vadd.f32 0.0, %v5192
    %v5194 = vpop.f32.mrb[0].mxu0
    %v5195 = vadd.f32 0.0, %v5194
    %v5196 = vpop.f32.mrb[0].mxu0
    %v5197 = vpop.f32.mrb[0].mxu0
    %5198 = vdwg.mxu0
    %5199 = vmatprep.subr.bf16.mxu0 %v5097
    %5200 = vmatpush1.bf16.msra.mxu0 %v5096
    %5201 = vmatprep.subr.bf16.mxu0 %v5101
    %5202 = vmatpush1.bf16.msra.mxu0 %v5100
    %5203 = vmatprep.subr.bf16.mxu0 %v5105
    %5204 = vmatpush1.bf16.msra.mxu0 %v5104
    %5205 = vmatprep.subr.bf16.mxu0 %v5109
    %5206 = vmatpush1.bf16.msra.mxu0 %v5108
    %5207 = vmatprep.subr.bf16.mxu0 %v5113
    %5208 = vmatpush1.bf16.msra.mxu0 %v5112
    %5209 = vmatprep.subr.bf16.mxu0 %v5117
    %5210 = vmatpush1.bf16.msra.mxu0 %v5116
    %5211 = vmatprep.subr.bf16.mxu0 %v5121
    %5212 = vmatpush1.bf16.msra.mxu0 %v5120
    %5213 = vmatprep.subr.bf16.mxu0 %v5125
    %5214 = vmatpush1.bf16.msra.mxu0 %v5124
    %5215 = vmatprep.subr.bf16.mxu0 0
    %5216 = vmatpush1.bf16.msra.mxu0 0
    %5217 = vmatprep.subr.bf16.mxu0 0
    %5218 = vmatpush1.bf16.msra.mxu0 0
    %5219 = vmatprep.subr.bf16.mxu0 0
    %5220 = vmatpush1.bf16.msra.mxu0 0
    %5221 = vmatprep.subr.bf16.mxu0 0
    %5222 = vmatpush1.bf16.msra.mxu0 0
    %5223 = vmatprep.subr.bf16.mxu0 0
    %5224 = vmatpush1.bf16.msra.mxu0 0
    %5225 = vmatprep.subr.bf16.mxu0 0
    %5226 = vmatpush1.bf16.msra.mxu0 0
    %5227 = vmatprep.subr.bf16.mxu0 0
    %5228 = vmatpush1.bf16.msra.mxu0 0
    %5229 = vmatprep.subr.bf16.mxu0 0
    %5230 = vmatpush1.bf16.msra.mxu0 0
    %5231 = vmatprep.mubr.bf16.mxu0 0
    %5232 = vmatmul.mubr.bf16.gmra.mrb[0].mxu0 %v4996
    %v5233 = vpop.f32.mrb[0].mxu0
    %v5234 = vadd.f32 0.0, %v5233
    %v5235 = vpop.f32.mrb[0].mxu0
    %v5236 = vadd.f32 0.0, %v5235
    %v5237 = vpop.f32.mrb[0].mxu0
    %v5238 = vpop.f32.mrb[0].mxu0
    %5239 = vdwg.mxu0
    %v5240 = vadd.f32 %v4929, %v5193
    %v5241 = vadd.f32 %v4930, %v5195
    %v5242 = vadd.f32 %v4931, %v5234
    %v5243 = vadd.f32 %v4932, %v5236
    %v5244 = vadd.f32 %v5240, %v4327
    %v5245 = vadd.f32 %v5241, %v4366
    %v5246 = vadd.f32 %v5242, %v4368
    %v5247 = vadd.f32 %v5243, %v4407
    %v5248 = vxor.u32 %v5244, 2147483648
    %v5249 = vmul.f32 %v5248, 1.442695
    %v5250 = vpow.pop %v5249
    %v5251 = vadd.f32 %v5250, 1.0
    %v5252 = vrcp.pop %v5251
    %v5253 = vmul.f32 1.0, %v5252
    %v5254 = vxor.u32 %v5245, 2147483648
    %v5255 = vmul.f32 %v5254, 1.442695
    %v5256 = vpow.pop %v5255
    %v5257 = vadd.f32 %v5256, 1.0
    %v5258 = vrcp.pop %v5257
    %v5259 = vmul.f32 1.0, %v5258
    %v5260 = vtanh.pop %v5246
    %v5261 = vxor.u32 %v5247, 2147483648
    %v5262 = vmul.f32 %v5261, 1.442695
    %v5263 = vpow.pop %v5262
    %v5264 = vadd.f32 %v5263, 1.0
    %v5265 = vrcp.pop %v5264
    %v5266 = vmul.f32 1.0, %v5265
    %v5267 = vmul.f32 %v5259, %v4032
    %v5268 = vmul.f32 %v5253, %v5260
    %v5269 = vadd.f32 %v5267, %v5268
    %v5270 = vtanh.pop %v5269
    %v5271 = vmul.f32 %v5266, %v5270
    %5272 = vst [vmem:[#allocation2] sm:$0xff] %v5271
    %5273 = vst [vmem:[#allocation3] sm:$0xff] %v5269
    %v5274 = vpack.c.bf16 %v5271, %v5271
    %s5275 = scalar_lea.vmem [#allocation20], 12
    %5276 = vst [vmem:[%s5275] sm:$0xf] %v5274
    %v5277 = vlaneseq
    %v5278 = vshrl.u32 %v5277, 7
    %v5279 = vsub.s32 %v721, %v5278
    %v5280 = vrot.slane %v4835, %v5279
    %v5281 = vlaneseq
    %v5282 = vshrl.u32 %v5281, 7
    %v5283 = vsub.s32 %v721, %v5282
    %v5284 = vrot.slane %v4840, %v5283
    %v5285 = vlaneseq
    %v5286 = vshrl.u32 %v5285, 7
    %v5287 = vsub.s32 %v721, %v5286
    %v5288 = vrot.slane %v4845, %v5287
    %v5289 = vlaneseq
    %v5290 = vshrl.u32 %v5289, 7
    %v5291 = vsub.s32 %v721, %v5290
    %v5292 = vrot.slane %v4850, %v5291
    %v5293 = vlaneseq
    %v5294 = vshrl.u32 %v5293, 7
    %v5295 = vsub.s32 %v721, %v5294
    %v5296 = vrot.slane %v4855, %v5295
    %v5297 = vlaneseq
    %v5298 = vshrl.u32 %v5297, 7
    %v5299 = vsub.s32 %v721, %v5298
    %v5300 = vrot.slane %v4860, %v5299
    %v5301 = vlaneseq
    %v5302 = vshrl.u32 %v5301, 7
    %v5303 = vsub.s32 %v721, %v5302
    %v5304 = vrot.slane %v4865, %v5303
    %v5305 = vlaneseq
    %v5306 = vshrl.u32 %v5305, 7
    %v5307 = vsub.s32 %v721, %v5306
    %v5308 = vrot.slane %v4870, %v5307
    %v5309 = vsel %vm754, %v5284, %v5280
    %v5310 = vsel %vm756, %v5288, %v5309
    %v5311 = vsel %vm758, %v5292, %v5310
    %v5312 = vsel %vm760, %v5296, %v5311
    %v5313 = vsel %vm762, %v5300, %v5312
    %v5314 = vsel %vm764, %v5304, %v5313
    %v5315 = vsel %vm766, %v5308, %v5314
    %s5317 = scalar_lea.vmem [#allocation21], 24
    %5318 = vst.msk [vmem:[%s5317] sm:$0xff] %vm769, %v5315
    %v5319 = vld [vmem:[#allocation2] sm:$0xff]
    %v5320 = vld [vmem:[#allocation3] sm:$0xff]
    %v5321 = vpack.c.bf16 %v5319, %v5319
    %v5322 = vld [vmem:[#allocation14] sm:$0xff]
    %v5323 = vld [vmem:[#allocation14 + $0x8] sm:$0xff]
    %v5324 = vld [vmem:[#allocation14 + $0x10] sm:$0xf]
    %v5325 = vld [vmem:[#allocation14 + $0x14] sm:$0xff]
    %v5326 = vld [vmem:[#allocation14 + $0x1c] sm:$0xff]
    %v5327 = vld [vmem:[#allocation14 + $0x24] sm:$0xf]
    %v5328 = vld [vmem:[#allocation14 + $0x28] sm:$0xff]
    %v5329 = vld [vmem:[#allocation14 + $0x30] sm:$0xff]
    %v5330 = vld [vmem:[#allocation14 + $0x38] sm:$0xf]
    %v5331 = vld [vmem:[#allocation14 + $0x3c] sm:$0xff]
    %v5332 = vld [vmem:[#allocation14 + $0x44] sm:$0xff]
    %v5333 = vld [vmem:[#allocation14 + $0x4c] sm:$0xf]
    %v5334 = vld [vmem:[#allocation14 + $0x50] sm:$0xff]
    %v5335 = vld [vmem:[#allocation14 + $0x58] sm:$0xff]
    %v5336 = vld [vmem:[#allocation14 + $0x60] sm:$0xf]
    %v5337 = vld [vmem:[#allocation14 + $0x64] sm:$0xff]
    %v5338 = vld [vmem:[#allocation14 + $0x6c] sm:$0xff]
    %v5339 = vld [vmem:[#allocation14 + $0x74] sm:$0xf]
    %v5340 = vld [vmem:[#allocation14 + $0x78] sm:$0xff]
    %v5341 = vld [vmem:[#allocation14 + $0x80] sm:$0xff]
    %v5342 = vld [vmem:[#allocation14 + $0x88] sm:$0xf]
    %v5343 = vld [vmem:[#allocation14 + $0x8c] sm:$0xff]
    %v5344 = vld [vmem:[#allocation14 + $0x94] sm:$0xff]
    %v5345 = vld [vmem:[#allocation14 + $0x9c] sm:$0xf]
    %v5346 = vld [vmem:[#allocation14 + $0xa0] sm:$0xff]
    %v5347 = vld [vmem:[#allocation14 + $0xa8] sm:$0xff]
    %v5348 = vld [vmem:[#allocation14 + $0xb0] sm:$0xf]
    %v5349 = vld [vmem:[#allocation14 + $0xb4] sm:$0xff]
    %v5350 = vld [vmem:[#allocation14 + $0xbc] sm:$0xff]
    %v5351 = vld [vmem:[#allocation14 + $0xc4] sm:$0xf]
    %v5352 = vld [vmem:[#allocation14 + $0xc8] sm:$0xff]
    %v5353 = vld [vmem:[#allocation14 + $0xd0] sm:$0xff]
    %v5354 = vld [vmem:[#allocation14 + $0xd8] sm:$0xf]
    %v5355 = vld [vmem:[#allocation14 + $0xdc] sm:$0xff]
    %v5356 = vld [vmem:[#allocation14 + $0xe4] sm:$0xff]
    %v5357 = vld [vmem:[#allocation14 + $0xec] sm:$0xf]
    %v5358 = vld [vmem:[#allocation14 + $0xf0] sm:$0xff]
    %v5359 = vld [vmem:[#allocation14 + $0xf8] sm:$0xff]
    %v5360 = vld [vmem:[#allocation14 + $0x100] sm:$0xf]
    %v5361 = vld [vmem:[#allocation14 + $0x104] sm:$0xff]
    %v5362 = vld [vmem:[#allocation14 + $0x10c] sm:$0xff]
    %v5363 = vld [vmem:[#allocation14 + $0x114] sm:$0xf]
    %v5364 = vld [vmem:[#allocation14 + $0x118] sm:$0xff]
    %v5365 = vld [vmem:[#allocation14 + $0x120] sm:$0xff]
    %v5366 = vld [vmem:[#allocation14 + $0x128] sm:$0xf]
    %v5367 = vld [vmem:[#allocation14 + $0x12c] sm:$0xff]
    %v5368 = vld [vmem:[#allocation14 + $0x134] sm:$0xff]
    %v5369 = vld [vmem:[#allocation14 + $0x13c] sm:$0xf]
    %v5418 = vunpack.c.l.b16 %v5322
    %v5419 = vunpack.c.h.b16 %v5322
    %v5420 = vunpack.c.l.b16 %v5323
    %v5421 = vunpack.c.h.b16 %v5323
    %v5422 = vunpack.c.l.b16 %v5324
    %v5423 = vunpack.c.l.b16 %v5325
    %v5424 = vunpack.c.h.b16 %v5325
    %v5425 = vunpack.c.l.b16 %v5326
    %v5426 = vunpack.c.h.b16 %v5326
    %v5427 = vunpack.c.l.b16 %v5327
    %v5428 = vunpack.c.l.b16 %v5328
    %v5429 = vunpack.c.h.b16 %v5328
    %v5430 = vunpack.c.l.b16 %v5329
    %v5431 = vunpack.c.h.b16 %v5329
    %v5432 = vunpack.c.l.b16 %v5330
    %v5433 = vunpack.c.l.b16 %v5331
    %v5434 = vunpack.c.h.b16 %v5331
    %v5435 = vunpack.c.l.b16 %v5332
    %v5436 = vunpack.c.h.b16 %v5332
    %v5437 = vunpack.c.l.b16 %v5333
    %v5438 = vunpack.c.l.b16 %v5334
    %v5439 = vunpack.c.h.b16 %v5334
    %v5440 = vunpack.c.l.b16 %v5335
    %v5441 = vunpack.c.h.b16 %v5335
    %v5442 = vunpack.c.l.b16 %v5336
    %v5443 = vunpack.c.l.b16 %v5337
    %v5444 = vunpack.c.h.b16 %v5337
    %v5445 = vunpack.c.l.b16 %v5338
    %v5446 = vunpack.c.h.b16 %v5338
    %v5447 = vunpack.c.l.b16 %v5339
    %v5448 = vunpack.c.l.b16 %v5340
    %v5449 = vunpack.c.h.b16 %v5340
    %v5450 = vunpack.c.l.b16 %v5341
    %v5451 = vunpack.c.h.b16 %v5341
    %v5452 = vunpack.c.l.b16 %v5342
    %v5453 = vunpack.c.l.b16 %v5343
    %v5454 = vunpack.c.h.b16 %v5343
    %v5455 = vunpack.c.l.b16 %v5344
    %v5456 = vunpack.c.h.b16 %v5344
    %v5457 = vunpack.c.l.b16 %v5345
    %v5458 = vunpack.c.l.b16 %v5346
    %v5459 = vunpack.c.h.b16 %v5346
    %v5460 = vunpack.c.l.b16 %v5347
    %v5461 = vunpack.c.h.b16 %v5347
    %v5462 = vunpack.c.l.b16 %v5348
    %v5463 = vunpack.c.l.b16 %v5349
    %v5464 = vunpack.c.h.b16 %v5349
    %v5465 = vunpack.c.l.b16 %v5350
    %v5466 = vunpack.c.h.b16 %v5350
    %v5467 = vunpack.c.l.b16 %v5351
    %v5468 = vunpack.c.l.b16 %v5352
    %v5469 = vunpack.c.h.b16 %v5352
    %v5470 = vunpack.c.l.b16 %v5353
    %v5471 = vunpack.c.h.b16 %v5353
    %v5472 = vunpack.c.l.b16 %v5354
    %v5473 = vunpack.c.l.b16 %v5355
    %v5474 = vunpack.c.h.b16 %v5355
    %v5475 = vunpack.c.l.b16 %v5356
    %v5476 = vunpack.c.h.b16 %v5356
    %v5477 = vunpack.c.l.b16 %v5357
    %v5478 = vunpack.c.l.b16 %v5358
    %v5479 = vunpack.c.h.b16 %v5358
    %v5480 = vunpack.c.l.b16 %v5359
    %v5481 = vunpack.c.h.b16 %v5359
    %v5482 = vunpack.c.l.b16 %v5360
    %v5483 = vunpack.c.l.b16 %v5361
    %v5484 = vunpack.c.h.b16 %v5361
    %v5485 = vunpack.c.l.b16 %v5362
    %v5486 = vunpack.c.h.b16 %v5362
    %v5487 = vunpack.c.l.b16 %v5363
    %v5488 = vunpack.c.l.b16 %v5364
    %v5489 = vunpack.c.h.b16 %v5364
    %v5490 = vunpack.c.l.b16 %v5365
    %v5491 = vunpack.c.h.b16 %v5365
    %v5492 = vunpack.c.l.b16 %v5366
    %v5493 = vunpack.c.l.b16 %v5367
    %v5494 = vunpack.c.h.b16 %v5367
    %v5495 = vunpack.c.l.b16 %v5368
    %v5496 = vunpack.c.h.b16 %v5368
    %v5497 = vunpack.c.l.b16 %v5369
    %v5498 = vpack.c.b16 %v5423, %v5418
    %v5499 = vpack.c.b16 %v5424, %v5419
    %v5500 = vpack.c.b16 %v5425, %v5420
    %v5501 = vpack.c.b16 %v5426, %v5421
    %v5502 = vpack.c.b16 %v5427, %v5422
    %v5503 = vpack.c.b16 %v5433, %v5428
    %v5504 = vpack.c.b16 %v5434, %v5429
    %v5505 = vpack.c.b16 %v5435, %v5430
    %v5506 = vpack.c.b16 %v5436, %v5431
    %v5507 = vpack.c.b16 %v5437, %v5432
    %v5508 = vpack.c.b16 %v5443, %v5438
    %v5509 = vpack.c.b16 %v5444, %v5439
    %v5510 = vpack.c.b16 %v5445, %v5440
    %v5511 = vpack.c.b16 %v5446, %v5441
    %v5512 = vpack.c.b16 %v5447, %v5442
    %v5513 = vpack.c.b16 %v5453, %v5448
    %v5514 = vpack.c.b16 %v5454, %v5449
    %v5515 = vpack.c.b16 %v5455, %v5450
    %v5516 = vpack.c.b16 %v5456, %v5451
    %v5517 = vpack.c.b16 %v5457, %v5452
    %v5518 = vpack.c.b16 %v5463, %v5458
    %v5519 = vpack.c.b16 %v5464, %v5459
    %v5520 = vpack.c.b16 %v5465, %v5460
    %v5521 = vpack.c.b16 %v5466, %v5461
    %v5522 = vpack.c.b16 %v5467, %v5462
    %v5523 = vpack.c.b16 %v5473, %v5468
    %v5524 = vpack.c.b16 %v5474, %v5469
    %v5525 = vpack.c.b16 %v5475, %v5470
    %v5526 = vpack.c.b16 %v5476, %v5471
    %v5527 = vpack.c.b16 %v5477, %v5472
    %v5528 = vpack.c.b16 %v5483, %v5478
    %v5529 = vpack.c.b16 %v5484, %v5479
    %v5530 = vpack.c.b16 %v5485, %v5480
    %v5531 = vpack.c.b16 %v5486, %v5481
    %v5532 = vpack.c.b16 %v5487, %v5482
    %v5533 = vpack.c.b16 %v5493, %v5488
    %v5534 = vpack.c.b16 %v5494, %v5489
    %v5535 = vpack.c.b16 %v5495, %v5490
    %v5536 = vpack.c.b16 %v5496, %v5491
    %v5537 = vpack.c.b16 %v5497, %v5492
    %5578 = vmatprep.subr.bf16.mxu0 %v5499
    %5579 = vmatpush1.bf16.msra.mxu0 %v5498
    %5580 = vmatprep.subr.bf16.mxu0 %v5504
    %5581 = vmatpush1.bf16.msra.mxu0 %v5503
    %5582 = vmatprep.subr.bf16.mxu0 %v5509
    %5583 = vmatpush1.bf16.msra.mxu0 %v5508
    %5584 = vmatprep.subr.bf16.mxu0 %v5514
    %5585 = vmatpush1.bf16.msra.mxu0 %v5513
    %5586 = vmatprep.subr.bf16.mxu0 %v5519
    %5587 = vmatpush1.bf16.msra.mxu0 %v5518
    %5588 = vmatprep.subr.bf16.mxu0 %v5524
    %5589 = vmatpush1.bf16.msra.mxu0 %v5523
    %5590 = vmatprep.subr.bf16.mxu0 %v5529
    %5591 = vmatpush1.bf16.msra.mxu0 %v5528
    %5592 = vmatprep.subr.bf16.mxu0 %v5534
    %5593 = vmatpush1.bf16.msra.mxu0 %v5533
    %5594 = vmatprep.subr.bf16.mxu0 0
    %5595 = vmatpush1.bf16.msra.mxu0 0
    %5596 = vmatprep.subr.bf16.mxu0 0
    %5597 = vmatpush1.bf16.msra.mxu0 0
    %5598 = vmatprep.subr.bf16.mxu0 0
    %5599 = vmatpush1.bf16.msra.mxu0 0
    %5600 = vmatprep.subr.bf16.mxu0 0
    %5601 = vmatpush1.bf16.msra.mxu0 0
    %5602 = vmatprep.subr.bf16.mxu0 0
    %5603 = vmatpush1.bf16.msra.mxu0 0
    %5604 = vmatprep.subr.bf16.mxu0 0
    %5605 = vmatpush1.bf16.msra.mxu0 0
    %5606 = vmatprep.subr.bf16.mxu0 0
    %5607 = vmatpush1.bf16.msra.mxu0 0
    %5608 = vmatprep.subr.bf16.mxu0 0
    %5609 = vmatpush1.bf16.msra.mxu0 0
    %5610 = vmatprep.mubr.bf16.mxu0 0
    %5611 = vmatmul.mubr.bf16.gmra.mrb[0].mxu0 %v5321
    %v5612 = vpop.f32.mrb[0].mxu0
    %v5613 = vadd.f32 0.0, %v5612
    %v5614 = vpop.f32.mrb[0].mxu0
    %v5615 = vadd.f32 0.0, %v5614
    %v5616 = vpop.f32.mrb[0].mxu0
    %v5617 = vpop.f32.mrb[0].mxu0
    %5618 = vdwg.mxu0
    %5619 = vmatprep.subr.bf16.mxu0 %v5501
    %5620 = vmatpush1.bf16.msra.mxu0 %v5500
    %5621 = vmatprep.subr.bf16.mxu0 %v5506
    %5622 = vmatpush1.bf16.msra.mxu0 %v5505
    %5623 = vmatprep.subr.bf16.mxu0 %v5511
    %5624 = vmatpush1.bf16.msra.mxu0 %v5510
    %5625 = vmatprep.subr.bf16.mxu0 %v5516
    %5626 = vmatpush1.bf16.msra.mxu0 %v5515
    %5627 = vmatprep.subr.bf16.mxu0 %v5521
    %5628 = vmatpush1.bf16.msra.mxu0 %v5520
    %5629 = vmatprep.subr.bf16.mxu0 %v5526
    %5630 = vmatpush1.bf16.msra.mxu0 %v5525
    %5631 = vmatprep.subr.bf16.mxu0 %v5531
    %5632 = vmatpush1.bf16.msra.mxu0 %v5530
    %5633 = vmatprep.subr.bf16.mxu0 %v5536
    %5634 = vmatpush1.bf16.msra.mxu0 %v5535
    %5635 = vmatprep.subr.bf16.mxu0 0
    %5636 = vmatpush1.bf16.msra.mxu0 0
    %5637 = vmatprep.subr.bf16.mxu0 0
    %5638 = vmatpush1.bf16.msra.mxu0 0
    %5639 = vmatprep.subr.bf16.mxu0 0
    %5640 = vmatpush1.bf16.msra.mxu0 0
    %5641 = vmatprep.subr.bf16.mxu0 0
    %5642 = vmatpush1.bf16.msra.mxu0 0
    %5643 = vmatprep.subr.bf16.mxu0 0
    %5644 = vmatpush1.bf16.msra.mxu0 0
    %5645 = vmatprep.subr.bf16.mxu0 0
    %5646 = vmatpush1.bf16.msra.mxu0 0
    %5647 = vmatprep.subr.bf16.mxu0 0
    %5648 = vmatpush1.bf16.msra.mxu0 0
    %5649 = vmatprep.subr.bf16.mxu0 0
    %5650 = vmatpush1.bf16.msra.mxu0 0
    %5651 = vmatprep.mubr.bf16.mxu0 0
    %5652 = vmatmul.mubr.bf16.gmra.mrb[0].mxu0 %v5321
    %v5653 = vpop.f32.mrb[0].mxu0
    %v5654 = vadd.f32 0.0, %v5653
    %v5655 = vpop.f32.mrb[0].mxu0
    %v5656 = vadd.f32 0.0, %v5655
    %v5657 = vpop.f32.mrb[0].mxu0
    %v5658 = vpop.f32.mrb[0].mxu0
    %5659 = vdwg.mxu0
    %5660 = vmatprep.subr.bf16.mxu0 0
    %5661 = vmatpush1.bf16.msra.mxu0 %v5502
    %5662 = vmatprep.subr.bf16.mxu0 0
    %5663 = vmatpush1.bf16.msra.mxu0 %v5507
    %5664 = vmatprep.subr.bf16.mxu0 0
    %5665 = vmatpush1.bf16.msra.mxu0 %v5512
    %5666 = vmatprep.subr.bf16.mxu0 0
    %5667 = vmatpush1.bf16.msra.mxu0 %v5517
    %5668 = vmatprep.subr.bf16.mxu0 0
    %5669 = vmatpush1.bf16.msra.mxu0 %v5522
    %5670 = vmatprep.subr.bf16.mxu0 0
    %5671 = vmatpush1.bf16.msra.mxu0 %v5527
    %5672 = vmatprep.subr.bf16.mxu0 0
    %5673 = vmatpush1.bf16.msra.mxu0 %v5532
    %5674 = vmatprep.subr.bf16.mxu0 0
    %5675 = vmatpush1.bf16.msra.mxu0 %v5537
    %5676 = vmatprep.subr.bf16.mxu0 0
    %5677 = vmatpush1.bf16.msra.mxu0 0
    %5678 = vmatprep.subr.bf16.mxu0 0
    %5679 = vmatpush1.bf16.msra.mxu0 0
    %5680 = vmatprep.subr.bf16.mxu0 0
    %5681 = vmatpush1.bf16.msra.mxu0 0
    %5682 = vmatprep.subr.bf16.mxu0 0
    %5683 = vmatpush1.bf16.msra.mxu0 0
    %5684 = vmatprep.subr.bf16.mxu0 0
    %5685 = vmatpush1.bf16.msra.mxu0 0
    %5686 = vmatprep.subr.bf16.mxu0 0
    %5687 = vmatpush1.bf16.msra.mxu0 0
    %5688 = vmatprep.subr.bf16.mxu0 0
    %5689 = vmatpush1.bf16.msra.mxu0 0
    %5690 = vmatprep.subr.bf16.mxu0 0
    %5691 = vmatpush1.bf16.msra.mxu0 0
    %5692 = vmatprep.mubr.bf16.mxu0 0
    %5693 = vmatmul.mubr.bf16.gmra.mrb[0].mxu0 %v5321
    %v5694 = vpop.f32.mrb[0].mxu0
    %v5695 = vadd.f32 0.0, %v5694
    %v5696 = vpop.f32.mrb[0].mxu0
    %v5697 = vpop.f32.mrb[0].mxu0
    %v5698 = vpop.f32.mrb[0].mxu0
    %5699 = vdwg.mxu0
    %v5700 = vld [vmem:[#allocation16] sm:$0x1]
    %v5702 = vlaneseq
    %v5703 = vshrl.u32 %v5702, 7
    %v5704 = vsub.s32 0, %v5703
    %v5705 = vrot.slane %v5700, %v5704
    %v5707 = vadd.f32 %v5613, %v5705
    %v5708 = vld [vmem:[#allocation10] sm:$0xff]
    %v5709 = vld [vmem:[#allocation10 + $0x8] sm:$0xff]
    %v5710 = vld [vmem:[#allocation10 + $0x10] sm:$0xff]
    %v5711 = vld [vmem:[#allocation10 + $0x18] sm:$0xff]
    %v5712 = vld [vmem:[#allocation10 + $0x20] sm:$0xff]
    %v5713 = vld [vmem:[#allocation10 + $0x28] sm:$0xff]
    %v5714 = vld [vmem:[#allocation10 + $0x30] sm:$0xff]
    %v5715 = vld [vmem:[#allocation10 + $0x38] sm:$0xff]
    %v5717 = vcombine.high %v5707, %v5707
    %v5719 = vunpack.c.l.s4 1966171168
    %v5720 = vunpack.c.0.s8 %v5719
    %v5721 = vlaneseq
    %v5722 = vshrl.u32 %v5721, 7
    %v5723 = vsub.s32 %v5720, %v5722
    %v5724 = vrot.slane %v5707, %v5723
    %v5726 = vunpack.c.l.s4 1966171168
    %v5727 = vunpack.c.0.s8 %v5726
    %v5728 = vlaneseq
    %v5729 = vshrl.u32 %v5728, 7
    %v5730 = vsub.s32 %v5727, %v5729
    %v5731 = vrot.slane %v5717, %v5730
    %v5732 = vcombine.high %v5724, %v5724
    %v5733 = vcombine.high %v5731, %v5731
    %v5735 = vunpack.c.l.s4 1966171168
    %v5736 = vunpack.c.0.s8 %v5735
    %v5737 = vlaneseq
    %v5738 = vshrl.u32 %v5737, 7
    %v5739 = vsub.s32 %v5736, %v5738
    %v5740 = vrot.slane %v5724, %v5739
    %v5742 = vunpack.c.l.s4 1966171168
    %v5743 = vunpack.c.0.s8 %v5742
    %v5744 = vlaneseq
    %v5745 = vshrl.u32 %v5744, 7
    %v5746 = vsub.s32 %v5743, %v5745
    %v5747 = vrot.slane %v5731, %v5746
    %v5749 = vunpack.c.l.s4 1966171168
    %v5750 = vunpack.c.0.s8 %v5749
    %v5751 = vlaneseq
    %v5752 = vshrl.u32 %v5751, 7
    %v5753 = vsub.s32 %v5750, %v5752
    %v5754 = vrot.slane %v5732, %v5753
    %v5756 = vunpack.c.l.s4 1966171168
    %v5757 = vunpack.c.0.s8 %v5756
    %v5758 = vlaneseq
    %v5759 = vshrl.u32 %v5758, 7
    %v5760 = vsub.s32 %v5757, %v5759
    %v5761 = vrot.slane %v5733, %v5760
    %v5762 = vcombine.high %v5740, %v5740
    %v5763 = vcombine.high %v5747, %v5747
    %v5764 = vcombine.high %v5754, %v5754
    %v5765 = vcombine.high %v5761, %v5761
    %v5766 = vlaneseq
    %v5767 = vshrl.u32 %v5766, 7
    %v5768 = vsub.s32 0, %v5767
    %v5769 = vrot.slane %v5740, %v5768
    %v5770 = vlaneseq
    %v5771 = vshrl.u32 %v5770, 7
    %v5772 = vsub.s32 0, %v5771
    %v5773 = vrot.slane %v5754, %v5772
    %v5774 = vlaneseq
    %v5775 = vshrl.u32 %v5774, 7
    %v5776 = vsub.s32 0, %v5775
    %v5777 = vrot.slane %v5762, %v5776
    %v5778 = vlaneseq
    %v5779 = vshrl.u32 %v5778, 7
    %v5780 = vsub.s32 0, %v5779
    %v5781 = vrot.slane %v5764, %v5780
    %v5782 = vlaneseq
    %v5783 = vshrl.u32 %v5782, 7
    %v5784 = vsub.s32 0, %v5783
    %v5785 = vrot.slane %v5747, %v5784
    %v5786 = vlaneseq
    %v5787 = vshrl.u32 %v5786, 7
    %v5788 = vsub.s32 0, %v5787
    %v5789 = vrot.slane %v5761, %v5788
    %v5790 = vlaneseq
    %v5791 = vshrl.u32 %v5790, 7
    %v5792 = vsub.s32 0, %v5791
    %v5793 = vrot.slane %v5763, %v5792
    %v5794 = vlaneseq
    %v5795 = vshrl.u32 %v5794, 7
    %v5796 = vsub.s32 0, %v5795
    %v5797 = vrot.slane %v5765, %v5796
    %v5806 = vadd.f32 %v5708, %v5769
    %v5807 = vadd.f32 %v5709, %v5773
    %v5808 = vadd.f32 %v5710, %v5777
    %v5809 = vadd.f32 %v5711, %v5781
    %v5810 = vadd.f32 %v5712, %v5785
    %v5811 = vadd.f32 %v5713, %v5789
    %v5812 = vadd.f32 %v5714, %v5793
    %v5813 = vadd.f32 %v5715, %v5797
    %v5814 = vtanh.pop %v5806
    %v5815 = vtanh.pop %v5807
    %v5816 = vtanh.pop %v5808
    %v5817 = vtanh.pop %v5809
    %v5818 = vtanh.pop %v5810
    %v5819 = vtanh.pop %v5811
    %v5820 = vtanh.pop %v5812
    %v5821 = vtanh.pop %v5813
    %v5822 = vld [vmem:[#allocation17] sm:$0x1]
    %v5824 = vlaneseq
    %v5825 = vshrl.u32 %v5824, 7
    %v5826 = vsub.s32 0, %v5825
    %v5827 = vrot.slane %v5822, %v5826
    %v5829 = vmul.f32 %v5814, %v5827
    %v5830 = vmul.f32 %v5815, %v5827
    %v5831 = vmul.f32 %v5816, %v5827
    %v5832 = vmul.f32 %v5817, %v5827
    %v5833 = vmul.f32 %v5818, %v5827
    %v5834 = vmul.f32 %v5819, %v5827
    %v5835 = vmul.f32 %v5820, %v5827
    %v5836 = vmul.f32 %v5821, %v5827
    %5837 = vadd.xlane.f32.xlu0 %v5829
    %v5838 = vpop.xlane.xlu0 %5837
    %5839 = vadd.xlane.f32.xlu0 %v5830
    %v5840 = vpop.xlane.xlu0 %5839
    %5841 = vadd.xlane.f32.xlu0 %v5831
    %v5842 = vpop.xlane.xlu0 %5841
    %5843 = vadd.xlane.f32.xlu0 %v5832
    %v5844 = vpop.xlane.xlu0 %5843
    %5845 = vadd.xlane.f32.xlu0 %v5833
    %v5846 = vpop.xlane.xlu0 %5845
    %5847 = vadd.xlane.f32.xlu0 %v5834
    %v5848 = vpop.xlane.xlu0 %5847
    %5849 = vadd.xlane.f32.xlu0 %v5835
    %v5850 = vpop.xlane.xlu0 %5849
    %5851 = vadd.xlane.f32.xlu0 %v5836
    %v5852 = vpop.xlane.xlu0 %5851
    %v5853 = vld [vmem:[#allocation4] sm:$0x1]
    %v5855 = vlaneseq
    %v5856 = vshrl.u32 %v5855, 7
    %v5857 = vsub.s32 0, %v5856
    %v5858 = vrot.slane %v5853, %v5857
    %5859 = vset.pattern.permute.xlu0 0
    %5860 = vperm.xlu0 %5859, %v5858
    %v5861 = vpop.permute.xlu0 %5860
    %v5863 = vadd.f32 %v5838, %v5861
    %v5864 = vadd.f32 %v5840, %v5861
    %v5865 = vadd.f32 %v5842, %v5861
    %v5866 = vadd.f32 %v5844, %v5861
    %v5867 = vadd.f32 %v5846, %v5861
    %v5868 = vadd.f32 %v5848, %v5861
    %v5869 = vadd.f32 %v5850, %v5861
    %v5870 = vadd.f32 %v5852, %v5861
    %v5879 = vlaneseq
    %v5880 = vshrl.u32 %v5879, 7
    %v5881 = vsub.s32 %v721, %v5880
    %v5882 = vrot.slane %v5863, %v5881
    %v5883 = vlaneseq
    %v5884 = vshrl.u32 %v5883, 7
    %v5885 = vsub.s32 %v721, %v5884
    %v5886 = vrot.slane %v5864, %v5885
    %v5887 = vlaneseq
    %v5888 = vshrl.u32 %v5887, 7
    %v5889 = vsub.s32 %v721, %v5888
    %v5890 = vrot.slane %v5865, %v5889
    %v5891 = vlaneseq
    %v5892 = vshrl.u32 %v5891, 7
    %v5893 = vsub.s32 %v721, %v5892
    %v5894 = vrot.slane %v5866, %v5893
    %v5895 = vlaneseq
    %v5896 = vshrl.u32 %v5895, 7
    %v5897 = vsub.s32 %v721, %v5896
    %v5898 = vrot.slane %v5867, %v5897
    %v5899 = vlaneseq
    %v5900 = vshrl.u32 %v5899, 7
    %v5901 = vsub.s32 %v721, %v5900
    %v5902 = vrot.slane %v5868, %v5901
    %v5903 = vlaneseq
    %v5904 = vshrl.u32 %v5903, 7
    %v5905 = vsub.s32 %v721, %v5904
    %v5906 = vrot.slane %v5869, %v5905
    %v5907 = vlaneseq
    %v5908 = vshrl.u32 %v5907, 7
    %v5909 = vsub.s32 %v721, %v5908
    %v5910 = vrot.slane %v5870, %v5909
    %v5911 = vsel %vm754, %v5886, %v5882
    %v5912 = vsel %vm756, %v5890, %v5911
    %v5913 = vsel %vm758, %v5894, %v5912
    %v5914 = vsel %vm760, %v5898, %v5913
    %v5915 = vsel %vm762, %v5902, %v5914
    %v5916 = vsel %vm764, %v5906, %v5915
    %v5917 = vsel %vm766, %v5910, %v5916
    %v5919 = vsel %vm769, %v5917, -inf
    %5920 = vmax.xlane.f32.xlu0 %v5919
    %v5921 = vpop.xlane.xlu0 %5920
    %v5923 = vlaneseq
    %v5924 = vshrl.u32 %v5923, 7
    %v5925 = vsub.s32 0, %v5924
    %v5926 = vrot.slane %v5921, %v5925
    %v5927 = vlaneseq
    %v5928 = vshrl.u32 %v5927, 7
    %v5929 = vsub.s32 1, %v5928
    %v5930 = vrot.slane %v5921, %v5929
    %v5931 = vlaneseq
    %v5932 = vshrl.u32 %v5931, 7
    %v5933 = vsub.s32 2, %v5932
    %v5934 = vrot.slane %v5921, %v5933
    %v5935 = vlaneseq
    %v5936 = vshrl.u32 %v5935, 7
    %v5937 = vsub.s32 3, %v5936
    %v5938 = vrot.slane %v5921, %v5937
    %v5939 = vlaneseq
    %v5940 = vshrl.u32 %v5939, 7
    %v5941 = vsub.s32 4, %v5940
    %v5942 = vrot.slane %v5921, %v5941
    %v5943 = vlaneseq
    %v5944 = vshrl.u32 %v5943, 7
    %v5945 = vsub.s32 5, %v5944
    %v5946 = vrot.slane %v5921, %v5945
    %v5947 = vlaneseq
    %v5948 = vshrl.u32 %v5947, 7
    %v5949 = vsub.s32 6, %v5948
    %v5950 = vrot.slane %v5921, %v5949
    %v5951 = vlaneseq
    %v5952 = vshrl.u32 %v5951, 7
    %v5953 = vsub.s32 7, %v5952
    %v5954 = vrot.slane %v5921, %v5953
    %v5963 = vsub.f32 %v5863, %v5926
    %v5964 = vsub.f32 %v5864, %v5930
    %v5965 = vsub.f32 %v5865, %v5934
    %v5966 = vsub.f32 %v5866, %v5938
    %v5967 = vsub.f32 %v5867, %v5942
    %v5968 = vsub.f32 %v5868, %v5946
    %v5969 = vsub.f32 %v5869, %v5950
    %v5970 = vsub.f32 %v5870, %v5954
    %v5971 = vmul.f32 %v5963, 1.442695
    %v5972 = vpow.pop %v5971
    %v5973 = vmul.f32 %v5964, 1.442695
    %v5974 = vpow.pop %v5973
    %v5975 = vmul.f32 %v5965, 1.442695
    %v5976 = vpow.pop %v5975
    %v5977 = vmul.f32 %v5966, 1.442695
    %v5978 = vpow.pop %v5977
    %v5979 = vmul.f32 %v5967, 1.442695
    %v5980 = vpow.pop %v5979
    %v5981 = vmul.f32 %v5968, 1.442695
    %v5982 = vpow.pop %v5981
    %v5983 = vmul.f32 %v5969, 1.442695
    %v5984 = vpow.pop %v5983
    %v5985 = vmul.f32 %v5970, 1.442695
    %v5986 = vpow.pop %v5985
    %5995 = vset.pattern.permute.xlu0 0
    %5996 = vperm.xlu0 %5995, %v5972
    %v5997 = vpop.permute.xlu0 %5996
    %5998 = vset.pattern.permute.xlu0 0
    %5999 = vperm.xlu0 %5998, %v5974
    %v6000 = vpop.permute.xlu0 %5999
    %6001 = vset.pattern.permute.xlu0 0
    %6002 = vperm.xlu0 %6001, %v5976
    %v6003 = vpop.permute.xlu0 %6002
    %6004 = vset.pattern.permute.xlu0 0
    %6005 = vperm.xlu0 %6004, %v5978
    %v6006 = vpop.permute.xlu0 %6005
    %6007 = vset.pattern.permute.xlu0 0
    %6008 = vperm.xlu0 %6007, %v5980
    %v6009 = vpop.permute.xlu0 %6008
    %6010 = vset.pattern.permute.xlu0 0
    %6011 = vperm.xlu0 %6010, %v5982
    %v6012 = vpop.permute.xlu0 %6011
    %6013 = vset.pattern.permute.xlu0 0
    %6014 = vperm.xlu0 %6013, %v5984
    %v6015 = vpop.permute.xlu0 %6014
    %6016 = vset.pattern.permute.xlu0 0
    %6017 = vperm.xlu0 %6016, %v5986
    %v6018 = vpop.permute.xlu0 %6017
    %v6019 = vlaneseq
    %v6020 = vshrl.u32 %v6019, 7
    %v6021 = vsub.s32 %v721, %v6020
    %v6022 = vrot.slane %v5997, %v6021
    %v6023 = vlaneseq
    %v6024 = vshrl.u32 %v6023, 7
    %v6025 = vsub.s32 %v721, %v6024
    %v6026 = vrot.slane %v6000, %v6025
    %v6027 = vlaneseq
    %v6028 = vshrl.u32 %v6027, 7
    %v6029 = vsub.s32 %v721, %v6028
    %v6030 = vrot.slane %v6003, %v6029
    %v6031 = vlaneseq
    %v6032 = vshrl.u32 %v6031, 7
    %v6033 = vsub.s32 %v721, %v6032
    %v6034 = vrot.slane %v6006, %v6033
    %v6035 = vlaneseq
    %v6036 = vshrl.u32 %v6035, 7
    %v6037 = vsub.s32 %v721, %v6036
    %v6038 = vrot.slane %v6009, %v6037
    %v6039 = vlaneseq
    %v6040 = vshrl.u32 %v6039, 7
    %v6041 = vsub.s32 %v721, %v6040
    %v6042 = vrot.slane %v6012, %v6041
    %v6043 = vlaneseq
    %v6044 = vshrl.u32 %v6043, 7
    %v6045 = vsub.s32 %v721, %v6044
    %v6046 = vrot.slane %v6015, %v6045
    %v6047 = vlaneseq
    %v6048 = vshrl.u32 %v6047, 7
    %v6049 = vsub.s32 %v721, %v6048
    %v6050 = vrot.slane %v6018, %v6049
    %v6051 = vsel %vm754, %v6026, %v6022
    %v6052 = vsel %vm756, %v6030, %v6051
    %v6053 = vsel %vm758, %v6034, %v6052
    %v6054 = vsel %vm760, %v6038, %v6053
    %v6055 = vsel %vm762, %v6042, %v6054
    %v6056 = vsel %vm764, %v6046, %v6055
    %v6057 = vsel %vm766, %v6050, %v6056
    %v6059 = vsel %vm769, %v6057, 0.0
    %6060 = vadd.xlane.f32.xlu0 %v6059
    %v6061 = vpop.xlane.xlu0 %6060
    %v6062 = vrcp.pop %v6061
    %v6064 = vlaneseq
    %v6065 = vshrl.u32 %v6064, 7
    %v6066 = vsub.s32 0, %v6065
    %v6067 = vrot.slane %v6062, %v6066
    %v6068 = vlaneseq
    %v6069 = vshrl.u32 %v6068, 7
    %v6070 = vsub.s32 1, %v6069
    %v6071 = vrot.slane %v6062, %v6070
    %v6072 = vlaneseq
    %v6073 = vshrl.u32 %v6072, 7
    %v6074 = vsub.s32 2, %v6073
    %v6075 = vrot.slane %v6062, %v6074
    %v6076 = vlaneseq
    %v6077 = vshrl.u32 %v6076, 7
    %v6078 = vsub.s32 3, %v6077
    %v6079 = vrot.slane %v6062, %v6078
    %v6080 = vlaneseq
    %v6081 = vshrl.u32 %v6080, 7
    %v6082 = vsub.s32 4, %v6081
    %v6083 = vrot.slane %v6062, %v6082
    %v6084 = vlaneseq
    %v6085 = vshrl.u32 %v6084, 7
    %v6086 = vsub.s32 5, %v6085
    %v6087 = vrot.slane %v6062, %v6086
    %v6088 = vlaneseq
    %v6089 = vshrl.u32 %v6088, 7
    %v6090 = vsub.s32 6, %v6089
    %v6091 = vrot.slane %v6062, %v6090
    %v6092 = vlaneseq
    %v6093 = vshrl.u32 %v6092, 7
    %v6094 = vsub.s32 7, %v6093
    %v6095 = vrot.slane %v6062, %v6094
    %v6104 = vmul.f32 %v5972, %v6067
    %v6105 = vmul.f32 %v5974, %v6071
    %v6106 = vmul.f32 %v5976, %v6075
    %v6107 = vmul.f32 %v5978, %v6079
    %v6108 = vmul.f32 %v5980, %v6083
    %v6109 = vmul.f32 %v5982, %v6087
    %v6110 = vmul.f32 %v5984, %v6091
    %v6111 = vmul.f32 %v5986, %v6095
    %v6112 = vld [vmem:[#allocation8] sm:$0xff]
    %v6113 = vld [vmem:[#allocation8 + $0x8] sm:$0xff]
    %v6114 = vld [vmem:[#allocation8 + $0x10] sm:$0xff]
    %v6115 = vld [vmem:[#allocation8 + $0x18] sm:$0xff]
    %v6116 = vld [vmem:[#allocation8 + $0x20] sm:$0xff]
    %v6117 = vld [vmem:[#allocation8 + $0x28] sm:$0xff]
    %v6118 = vld [vmem:[#allocation8 + $0x30] sm:$0xff]
    %v6119 = vld [vmem:[#allocation8 + $0x38] sm:$0xff]
    %6121 = vset.pattern.permute.xlu0 0
    %6122 = vperm.xlu0 %6121, %v6104
    %v6123 = vpop.permute.xlu0 %6122
    %6126 = vset.pattern.permute.xlu0 0
    %6127 = vperm.xlu0 %6126, %v6105
    %v6128 = vpop.permute.xlu0 %6127
    %6131 = vset.pattern.permute.xlu0 0
    %6132 = vperm.xlu0 %6131, %v6106
    %v6133 = vpop.permute.xlu0 %6132
    %6136 = vset.pattern.permute.xlu0 0
    %6137 = vperm.xlu0 %6136, %v6107
    %v6138 = vpop.permute.xlu0 %6137
    %6141 = vset.pattern.permute.xlu0 0
    %6142 = vperm.xlu0 %6141, %v6108
    %v6143 = vpop.permute.xlu0 %6142
    %6146 = vset.pattern.permute.xlu0 0
    %6147 = vperm.xlu0 %6146, %v6109
    %v6148 = vpop.permute.xlu0 %6147
    %6151 = vset.pattern.permute.xlu0 0
    %6152 = vperm.xlu0 %6151, %v6110
    %v6153 = vpop.permute.xlu0 %6152
    %6156 = vset.pattern.permute.xlu0 0
    %6157 = vperm.xlu0 %6156, %v6111
    %v6158 = vpop.permute.xlu0 %6157
    %v6160 = vmul.f32 %v6112, %v6123
    %v6161 = vmul.f32 %v6113, %v6128
    %v6162 = vmul.f32 %v6114, %v6133
    %v6163 = vmul.f32 %v6115, %v6138
    %v6164 = vmul.f32 %v6116, %v6143
    %v6165 = vmul.f32 %v6117, %v6148
    %v6166 = vmul.f32 %v6118, %v6153
    %v6167 = vmul.f32 %v6119, %v6158
    %v6168 = vrot.slane %v6160, 4
    %v6169 = vadd.f32 %v6160, %v6168
    %v6170 = vrot.slane %v6169, 2
    %v6171 = vadd.f32 %v6169, %v6170
    %v6172 = vrot.slane %v6171, 1
    %v6173 = vadd.f32 %v6171, %v6172
    %v6174 = vrot.slane %v6161, 4
    %v6175 = vadd.f32 %v6161, %v6174
    %v6176 = vrot.slane %v6175, 2
    %v6177 = vadd.f32 %v6175, %v6176
    %v6178 = vrot.slane %v6177, 1
    %v6179 = vadd.f32 %v6177, %v6178
    %v6180 = vrot.slane %v6162, 4
    %v6181 = vadd.f32 %v6162, %v6180
    %v6182 = vrot.slane %v6181, 2
    %v6183 = vadd.f32 %v6181, %v6182
    %v6184 = vrot.slane %v6183, 1
    %v6185 = vadd.f32 %v6183, %v6184
    %v6186 = vrot.slane %v6163, 4
    %v6187 = vadd.f32 %v6163, %v6186
    %v6188 = vrot.slane %v6187, 2
    %v6189 = vadd.f32 %v6187, %v6188
    %v6190 = vrot.slane %v6189, 1
    %v6191 = vadd.f32 %v6189, %v6190
    %v6192 = vrot.slane %v6164, 4
    %v6193 = vadd.f32 %v6164, %v6192
    %v6194 = vrot.slane %v6193, 2
    %v6195 = vadd.f32 %v6193, %v6194
    %v6196 = vrot.slane %v6195, 1
    %v6197 = vadd.f32 %v6195, %v6196
    %v6198 = vrot.slane %v6165, 4
    %v6199 = vadd.f32 %v6165, %v6198
    %v6200 = vrot.slane %v6199, 2
    %v6201 = vadd.f32 %v6199, %v6200
    %v6202 = vrot.slane %v6201, 1
    %v6203 = vadd.f32 %v6201, %v6202
    %v6204 = vrot.slane %v6166, 4
    %v6205 = vadd.f32 %v6166, %v6204
    %v6206 = vrot.slane %v6205, 2
    %v6207 = vadd.f32 %v6205, %v6206
    %v6208 = vrot.slane %v6207, 1
    %v6209 = vadd.f32 %v6207, %v6208
    %v6210 = vrot.slane %v6167, 4
    %v6211 = vadd.f32 %v6167, %v6210
    %v6212 = vrot.slane %v6211, 2
    %v6213 = vadd.f32 %v6211, %v6212
    %v6214 = vrot.slane %v6213, 1
    %v6215 = vadd.f32 %v6213, %v6214
    %s6216 = scalar_lea.vmem [#allocation5], 128
    %v6217 = vld [vmem:[%s6216] sm:$0xff]
    %v6218 = vld [vmem:[%s6216 + $0x8] sm:$0xff]
    %v6219 = vld [vmem:[%s6216 + $0x10] sm:$0xff]
    %v6220 = vld [vmem:[%s6216 + $0x18] sm:$0xff]
    %v6221 = vpack.c.bf16 %v6173, %v6173
    %v6222 = vpack.c.bf16 %v6179, %v6179
    %v6223 = vpack.c.bf16 %v6185, %v6185
    %v6224 = vpack.c.bf16 %v6191, %v6191
    %v6225 = vpack.c.bf16 %v6197, %v6197
    %v6226 = vpack.c.bf16 %v6203, %v6203
    %v6227 = vpack.c.bf16 %v6209, %v6209
    %v6228 = vpack.c.bf16 %v6215, %v6215
    %v6229 = vld [vmem:[#allocation19] sm:$0xff]
    %v6230 = vld [vmem:[#allocation19 + $0x8] sm:$0xff]
    %v6231 = vld [vmem:[#allocation19 + $0x10] sm:$0xff]
    %v6232 = vld [vmem:[#allocation19 + $0x18] sm:$0xff]
    %v6233 = vld [vmem:[#allocation19 + $0x20] sm:$0xff]
    %v6234 = vld [vmem:[#allocation19 + $0x28] sm:$0xff]
    %v6235 = vld [vmem:[#allocation19 + $0x30] sm:$0xff]
    %v6236 = vld [vmem:[#allocation19 + $0x38] sm:$0xff]
    %v6237 = vld [vmem:[#allocation19 + $0x40] sm:$0xff]
    %v6238 = vld [vmem:[#allocation19 + $0x48] sm:$0xff]
    %v6239 = vld [vmem:[#allocation19 + $0x50] sm:$0xff]
    %v6240 = vld [vmem:[#allocation19 + $0x58] sm:$0xff]
    %v6241 = vld [vmem:[#allocation19 + $0x60] sm:$0xff]
    %v6242 = vld [vmem:[#allocation19 + $0x68] sm:$0xff]
    %v6243 = vld [vmem:[#allocation19 + $0x70] sm:$0xff]
    %v6244 = vld [vmem:[#allocation19 + $0x78] sm:$0xff]
    %v6245 = vld [vmem:[#allocation19 + $0x80] sm:$0xff]
    %v6246 = vld [vmem:[#allocation19 + $0x88] sm:$0xff]
    %v6247 = vld [vmem:[#allocation19 + $0x90] sm:$0xff]
    %v6248 = vld [vmem:[#allocation19 + $0x98] sm:$0xff]
    %v6249 = vld [vmem:[#allocation19 + $0xa0] sm:$0xff]
    %v6250 = vld [vmem:[#allocation19 + $0xa8] sm:$0xff]
    %v6251 = vld [vmem:[#allocation19 + $0xb0] sm:$0xff]
    %v6252 = vld [vmem:[#allocation19 + $0xb8] sm:$0xff]
    %v6253 = vld [vmem:[#allocation19 + $0xc0] sm:$0xff]
    %v6254 = vld [vmem:[#allocation19 + $0xc8] sm:$0xff]
    %v6255 = vld [vmem:[#allocation19 + $0xd0] sm:$0xff]
    %v6256 = vld [vmem:[#allocation19 + $0xd8] sm:$0xff]
    %v6257 = vld [vmem:[#allocation19 + $0xe0] sm:$0xff]
    %v6258 = vld [vmem:[#allocation19 + $0xe8] sm:$0xff]
    %v6259 = vld [vmem:[#allocation19 + $0xf0] sm:$0xff]
    %v6260 = vld [vmem:[#allocation19 + $0xf8] sm:$0xff]
    %v6269 = vunpack.c.l.b16 %v6221
    %v6270 = vunpack.c.l.b16 %v6222
    %v6271 = vunpack.c.l.b16 %v6223
    %v6272 = vunpack.c.l.b16 %v6224
    %v6273 = vunpack.c.l.b16 %v6225
    %v6274 = vunpack.c.l.b16 %v6226
    %v6275 = vunpack.c.l.b16 %v6227
    %v6276 = vunpack.c.l.b16 %v6228
    %v6277 = vsel %vm754, %v6270, %v6269
    %v6278 = vsel %vm756, %v6271, %v6277
    %v6279 = vsel %vm758, %v6272, %v6278
    %v6280 = vsel %vm760, %v6273, %v6279
    %v6281 = vsel %vm762, %v6274, %v6280
    %v6282 = vsel %vm764, %v6275, %v6281
    %v6283 = vsel %vm766, %v6276, %v6282
    %v6284 = vpack.c.b16 %v6283, %v6283
    %v6318 = vunpack.c.l.b16 %v6229
    %v6319 = vunpack.c.h.b16 %v6229
    %v6320 = vunpack.c.l.b16 %v6230
    %v6321 = vunpack.c.h.b16 %v6230
    %v6322 = vunpack.c.l.b16 %v6231
    %v6323 = vunpack.c.h.b16 %v6231
    %v6324 = vunpack.c.l.b16 %v6232
    %v6325 = vunpack.c.h.b16 %v6232
    %v6326 = vunpack.c.l.b16 %v6233
    %v6327 = vunpack.c.h.b16 %v6233
    %v6328 = vunpack.c.l.b16 %v6234
    %v6329 = vunpack.c.h.b16 %v6234
    %v6330 = vunpack.c.l.b16 %v6235
    %v6331 = vunpack.c.h.b16 %v6235
    %v6332 = vunpack.c.l.b16 %v6236
    %v6333 = vunpack.c.h.b16 %v6236
    %v6334 = vunpack.c.l.b16 %v6237
    %v6335 = vunpack.c.h.b16 %v6237
    %v6336 = vunpack.c.l.b16 %v6238
    %v6337 = vunpack.c.h.b16 %v6238
    %v6338 = vunpack.c.l.b16 %v6239
    %v6339 = vunpack.c.h.b16 %v6239
    %v6340 = vunpack.c.l.b16 %v6240
    %v6341 = vunpack.c.h.b16 %v6240
    %v6342 = vunpack.c.l.b16 %v6241
    %v6343 = vunpack.c.h.b16 %v6241
    %v6344 = vunpack.c.l.b16 %v6242
    %v6345 = vunpack.c.h.b16 %v6242
    %v6346 = vunpack.c.l.b16 %v6243
    %v6347 = vunpack.c.h.b16 %v6243
    %v6348 = vunpack.c.l.b16 %v6244
    %v6349 = vunpack.c.h.b16 %v6244
    %v6350 = vunpack.c.l.b16 %v6245
    %v6351 = vunpack.c.h.b16 %v6245
    %v6352 = vunpack.c.l.b16 %v6246
    %v6353 = vunpack.c.h.b16 %v6246
    %v6354 = vunpack.c.l.b16 %v6247
    %v6355 = vunpack.c.h.b16 %v6247
    %v6356 = vunpack.c.l.b16 %v6248
    %v6357 = vunpack.c.h.b16 %v6248
    %v6358 = vunpack.c.l.b16 %v6249
    %v6359 = vunpack.c.h.b16 %v6249
    %v6360 = vunpack.c.l.b16 %v6250
    %v6361 = vunpack.c.h.b16 %v6250
    %v6362 = vunpack.c.l.b16 %v6251
    %v6363 = vunpack.c.h.b16 %v6251
    %v6364 = vunpack.c.l.b16 %v6252
    %v6365 = vunpack.c.h.b16 %v6252
    %v6366 = vunpack.c.l.b16 %v6253
    %v6367 = vunpack.c.h.b16 %v6253
    %v6368 = vunpack.c.l.b16 %v6254
    %v6369 = vunpack.c.h.b16 %v6254
    %v6370 = vunpack.c.l.b16 %v6255
    %v6371 = vunpack.c.h.b16 %v6255
    %v6372 = vunpack.c.l.b16 %v6256
    %v6373 = vunpack.c.h.b16 %v6256
    %v6374 = vunpack.c.l.b16 %v6257
    %v6375 = vunpack.c.h.b16 %v6257
    %v6376 = vunpack.c.l.b16 %v6258
    %v6377 = vunpack.c.h.b16 %v6258
    %v6378 = vunpack.c.l.b16 %v6259
    %v6379 = vunpack.c.h.b16 %v6259
    %v6380 = vunpack.c.l.b16 %v6260
    %v6381 = vunpack.c.h.b16 %v6260
    %v6382 = vpack.c.b16 %v6322, %v6318
    %v6383 = vpack.c.b16 %v6323, %v6319
    %v6384 = vpack.c.b16 %v6324, %v6320
    %v6385 = vpack.c.b16 %v6325, %v6321
    %v6386 = vpack.c.b16 %v6330, %v6326
    %v6387 = vpack.c.b16 %v6331, %v6327
    %v6388 = vpack.c.b16 %v6332, %v6328
    %v6389 = vpack.c.b16 %v6333, %v6329
    %v6390 = vpack.c.b16 %v6338, %v6334
    %v6391 = vpack.c.b16 %v6339, %v6335
    %v6392 = vpack.c.b16 %v6340, %v6336
    %v6393 = vpack.c.b16 %v6341, %v6337
    %v6394 = vpack.c.b16 %v6346, %v6342
    %v6395 = vpack.c.b16 %v6347, %v6343
    %v6396 = vpack.c.b16 %v6348, %v6344
    %v6397 = vpack.c.b16 %v6349, %v6345
    %v6398 = vpack.c.b16 %v6354, %v6350
    %v6399 = vpack.c.b16 %v6355, %v6351
    %v6400 = vpack.c.b16 %v6356, %v6352
    %v6401 = vpack.c.b16 %v6357, %v6353
    %v6402 = vpack.c.b16 %v6362, %v6358
    %v6403 = vpack.c.b16 %v6363, %v6359
    %v6404 = vpack.c.b16 %v6364, %v6360
    %v6405 = vpack.c.b16 %v6365, %v6361
    %v6406 = vpack.c.b16 %v6370, %v6366
    %v6407 = vpack.c.b16 %v6371, %v6367
    %v6408 = vpack.c.b16 %v6372, %v6368
    %v6409 = vpack.c.b16 %v6373, %v6369
    %v6410 = vpack.c.b16 %v6378, %v6374
    %v6411 = vpack.c.b16 %v6379, %v6375
    %v6412 = vpack.c.b16 %v6380, %v6376
    %v6413 = vpack.c.b16 %v6381, %v6377
    %6446 = vmatprep.subr.bf16.mxu0 %v6383
    %6447 = vmatpush1.bf16.msra.mxu0 %v6382
    %6448 = vmatprep.subr.bf16.mxu0 %v6387
    %6449 = vmatpush1.bf16.msra.mxu0 %v6386
    %6450 = vmatprep.subr.bf16.mxu0 %v6391
    %6451 = vmatpush1.bf16.msra.mxu0 %v6390
    %6452 = vmatprep.subr.bf16.mxu0 %v6395
    %6453 = vmatpush1.bf16.msra.mxu0 %v6394
    %6454 = vmatprep.subr.bf16.mxu0 %v6399
    %6455 = vmatpush1.bf16.msra.mxu0 %v6398
    %6456 = vmatprep.subr.bf16.mxu0 %v6403
    %6457 = vmatpush1.bf16.msra.mxu0 %v6402
    %6458 = vmatprep.subr.bf16.mxu0 %v6407
    %6459 = vmatpush1.bf16.msra.mxu0 %v6406
    %6460 = vmatprep.subr.bf16.mxu0 %v6411
    %6461 = vmatpush1.bf16.msra.mxu0 %v6410
    %6462 = vmatprep.subr.bf16.mxu0 0
    %6463 = vmatpush1.bf16.msra.mxu0 0
    %6464 = vmatprep.subr.bf16.mxu0 0
    %6465 = vmatpush1.bf16.msra.mxu0 0
    %6466 = vmatprep.subr.bf16.mxu0 0
    %6467 = vmatpush1.bf16.msra.mxu0 0
    %6468 = vmatprep.subr.bf16.mxu0 0
    %6469 = vmatpush1.bf16.msra.mxu0 0
    %6470 = vmatprep.subr.bf16.mxu0 0
    %6471 = vmatpush1.bf16.msra.mxu0 0
    %6472 = vmatprep.subr.bf16.mxu0 0
    %6473 = vmatpush1.bf16.msra.mxu0 0
    %6474 = vmatprep.subr.bf16.mxu0 0
    %6475 = vmatpush1.bf16.msra.mxu0 0
    %6476 = vmatprep.subr.bf16.mxu0 0
    %6477 = vmatpush1.bf16.msra.mxu0 0
    %6478 = vmatprep.mubr.bf16.mxu0 0
    %6479 = vmatmul.mubr.bf16.gmra.mrb[0].mxu0 %v6284
    %v6480 = vpop.f32.mrb[0].mxu0
    %v6481 = vadd.f32 0.0, %v6480
    %v6482 = vpop.f32.mrb[0].mxu0
    %v6483 = vadd.f32 0.0, %v6482
    %v6484 = vpop.f32.mrb[0].mxu0
    %v6485 = vpop.f32.mrb[0].mxu0
    %6486 = vdwg.mxu0
    %6487 = vmatprep.subr.bf16.mxu0 %v6385
    %6488 = vmatpush1.bf16.msra.mxu0 %v6384
    %6489 = vmatprep.subr.bf16.mxu0 %v6389
    %6490 = vmatpush1.bf16.msra.mxu0 %v6388
    %6491 = vmatprep.subr.bf16.mxu0 %v6393
    %6492 = vmatpush1.bf16.msra.mxu0 %v6392
    %6493 = vmatprep.subr.bf16.mxu0 %v6397
    %6494 = vmatpush1.bf16.msra.mxu0 %v6396
    %6495 = vmatprep.subr.bf16.mxu0 %v6401
    %6496 = vmatpush1.bf16.msra.mxu0 %v6400
    %6497 = vmatprep.subr.bf16.mxu0 %v6405
    %6498 = vmatpush1.bf16.msra.mxu0 %v6404
    %6499 = vmatprep.subr.bf16.mxu0 %v6409
    %6500 = vmatpush1.bf16.msra.mxu0 %v6408
    %6501 = vmatprep.subr.bf16.mxu0 %v6413
    %6502 = vmatpush1.bf16.msra.mxu0 %v6412
    %6503 = vmatprep.subr.bf16.mxu0 0
    %6504 = vmatpush1.bf16.msra.mxu0 0
    %6505 = vmatprep.subr.bf16.mxu0 0
    %6506 = vmatpush1.bf16.msra.mxu0 0
    %6507 = vmatprep.subr.bf16.mxu0 0
    %6508 = vmatpush1.bf16.msra.mxu0 0
    %6509 = vmatprep.subr.bf16.mxu0 0
    %6510 = vmatpush1.bf16.msra.mxu0 0
    %6511 = vmatprep.subr.bf16.mxu0 0
    %6512 = vmatpush1.bf16.msra.mxu0 0
    %6513 = vmatprep.subr.bf16.mxu0 0
    %6514 = vmatpush1.bf16.msra.mxu0 0
    %6515 = vmatprep.subr.bf16.mxu0 0
    %6516 = vmatpush1.bf16.msra.mxu0 0
    %6517 = vmatprep.subr.bf16.mxu0 0
    %6518 = vmatpush1.bf16.msra.mxu0 0
    %6519 = vmatprep.mubr.bf16.mxu0 0
    %6520 = vmatmul.mubr.bf16.gmra.mrb[0].mxu0 %v6284
    %v6521 = vpop.f32.mrb[0].mxu0
    %v6522 = vadd.f32 0.0, %v6521
    %v6523 = vpop.f32.mrb[0].mxu0
    %v6524 = vadd.f32 0.0, %v6523
    %v6525 = vpop.f32.mrb[0].mxu0
    %v6526 = vpop.f32.mrb[0].mxu0
    %6527 = vdwg.mxu0
    %v6528 = vadd.f32 %v6217, %v6481
    %v6529 = vadd.f32 %v6218, %v6483
    %v6530 = vadd.f32 %v6219, %v6522
    %v6531 = vadd.f32 %v6220, %v6524
    %v6532 = vadd.f32 %v6528, %v5615
    %v6533 = vadd.f32 %v6529, %v5654
    %v6534 = vadd.f32 %v6530, %v5656
    %v6535 = vadd.f32 %v6531, %v5695
    %v6536 = vxor.u32 %v6532, 2147483648
    %v6537 = vmul.f32 %v6536, 1.442695
    %v6538 = vpow.pop %v6537
    %v6539 = vadd.f32 %v6538, 1.0
    %v6540 = vrcp.pop %v6539
    %v6541 = vmul.f32 1.0, %v6540
    %v6542 = vxor.u32 %v6533, 2147483648
    %v6543 = vmul.f32 %v6542, 1.442695
    %v6544 = vpow.pop %v6543
    %v6545 = vadd.f32 %v6544, 1.0
    %v6546 = vrcp.pop %v6545
    %v6547 = vmul.f32 1.0, %v6546
    %v6548 = vtanh.pop %v6534
    %v6549 = vxor.u32 %v6535, 2147483648
    %v6550 = vmul.f32 %v6549, 1.442695
    %v6551 = vpow.pop %v6550
    %v6552 = vadd.f32 %v6551, 1.0
    %v6553 = vrcp.pop %v6552
    %v6554 = vmul.f32 1.0, %v6553
    %v6555 = vmul.f32 %v6547, %v5320
    %v6556 = vmul.f32 %v6541, %v6548
    %v6557 = vadd.f32 %v6555, %v6556
    %v6558 = vtanh.pop %v6557
    %v6559 = vmul.f32 %v6554, %v6558
    %6560 = vst [vmem:[#allocation2] sm:$0xff] %v6559
    %6561 = vst [vmem:[#allocation3] sm:$0xff] %v6557
    %v6562 = vpack.c.bf16 %v6559, %v6559
    %s6563 = scalar_lea.vmem [#allocation20], 16
    %6564 = vst [vmem:[%s6563] sm:$0xf] %v6562
    %v6565 = vlaneseq
    %v6566 = vshrl.u32 %v6565, 7
    %v6567 = vsub.s32 %v721, %v6566
    %v6568 = vrot.slane %v6123, %v6567
    %v6569 = vlaneseq
    %v6570 = vshrl.u32 %v6569, 7
    %v6571 = vsub.s32 %v721, %v6570
    %v6572 = vrot.slane %v6128, %v6571
    %v6573 = vlaneseq
    %v6574 = vshrl.u32 %v6573, 7
    %v6575 = vsub.s32 %v721, %v6574
    %v6576 = vrot.slane %v6133, %v6575
    %v6577 = vlaneseq
    %v6578 = vshrl.u32 %v6577, 7
    %v6579 = vsub.s32 %v721, %v6578
    %v6580 = vrot.slane %v6138, %v6579
    %v6581 = vlaneseq
    %v6582 = vshrl.u32 %v6581, 7
    %v6583 = vsub.s32 %v721, %v6582
    %v6584 = vrot.slane %v6143, %v6583
    %v6585 = vlaneseq
    %v6586 = vshrl.u32 %v6585, 7
    %v6587 = vsub.s32 %v721, %v6586
    %v6588 = vrot.slane %v6148, %v6587
    %v6589 = vlaneseq
    %v6590 = vshrl.u32 %v6589, 7
    %v6591 = vsub.s32 %v721, %v6590
    %v6592 = vrot.slane %v6153, %v6591
    %v6593 = vlaneseq
    %v6594 = vshrl.u32 %v6593, 7
    %v6595 = vsub.s32 %v721, %v6594
    %v6596 = vrot.slane %v6158, %v6595
    %v6597 = vsel %vm754, %v6572, %v6568
    %v6598 = vsel %vm756, %v6576, %v6597
    %v6599 = vsel %vm758, %v6580, %v6598
    %v6600 = vsel %vm760, %v6584, %v6599
    %v6601 = vsel %vm762, %v6588, %v6600
    %v6602 = vsel %vm764, %v6592, %v6601
    %v6603 = vsel %vm766, %v6596, %v6602
    %s6605 = scalar_lea.vmem [#allocation21], 32
    %6606 = vst.msk [vmem:[%s6605] sm:$0xff] %vm769, %v6603
    // Predicated region
    $region78: #{decoder_forward.2} parent=1 // pred_check
      _
    $region79: #{decoder_forward.2} parent=1 // pred_check_branch
      %6608 = sbr.rel (0) target = $region81
    $region80: #{decoder_forward.2} parent=1 // pred_region
      %s6610 = ssub.s32 320, 320
      %6611 = vsyncadd [#allocation7], %s6610
      %s6612 = sshll.u32 [#allocation20], 4
      %s6613 = int_to_ptr.vmem [resolvable:$true] %s6612
      %6618 = dma.vmem_to_hbm [thread:$0]  %s6613, 320, %s10, [#allocation7], 64, 64, 4
    $region81: #{decoder_forward.2} parent=1 // pred_fallthru
      _
    // Predicated region
    $region82: #{decoder_forward.2} parent=1 // pred_check
      _
    $region83: #{decoder_forward.2} parent=1 // pred_check_branch
      %6620 = sbr.rel (0) target = $region85
    $region84: #{decoder_forward.2} parent=1 // pred_region
      %s6622 = ssub.s32 640, 640
      %6623 = vsyncadd [#allocation22], %s6622
      %s6624 = sshll.u32 [#allocation21], 4
      %s6625 = int_to_ptr.vmem [resolvable:$true] %s6624
      %6630 = dma.vmem_to_hbm [thread:$0]  %s6625, 640, %s11, [#allocation22], 128, 128, 8
    $region85: #{decoder_forward.2} parent=1 // pred_fallthru
      _
    // Predicated region
    $region86: #{decoder_forward.2} parent=1 // pred_check
      _
    $region87: #{decoder_forward.2} parent=1 // pred_check_branch
      %6632 = sbr.rel (0) target = $region89
    $region88: #{decoder_forward.2} parent=1 // pred_region
      %6633 = dma.done [#allocation7], 320
    $region89: #{decoder_forward.2} parent=1 // pred_fallthru
      _
    // Predicated region
    $region90: #{decoder_forward.2} parent=1 // pred_check
      _
    $region91: #{decoder_forward.2} parent=1 // pred_check_branch
      %6635 = sbr.rel (0) target = $region93
    $region92: #{decoder_forward.2} parent=1 // pred_region
      %6636 = dma.done [#allocation22], 640
    $region93: #{decoder_forward.2} parent=1 // pred_fallthru
      _
    %6637 = vsyncpa [#allocation6], 1
    %6638 = vsyncpa [#allocation9], 1
    %6639 = vsyncpa [#allocation12], 1
    %6640 = vsyncpa [#allocation15], 1
    %6641 = vsyncpa [#allocation18], 1
    %6642 = vsyncpa [#allocation7], 1
    %6643 = vsyncpa [#allocation22], 1

</llo_original>
